<compile_context>
chip_gen: v7x
topology: tpu7x:2x2x1
jax: 0.10.0
libtpu: 0.0.40
codegen_flags: <defaults>
</compile_context>

<pallas_src>
from functools import partial

import numpy as np
import jax
import jax.numpy as jnp
from jax.experimental import pallas as pl
from jax.experimental.pallas import tpu as pltpu

# MXU operand dtype (accumulation is always f32).  bf16 ~2x MXU rate on v5e/v6e/v7x and halves
# weight/activation DMA bytes.  Set both to jnp.float32 for exact reference-numerics parity.
MATMUL_DTYPE = jnp.bfloat16
ACT_DTYPE = jnp.bfloat16          # storage dtype for non-residual inter-kernel activations


# ------------------------------- small helpers --------------------------------

def _cparams(dims):
    return pltpu.CompilerParams(dimension_semantics=dims)


def _row_tile(M, row_bytes, budget=8 << 20, cap=1024):
    # Largest multiple-of-16 (bf16 sublane pack) divisor of M whose double-buffered row blocks
    # stay within a small VMEM byte budget (safe on v7x's 64 MiB).  Falls back to multiples of 8,
    # then to the full extent (full-extent blocks are always legal).
    if M <= 8:
        return M
    limit = int(min(cap, max(8, budget // max(int(row_bytes), 1))))
    best16, best8 = None, None
    d = 8
    while d <= min(M, limit):
        if M % d == 0:
            best8 = d
            if d % 16 == 0:
                best16 = d
        d += 8
    if best16 is not None:
        return best16
    if best8 is not None:
        return best8
    return M   # TODO(synk): awkward M (no 8-aligned divisor) falls back to an untiled block.


def _pick_group(nWB, max_rows=512):
    # Windows batched per attention grid step: multiple-of-8 divisor of nWB (sublane aligned),
    # preferring >=2 groups per (branch, head) so the pipeline has steps to overlap DMA.
    best, best_multi = None, None
    d = 8
    while d <= min(nWB, max_rows):
        if nWB % d == 0:
            best = d
            if nWB // d >= 2:
                best_multi = d
        d += 8
    if best_multi is not None:
        return best_multi
    if best is not None:
        return best
    return nWB   # full extent is always a legal block


def _ln_f32(x, g, b, eps=1e-5):
    mu = jnp.mean(x, axis=-1, keepdims=True)
    xc = x - mu
    var = jnp.mean(xc * xc, axis=-1, keepdims=True)
    return xc * jax.lax.rsqrt(var + eps) * g + b


_INV_SQRT2 = 0.7071067811865476


def _gelu_exact(x):
    return 0.5 * x * (1.0 + jax.lax.erf(x * _INV_SQRT2))


# ------------------------------- Pallas kernels --------------------------------

def _ln_matmul_kernel(x_ref, g_ref, b_ref, w_ref, o_ref):
    # o = LN(x) @ W           (fused norm1 -> qkv; qkv_bias=False so no bias DMA/add)
    xn = _ln_f32(x_ref[...].astype(jnp.float32), g_ref[...], b_ref[...])
    acc = jnp.dot(xn.astype(w_ref.dtype), w_ref[...], preferred_element_type=jnp.float32)
    o_ref[...] = acc.astype(o_ref.dtype)


def _ln_matmul_bias_kernel(x_ref, g_ref, b_ref, w_ref, wb_ref, o_ref):
    # o = LN(x) @ W + b       (fused norm2 -> fc1 on the no-erf fallback path)
    xn = _ln_f32(x_ref[...].astype(jnp.float32), g_ref[...], b_ref[...])
    acc = jnp.dot(xn.astype(w_ref.dtype), w_ref[...], preferred_element_type=jnp.float32)
    o_ref[...] = (acc + wb_ref[...]).astype(o_ref.dtype)


def _ln_fc1_gelu_gate_kernel(x_ref, g1_ref, b1_ref, w_ref, wb_ref, g2_ref, b2_ref,
                             x1_ref, x2_ref):
    # Fused MLP front end: LN2 -> fc1 -> exact GELU -> chunk (128-lane aligned) -> Gate-LN(x2).
    xn = _ln_f32(x_ref[...].astype(jnp.float32), g1_ref[...], b1_ref[...])
    h = jnp.dot(xn.astype(w_ref.dtype), w_ref[...], preferred_element_type=jnp.float32)
    h = _gelu_exact(h + wb_ref[...])
    h2 = h.shape[-1] // 2
    x1_ref[...] = h[:, :h2].astype(x1_ref.dtype)
    x2_ref[...] = _ln_f32(h[:, h2:], g2_ref[...], b2_ref[...]).astype(x2_ref.dtype)


def _proj_residual_kernel(a_ref, l_ref, res_ref, w_ref, b_ref, o_ref):
    # o = res + (attened + lcm) @ W_proj + b_proj      (residual fused into the epilogue)
    s = a_ref[...].astype(jnp.float32) + l_ref[...].astype(jnp.float32)
    acc = jnp.dot(s.astype(w_ref.dtype), w_ref[...], preferred_element_type=jnp.float32)
    o_ref[...] = (res_ref[...].astype(jnp.float32) + acc + b_ref[...]).astype(o_ref.dtype)


def _fc2_gate_final_kernel(x1_ref, x2_ref, xs_ref, x0_ref, gam_ref, w_ref, b_ref, o_ref):
    # o = xs + (x1 * x2) @ W_fc2 + b_fc2 + x0 * gamma   (Gate mult + residual + LayerScale fused)
    g = x1_ref[...].astype(jnp.float32) * x2_ref[...].astype(jnp.float32)
    acc = jnp.dot(g.astype(w_ref.dtype), w_ref[...], preferred_element_type=jnp.float32)
    out = (xs_ref[...].astype(jnp.float32) + acc + b_ref[...]
           + x0_ref[...].astype(jnp.float32) * gam_ref[...])
    o_ref[...] = out.astype(o_ref.dtype)


def _attn_kernel(q_ref, k_ref, v_ref, bias_ref, o_ref, *, n_tok, scale):
    # One (branch*head, window-group) step.
    #   lane-dense blocks: (1, GW, N*hd) -> split into (GW, N, hd) in-kernel (VMEM-local)
    #   fallback blocks  : (1, GW, N, hd) used directly
    q = q_ref[0].astype(jnp.float32)
    k = k_ref[0].astype(jnp.float32)
    v = v_ref[0].astype(jnp.float32)
    lane_dense = q.ndim == 2
    if lane_dense:
        gw, d = q.shape
        hd = d // n_tok
        q = q.reshape(gw, n_tok, hd)
        k = k.reshape(gw, n_tok, hd)
        v = v.reshape(gw, n_tok, hd)
    s = jax.lax.dot_general(q.astype(MATMUL_DTYPE), k.astype(MATMUL_DTYPE),
                            (((2,), (2,)), ((0,), (0,))),
                            preferred_element_type=jnp.float32)
    s = s * scale + bias_ref[...]                    # (1, N, N) broadcasts over the GW windows
    s = s - jnp.max(s, axis=-1, keepdims=True)
    e = jnp.exp(s)
    p = e / jnp.sum(e, axis=-1, keepdims=True)       # exact divide (reference softmax parity)
    o = jax.lax.dot_general(p.astype(MATMUL_DTYPE), v.astype(MATMUL_DTYPE),
                            (((2,), (1,)), ((0,), (0,))),
                            preferred_element_type=jnp.float32)
    if lane_dense:
        o = o.reshape(o.shape[0], n_tok * o.shape[-1])
    o_ref[0] = o.astype(o_ref.dtype)


def _dwconv_tail(x, w_ref, b_ref, o_ref, xp_ref):
    # Depthwise 3x3, stride 1, padding 1.  Interior copied into the VMEM halo scratch; the
    # 1-pixel zero border is written only on the first grid step (scratch persists).
    H, W, C = x.shape

    @pl.when(pl.program_id(0) == 0)
    def _zero_border():
        zrow = jnp.zeros((1, W + 2, C), jnp.float32)
        zcol = jnp.zeros((H, 1, C), jnp.float32)
        xp_ref[0:1, :, :] = zrow
        xp_ref[H + 1:H + 2, :, :] = zrow
        xp_ref[1:H + 1, 0:1, :] = zcol
        xp_ref[1:H + 1, W + 1:W + 2, :] = zcol

    xp_ref[1:H + 1, 1:W + 1, :] = x
    xp = xp_ref[...]
    w = w_ref[...].astype(jnp.float32)
    acc = jnp.zeros((H, W, C), jnp.float32)
    for ki in range(3):
        for kj in range(3):
            acc = acc + xp[ki:ki + H, kj:kj + W, :] * w[ki, kj][None, None, :]
    o_ref[0] = (acc + b_ref[...].reshape(1, 1, C)).astype(o_ref.dtype)


def _dwconv3x3_kernel(x_ref, w_ref, b_ref, o_ref, xp_ref):
    _dwconv_tail(x_ref[0].astype(jnp.float32), w_ref, b_ref, o_ref, xp_ref)


def _dwconv3x3_ln_kernel(x_ref, g_ref, bln_ref, w_ref, b_ref, o_ref, xp_ref):
    # Gate path (fallback): channel LayerNorm fused into the conv prologue.
    x = _ln_f32(x_ref[0].astype(jnp.float32), g_ref[...], bln_ref[...])
    _dwconv_tail(x, w_ref, b_ref, o_ref, xp_ref)


# ------------------------------- Pallas wrappers -------------------------------

def ln_matmul_pallas(x, g, b, w, bias=None, out_dtype=None):
    M, K = x.shape
    N = w.shape[1]
    if out_dtype is None:
        out_dtype = x.dtype
    row_bytes = K * x.dtype.itemsize + N * np.dtype(out_dtype).itemsize
    TM = _row_tile(M, row_bytes)
    row2 = lambda i: (i, 0)
    full2 = lambda i: (0, 0)
    x_spec = pl.BlockSpec((TM, K), row2)
    gk_spec = pl.BlockSpec((1, K), full2)
    w_spec = pl.BlockSpec((K, N), full2)
    out_spec = pl.BlockSpec((TM, N), row2)
    if bias is None:
        return pl.pallas_call(
            _ln_matmul_kernel,
            out_shape=jax.ShapeDtypeStruct((M, N), out_dtype),
            grid=(M // TM,),
            in_specs=[x_spec, gk_spec, gk_spec, w_spec],
            out_specs=out_spec,
            compiler_params=_cparams(("parallel",)),
        )(x, g.reshape(1, K), b.reshape(1, K), w)
    return pl.pallas_call(
        _ln_matmul_bias_kernel,
        out_shape=jax.ShapeDtypeStruct((M, N), out_dtype),
        grid=(M // TM,),
        in_specs=[x_spec, gk_spec, gk_spec, w_spec, pl.BlockSpec((1, N), full2)],
        out_specs=out_spec,
        compiler_params=_cparams(("parallel",)),
    )(x, g.reshape(1, K), b.reshape(1, K), w, bias.reshape(1, N))


def ln_fc1_gelu_gate_pallas(x, g1, b1, w, wb, g2, b2):
    M, K = x.shape
    Nh = w.shape[1]
    h2 = Nh // 2
    row_bytes = K * 4 + Nh * np.dtype(ACT_DTYPE).itemsize
    TM = _row_tile(M, row_bytes)
    row2 = lambda i: (i, 0)
    full2 = lambda i: (0, 0)
    out_half = pl.BlockSpec((TM, h2), row2)
    return pl.pallas_call(
        _ln_fc1_gelu_gate_kernel,
        out_shape=(jax.ShapeDtypeStruct((M, h2), ACT_DTYPE),
                   jax.ShapeDtypeStruct((M, h2), ACT_DTYPE)),
        grid=(M // TM,),
        in_specs=[pl.BlockSpec((TM, K), row2),
                  pl.BlockSpec((1, K), full2),
                  pl.BlockSpec((1, K), full2),
                  pl.BlockSpec((K, Nh), full2),
                  pl.BlockSpec((1, Nh), full2),
                  pl.BlockSpec((1, h2), full2),
                  pl.BlockSpec((1, h2), full2)],
        out_specs=(out_half, out_half),
        compiler_params=_cparams(("parallel",)),
    )(x, g1.reshape(1, K), b1.reshape(1, K), w, wb.reshape(1, Nh),
      g2.reshape(1, h2), b2.reshape(1, h2))


def proj_residual_pallas(attened, lcm, res, w, b):
    M, K = attened.shape
    N = w.shape[1]
    row_bytes = K * (attened.dtype.itemsize + lcm.dtype.itemsize) + N * (res.dtype.itemsize + 4)
    TM = _row_tile(M, row_bytes)
    row2 = lambda i: (i, 0)
    full2 = lambda i: (0, 0)
    return pl.pallas_call(
        _proj_residual_kernel,
        out_shape=jax.ShapeDtypeStruct((M, N), jnp.float32),
        grid=(M // TM,),
        in_specs=[pl.BlockSpec((TM, K), row2),
                  pl.BlockSpec((TM, K), row2),
                  pl.BlockSpec((TM, N), row2),
                  pl.BlockSpec((K, N), full2),
                  pl.BlockSpec((1, N), full2)],
        out_specs=pl.BlockSpec((TM, N), row2),
        compiler_params=_cparams(("parallel",)),
    )(attened, lcm, res, w, b.reshape(1, N))


def fc2_gate_final_pallas(x1, x2, xs, x0, gamma, w, b):
    M, K = x1.shape
    N = w.shape[1]
    row_bytes = K * (x1.dtype.itemsize + x2.dtype.itemsize) + N * 12
    TM = _row_tile(M, row_bytes)
    row2 = lambda i: (i, 0)
    full2 = lambda i: (0, 0)
    return pl.pallas_call(
        _fc2_gate_final_kernel,
        out_shape=jax.ShapeDtypeStruct((M, N), jnp.float32),
        grid=(M // TM,),
        in_specs=[pl.BlockSpec((TM, K), row2),
                  pl.BlockSpec((TM, K), row2),
                  pl.BlockSpec((TM, N), row2),
                  pl.BlockSpec((TM, N), row2),
                  pl.BlockSpec((1, N), full2),
                  pl.BlockSpec((K, N), full2),
                  pl.BlockSpec((1, N), full2)],
        out_specs=pl.BlockSpec((TM, N), row2),
        compiler_params=_cparams(("parallel",)),
    )(x1, x2, xs, x0, gamma.reshape(1, N), w, b.reshape(1, N))


def attn_pallas(q, k, v, bias, scale, n_tok, lane_dense):
    # q/k/v: (TH, nWB, N*hd) lane-dense, both branches stacked on the head axis.
    # bias : (TH, N, N) precomputed DynamicPosBias table, selected per head via index_map.
    TH, nWB, D = q.shape
    hd = D // n_tok
    GW = _pick_group(nWB)
    grid = (TH, nWB // GW)
    bias_spec = pl.BlockSpec((1, n_tok, n_tok), lambda h, g: (h, 0, 0))
    if lane_dense:
        qkv_spec = pl.BlockSpec((1, GW, D), lambda h, g: (h, g, 0))
        out = pl.pallas_call(
            partial(_attn_kernel, n_tok=n_tok, scale=scale),
            out_shape=jax.ShapeDtypeStruct((TH, nWB, D), q.dtype),
            grid=grid,
            in_specs=[qkv_spec, qkv_spec, qkv_spec, bias_spec],
            out_specs=pl.BlockSpec((1, GW, D), lambda h, g: (h, g, 0)),
            compiler_params=_cparams(("parallel", "parallel")),
        )(q, k, v, bias)
        return out
    # Fallback: lane-sparse (1, GW, N, hd) blocks (previous layout) if the in-kernel lane split
    # does not lower on this jax/Mosaic version.
    q4 = q.reshape(TH, nWB, n_tok, hd)
    k4 = k.reshape(TH, nWB, n_tok, hd)
    v4 = v.reshape(TH, nWB, n_tok, hd)
    qkv_spec = pl.BlockSpec((1, GW, n_tok, hd), lambda h, g: (h, g, 0, 0))
    out = pl.pallas_call(
        partial(_attn_kernel, n_tok=n_tok, scale=scale),
        out_shape=jax.ShapeDtypeStruct((TH, nWB, n_tok, hd), q.dtype),
        grid=grid,
        in_specs=[qkv_spec, qkv_spec, qkv_spec, bias_spec],
        out_specs=pl.BlockSpec((1, GW, n_tok, hd), lambda h, g: (h, g, 0, 0)),
        compiler_params=_cparams(("parallel", "parallel")),
    )(q4, k4, v4, bias)
    return out.reshape(TH, nWB, D)


def dwconv3x3_pallas(x_nhwc, w, b, out_dtype, ln_g=None, ln_b=None):
    # TODO(synk): for v7x at production resolutions, tile the grid over row strips (with halo
    # exchange) instead of whole images so double-buffered blocks stay inside 64 MiB VMEM.
    B, H, W, C = x_nhwc.shape
    img_spec = pl.BlockSpec((1, H, W, C), lambda bi: (bi, 0, 0, 0))
    w_spec = pl.BlockSpec((3, 3, C), lambda bi: (0, 0, 0))
    vec_spec = pl.BlockSpec((1, C), lambda bi: (0, 0))
    scratch = [pltpu.VMEM((H + 2, W + 2, C), jnp.float32)]
    out_shape = jax.ShapeDtypeStruct((B, H, W, C), out_dtype)
    if ln_g is None:
        return pl.pallas_call(
            _dwconv3x3_kernel,
            out_shape=out_shape,
            grid=(B,),
            in_specs=[img_spec, w_spec, vec_spec],
            out_specs=img_spec,
            scratch_shapes=scratch,
            compiler_params=_cparams(("parallel",)),
        )(x_nhwc, w, b.reshape(1, C))
    return pl.pallas_call(
        _dwconv3x3_ln_kernel,
        out_shape=out_shape,
        grid=(B,),
        in_specs=[img_spec, vec_spec, vec_spec, w_spec, vec_spec],
        out_specs=img_spec,
        scratch_shapes=scratch,
        compiler_params=_cparams(("parallel",)),
    )(x_nhwc, ln_g.reshape(1, C), ln_b.reshape(1, C), w, b.reshape(1, C))


# ------------------------------- startup probes --------------------------------

def _probe_ok(fn):
    try:
        jax.block_until_ready(fn())
        return True
    except Exception:
        return False


def _erf_supported():
    # Exact-erf GELU is fused into the fc1 kernel only if Mosaic lowers lax.erf.
    def k(x_ref, o_ref):
        o_ref[...] = jax.lax.erf(x_ref[...])
    return _probe_ok(lambda: pl.pallas_call(
        k, out_shape=jax.ShapeDtypeStruct((8, 128), jnp.float32))(jnp.zeros((8, 128), jnp.float32)))


def _lane_dense_attn_supported(n_tok, hd):
    # Probe the lane-dense attention layout (in-kernel (GW,128)->(GW,N,hd) split).
    d = n_tok * hd
    q = jnp.zeros((1, 8, d), ACT_DTYPE)
    bias = jnp.zeros((1, n_tok, n_tok), jnp.float32)
    return _probe_ok(lambda: attn_pallas(q, q, q, bias, 1.0, n_tok, lane_dense=True))


# -------------------------------- model pieces ---------------------------------

def _make_rpe(H_sp, W_sp):
    ph = np.arange(1 - H_sp, H_sp)
    pw = np.arange(1 - W_sp, W_sp)
    biases = np.stack(np.meshgrid(ph, pw, indexing="ij"))
    biases = biases.reshape(2, -1).T.astype(np.float32)            # (num_pos, 2)
    coords = np.stack(np.meshgrid(np.arange(H_sp), np.arange(W_sp), indexing="ij"))
    cf = coords.reshape(2, -1)
    rel = (cf[:, :, None] - cf[:, None, :]).transpose(1, 2, 0).astype(np.int32)
    rel[:, :, 0] += H_sp - 1
    rel[:, :, 1] += W_sp - 1
    rel[:, :, 0] *= 2 * W_sp - 1
    rpi = rel.sum(-1).astype(np.int32)                             # (N, N)
    return biases, rpi


def _pos_bias_table(H_sp, W_sp, heads, pos_dim, key):
    # DynamicPosBias (residual=False) is input-independent: evaluated ONCE at init and kept as a
    # compact (heads, N, N) table that the attention kernel indexes per head.
    biases, rpi = _make_rpe(H_sp, W_sp)
    ks = jax.random.split(key, 4)

    def Wp(k, shape):
        return 0.02 * jax.random.normal(k, shape, jnp.float32)

    x = jnp.asarray(biases) @ Wp(ks[0], (2, pos_dim))
    x = jax.nn.relu(_ln_f32(x, 1.0, 0.0)) @ Wp(ks[1], (pos_dim, pos_dim))
    x = jax.nn.relu(_ln_f32(x, 1.0, 0.0)) @ Wp(ks[2], (pos_dim, pos_dim))
    x = jax.nn.relu(_ln_f32(x, 1.0, 0.0)) @ Wp(ks[3], (pos_dim, heads))
    n_tok = H_sp * W_sp
    return x[jnp.asarray(rpi).reshape(-1)].reshape(n_tok, n_tok, heads).transpose(2, 0, 1)


def make_windowed_qkv(qkv_flat, B, H, W, C, heads_half, split0, split1):
    # (M, 3C) -> q, k, v each (2*heads_half, nWB, N*hd), lane-dense, branches stacked on heads.
    # TODO(synk): the im2win relayout itself stays in XLA — a BlockSpec gather of (2x4)/(4x2)
    # windows with 16-channel heads would violate the (8,128) block-shape rule.
    Ch = C // 2
    hd = Ch // heads_half
    t = qkv_flat.reshape(B, H, W, 3, C)

    def branch(tb, H_sp, W_sp):
        nH, nW = H // H_sp, W // W_sp
        tb = tb.reshape(B, nH, H_sp, nW, W_sp, 3, heads_half, hd)
        tb = tb.transpose(5, 6, 0, 1, 3, 2, 4, 7)       # (3, heads, B, nH, nW, H_sp, W_sp, hd)
        return tb.reshape(3, heads_half, B * nH * nW, H_sp * W_sp * hd)

    w0 = branch(t[..., :Ch], split0[0], split0[1])
    w1 = branch(t[..., Ch:], split1[0], split1[1])
    qkv_w = jnp.concatenate([w0, w1], axis=1)           # (3, TH, nWB, N*hd)
    return qkv_w[0], qkv_w[1], qkv_w[2]


def windows_to_img(o, B, H, W, heads, hd, split):
    # (heads, nWB, N*hd) for one branch -> (B, H, W, heads*hd)   (matches windows2img + head cat)
    H_sp, W_sp = split
    nH, nW = H // H_sp, W // W_sp
    o = o.reshape(heads, B, nH, nW, H_sp, W_sp, hd)
    o = o.transpose(1, 2, 4, 3, 5, 0, 6)                # (B, nH, H_sp, nW, W_sp, heads, hd)
    return o.reshape(B, H, W, heads * hd)


def block_forward(x, H, W, params, erf_ok, lane_dense):
    B, L, C = x.shape
    M = B * L
    x0 = x.reshape(M, C)
    ap = params["attn"]
    mp = params["mlp"]

    # ---- x = x + L_SA(LN1(x)) ---------------------------------------------------
    qkv = ln_matmul_pallas(x0, params["norm1_g"], params["norm1_b"], ap["qkv_w"],
                           out_dtype=ACT_DTYPE)                    # (M, 3C)

    hh = ap["heads_half"]
    q, k, v = make_windowed_qkv(qkv, B, H, W, C, hh, ap["split0"], ap["split1"])
    o = attn_pallas(q, k, v, ap["pos_bias"], ap["scale"], ap["N"], lane_dense)

    x1b = windows_to_img(o[:hh], B, H, W, hh, ap["hd"], ap["split0"])
    x2b = windows_to_img(o[hh:], B, H, W, hh, ap["hd"], ap["split1"])
    attened = jnp.concatenate([x1b, x2b], axis=-1).reshape(M, C)

    v_img = qkv[:, 2 * C:3 * C].reshape(B, H, W, C)                # NHWC view of v
    lcm = dwconv3x3_pallas(v_img, ap["get_v_w"], ap["get_v_b"], ACT_DTYPE).reshape(M, C)

    xs = proj_residual_pallas(attened, lcm, x0, ap["proj_w"], ap["proj_b"])   # (M, C) f32

    # ---- x = x + MLP(LN2(x)) + res * gamma ----------------------------------------
    h2 = mp["fc2_w"].shape[0]
    if erf_ok:
        x1, x2n = ln_fc1_gelu_gate_pallas(xs, params["norm2_g"], params["norm2_b"],
                                          mp["fc1_w"], mp["fc1_b"],
                                          mp["gate_ln_g"], mp["gate_ln_b"])
        x2c = dwconv3x3_pallas(x2n.reshape(B, H, W, h2), mp["gate_conv_w"], mp["gate_conv_b"],
                               ACT_DTYPE).reshape(M, h2)
    else:
        # TODO(synk): exact erf-GELU stays in plain JAX when Mosaic lacks an erf lowering.
        h = ln_matmul_pallas(xs, params["norm2_g"], params["norm2_b"], mp["fc1_w"],
                             bias=mp["fc1_b"], out_dtype=jnp.float32)
        h = jax.nn.gelu(h, approximate=False)
        x1 = h[:, :h2].astype(ACT_DTYPE)
        x2c = dwconv3x3_pallas(h[:, h2:].reshape(B, H, W, h2),
                               mp["gate_conv_w"], mp["gate_conv_b"], ACT_DTYPE,
                               ln_g=mp["gate_ln_g"], ln_b=mp["gate_ln_b"]).reshape(M, h2)

    out = fc2_gate_final_pallas(x1, x2c, xs, x0, params["gamma"], mp["fc2_w"], mp["fc2_b"])
    return out.reshape(B, L, C)


# ------------------------------- parameter init --------------------------------

def init_params(key, dim, num_heads, split_size=(2, 4), mlp_ratio=4.0, layerscale_value=1e-4):
    keys = iter(jax.random.split(key, 32))

    def Wp(shape, dtype=jnp.float32):
        return (0.02 * jax.random.normal(next(keys), shape, jnp.float32)).astype(dtype)

    def Zp(shape):
        return jnp.zeros(shape, jnp.float32)

    dim_half = dim // 2
    heads_half = num_heads // 2
    hd = dim_half // heads_half
    pos_dim = max((dim_half // 4) // 4, 1)        # DynamicPosBias(dim//2 // 4).pos_dim
    hidden = int(dim * mlp_ratio)
    split0 = (split_size[0], split_size[1])       # idx=0 -> (H_sp, W_sp) = (2, 4)
    split1 = (split_size[1], split_size[0])       # idx=1 -> (H_sp, W_sp) = (4, 2)
    n_tok = split_size[0] * split_size[1]

    pos0 = _pos_bias_table(split0[0], split0[1], heads_half, pos_dim, next(keys))
    pos1 = _pos_bias_table(split1[0], split1[1], heads_half, pos_dim, next(keys))
    pos_bias = jnp.concatenate([pos0, pos1], axis=0)   # (num_heads, N, N)

    return dict(
        norm1_g=jnp.ones((dim,)), norm1_b=Zp((dim,)),
        norm2_g=jnp.ones((dim,)), norm2_b=Zp((dim,)),
        gamma=layerscale_value * jnp.ones((dim,)),
        attn=dict(
            qkv_w=Wp((dim, 3 * dim), MATMUL_DTYPE),              # qkv_bias=False
            proj_w=Wp((dim, dim), MATMUL_DTYPE), proj_b=Zp((dim,)),
            get_v_w=Wp((3, 3, dim)), get_v_b=Zp((dim,)),
            pos_bias=pos_bias,
            split0=split0, split1=split1, heads_half=heads_half, hd=hd, N=n_tok,
            scale=float(hd) ** (-0.5),
        ),
        mlp=dict(
            fc1_w=Wp((dim, hidden), MATMUL_DTYPE), fc1_b=Zp((hidden,)),
            gate_ln_g=jnp.ones((hidden // 2,)), gate_ln_b=Zp((hidden // 2,)),
            gate_conv_w=Wp((3, 3, hidden // 2)), gate_conv_b=Zp((hidden // 2,)),
            fc2_w=Wp((hidden // 2, dim), MATMUL_DTYPE), fc2_b=Zp((dim,)),
        ),
    )


# ------------------------------------ main --------------------------------------

if __name__ == "__main__":
    B, H, W = 2, 8, 8
    dim, num_heads = 64, 4
    key = jax.random.PRNGKey(0)
    pkey, xkey = jax.random.split(key)

    params = init_params(pkey, dim, num_heads)
    x = jax.random.normal(xkey, (B, H * W, dim), jnp.float32)

    erf_ok = _erf_supported()
    lane_dense = _lane_dense_attn_supported(params["attn"]["N"], params["attn"]["hd"])

    fwd = jax.jit(partial(block_forward, H=H, W=W, params=params,
                          erf_ok=erf_ok, lane_dense=lane_dense))
    out = jax.block_until_ready(fwd(x))

    assert out.shape == (B, H * W, dim)
    assert bool(jnp.all(jnp.isfinite(out)))
    print("KERNEL_OK")
</pallas_src>

<mosaic_0001>
module attributes {stable_mosaic.version = 11 : i64} {
  func.func @k(%arg0: memref<8x128xf32, #tpu.memory_space<vmem>>, %arg1: memref<8x128xf32, #tpu.memory_space<vmem>>) attributes {dimension_semantics = [], scalar_prefetch = 0 : i64, scratch_operands = 0 : i64, tpu.core_type = #tpu.core_type<tc>} {
    %c0 = arith.constant 0 : index
    %c0_0 = arith.constant 0 : index
    %0 = vector.load %arg0[%c0, %c0_0] : memref<8x128xf32, #tpu.memory_space<vmem>>, vector<8x128xf32>
    %1 = math.erf %0 : vector<8x128xf32>
    %c0_1 = arith.constant 0 : index
    %c0_2 = arith.constant 0 : index
    %2 = vector.load %arg1[%c0_1, %c0_2] : memref<8x128xf32, #tpu.memory_space<vmem>>, vector<8x128xf32>
    tpu.vector_store %arg1[%c0_1, %c0_2], %1 {strides = array<i32>} : memref<8x128xf32, #tpu.memory_space<vmem>>, vector<8x128xf32>,
    return
  }
}

module attributes {stable_mosaic.version = 11 : i64} {
  func.func @_attn_kernel(%arg0: i32, %arg1: i32, %arg2: memref<1x8x128xbf16, #tpu.memory_space<vmem>>, %arg3: memref<1x8x128xbf16, #tpu.memory_space<vmem>>, %arg4: memref<1x8x128xbf16, #tpu.memory_space<vmem>>, %arg5: memref<1x8x8xf32, #tpu.memory_space<vmem>>, %arg6: memref<1x8x128xbf16, #tpu.memory_space<vmem>>) attributes {dimension_semantics = [#tpu.dimension_semantics<parallel>, #tpu.dimension_semantics<parallel>], iteration_bounds = array<i64: 1, 1>, scalar_prefetch = 0 : i64, scratch_operands = 0 : i64, tpu.core_type = #tpu.core_type<tc>, window_params = [{transform_indices = @transform_0, window_bounds = array<i64: 1, 8, 128>}, {transform_indices = @transform_1, window_bounds = array<i64: 1, 8, 128>}, {transform_indices = @transform_2, window_bounds = array<i64: 1, 8, 128>}, {transform_indices = @transform_3, window_bounds = array<i64: 1, 8, 8>}, {transform_indices = @transform_4, window_bounds = array<i64: 1, 8, 128>}]} {
    %c0 = arith.constant 0 : index
    %c0_0 = arith.constant 0 : index
    %c0_1 = arith.constant 0 : index
    %0 = vector.load %arg2[%c0, %c0_0, %c0_1] : memref<1x8x128xbf16, #tpu.memory_space<vmem>>, vector<1x8x128xbf16>
    %1 = vector.shape_cast %0 : vector<1x8x128xbf16> to vector<8x128xbf16>
    %2 = arith.extf %1 : vector<8x128xbf16> to vector<8x128xf32>
    %c0_2 = arith.constant 0 : index
    %c0_3 = arith.constant 0 : index
    %c0_4 = arith.constant 0 : index
    %3 = vector.load %arg3[%c0_2, %c0_3, %c0_4] : memref<1x8x128xbf16, #tpu.memory_space<vmem>>, vector<1x8x128xbf16>
    %4 = vector.shape_cast %3 : vector<1x8x128xbf16> to vector<8x128xbf16>
    %5 = arith.extf %4 : vector<8x128xbf16> to vector<8x128xf32>
    %c0_5 = arith.constant 0 : index
    %c0_6 = arith.constant 0 : index
    %c0_7 = arith.constant 0 : index
    %6 = vector.load %arg4[%c0_5, %c0_6, %c0_7] : memref<1x8x128xbf16, #tpu.memory_space<vmem>>, vector<1x8x128xbf16>
    %7 = vector.shape_cast %6 : vector<1x8x128xbf16> to vector<8x128xbf16>
    %8 = arith.extf %7 : vector<8x128xbf16> to vector<8x128xf32>
    %9 = vector.shape_cast %2 : vector<8x128xf32> to vector<8x8x16xf32>
    %10 = vector.shape_cast %5 : vector<8x128xf32> to vector<8x8x16xf32>
    %11 = vector.shape_cast %8 : vector<8x128xf32> to vector<8x8x16xf32>
    %12 = arith.truncf %9 : vector<8x8x16xf32> to vector<8x8x16xbf16>
    %13 = arith.truncf %10 : vector<8x8x16xf32> to vector<8x8x16xbf16>
    %cst = arith.constant dense<0.000000e+00> : vector<8x8x8xf32>
    %14 = tpu.matmul %12, %13, %cst {dimension_numbers = #tpu.dot_dimension_numbers<[2], [2], [1], [1], [0, 0, 0, 1, 1, 1], [0], [0]>} : vector<8x8x16xbf16>, vector<8x8x16xbf16>, vector<8x8x8xf32> -> vector<8x8x8xf32>
    %cst_8 = arith.constant 1.000000e+00 : f32
    %15 = vector.broadcast %cst_8 : f32 to vector<8x8x8xf32>
    %16 = arith.mulf %14, %15 : vector<8x8x8xf32>
    %c0_9 = arith.constant 0 : index
    %c0_10 = arith.constant 0 : index
    %c0_11 = arith.constant 0 : index
    %17 = vector.load %arg5[%c0_9, %c0_10, %c0_11] : memref<1x8x8xf32, #tpu.memory_space<vmem>>, vector<1x8x8xf32>
    %18 = vector.broadcast %17 : vector<1x8x8xf32> to vector<8x8x8xf32>
    %19 = arith.addf %16, %18 : vector<8x8x8xf32>
    %cst_12 = arith.constant dense<0xFF800000> : vector<8x8xf32>
    %20 = vector.multi_reduction <maximumf>, %19, %cst_12 [2] : vector<8x8x8xf32> to vector<8x8xf32>
    %21 = vector.shape_cast %20 : vector<8x8xf32> to vector<8x8x1xf32>
    %22 = vector.broadcast %21 : vector<8x8x1xf32> to vector<8x8x8xf32>
    %23 = arith.subf %19, %22 : vector<8x8x8xf32>
    %24 = math.exp %23 : vector<8x8x8xf32>
    %cst_13 = arith.constant dense<0.000000e+00> : vector<8x8xf32>
    %25 = vector.multi_reduction <add>, %24, %cst_13 [2] : vector<8x8x8xf32> to vector<8x8xf32>
    %26 = vector.shape_cast %25 : vector<8x8xf32> to vector<8x8x1xf32>
    %27 = vector.broadcast %26 : vector<8x8x1xf32> to vector<8x8x8xf32>
    %28 = arith.divf %24, %27 : vector<8x8x8xf32>
    %29 = arith.truncf %28 : vector<8x8x8xf32> to vector<8x8x8xbf16>
    %30 = arith.truncf %11 : vector<8x8x16xf32> to vector<8x8x16xbf16>
    %cst_14 = arith.constant dense<0.000000e+00> : vector<8x8x16xf32>
    %31 = tpu.matmul %29, %30, %cst_14 {dimension_numbers = #tpu.dot_dimension_numbers<[2], [1], [1], [2], [0, 0, 0, 1, 1, 2], [0], [0]>} : vector<8x8x8xbf16>, vector<8x8x16xbf16>, vector<8x8x16xf32> -> vector<8x8x16xf32>
    %32 = vector.shape_cast %31 : vector<8x8x16xf32> to vector<8x128xf32>
    %33 = arith.truncf %32 : vector<8x128xf32> to vector<8x128xbf16>
    %c0_15 = arith.constant 0 : index
    %c0_16 = arith.constant 0 : index
    %c0_17 = arith.constant 0 : index
    %34 = vector.load %arg6[%c0_15, %c0_16, %c0_17] : memref<1x8x128xbf16, #tpu.memory_space<vmem>>, vector<1x8x128xbf16>
    %35 = vector.shape_cast %34 : vector<1x8x128xbf16> to vector<8x128xbf16>
    %36 = vector.shape_cast %33 : vector<8x128xbf16> to vector<1x8x128xbf16>
    tpu.vector_store %arg6[%c0_15, %c0_16, %c0_17], %36 {strides = array<i32>} : memref<1x8x128xbf16, #tpu.memory_space<vmem>>, vector<1x8x128xbf16>,
    return
  }
  func.func @transform_0(%arg0: i32, %arg1: i32) -> (i32, i32, i32) {
    %c0_i32 = arith.constant 0 : i32
    %c0_i32_0 = arith.constant 0 : i32
    return %arg0, %arg1, %c0_i32 : i32, i32, i32
  }
  func.func @transform_1(%arg0: i32, %arg1: i32) -> (i32, i32, i32) {
    %c0_i32 = arith.constant 0 : i32
    %c0_i32_0 = arith.constant 0 : i32
    return %arg0, %arg1, %c0_i32 : i32, i32, i32
  }
  func.func @transform_2(%arg0: i32, %arg1: i32) -> (i32, i32, i32) {
    %c0_i32 = arith.constant 0 : i32
    %c0_i32_0 = arith.constant 0 : i32
    return %arg0, %arg1, %c0_i32 : i32, i32, i32
  }
  func.func @transform_3(%arg0: i32, %arg1: i32) -> (i32, i32, i32) {
    %c0_i32 = arith.constant 0 : i32
    %c0_i32_0 = arith.constant 0 : i32
    %c0_i32_1 = arith.constant 0 : i32
    return %arg0, %c0_i32, %c0_i32_0 : i32, i32, i32
  }
  func.func @transform_4(%arg0: i32, %arg1: i32) -> (i32, i32, i32) {
    %c0_i32 = arith.constant 0 : i32
    %c0_i32_0 = arith.constant 0 : i32
    return %arg0, %arg1, %c0_i32 : i32, i32, i32
  }
}

module attributes {stable_mosaic.version = 11 : i64} {
  func.func @_ln_matmul_kernel(%arg0: i32, %arg1: memref<128x64xf32, #tpu.memory_space<vmem>>, %arg2: memref<1x64xf32, #tpu.memory_space<vmem>>, %arg3: memref<1x64xf32, #tpu.memory_space<vmem>>, %arg4: memref<64x192xbf16, #tpu.memory_space<vmem>>, %arg5: memref<128x192xbf16, #tpu.memory_space<vmem>>) attributes {dimension_semantics = [#tpu.dimension_semantics<parallel>], iteration_bounds = array<i64: 1>, scalar_prefetch = 0 : i64, scratch_operands = 0 : i64, tpu.core_type = #tpu.core_type<tc>, window_params = [{transform_indices = @transform_0, window_bounds = array<i64: 128, 64>}, {pipeline_mode = #tpu.pipeline_mode<synchronous>, transform_indices = @transform_1, window_bounds = array<i64: 1, 64>}, {pipeline_mode = #tpu.pipeline_mode<synchronous>, transform_indices = @transform_2, window_bounds = array<i64: 1, 64>}, {pipeline_mode = #tpu.pipeline_mode<synchronous>, transform_indices = @transform_3, window_bounds = array<i64: 64, 192>}, {transform_indices = @transform_4, window_bounds = array<i64: 128, 192>}]} {
    %c0 = arith.constant 0 : index
    %c0_0 = arith.constant 0 : index
    %0 = vector.load %arg1[%c0, %c0_0] : memref<128x64xf32, #tpu.memory_space<vmem>>, vector<128x64xf32>
    %c0_1 = arith.constant 0 : index
    %c0_2 = arith.constant 0 : index
    %1 = vector.load %arg2[%c0_1, %c0_2] : memref<1x64xf32, #tpu.memory_space<vmem>>, vector<1x64xf32>
    %c0_3 = arith.constant 0 : index
    %c0_4 = arith.constant 0 : index
    %2 = vector.load %arg3[%c0_3, %c0_4] : memref<1x64xf32, #tpu.memory_space<vmem>>, vector<1x64xf32>
    %cst = arith.constant dense<0.000000e+00> : vector<128xf32>
    %3 = vector.multi_reduction <add>, %0, %cst [1] : vector<128x64xf32> to vector<128xf32>
    %4 = vector.shape_cast %3 : vector<128xf32> to vector<128x1xf32>
    %cst_5 = arith.constant 6.400000e+01 : f32
    %5 = vector.broadcast %cst_5 : f32 to vector<128x1xf32>
    %6 = arith.divf %4, %5 : vector<128x1xf32>
    %7 = vector.broadcast %6 : vector<128x1xf32> to vector<128x64xf32>
    %8 = arith.subf %0, %7 : vector<128x64xf32>
    %9 = arith.mulf %8, %8 : vector<128x64xf32>
    %cst_6 = arith.constant dense<0.000000e+00> : vector<128xf32>
    %10 = vector.multi_reduction <add>, %9, %cst_6 [1] : vector<128x64xf32> to vector<128xf32>
    %11 = vector.shape_cast %10 : vector<128xf32> to vector<128x1xf32>
    %cst_7 = arith.constant 6.400000e+01 : f32
    %12 = vector.broadcast %cst_7 : f32 to vector<128x1xf32>
    %13 = arith.divf %11, %12 : vector<128x1xf32>
    %cst_8 = arith.constant 9.99999974E-6 : f32
    %14 = vector.broadcast %cst_8 : f32 to vector<128x1xf32>
    %15 = arith.addf %13, %14 : vector<128x1xf32>
    %16 = math.rsqrt %15 : vector<128x1xf32>
    %17 = vector.broadcast %16 : vector<128x1xf32> to vector<128x64xf32>
    %18 = arith.mulf %8, %17 : vector<128x64xf32>
    %19 = vector.broadcast %1 : vector<1x64xf32> to vector<128x64xf32>
    %20 = arith.mulf %18, %19 : vector<128x64xf32>
    %21 = vector.broadcast %2 : vector<1x64xf32> to vector<128x64xf32>
    %22 = arith.addf %20, %21 : vector<128x64xf32>
    %23 = arith.truncf %22 : vector<128x64xf32> to vector<128x64xbf16>
    %c0_9 = arith.constant 0 : index
    %c0_10 = arith.constant 0 : index
    %24 = vector.load %arg4[%c0_9, %c0_10] : memref<64x192xbf16, #tpu.memory_space<vmem>>, vector<64x192xbf16>
    %cst_11 = arith.constant dense<0.000000e+00> : vector<128x192xf32>
    %25 = tpu.matmul %23, %24, %cst_11 {dimension_numbers = #tpu.dot_dimension_numbers<[1], [0], [0], [1], [0, 0, 1, 1], [], []>} : vector<128x64xbf16>, vector<64x192xbf16>, vector<128x192xf32> -> vector<128x192xf32>
    %26 = arith.truncf %25 : vector<128x192xf32> to vector<128x192xbf16>
    %c0_12 = arith.constant 0 : index
    %c0_13 = arith.constant 0 : index
    %27 = vector.load %arg5[%c0_12, %c0_13] : memref<128x192xbf16, #tpu.memory_space<vmem>>, vector<128x192xbf16>
    tpu.vector_store %arg5[%c0_12, %c0_13], %26 {strides = array<i32>} : memref<128x192xbf16, #tpu.memory_space<vmem>>, vector<128x192xbf16>,
    return
  }
  func.func @transform_0(%arg0: i32) -> (i32, i32) {
    %c0_i32 = arith.constant 0 : i32
    %c0_i32_0 = arith.constant 0 : i32
    return %arg0, %c0_i32 : i32, i32
  }
  func.func @transform_1(%arg0: i32) -> (i32, i32) {
    %c0_i32 = arith.constant 0 : i32
    %c0_i32_0 = arith.constant 0 : i32
    %c0_i32_1 = arith.constant 0 : i32
    return %c0_i32, %c0_i32_0 : i32, i32
  }
  func.func @transform_2(%arg0: i32) -> (i32, i32) {
    %c0_i32 = arith.constant 0 : i32
    %c0_i32_0 = arith.constant 0 : i32
    %c0_i32_1 = arith.constant 0 : i32
    return %c0_i32, %c0_i32_0 : i32, i32
  }
  func.func @transform_3(%arg0: i32) -> (i32, i32) {
    %c0_i32 = arith.constant 0 : i32
    %c0_i32_0 = arith.constant 0 : i32
    %c0_i32_1 = arith.constant 0 : i32
    return %c0_i32, %c0_i32_0 : i32, i32
  }
  func.func @transform_4(%arg0: i32) -> (i32, i32) {
    %c0_i32 = arith.constant 0 : i32
    %c0_i32_0 = arith.constant 0 : i32
    return %arg0, %c0_i32 : i32, i32
  }
}

module attributes {stable_mosaic.version = 11 : i64} {
  func.func @_attn_kernel(%arg0: i32, %arg1: i32, %arg2: memref<1x8x8x16xbf16, #tpu.memory_space<vmem>>, %arg3: memref<1x8x8x16xbf16, #tpu.memory_space<vmem>>, %arg4: memref<1x8x8x16xbf16, #tpu.memory_space<vmem>>, %arg5: memref<1x8x8xf32, #tpu.memory_space<vmem>>, %arg6: memref<1x8x8x16xbf16, #tpu.memory_space<vmem>>) attributes {dimension_semantics = [#tpu.dimension_semantics<parallel>, #tpu.dimension_semantics<parallel>], iteration_bounds = array<i64: 4, 2>, scalar_prefetch = 0 : i64, scratch_operands = 0 : i64, tpu.core_type = #tpu.core_type<tc>, window_params = [{transform_indices = @transform_0, window_bounds = array<i64: 1, 8, 8, 16>}, {transform_indices = @transform_1, window_bounds = array<i64: 1, 8, 8, 16>}, {transform_indices = @transform_2, window_bounds = array<i64: 1, 8, 8, 16>}, {transform_indices = @transform_3, window_bounds = array<i64: 1, 8, 8>}, {transform_indices = @transform_4, window_bounds = array<i64: 1, 8, 8, 16>}]} {
    %c0 = arith.constant 0 : index
    %c0_0 = arith.constant 0 : index
    %c0_1 = arith.constant 0 : index
    %c0_2 = arith.constant 0 : index
    %0 = vector.load %arg2[%c0, %c0_0, %c0_1, %c0_2] : memref<1x8x8x16xbf16, #tpu.memory_space<vmem>>, vector<1x8x8x16xbf16>
    %1 = vector.shape_cast %0 : vector<1x8x8x16xbf16> to vector<8x8x16xbf16>
    %2 = arith.extf %1 : vector<8x8x16xbf16> to vector<8x8x16xf32>
    %c0_3 = arith.constant 0 : index
    %c0_4 = arith.constant 0 : index
    %c0_5 = arith.constant 0 : index
    %c0_6 = arith.constant 0 : index
    %3 = vector.load %arg3[%c0_3, %c0_4, %c0_5, %c0_6] : memref<1x8x8x16xbf16, #tpu.memory_space<vmem>>, vector<1x8x8x16xbf16>
    %4 = vector.shape_cast %3 : vector<1x8x8x16xbf16> to vector<8x8x16xbf16>
    %5 = arith.extf %4 : vector<8x8x16xbf16> to vector<8x8x16xf32>
    %c0_7 = arith.constant 0 : index
    %c0_8 = arith.constant 0 : index
    %c0_9 = arith.constant 0 : index
    %c0_10 = arith.constant 0 : index
    %6 = vector.load %arg4[%c0_7, %c0_8, %c0_9, %c0_10] : memref<1x8x8x16xbf16, #tpu.memory_space<vmem>>, vector<1x8x8x16xbf16>
    %7 = vector.shape_cast %6 : vector<1x8x8x16xbf16> to vector<8x8x16xbf16>
    %8 = arith.extf %7 : vector<8x8x16xbf16> to vector<8x8x16xf32>
    %9 = arith.truncf %2 : vector<8x8x16xf32> to vector<8x8x16xbf16>
    %10 = arith.truncf %5 : vector<8x8x16xf32> to vector<8x8x16xbf16>
    %cst = arith.constant dense<0.000000e+00> : vector<8x8x8xf32>
    %11 = tpu.matmul %9, %10, %cst {dimension_numbers = #tpu.dot_dimension_numbers<[2], [2], [1], [1], [0, 0, 0, 1, 1, 1], [0], [0]>} : vector<8x8x16xbf16>, vector<8x8x16xbf16>, vector<8x8x8xf32> -> vector<8x8x8xf32>
    %cst_11 = arith.constant 2.500000e-01 : f32
    %12 = vector.broadcast %cst_11 : f32 to vector<8x8x8xf32>
    %13 = arith.mulf %11, %12 : vector<8x8x8xf32>
    %c0_12 = arith.constant 0 : index
    %c0_13 = arith.constant 0 : index
    %c0_14 = arith.constant 0 : index
    %14 = vector.load %arg5[%c0_12, %c0_13, %c0_14] : memref<1x8x8xf32, #tpu.memory_space<vmem>>, vector<1x8x8xf32>
    %15 = vector.broadcast %14 : vector<1x8x8xf32> to vector<8x8x8xf32>
    %16 = arith.addf %13, %15 : vector<8x8x8xf32>
    %cst_15 = arith.constant dense<0xFF800000> : vector<8x8xf32>
    %17 = vector.multi_reduction <maximumf>, %16, %cst_15 [2] : vector<8x8x8xf32> to vector<8x8xf32>
    %18 = vector.shape_cast %17 : vector<8x8xf32> to vector<8x8x1xf32>
    %19 = vector.broadcast %18 : vector<8x8x1xf32> to vector<8x8x8xf32>
    %20 = arith.subf %16, %19 : vector<8x8x8xf32>
    %21 = math.exp %20 : vector<8x8x8xf32>
    %cst_16 = arith.constant dense<0.000000e+00> : vector<8x8xf32>
    %22 = vector.multi_reduction <add>, %21, %cst_16 [2] : vector<8x8x8xf32> to vector<8x8xf32>
    %23 = vector.shape_cast %22 : vector<8x8xf32> to vector<8x8x1xf32>
    %24 = vector.broadcast %23 : vector<8x8x1xf32> to vector<8x8x8xf32>
    %25 = arith.divf %21, %24 : vector<8x8x8xf32>
    %26 = arith.truncf %25 : vector<8x8x8xf32> to vector<8x8x8xbf16>
    %27 = arith.truncf %8 : vector<8x8x16xf32> to vector<8x8x16xbf16>
    %cst_17 = arith.constant dense<0.000000e+00> : vector<8x8x16xf32>
    %28 = tpu.matmul %26, %27, %cst_17 {dimension_numbers = #tpu.dot_dimension_numbers<[2], [1], [1], [2], [0, 0, 0, 1, 1, 2], [0], [0]>} : vector<8x8x8xbf16>, vector<8x8x16xbf16>, vector<8x8x16xf32> -> vector<8x8x16xf32>
    %29 = arith.truncf %28 : vector<8x8x16xf32> to vector<8x8x16xbf16>
    %c0_18 = arith.constant 0 : index
    %c0_19 = arith.constant 0 : index
    %c0_20 = arith.constant 0 : index
    %c0_21 = arith.constant 0 : index
    %30 = vector.load %arg6[%c0_18, %c0_19, %c0_20, %c0_21] : memref<1x8x8x16xbf16, #tpu.memory_space<vmem>>, vector<1x8x8x16xbf16>
    %31 = vector.shape_cast %30 : vector<1x8x8x16xbf16> to vector<8x8x16xbf16>
    %32 = vector.shape_cast %29 : vector<8x8x16xbf16> to vector<1x8x8x16xbf16>
    tpu.vector_store %arg6[%c0_18, %c0_19, %c0_20, %c0_21], %32 {strides = array<i32>} : memref<1x8x8x16xbf16, #tpu.memory_space<vmem>>, vector<1x8x8x16xbf16>,
    return
  }
  func.func @transform_0(%arg0: i32, %arg1: i32) -> (i32, i32, i32, i32) {
    %c0_i32 = arith.constant 0 : i32
    %c0_i32_0 = arith.constant 0 : i32
    %c0_i32_1 = arith.constant 0 : i32
    return %arg0, %arg1, %c0_i32, %c0_i32_0 : i32, i32, i32, i32
  }
  func.func @transform_1(%arg0: i32, %arg1: i32) -> (i32, i32, i32, i32) {
    %c0_i32 = arith.constant 0 : i32
    %c0_i32_0 = arith.constant 0 : i32
    %c0_i32_1 = arith.constant 0 : i32
    return %arg0, %arg1, %c0_i32, %c0_i32_0 : i32, i32, i32, i32
  }
  func.func @transform_2(%arg0: i32, %arg1: i32) -> (i32, i32, i32, i32) {
    %c0_i32 = arith.constant 0 : i32
    %c0_i32_0 = arith.constant 0 : i32
    %c0_i32_1 = arith.constant 0 : i32
    return %arg0, %arg1, %c0_i32, %c0_i32_0 : i32, i32, i32, i32
  }
  func.func @transform_3(%arg0: i32, %arg1: i32) -> (i32, i32, i32) {
    %c0_i32 = arith.constant 0 : i32
    %c0_i32_0 = arith.constant 0 : i32
    %c0_i32_1 = arith.constant 0 : i32
    return %arg0, %c0_i32, %c0_i32_0 : i32, i32, i32
  }
  func.func @transform_4(%arg0: i32, %arg1: i32) -> (i32, i32, i32, i32) {
    %c0_i32 = arith.constant 0 : i32
    %c0_i32_0 = arith.constant 0 : i32
    %c0_i32_1 = arith.constant 0 : i32
    return %arg0, %arg1, %c0_i32, %c0_i32_0 : i32, i32, i32, i32
  }
}

module attributes {stable_mosaic.version = 11 : i64} {
  func.func @_proj_residual_kernel(%arg0: i32, %arg1: memref<128x64xbf16, #tpu.memory_space<vmem>>, %arg2: memref<128x64xbf16, #tpu.memory_space<vmem>>, %arg3: memref<128x64xf32, #tpu.memory_space<vmem>>, %arg4: memref<64x64xbf16, #tpu.memory_space<vmem>>, %arg5: memref<1x64xf32, #tpu.memory_space<vmem>>, %arg6: memref<128x64xf32, #tpu.memory_space<vmem>>) attributes {dimension_semantics = [#tpu.dimension_semantics<parallel>], iteration_bounds = array<i64: 1>, scalar_prefetch = 0 : i64, scratch_operands = 0 : i64, tpu.core_type = #tpu.core_type<tc>, window_params = [{transform_indices = @transform_0, window_bounds = array<i64: 128, 64>}, {transform_indices = @transform_1, window_bounds = array<i64: 128, 64>}, {transform_indices = @transform_2, window_bounds = array<i64: 128, 64>}, {pipeline_mode = #tpu.pipeline_mode<synchronous>, transform_indices = @transform_3, window_bounds = array<i64: 64, 64>}, {pipeline_mode = #tpu.pipeline_mode<synchronous>, transform_indices = @transform_4, window_bounds = array<i64: 1, 64>}, {transform_indices = @transform_5, window_bounds = array<i64: 128, 64>}]} {
    %c0 = arith.constant 0 : index
    %c0_0 = arith.constant 0 : index
    %0 = vector.load %arg1[%c0, %c0_0] : memref<128x64xbf16, #tpu.memory_space<vmem>>, vector<128x64xbf16>
    %1 = arith.extf %0 : vector<128x64xbf16> to vector<128x64xf32>
    %c0_1 = arith.constant 0 : index
    %c0_2 = arith.constant 0 : index
    %2 = vector.load %arg2[%c0_1, %c0_2] : memref<128x64xbf16, #tpu.memory_space<vmem>>, vector<128x64xbf16>
    %3 = arith.extf %2 : vector<128x64xbf16> to vector<128x64xf32>
    %4 = arith.addf %1, %3 : vector<128x64xf32>
    %5 = arith.truncf %4 : vector<128x64xf32> to vector<128x64xbf16>
    %c0_3 = arith.constant 0 : index
    %c0_4 = arith.constant 0 : index
    %6 = vector.load %arg4[%c0_3, %c0_4] : memref<64x64xbf16, #tpu.memory_space<vmem>>, vector<64x64xbf16>
    %cst = arith.constant dense<0.000000e+00> : vector<128x64xf32>
    %7 = tpu.matmul %5, %6, %cst {dimension_numbers = #tpu.dot_dimension_numbers<[1], [0], [0], [1], [0, 0, 1, 1], [], []>} : vector<128x64xbf16>, vector<64x64xbf16>, vector<128x64xf32> -> vector<128x64xf32>
    %c0_5 = arith.constant 0 : index
    %c0_6 = arith.constant 0 : index
    %8 = vector.load %arg3[%c0_5, %c0_6] : memref<128x64xf32, #tpu.memory_space<vmem>>, vector<128x64xf32>
    %9 = arith.addf %8, %7 : vector<128x64xf32>
    %c0_7 = arith.constant 0 : index
    %c0_8 = arith.constant 0 : index
    %10 = vector.load %arg5[%c0_7, %c0_8] : memref<1x64xf32, #tpu.memory_space<vmem>>, vector<1x64xf32>
    %11 = vector.broadcast %10 : vector<1x64xf32> to vector<128x64xf32>
    %12 = arith.addf %9, %11 : vector<128x64xf32>
    %c0_9 = arith.constant 0 : index
    %c0_10 = arith.constant 0 : index
    %13 = vector.load %arg6[%c0_9, %c0_10] : memref<128x64xf32, #tpu.memory_space<vmem>>, vector<128x64xf32>
    tpu.vector_store %arg6[%c0_9, %c0_10], %12 {strides = array<i32>} : memref<128x64xf32, #tpu.memory_space<vmem>>, vector<128x64xf32>,
    return
  }
  func.func @transform_0(%arg0: i32) -> (i32, i32) {
    %c0_i32 = arith.constant 0 : i32
    %c0_i32_0 = arith.constant 0 : i32
    return %arg0, %c0_i32 : i32, i32
  }
  func.func @transform_1(%arg0: i32) -> (i32, i32) {
    %c0_i32 = arith.constant 0 : i32
    %c0_i32_0 = arith.constant 0 : i32
    return %arg0, %c0_i32 : i32, i32
  }
  func.func @transform_2(%arg0: i32) -> (i32, i32) {
    %c0_i32 = arith.constant 0 : i32
    %c0_i32_0 = arith.constant 0 : i32
    return %arg0, %c0_i32 : i32, i32
  }
  func.func @transform_3(%arg0: i32) -> (i32, i32) {
    %c0_i32 = arith.constant 0 : i32
    %c0_i32_0 = arith.constant 0 : i32
    %c0_i32_1 = arith.constant 0 : i32
    return %c0_i32, %c0_i32_0 : i32, i32
  }
  func.func @transform_4(%arg0: i32) -> (i32, i32) {
    %c0_i32 = arith.constant 0 : i32
    %c0_i32_0 = arith.constant 0 : i32
    %c0_i32_1 = arith.constant 0 : i32
    return %c0_i32, %c0_i32_0 : i32, i32
  }
  func.func @transform_5(%arg0: i32) -> (i32, i32) {
    %c0_i32 = arith.constant 0 : i32
    %c0_i32_0 = arith.constant 0 : i32
    return %arg0, %c0_i32 : i32, i32
  }
}

module attributes {stable_mosaic.version = 11 : i64} {
  func.func @_dwconv3x3_kernel(%arg0: i32, %arg1: memref<1x8x8x64xbf16, #tpu.memory_space<vmem>>, %arg2: memref<3x3x64xf32, #tpu.memory_space<vmem>>, %arg3: memref<1x64xf32, #tpu.memory_space<vmem>>, %arg4: memref<1x8x8x64xbf16, #tpu.memory_space<vmem>>, %arg5: memref<10x10x64xf32, #tpu.memory_space<vmem>>) attributes {dimension_semantics = [#tpu.dimension_semantics<parallel>], iteration_bounds = array<i64: 2>, scalar_prefetch = 0 : i64, scratch_operands = 1 : i64, tpu.core_type = #tpu.core_type<tc>, window_params = [{transform_indices = @transform_0, window_bounds = array<i64: 1, 8, 8, 64>}, {pipeline_mode = #tpu.pipeline_mode<synchronous>, transform_indices = @transform_1, window_bounds = array<i64: 3, 3, 64>}, {pipeline_mode = #tpu.pipeline_mode<synchronous>, transform_indices = @transform_2, window_bounds = array<i64: 1, 64>}, {transform_indices = @transform_3, window_bounds = array<i64: 1, 8, 8, 64>}]} {
    %c0 = arith.constant 0 : index
    %c0_0 = arith.constant 0 : index
    %c0_1 = arith.constant 0 : index
    %c0_2 = arith.constant 0 : index
    %0 = vector.load %arg1[%c0, %c0_0, %c0_1, %c0_2] : memref<1x8x8x64xbf16, #tpu.memory_space<vmem>>, vector<1x8x8x64xbf16>
    %1 = vector.shape_cast %0 : vector<1x8x8x64xbf16> to vector<8x8x64xbf16>
    %2 = arith.extf %1 : vector<8x8x64xbf16> to vector<8x8x64xf32>
    %c0_i32 = arith.constant 0 : i32
    %3 = arith.cmpi eq, %arg0, %c0_i32 : i32
    %4 = arith.extui %3 : i1 to i32
    %c0_i32_3 = arith.constant 0 : i32
    %5 = arith.cmpi ne, %4, %c0_i32_3 : i32
    scf.if %5 {
      %cst_18 = arith.constant 0.000000e+00 : f32
      %81 = vector.broadcast %cst_18 : f32 to vector<1x10x64xf32>
      %cst_19 = arith.constant 0.000000e+00 : f32
      %82 = vector.broadcast %cst_19 : f32 to vector<8x1x64xf32>
      %c0_20 = arith.constant 0 : index
      %c0_21 = arith.constant 0 : index
      %c0_22 = arith.constant 0 : index
      %83 = vector.load %arg5[%c0_20, %c0_21, %c0_22] : memref<10x10x64xf32, #tpu.memory_space<vmem>>, vector<1x10x64xf32>
      tpu.vector_store %arg5[%c0_20, %c0_21, %c0_22], %81 {strides = array<i32>} : memref<10x10x64xf32, #tpu.memory_space<vmem>>, vector<1x10x64xf32>,
      %c9 = arith.constant 9 : index
      %c0_23 = arith.constant 0 : index
      %c0_24 = arith.constant 0 : index
      %84 = vector.load %arg5[%c9, %c0_23, %c0_24] : memref<10x10x64xf32, #tpu.memory_space<vmem>>, vector<1x10x64xf32>
      tpu.vector_store %arg5[%c9, %c0_23, %c0_24], %81 {strides = array<i32>} : memref<10x10x64xf32, #tpu.memory_space<vmem>>, vector<1x10x64xf32>,
      %c1_25 = arith.constant 1 : index
      %c0_26 = arith.constant 0 : index
      %c0_27 = arith.constant 0 : index
      %85 = vector.load %arg5[%c1_25, %c0_26, %c0_27] : memref<10x10x64xf32, #tpu.memory_space<vmem>>, vector<8x1x64xf32>
      tpu.vector_store %arg5[%c1_25, %c0_26, %c0_27], %82 {strides = array<i32>} : memref<10x10x64xf32, #tpu.memory_space<vmem>>, vector<8x1x64xf32>,
      %c1_28 = arith.constant 1 : index
      %c9_29 = arith.constant 9 : index
      %c0_30 = arith.constant 0 : index
      %86 = vector.load %arg5[%c1_28, %c9_29, %c0_30] : memref<10x10x64xf32, #tpu.memory_space<vmem>>, vector<8x1x64xf32>
      tpu.vector_store %arg5[%c1_28, %c9_29, %c0_30], %82 {strides = array<i32>} : memref<10x10x64xf32, #tpu.memory_space<vmem>>, vector<8x1x64xf32>,
    } else {
    }
    %c1 = arith.constant 1 : index
    %c1_4 = arith.constant 1 : index
    %c0_5 = arith.constant 0 : index
    %6 = vector.load %arg5[%c1, %c1_4, %c0_5] : memref<10x10x64xf32, #tpu.memory_space<vmem>>, vector<8x8x64xf32>
    tpu.vector_store %arg5[%c1, %c1_4, %c0_5], %2 {strides = array<i32>} : memref<10x10x64xf32, #tpu.memory_space<vmem>>, vector<8x8x64xf32>,
    %c0_6 = arith.constant 0 : index
    %c0_7 = arith.constant 0 : index
    %c0_8 = arith.constant 0 : index
    %7 = vector.load %arg5[%c0_6, %c0_7, %c0_8] : memref<10x10x64xf32, #tpu.memory_space<vmem>>, vector<10x10x64xf32>
    %c0_9 = arith.constant 0 : index
    %c0_10 = arith.constant 0 : index
    %c0_11 = arith.constant 0 : index
    %8 = vector.load %arg2[%c0_9, %c0_10, %c0_11] : memref<3x3x64xf32, #tpu.memory_space<vmem>>, vector<3x3x64xf32>
    %cst = arith.constant 0.000000e+00 : f32
    %9 = vector.broadcast %cst : f32 to vector<8x8x64xf32>
    %10 = vector.extract_strided_slice %7 {offsets = [0, 0, 0], sizes = [8, 8, 64], strides = [1, 1, 1]} : vector<10x10x64xf32> to vector<8x8x64xf32>
    %11 = vector.extract_strided_slice %8 {offsets = [0, 0, 0], sizes = [1, 1, 64], strides = [1, 1, 1]} : vector<3x3x64xf32> to vector<1x1x64xf32>
    %12 = vector.shape_cast %11 : vector<1x1x64xf32> to vector<64xf32>
    %13 = vector.shape_cast %12 : vector<64xf32> to vector<1x1x64xf32>
    %14 = vector.broadcast %13 : vector<1x1x64xf32> to vector<8x8x64xf32>
    %15 = arith.mulf %10, %14 : vector<8x8x64xf32>
    %16 = arith.addf %9, %15 : vector<8x8x64xf32>
    %17 = vector.extract_strided_slice %7 {offsets = [0, 1, 0], sizes = [8, 8, 64], strides = [1, 1, 1]} : vector<10x10x64xf32> to vector<8x8x64xf32>
    %18 = vector.extract_strided_slice %8 {offsets = [0, 1, 0], sizes = [1, 1, 64], strides = [1, 1, 1]} : vector<3x3x64xf32> to vector<1x1x64xf32>
    %19 = vector.shape_cast %18 : vector<1x1x64xf32> to vector<64xf32>
    %20 = vector.shape_cast %19 : vector<64xf32> to vector<1x1x64xf32>
    %21 = vector.broadcast %20 : vector<1x1x64xf32> to vector<8x8x64xf32>
    %22 = arith.mulf %17, %21 : vector<8x8x64xf32>
    %23 = arith.addf %16, %22 : vector<8x8x64xf32>
    %24 = vector.extract_strided_slice %7 {offsets = [0, 2, 0], sizes = [8, 8, 64], strides = [1, 1, 1]} : vector<10x10x64xf32> to vector<8x8x64xf32>
    %25 = vector.extract_strided_slice %8 {offsets = [0, 2, 0], sizes = [1, 1, 64], strides = [1, 1, 1]} : vector<3x3x64xf32> to vector<1x1x64xf32>
    %26 = vector.shape_cast %25 : vector<1x1x64xf32> to vector<64xf32>
    %27 = vector.shape_cast %26 : vector<64xf32> to vector<1x1x64xf32>
    %28 = vector.broadcast %27 : vector<1x1x64xf32> to vector<8x8x64xf32>
    %29 = arith.mulf %24, %28 : vector<8x8x64xf32>
    %30 = arith.addf %23, %29 : vector<8x8x64xf32>
    %31 = vector.extract_strided_slice %7 {offsets = [1, 0, 0], sizes = [8, 8, 64], strides = [1, 1, 1]} : vector<10x10x64xf32> to vector<8x8x64xf32>
    %32 = vector.extract_strided_slice %8 {offsets = [1, 0, 0], sizes = [1, 1, 64], strides = [1, 1, 1]} : vector<3x3x64xf32> to vector<1x1x64xf32>
    %33 = vector.shape_cast %32 : vector<1x1x64xf32> to vector<64xf32>
    %34 = vector.shape_cast %33 : vector<64xf32> to vector<1x1x64xf32>
    %35 = vector.broadcast %34 : vector<1x1x64xf32> to vector<8x8x64xf32>
    %36 = arith.mulf %31, %35 : vector<8x8x64xf32>
    %37 = arith.addf %30, %36 : vector<8x8x64xf32>
    %38 = vector.extract_strided_slice %7 {offsets = [1, 1, 0], sizes = [8, 8, 64], strides = [1, 1, 1]} : vector<10x10x64xf32> to vector<8x8x64xf32>
    %39 = vector.extract_strided_slice %8 {offsets = [1, 1, 0], sizes = [1, 1, 64], strides = [1, 1, 1]} : vector<3x3x64xf32> to vector<1x1x64xf32>
    %40 = vector.shape_cast %39 : vector<1x1x64xf32> to vector<64xf32>
    %41 = vector.shape_cast %40 : vector<64xf32> to vector<1x1x64xf32>
    %42 = vector.broadcast %41 : vector<1x1x64xf32> to vector<8x8x64xf32>
    %43 = arith.mulf %38, %42 : vector<8x8x64xf32>
    %44 = arith.addf %37, %43 : vector<8x8x64xf32>
    %45 = vector.extract_strided_slice %7 {offsets = [1, 2, 0], sizes = [8, 8, 64], strides = [1, 1, 1]} : vector<10x10x64xf32> to vector<8x8x64xf32>
    %46 = vector.extract_strided_slice %8 {offsets = [1, 2, 0], sizes = [1, 1, 64], strides = [1, 1, 1]} : vector<3x3x64xf32> to vector<1x1x64xf32>
    %47 = vector.shape_cast %46 : vector<1x1x64xf32> to vector<64xf32>
    %48 = vector.shape_cast %47 : vector<64xf32> to vector<1x1x64xf32>
    %49 = vector.broadcast %48 : vector<1x1x64xf32> to vector<8x8x64xf32>
    %50 = arith.mulf %45, %49 : vector<8x8x64xf32>
    %51 = arith.addf %44, %50 : vector<8x8x64xf32>
    %52 = vector.extract_strided_slice %7 {offsets = [2, 0, 0], sizes = [8, 8, 64], strides = [1, 1, 1]} : vector<10x10x64xf32> to vector<8x8x64xf32>
    %53 = vector.extract_strided_slice %8 {offsets = [2, 0, 0], sizes = [1, 1, 64], strides = [1, 1, 1]} : vector<3x3x64xf32> to vector<1x1x64xf32>
    %54 = vector.shape_cast %53 : vector<1x1x64xf32> to vector<64xf32>
    %55 = vector.shape_cast %54 : vector<64xf32> to vector<1x1x64xf32>
    %56 = vector.broadcast %55 : vector<1x1x64xf32> to vector<8x8x64xf32>
    %57 = arith.mulf %52, %56 : vector<8x8x64xf32>
    %58 = arith.addf %51, %57 : vector<8x8x64xf32>
    %59 = vector.extract_strided_slice %7 {offsets = [2, 1, 0], sizes = [8, 8, 64], strides = [1, 1, 1]} : vector<10x10x64xf32> to vector<8x8x64xf32>
    %60 = vector.extract_strided_slice %8 {offsets = [2, 1, 0], sizes = [1, 1, 64], strides = [1, 1, 1]} : vector<3x3x64xf32> to vector<1x1x64xf32>
    %61 = vector.shape_cast %60 : vector<1x1x64xf32> to vector<64xf32>
    %62 = vector.shape_cast %61 : vector<64xf32> to vector<1x1x64xf32>
    %63 = vector.broadcast %62 : vector<1x1x64xf32> to vector<8x8x64xf32>
    %64 = arith.mulf %59, %63 : vector<8x8x64xf32>
    %65 = arith.addf %58, %64 : vector<8x8x64xf32>
    %66 = vector.extract_strided_slice %7 {offsets = [2, 2, 0], sizes = [8, 8, 64], strides = [1, 1, 1]} : vector<10x10x64xf32> to vector<8x8x64xf32>
    %67 = vector.extract_strided_slice %8 {offsets = [2, 2, 0], sizes = [1, 1, 64], strides = [1, 1, 1]} : vector<3x3x64xf32> to vector<1x1x64xf32>
    %68 = vector.shape_cast %67 : vector<1x1x64xf32> to vector<64xf32>
    %69 = vector.shape_cast %68 : vector<64xf32> to vector<1x1x64xf32>
    %70 = vector.broadcast %69 : vector<1x1x64xf32> to vector<8x8x64xf32>
    %71 = arith.mulf %66, %70 : vector<8x8x64xf32>
    %72 = arith.addf %65, %71 : vector<8x8x64xf32>
    %c0_12 = arith.constant 0 : index
    %c0_13 = arith.constant 0 : index
    %73 = vector.load %arg3[%c0_12, %c0_13] : memref<1x64xf32, #tpu.memory_space<vmem>>, vector<1x64xf32>
    %74 = vector.shape_cast %73 : vector<1x64xf32> to vector<1x1x64xf32>
    %75 = vector.broadcast %74 : vector<1x1x64xf32> to vector<8x8x64xf32>
    %76 = arith.addf %72, %75 : vector<8x8x64xf32>
    %77 = arith.truncf %76 : vector<8x8x64xf32> to vector<8x8x64xbf16>
    %c0_14 = arith.constant 0 : index
    %c0_15 = arith.constant 0 : index
    %c0_16 = arith.constant 0 : index
    %c0_17 = arith.constant 0 : index
    %78 = vector.load %arg4[%c0_14, %c0_15, %c0_16, %c0_17] : memref<1x8x8x64xbf16, #tpu.memory_space<vmem>>, vector<1x8x8x64xbf16>
    %79 = vector.shape_cast %78 : vector<1x8x8x64xbf16> to vector<8x8x64xbf16>
    %80 = vector.shape_cast %77 : vector<8x8x64xbf16> to vector<1x8x8x64xbf16>
    tpu.vector_store %arg4[%c0_14, %c0_15, %c0_16, %c0_17], %80 {strides = array<i32>} : memref<1x8x8x64xbf16, #tpu.memory_space<vmem>>, vector<1x8x8x64xbf16>,
    return
  }
  func.func @transform_0(%arg0: i32) -> (i32, i32, i32, i32) {
    %c0_i32 = arith.constant 0 : i32
    %c0_i32_0 = arith.constant 0 : i32
    %c0_i32_1 = arith.constant 0 : i32
    %c0_i32_2 = arith.constant 0 : i32
    return %arg0, %c0_i32, %c0_i32_0, %c0_i32_1 : i32, i32, i32, i32
  }
  func.func @transform_1(%arg0: i32) -> (i32, i32, i32) {
    %c0_i32 = arith.constant 0 : i32
    %c0_i32_0 = arith.constant 0 : i32
    %c0_i32_1 = arith.constant 0 : i32
    %c0_i32_2 = arith.constant 0 : i32
    return %c0_i32, %c0_i32_0, %c0_i32_1 : i32, i32, i32
  }
  func.func @transform_2(%arg0: i32) -> (i32, i32) {
    %c0_i32 = arith.constant 0 : i32
    %c0_i32_0 = arith.constant 0 : i32
    %c0_i32_1 = arith.constant 0 : i32
    return %c0_i32, %c0_i32_0 : i32, i32
  }
  func.func @transform_3(%arg0: i32) -> (i32, i32, i32, i32) {
    %c0_i32 = arith.constant 0 : i32
    %c0_i32_0 = arith.constant 0 : i32
    %c0_i32_1 = arith.constant 0 : i32
    %c0_i32_2 = arith.constant 0 : i32
    return %arg0, %c0_i32, %c0_i32_0, %c0_i32_1 : i32, i32, i32, i32
  }
}

module attributes {stable_mosaic.version = 11 : i64} {
  func.func @_ln_matmul_bias_kernel(%arg0: i32, %arg1: memref<128x64xf32, #tpu.memory_space<vmem>>, %arg2: memref<1x64xf32, #tpu.memory_space<vmem>>, %arg3: memref<1x64xf32, #tpu.memory_space<vmem>>, %arg4: memref<64x256xbf16, #tpu.memory_space<vmem>>, %arg5: memref<1x256xf32, #tpu.memory_space<vmem>>, %arg6: memref<128x256xf32, #tpu.memory_space<vmem>>) attributes {dimension_semantics = [#tpu.dimension_semantics<parallel>], iteration_bounds = array<i64: 1>, scalar_prefetch = 0 : i64, scratch_operands = 0 : i64, tpu.core_type = #tpu.core_type<tc>, window_params = [{transform_indices = @transform_0, window_bounds = array<i64: 128, 64>}, {pipeline_mode = #tpu.pipeline_mode<synchronous>, transform_indices = @transform_1, window_bounds = array<i64: 1, 64>}, {pipeline_mode = #tpu.pipeline_mode<synchronous>, transform_indices = @transform_2, window_bounds = array<i64: 1, 64>}, {pipeline_mode = #tpu.pipeline_mode<synchronous>, transform_indices = @transform_3, window_bounds = array<i64: 64, 256>}, {pipeline_mode = #tpu.pipeline_mode<synchronous>, transform_indices = @transform_4, window_bounds = array<i64: 1, 256>}, {transform_indices = @transform_5, window_bounds = array<i64: 128, 256>}]} {
    %c0 = arith.constant 0 : index
    %c0_0 = arith.constant 0 : index
    %0 = vector.load %arg1[%c0, %c0_0] : memref<128x64xf32, #tpu.memory_space<vmem>>, vector<128x64xf32>
    %c0_1 = arith.constant 0 : index
    %c0_2 = arith.constant 0 : index
    %1 = vector.load %arg2[%c0_1, %c0_2] : memref<1x64xf32, #tpu.memory_space<vmem>>, vector<1x64xf32>
    %c0_3 = arith.constant 0 : index
    %c0_4 = arith.constant 0 : index
    %2 = vector.load %arg3[%c0_3, %c0_4] : memref<1x64xf32, #tpu.memory_space<vmem>>, vector<1x64xf32>
    %cst = arith.constant dense<0.000000e+00> : vector<128xf32>
    %3 = vector.multi_reduction <add>, %0, %cst [1] : vector<128x64xf32> to vector<128xf32>
    %4 = vector.shape_cast %3 : vector<128xf32> to vector<128x1xf32>
    %cst_5 = arith.constant 6.400000e+01 : f32
    %5 = vector.broadcast %cst_5 : f32 to vector<128x1xf32>
    %6 = arith.divf %4, %5 : vector<128x1xf32>
    %7 = vector.broadcast %6 : vector<128x1xf32> to vector<128x64xf32>
    %8 = arith.subf %0, %7 : vector<128x64xf32>
    %9 = arith.mulf %8, %8 : vector<128x64xf32>
    %cst_6 = arith.constant dense<0.000000e+00> : vector<128xf32>
    %10 = vector.multi_reduction <add>, %9, %cst_6 [1] : vector<128x64xf32> to vector<128xf32>
    %11 = vector.shape_cast %10 : vector<128xf32> to vector<128x1xf32>
    %cst_7 = arith.constant 6.400000e+01 : f32
    %12 = vector.broadcast %cst_7 : f32 to vector<128x1xf32>
    %13 = arith.divf %11, %12 : vector<128x1xf32>
    %cst_8 = arith.constant 9.99999974E-6 : f32
    %14 = vector.broadcast %cst_8 : f32 to vector<128x1xf32>
    %15 = arith.addf %13, %14 : vector<128x1xf32>
    %16 = math.rsqrt %15 : vector<128x1xf32>
    %17 = vector.broadcast %16 : vector<128x1xf32> to vector<128x64xf32>
    %18 = arith.mulf %8, %17 : vector<128x64xf32>
    %19 = vector.broadcast %1 : vector<1x64xf32> to vector<128x64xf32>
    %20 = arith.mulf %18, %19 : vector<128x64xf32>
    %21 = vector.broadcast %2 : vector<1x64xf32> to vector<128x64xf32>
    %22 = arith.addf %20, %21 : vector<128x64xf32>
    %23 = arith.truncf %22 : vector<128x64xf32> to vector<128x64xbf16>
    %c0_9 = arith.constant 0 : index
    %c0_10 = arith.constant 0 : index
    %24 = vector.load %arg4[%c0_9, %c0_10] : memref<64x256xbf16, #tpu.memory_space<vmem>>, vector<64x256xbf16>
    %cst_11 = arith.constant dense<0.000000e+00> : vector<128x256xf32>
    %25 = tpu.matmul %23, %24, %cst_11 {dimension_numbers = #tpu.dot_dimension_numbers<[1], [0], [0], [1], [0, 0, 1, 1], [], []>} : vector<128x64xbf16>, vector<64x256xbf16>, vector<128x256xf32> -> vector<128x256xf32>
    %c0_12 = arith.constant 0 : index
    %c0_13 = arith.constant 0 : index
    %26 = vector.load %arg5[%c0_12, %c0_13] : memref<1x256xf32, #tpu.memory_space<vmem>>, vector<1x256xf32>
    %27 = vector.broadcast %26 : vector<1x256xf32> to vector<128x256xf32>
    %28 = arith.addf %25, %27 : vector<128x256xf32>
    %c0_14 = arith.constant 0 : index
    %c0_15 = arith.constant 0 : index
    %29 = vector.load %arg6[%c0_14, %c0_15] : memref<128x256xf32, #tpu.memory_space<vmem>>, vector<128x256xf32>
    tpu.vector_store %arg6[%c0_14, %c0_15], %28 {strides = array<i32>} : memref<128x256xf32, #tpu.memory_space<vmem>>, vector<128x256xf32>,
    return
  }
  func.func @transform_0(%arg0: i32) -> (i32, i32) {
    %c0_i32 = arith.constant 0 : i32
    %c0_i32_0 = arith.constant 0 : i32
    return %arg0, %c0_i32 : i32, i32
  }
  func.func @transform_1(%arg0: i32) -> (i32, i32) {
    %c0_i32 = arith.constant 0 : i32
    %c0_i32_0 = arith.constant 0 : i32
    %c0_i32_1 = arith.constant 0 : i32
    return %c0_i32, %c0_i32_0 : i32, i32
  }
  func.func @transform_2(%arg0: i32) -> (i32, i32) {
    %c0_i32 = arith.constant 0 : i32
    %c0_i32_0 = arith.constant 0 : i32
    %c0_i32_1 = arith.constant 0 : i32
    return %c0_i32, %c0_i32_0 : i32, i32
  }
  func.func @transform_3(%arg0: i32) -> (i32, i32) {
    %c0_i32 = arith.constant 0 : i32
    %c0_i32_0 = arith.constant 0 : i32
    %c0_i32_1 = arith.constant 0 : i32
    return %c0_i32, %c0_i32_0 : i32, i32
  }
  func.func @transform_4(%arg0: i32) -> (i32, i32) {
    %c0_i32 = arith.constant 0 : i32
    %c0_i32_0 = arith.constant 0 : i32
    %c0_i32_1 = arith.constant 0 : i32
    return %c0_i32, %c0_i32_0 : i32, i32
  }
  func.func @transform_5(%arg0: i32) -> (i32, i32) {
    %c0_i32 = arith.constant 0 : i32
    %c0_i32_0 = arith.constant 0 : i32
    return %arg0, %c0_i32 : i32, i32
  }
}

module attributes {stable_mosaic.version = 11 : i64} {
  func.func @_dwconv3x3_ln_kernel(%arg0: i32, %arg1: memref<1x8x8x128xf32, #tpu.memory_space<vmem>>, %arg2: memref<1x128xf32, #tpu.memory_space<vmem>>, %arg3: memref<1x128xf32, #tpu.memory_space<vmem>>, %arg4: memref<3x3x128xf32, #tpu.memory_space<vmem>>, %arg5: memref<1x128xf32, #tpu.memory_space<vmem>>, %arg6: memref<1x8x8x128xbf16, #tpu.memory_space<vmem>>, %arg7: memref<10x10x128xf32, #tpu.memory_space<vmem>>) attributes {dimension_semantics = [#tpu.dimension_semantics<parallel>], iteration_bounds = array<i64: 2>, scalar_prefetch = 0 : i64, scratch_operands = 1 : i64, tpu.core_type = #tpu.core_type<tc>, window_params = [{transform_indices = @transform_0, window_bounds = array<i64: 1, 8, 8, 128>}, {pipeline_mode = #tpu.pipeline_mode<synchronous>, transform_indices = @transform_1, window_bounds = array<i64: 1, 128>}, {pipeline_mode = #tpu.pipeline_mode<synchronous>, transform_indices = @transform_2, window_bounds = array<i64: 1, 128>}, {pipeline_mode = #tpu.pipeline_mode<synchronous>, transform_indices = @transform_3, window_bounds = array<i64: 3, 3, 128>}, {pipeline_mode = #tpu.pipeline_mode<synchronous>, transform_indices = @transform_4, window_bounds = array<i64: 1, 128>}, {transform_indices = @transform_5, window_bounds = array<i64: 1, 8, 8, 128>}]} {
    %c0 = arith.constant 0 : index
    %c0_0 = arith.constant 0 : index
    %c0_1 = arith.constant 0 : index
    %c0_2 = arith.constant 0 : index
    %0 = vector.load %arg1[%c0, %c0_0, %c0_1, %c0_2] : memref<1x8x8x128xf32, #tpu.memory_space<vmem>>, vector<1x8x8x128xf32>
    %1 = vector.shape_cast %0 : vector<1x8x8x128xf32> to vector<8x8x128xf32>
    %c0_3 = arith.constant 0 : index
    %c0_4 = arith.constant 0 : index
    %2 = vector.load %arg2[%c0_3, %c0_4] : memref<1x128xf32, #tpu.memory_space<vmem>>, vector<1x128xf32>
    %c0_5 = arith.constant 0 : index
    %c0_6 = arith.constant 0 : index
    %3 = vector.load %arg3[%c0_5, %c0_6] : memref<1x128xf32, #tpu.memory_space<vmem>>, vector<1x128xf32>
    %cst = arith.constant dense<0.000000e+00> : vector<8x8xf32>
    %4 = vector.multi_reduction <add>, %1, %cst [2] : vector<8x8x128xf32> to vector<8x8xf32>
    %5 = vector.shape_cast %4 : vector<8x8xf32> to vector<8x8x1xf32>
    %cst_7 = arith.constant 1.280000e+02 : f32
    %6 = vector.broadcast %cst_7 : f32 to vector<8x8x1xf32>
    %7 = arith.divf %5, %6 : vector<8x8x1xf32>
    %8 = vector.broadcast %7 : vector<8x8x1xf32> to vector<8x8x128xf32>
    %9 = arith.subf %1, %8 : vector<8x8x128xf32>
    %10 = arith.mulf %9, %9 : vector<8x8x128xf32>
    %cst_8 = arith.constant dense<0.000000e+00> : vector<8x8xf32>
    %11 = vector.multi_reduction <add>, %10, %cst_8 [2] : vector<8x8x128xf32> to vector<8x8xf32>
    %12 = vector.shape_cast %11 : vector<8x8xf32> to vector<8x8x1xf32>
    %cst_9 = arith.constant 1.280000e+02 : f32
    %13 = vector.broadcast %cst_9 : f32 to vector<8x8x1xf32>
    %14 = arith.divf %12, %13 : vector<8x8x1xf32>
    %cst_10 = arith.constant 9.99999974E-6 : f32
    %15 = vector.broadcast %cst_10 : f32 to vector<8x8x1xf32>
    %16 = arith.addf %14, %15 : vector<8x8x1xf32>
    %17 = math.rsqrt %16 : vector<8x8x1xf32>
    %18 = vector.broadcast %17 : vector<8x8x1xf32> to vector<8x8x128xf32>
    %19 = arith.mulf %9, %18 : vector<8x8x128xf32>
    %20 = vector.shape_cast %2 : vector<1x128xf32> to vector<1x1x128xf32>
    %21 = vector.broadcast %20 : vector<1x1x128xf32> to vector<8x8x128xf32>
    %22 = arith.mulf %19, %21 : vector<8x8x128xf32>
    %23 = vector.shape_cast %3 : vector<1x128xf32> to vector<1x1x128xf32>
    %24 = vector.broadcast %23 : vector<1x1x128xf32> to vector<8x8x128xf32>
    %25 = arith.addf %22, %24 : vector<8x8x128xf32>
    %c0_i32 = arith.constant 0 : i32
    %26 = arith.cmpi eq, %arg0, %c0_i32 : i32
    %27 = arith.extui %26 : i1 to i32
    %c0_i32_11 = arith.constant 0 : i32
    %28 = arith.cmpi ne, %27, %c0_i32_11 : i32
    scf.if %28 {
      %cst_27 = arith.constant 0.000000e+00 : f32
      %104 = vector.broadcast %cst_27 : f32 to vector<1x10x128xf32>
      %cst_28 = arith.constant 0.000000e+00 : f32
      %105 = vector.broadcast %cst_28 : f32 to vector<8x1x128xf32>
      %c0_29 = arith.constant 0 : index
      %c0_30 = arith.constant 0 : index
      %c0_31 = arith.constant 0 : index
      %106 = vector.load %arg7[%c0_29, %c0_30, %c0_31] : memref<10x10x128xf32, #tpu.memory_space<vmem>>, vector<1x10x128xf32>
      tpu.vector_store %arg7[%c0_29, %c0_30, %c0_31], %104 {strides = array<i32>} : memref<10x10x128xf32, #tpu.memory_space<vmem>>, vector<1x10x128xf32>,
      %c9 = arith.constant 9 : index
      %c0_32 = arith.constant 0 : index
      %c0_33 = arith.constant 0 : index
      %107 = vector.load %arg7[%c9, %c0_32, %c0_33] : memref<10x10x128xf32, #tpu.memory_space<vmem>>, vector<1x10x128xf32>
      tpu.vector_store %arg7[%c9, %c0_32, %c0_33], %104 {strides = array<i32>} : memref<10x10x128xf32, #tpu.memory_space<vmem>>, vector<1x10x128xf32>,
      %c1_34 = arith.constant 1 : index
      %c0_35 = arith.constant 0 : index
      %c0_36 = arith.constant 0 : index
      %108 = vector.load %arg7[%c1_34, %c0_35, %c0_36] : memref<10x10x128xf32, #tpu.memory_space<vmem>>, vector<8x1x128xf32>
      tpu.vector_store %arg7[%c1_34, %c0_35, %c0_36], %105 {strides = array<i32>} : memref<10x10x128xf32, #tpu.memory_space<vmem>>, vector<8x1x128xf32>,
      %c1_37 = arith.constant 1 : index
      %c9_38 = arith.constant 9 : index
      %c0_39 = arith.constant 0 : index
      %109 = vector.load %arg7[%c1_37, %c9_38, %c0_39] : memref<10x10x128xf32, #tpu.memory_space<vmem>>, vector<8x1x128xf32>
      tpu.vector_store %arg7[%c1_37, %c9_38, %c0_39], %105 {strides = array<i32>} : memref<10x10x128xf32, #tpu.memory_space<vmem>>, vector<8x1x128xf32>,
    } else {
    }
    %c1 = arith.constant 1 : index
    %c1_12 = arith.constant 1 : index
    %c0_13 = arith.constant 0 : index
    %29 = vector.load %arg7[%c1, %c1_12, %c0_13] : memref<10x10x128xf32, #tpu.memory_space<vmem>>, vector<8x8x128xf32>
    tpu.vector_store %arg7[%c1, %c1_12, %c0_13], %25 {strides = array<i32>} : memref<10x10x128xf32, #tpu.memory_space<vmem>>, vector<8x8x128xf32>,
    %c0_14 = arith.constant 0 : index
    %c0_15 = arith.constant 0 : index
    %c0_16 = arith.constant 0 : index
    %30 = vector.load %arg7[%c0_14, %c0_15, %c0_16] : memref<10x10x128xf32, #tpu.memory_space<vmem>>, vector<10x10x128xf32>
    %c0_17 = arith.constant 0 : index
    %c0_18 = arith.constant 0 : index
    %c0_19 = arith.constant 0 : index
    %31 = vector.load %arg4[%c0_17, %c0_18, %c0_19] : memref<3x3x128xf32, #tpu.memory_space<vmem>>, vector<3x3x128xf32>
    %cst_20 = arith.constant 0.000000e+00 : f32
    %32 = vector.broadcast %cst_20 : f32 to vector<8x8x128xf32>
    %33 = vector.extract_strided_slice %30 {offsets = [0, 0, 0], sizes = [8, 8, 128], strides = [1, 1, 1]} : vector<10x10x128xf32> to vector<8x8x128xf32>
    %34 = vector.extract_strided_slice %31 {offsets = [0, 0, 0], sizes = [1, 1, 128], strides = [1, 1, 1]} : vector<3x3x128xf32> to vector<1x1x128xf32>
    %35 = vector.shape_cast %34 : vector<1x1x128xf32> to vector<128xf32>
    %36 = vector.shape_cast %35 : vector<128xf32> to vector<1x1x128xf32>
    %37 = vector.broadcast %36 : vector<1x1x128xf32> to vector<8x8x128xf32>
    %38 = arith.mulf %33, %37 : vector<8x8x128xf32>
    %39 = arith.addf %32, %38 : vector<8x8x128xf32>
    %40 = vector.extract_strided_slice %30 {offsets = [0, 1, 0], sizes = [8, 8, 128], strides = [1, 1, 1]} : vector<10x10x128xf32> to vector<8x8x128xf32>
    %41 = vector.extract_strided_slice %31 {offsets = [0, 1, 0], sizes = [1, 1, 128], strides = [1, 1, 1]} : vector<3x3x128xf32> to vector<1x1x128xf32>
    %42 = vector.shape_cast %41 : vector<1x1x128xf32> to vector<128xf32>
    %43 = vector.shape_cast %42 : vector<128xf32> to vector<1x1x128xf32>
    %44 = vector.broadcast %43 : vector<1x1x128xf32> to vector<8x8x128xf32>
    %45 = arith.mulf %40, %44 : vector<8x8x128xf32>
    %46 = arith.addf %39, %45 : vector<8x8x128xf32>
    %47 = vector.extract_strided_slice %30 {offsets = [0, 2, 0], sizes = [8, 8, 128], strides = [1, 1, 1]} : vector<10x10x128xf32> to vector<8x8x128xf32>
    %48 = vector.extract_strided_slice %31 {offsets = [0, 2, 0], sizes = [1, 1, 128], strides = [1, 1, 1]} : vector<3x3x128xf32> to vector<1x1x128xf32>
    %49 = vector.shape_cast %48 : vector<1x1x128xf32> to vector<128xf32>
    %50 = vector.shape_cast %49 : vector<128xf32> to vector<1x1x128xf32>
    %51 = vector.broadcast %50 : vector<1x1x128xf32> to vector<8x8x128xf32>
    %52 = arith.mulf %47, %51 : vector<8x8x128xf32>
    %53 = arith.addf %46, %52 : vector<8x8x128xf32>
    %54 = vector.extract_strided_slice %30 {offsets = [1, 0, 0], sizes = [8, 8, 128], strides = [1, 1, 1]} : vector<10x10x128xf32> to vector<8x8x128xf32>
    %55 = vector.extract_strided_slice %31 {offsets = [1, 0, 0], sizes = [1, 1, 128], strides = [1, 1, 1]} : vector<3x3x128xf32> to vector<1x1x128xf32>
    %56 = vector.shape_cast %55 : vector<1x1x128xf32> to vector<128xf32>
    %57 = vector.shape_cast %56 : vector<128xf32> to vector<1x1x128xf32>
    %58 = vector.broadcast %57 : vector<1x1x128xf32> to vector<8x8x128xf32>
    %59 = arith.mulf %54, %58 : vector<8x8x128xf32>
    %60 = arith.addf %53, %59 : vector<8x8x128xf32>
    %61 = vector.extract_strided_slice %30 {offsets = [1, 1, 0], sizes = [8, 8, 128], strides = [1, 1, 1]} : vector<10x10x128xf32> to vector<8x8x128xf32>
    %62 = vector.extract_strided_slice %31 {offsets = [1, 1, 0], sizes = [1, 1, 128], strides = [1, 1, 1]} : vector<3x3x128xf32> to vector<1x1x128xf32>
    %63 = vector.shape_cast %62 : vector<1x1x128xf32> to vector<128xf32>
    %64 = vector.shape_cast %63 : vector<128xf32> to vector<1x1x128xf32>
    %65 = vector.broadcast %64 : vector<1x1x128xf32> to vector<8x8x128xf32>
    %66 = arith.mulf %61, %65 : vector<8x8x128xf32>
    %67 = arith.addf %60, %66 : vector<8x8x128xf32>
    %68 = vector.extract_strided_slice %30 {offsets = [1, 2, 0], sizes = [8, 8, 128], strides = [1, 1, 1]} : vector<10x10x128xf32> to vector<8x8x128xf32>
    %69 = vector.extract_strided_slice %31 {offsets = [1, 2, 0], sizes = [1, 1, 128], strides = [1, 1, 1]} : vector<3x3x128xf32> to vector<1x1x128xf32>
    %70 = vector.shape_cast %69 : vector<1x1x128xf32> to vector<128xf32>
    %71 = vector.shape_cast %70 : vector<128xf32> to vector<1x1x128xf32>
    %72 = vector.broadcast %71 : vector<1x1x128xf32> to vector<8x8x128xf32>
    %73 = arith.mulf %68, %72 : vector<8x8x128xf32>
    %74 = arith.addf %67, %73 : vector<8x8x128xf32>
    %75 = vector.extract_strided_slice %30 {offsets = [2, 0, 0], sizes = [8, 8, 128], strides = [1, 1, 1]} : vector<10x10x128xf32> to vector<8x8x128xf32>
    %76 = vector.extract_strided_slice %31 {offsets = [2, 0, 0], sizes = [1, 1, 128], strides = [1, 1, 1]} : vector<3x3x128xf32> to vector<1x1x128xf32>
    %77 = vector.shape_cast %76 : vector<1x1x128xf32> to vector<128xf32>
    %78 = vector.shape_cast %77 : vector<128xf32> to vector<1x1x128xf32>
    %79 = vector.broadcast %78 : vector<1x1x128xf32> to vector<8x8x128xf32>
    %80 = arith.mulf %75, %79 : vector<8x8x128xf32>
    %81 = arith.addf %74, %80 : vector<8x8x128xf32>
    %82 = vector.extract_strided_slice %30 {offsets = [2, 1, 0], sizes = [8, 8, 128], strides = [1, 1, 1]} : vector<10x10x128xf32> to vector<8x8x128xf32>
    %83 = vector.extract_strided_slice %31 {offsets = [2, 1, 0], sizes = [1, 1, 128], strides = [1, 1, 1]} : vector<3x3x128xf32> to vector<1x1x128xf32>
    %84 = vector.shape_cast %83 : vector<1x1x128xf32> to vector<128xf32>
    %85 = vector.shape_cast %84 : vector<128xf32> to vector<1x1x128xf32>
    %86 = vector.broadcast %85 : vector<1x1x128xf32> to vector<8x8x128xf32>
    %87 = arith.mulf %82, %86 : vector<8x8x128xf32>
    %88 = arith.addf %81, %87 : vector<8x8x128xf32>
    %89 = vector.extract_strided_slice %30 {offsets = [2, 2, 0], sizes = [8, 8, 128], strides = [1, 1, 1]} : vector<10x10x128xf32> to vector<8x8x128xf32>
    %90 = vector.extract_strided_slice %31 {offsets = [2, 2, 0], sizes = [1, 1, 128], strides = [1, 1, 1]} : vector<3x3x128xf32> to vector<1x1x128xf32>
    %91 = vector.shape_cast %90 : vector<1x1x128xf32> to vector<128xf32>
    %92 = vector.shape_cast %91 : vector<128xf32> to vector<1x1x128xf32>
    %93 = vector.broadcast %92 : vector<1x1x128xf32> to vector<8x8x128xf32>
    %94 = arith.mulf %89, %93 : vector<8x8x128xf32>
    %95 = arith.addf %88, %94 : vector<8x8x128xf32>
    %c0_21 = arith.constant 0 : index
    %c0_22 = arith.constant 0 : index
    %96 = vector.load %arg5[%c0_21, %c0_22] : memref<1x128xf32, #tpu.memory_space<vmem>>, vector<1x128xf32>
    %97 = vector.shape_cast %96 : vector<1x128xf32> to vector<1x1x128xf32>
    %98 = vector.broadcast %97 : vector<1x1x128xf32> to vector<8x8x128xf32>
    %99 = arith.addf %95, %98 : vector<8x8x128xf32>
    %100 = arith.truncf %99 : vector<8x8x128xf32> to vector<8x8x128xbf16>
    %c0_23 = arith.constant 0 : index
    %c0_24 = arith.constant 0 : index
    %c0_25 = arith.constant 0 : index
    %c0_26 = arith.constant 0 : index
    %101 = vector.load %arg6[%c0_23, %c0_24, %c0_25, %c0_26] : memref<1x8x8x128xbf16, #tpu.memory_space<vmem>>, vector<1x8x8x128xbf16>
    %102 = vector.shape_cast %101 : vector<1x8x8x128xbf16> to vector<8x8x128xbf16>
    %103 = vector.shape_cast %100 : vector<8x8x128xbf16> to vector<1x8x8x128xbf16>
    tpu.vector_store %arg6[%c0_23, %c0_24, %c0_25, %c0_26], %103 {strides = array<i32>} : memref<1x8x8x128xbf16, #tpu.memory_space<vmem>>, vector<1x8x8x128xbf16>,
    return
  }
  func.func @transform_0(%arg0: i32) -> (i32, i32, i32, i32) {
    %c0_i32 = arith.constant 0 : i32
    %c0_i32_0 = arith.constant 0 : i32
    %c0_i32_1 = arith.constant 0 : i32
    %c0_i32_2 = arith.constant 0 : i32
    return %arg0, %c0_i32, %c0_i32_0, %c0_i32_1 : i32, i32, i32, i32
  }
  func.func @transform_1(%arg0: i32) -> (i32, i32) {
    %c0_i32 = arith.constant 0 : i32
    %c0_i32_0 = arith.constant 0 : i32
    %c0_i32_1 = arith.constant 0 : i32
    return %c0_i32, %c0_i32_0 : i32, i32
  }
  func.func @transform_2(%arg0: i32) -> (i32, i32) {
    %c0_i32 = arith.constant 0 : i32
    %c0_i32_0 = arith.constant 0 : i32
    %c0_i32_1 = arith.constant 0 : i32
    return %c0_i32, %c0_i32_0 : i32, i32
  }
  func.func @transform_3(%arg0: i32) -> (i32, i32, i32) {
    %c0_i32 = arith.constant 0 : i32
    %c0_i32_0 = arith.constant 0 : i32
    %c0_i32_1 = arith.constant 0 : i32
    %c0_i32_2 = arith.constant 0 : i32
    return %c0_i32, %c0_i32_0, %c0_i32_1 : i32, i32, i32
  }
  func.func @transform_4(%arg0: i32) -> (i32, i32) {
    %c0_i32 = arith.constant 0 : i32
    %c0_i32_0 = arith.constant 0 : i32
    %c0_i32_1 = arith.constant 0 : i32
    return %c0_i32, %c0_i32_0 : i32, i32
  }
  func.func @transform_5(%arg0: i32) -> (i32, i32, i32, i32) {
    %c0_i32 = arith.constant 0 : i32
    %c0_i32_0 = arith.constant 0 : i32
    %c0_i32_1 = arith.constant 0 : i32
    %c0_i32_2 = arith.constant 0 : i32
    return %arg0, %c0_i32, %c0_i32_0, %c0_i32_1 : i32, i32, i32, i32
  }
}

module attributes {stable_mosaic.version = 11 : i64} {
  func.func @_fc2_gate_final_kernel(%arg0: i32, %arg1: memref<128x128xbf16, #tpu.memory_space<vmem>>, %arg2: memref<128x128xbf16, #tpu.memory_space<vmem>>, %arg3: memref<128x64xf32, #tpu.memory_space<vmem>>, %arg4: memref<128x64xf32, #tpu.memory_space<vmem>>, %arg5: memref<1x64xf32, #tpu.memory_space<vmem>>, %arg6: memref<128x64xbf16, #tpu.memory_space<vmem>>, %arg7: memref<1x64xf32, #tpu.memory_space<vmem>>, %arg8: memref<128x64xf32, #tpu.memory_space<vmem>>) attributes {dimension_semantics = [#tpu.dimension_semantics<parallel>], iteration_bounds = array<i64: 1>, scalar_prefetch = 0 : i64, scratch_operands = 0 : i64, tpu.core_type = #tpu.core_type<tc>, window_params = [{transform_indices = @transform_0, window_bounds = array<i64: 128, 128>}, {transform_indices = @transform_1, window_bounds = array<i64: 128, 128>}, {transform_indices = @transform_2, window_bounds = array<i64: 128, 64>}, {transform_indices = @transform_3, window_bounds = array<i64: 128, 64>}, {pipeline_mode = #tpu.pipeline_mode<synchronous>, transform_indices = @transform_4, window_bounds = array<i64: 1, 64>}, {pipeline_mode = #tpu.pipeline_mode<synchronous>, transform_indices = @transform_5, window_bounds = array<i64: 128, 64>}, {pipeline_mode = #tpu.pipeline_mode<synchronous>, transform_indices = @transform_6, window_bounds = array<i64: 1, 64>}, {transform_indices = @transform_7, window_bounds = array<i64: 128, 64>}]} {
    %c0 = arith.constant 0 : index
    %c0_0 = arith.constant 0 : index
    %0 = vector.load %arg1[%c0, %c0_0] : memref<128x128xbf16, #tpu.memory_space<vmem>>, vector<128x128xbf16>
    %1 = arith.extf %0 : vector<128x128xbf16> to vector<128x128xf32>
    %c0_1 = arith.constant 0 : index
    %c0_2 = arith.constant 0 : index
    %2 = vector.load %arg2[%c0_1, %c0_2] : memref<128x128xbf16, #tpu.memory_space<vmem>>, vector<128x128xbf16>
    %3 = arith.extf %2 : vector<128x128xbf16> to vector<128x128xf32>
    %4 = arith.mulf %1, %3 : vector<128x128xf32>
    %5 = arith.truncf %4 : vector<128x128xf32> to vector<128x128xbf16>
    %c0_3 = arith.constant 0 : index
    %c0_4 = arith.constant 0 : index
    %6 = vector.load %arg6[%c0_3, %c0_4] : memref<128x64xbf16, #tpu.memory_space<vmem>>, vector<128x64xbf16>
    %cst = arith.constant dense<0.000000e+00> : vector<128x64xf32>
    %7 = tpu.matmul %5, %6, %cst {dimension_numbers = #tpu.dot_dimension_numbers<[1], [0], [0], [1], [0, 0, 1, 1], [], []>} : vector<128x128xbf16>, vector<128x64xbf16>, vector<128x64xf32> -> vector<128x64xf32>
    %c0_5 = arith.constant 0 : index
    %c0_6 = arith.constant 0 : index
    %8 = vector.load %arg3[%c0_5, %c0_6] : memref<128x64xf32, #tpu.memory_space<vmem>>, vector<128x64xf32>
    %9 = arith.addf %8, %7 : vector<128x64xf32>
    %c0_7 = arith.constant 0 : index
    %c0_8 = arith.constant 0 : index
    %10 = vector.load %arg7[%c0_7, %c0_8] : memref<1x64xf32, #tpu.memory_space<vmem>>, vector<1x64xf32>
    %11 = vector.broadcast %10 : vector<1x64xf32> to vector<128x64xf32>
    %12 = arith.addf %9, %11 : vector<128x64xf32>
    %c0_9 = arith.constant 0 : index
    %c0_10 = arith.constant 0 : index
    %13 = vector.load %arg4[%c0_9, %c0_10] : memref<128x64xf32, #tpu.memory_space<vmem>>, vector<128x64xf32>
    %c0_11 = arith.constant 0 : index
    %c0_12 = arith.constant 0 : index
    %14 = vector.load %arg5[%c0_11, %c0_12] : memref<1x64xf32, #tpu.memory_space<vmem>>, vector<1x64xf32>
    %15 = vector.broadcast %14 : vector<1x64xf32> to vector<128x64xf32>
    %16 = arith.mulf %13, %15 : vector<128x64xf32>
    %17 = arith.addf %12, %16 : vector<128x64xf32>
    %c0_13 = arith.constant 0 : index
    %c0_14 = arith.constant 0 : index
    %18 = vector.load %arg8[%c0_13, %c0_14] : memref<128x64xf32, #tpu.memory_space<vmem>>, vector<128x64xf32>
    tpu.vector_store %arg8[%c0_13, %c0_14], %17 {strides = array<i32>} : memref<128x64xf32, #tpu.memory_space<vmem>>, vector<128x64xf32>,
    return
  }
  func.func @transform_0(%arg0: i32) -> (i32, i32) {
    %c0_i32 = arith.constant 0 : i32
    %c0_i32_0 = arith.constant 0 : i32
    return %arg0, %c0_i32 : i32, i32
  }
  func.func @transform_1(%arg0: i32) -> (i32, i32) {
    %c0_i32 = arith.constant 0 : i32
    %c0_i32_0 = arith.constant 0 : i32
    return %arg0, %c0_i32 : i32, i32
  }
  func.func @transform_2(%arg0: i32) -> (i32, i32) {
    %c0_i32 = arith.constant 0 : i32
    %c0_i32_0 = arith.constant 0 : i32
    return %arg0, %c0_i32 : i32, i32
  }
  func.func @transform_3(%arg0: i32) -> (i32, i32) {
    %c0_i32 = arith.constant 0 : i32
    %c0_i32_0 = arith.constant 0 : i32
    return %arg0, %c0_i32 : i32, i32
  }
  func.func @transform_4(%arg0: i32) -> (i32, i32) {
    %c0_i32 = arith.constant 0 : i32
    %c0_i32_0 = arith.constant 0 : i32
    %c0_i32_1 = arith.constant 0 : i32
    return %c0_i32, %c0_i32_0 : i32, i32
  }
  func.func @transform_5(%arg0: i32) -> (i32, i32) {
    %c0_i32 = arith.constant 0 : i32
    %c0_i32_0 = arith.constant 0 : i32
    %c0_i32_1 = arith.constant 0 : i32
    return %c0_i32, %c0_i32_0 : i32, i32
  }
  func.func @transform_6(%arg0: i32) -> (i32, i32) {
    %c0_i32 = arith.constant 0 : i32
    %c0_i32_0 = arith.constant 0 : i32
    %c0_i32_1 = arith.constant 0 : i32
    return %c0_i32, %c0_i32_0 : i32, i32
  }
  func.func @transform_7(%arg0: i32) -> (i32, i32) {
    %c0_i32 = arith.constant 0 : i32
    %c0_i32_0 = arith.constant 0 : i32
    return %arg0, %c0_i32 : i32, i32
  }
}

</mosaic_0001>

<llo_original>
// kernel: tpu_custom_call.1
$region0: #{tpu_custom_call.1}
  #allocation0 [shape = 'u32[]', space=smem, size = 0x4, offset = 0x4, fixed_abs, tag = 'smem constant byte address 0x4 - core index']
  #allocation1 [shape = 'u32[144,128]{1,0:T(1,128)}', space=vmem, size = 0x12000, scoped, tag = 'internal scratch']
  %s0 = inlined_call_operand.hbm [shape: f32[8,128], index: 0, kind: input, shape index: {}]
  %s1 = inlined_call_operand.hbm [shape: f32[8,128], index: 1, kind: output, shape index: {}]
  %s2 = sld [smem:[#allocation0]]
  $region18: #{tpu_custom_call.1} parent=0
    _
  %s4 = ssub.s32 1, %s2
  %s5 = scalar_select 0, %s4, %s2
  $region1: #{tpu_custom_call.1} parent=0
    #allocation2 [shape = 'u8[4096]{0}', space=vmem, size = 0x1000, scoped, tag = 'input window, operand 0, single buffered']
    #allocation3 [shape = 's32[1]{0}', space=sflag, size = 0x4, scoped, tag = 'scoped memory for tpu_custom_call.1']
    #allocation4 [shape = 's32[1]{0}', space=sflag, size = 0x4, scoped, tag = 'scoped memory for tpu_custom_call.1']
    #allocation5 [shape = 'u8[4096]{0}', space=vmem, size = 0x1000, scoped, tag = 'output window, operand 0, single buffered']
    %6 = vsyncpa [#allocation3], 0
    %7 = vsyncpa [#allocation4], 0
    // Predicated region
    $region2: #{tpu_custom_call.1} parent=1 // pred_check
      _
    $region3: #{tpu_custom_call.1} parent=1 // pred_check_branch
      %9 = sbr.rel (0) target = $region5
    $region4: #{tpu_custom_call.1} parent=1 // pred_region
      %s11 = ssub.s32 128, 128
      %12 = vsyncadd [#allocation3], %s11
      %s14 = sshll.u32 [#allocation2], 4
      %s15 = int_to_ptr.vmem [resolvable:$true] %s14
      %17 = dma.hbm_to_vmem [thread:$0]  %s0, 128, %s15, [#allocation3]
    $region5: #{tpu_custom_call.1} parent=1 // pred_fallthru
      _
    // Predicated region
    $region6: #{tpu_custom_call.1} parent=1 // pred_check
      _
    $region7: #{tpu_custom_call.1} parent=1 // pred_check_branch
      %19 = sbr.rel (0) target = $region9
    $region8: #{tpu_custom_call.1} parent=1 // pred_region
      %20 = dma.done [#allocation3], 128
    $region9: #{tpu_custom_call.1} parent=1 // pred_fallthru
      _
    %v21 = vld [vmem:[#allocation2] sm:$0xff]
    %v22 = verf.f32.pop %v21
    %23 = vst [vmem:[#allocation5] sm:$0xff] %v22
    // Predicated region
    $region10: #{tpu_custom_call.1} parent=1 // pred_check
      _
    $region11: #{tpu_custom_call.1} parent=1 // pred_check_branch
      %25 = sbr.rel (0) target = $region13
    $region12: #{tpu_custom_call.1} parent=1 // pred_region
      %s27 = ssub.s32 128, 128
      %28 = vsyncadd [#allocation4], %s27
      %s30 = sshll.u32 [#allocation5], 4
      %s31 = int_to_ptr.vmem [resolvable:$true] %s30
      %33 = dma.vmem_to_hbm [thread:$0]  %s31, 128, %s1, [#allocation4]
    $region13: #{tpu_custom_call.1} parent=1 // pred_fallthru
      _
    // Predicated region
    $region14: #{tpu_custom_call.1} parent=1 // pred_check
      _
    $region15: #{tpu_custom_call.1} parent=1 // pred_check_branch
      %35 = sbr.rel (0) target = $region17
    $region16: #{tpu_custom_call.1} parent=1 // pred_region
      %36 = dma.done [#allocation4], 128
    $region17: #{tpu_custom_call.1} parent=1 // pred_fallthru
      _
    %37 = vsyncpa [#allocation3], 1
    %38 = vsyncpa [#allocation4], 1

// kernel: tpu_custom_call.1
$region0: #{tpu_custom_call.1}
  #allocation0 [shape = 'u32[]', space=smem, size = 0x4, offset = 0x4, fixed_abs, tag = 'smem constant byte address 0x4 - core index']
  #allocation1 [shape = 'u32[144,128]{1,0:T(1,128)}', space=vmem, size = 0x12000, scoped, tag = 'internal scratch']
  %s0 = inlined_call_operand.hbm [shape: bf16[1,8,128], index: 0, kind: input, shape index: {}]
  %s1 = inlined_call_operand.hbm [shape: bf16[1,8,128], index: 1, kind: input, shape index: {}]
  %s2 = inlined_call_operand.hbm [shape: bf16[1,8,128], index: 2, kind: input, shape index: {}]
  %s3 = inlined_call_operand.vmem [shape: f32[1,8,8], index: 3, kind: input, shape index: {}]
  %s4 = inlined_call_operand.hbm [shape: bf16[1,8,128], index: 4, kind: output, shape index: {}]
  %s5 = sld [smem:[#allocation0]]
  $region38: #{tpu_custom_call.1} parent=0
    _
  %s7 = ssub.s32 1, %s5
  %s8 = scalar_select 0, %s7, %s5
  $region1: #{tpu_custom_call.1} parent=0
    #allocation2 [shape = 'u8[2048]{0}', space=vmem, size = 0x800, scoped, tag = 'input window, operand 0, single buffered']
    #allocation3 [shape = 's32[1]{0}', space=sflag, size = 0x4, scoped, tag = 'scoped memory for tpu_custom_call.1']
    #allocation4 [shape = 's32[1]{0}', space=sflag, size = 0x4, scoped, tag = 'scoped memory for tpu_custom_call.1']
    #allocation5 [shape = 'u8[2048]{0}', space=vmem, size = 0x800, scoped, tag = 'input window, operand 1, single buffered']
    #allocation6 [shape = 's32[1]{0}', space=sflag, size = 0x4, scoped, tag = 'scoped memory for tpu_custom_call.1']
    #allocation7 [shape = 'u8[2048]{0}', space=vmem, size = 0x800, scoped, tag = 'input window, operand 2, single buffered']
    #allocation8 [shape = 'u8[2048]{0}', space=vmem, size = 0x800, scoped, tag = 'output window, operand 0, single buffered']
    %9 = vsyncpa [#allocation3], 0
    %10 = vsyncpa [#allocation6], 0
    %11 = vsyncpa [#allocation4], 0
    // Predicated region
    $region2: #{tpu_custom_call.1} parent=1 // pred_check
      _
    $region3: #{tpu_custom_call.1} parent=1 // pred_check_branch
      %13 = sbr.rel (0) target = $region5
    $region4: #{tpu_custom_call.1} parent=1 // pred_region
      %s15 = ssub.s32 64, 64
      %16 = vsyncadd [#allocation3], %s15
      %s18 = sshll.u32 [#allocation2], 4
      %s19 = int_to_ptr.vmem [resolvable:$true] %s18
      %21 = dma.hbm_to_vmem [thread:$0]  %s0, 64, %s19, [#allocation3]
    $region5: #{tpu_custom_call.1} parent=1 // pred_fallthru
      _
    // Predicated region
    $region6: #{tpu_custom_call.1} parent=1 // pred_check
      _
    $region7: #{tpu_custom_call.1} parent=1 // pred_check_branch
      %23 = sbr.rel (0) target = $region9
    $region8: #{tpu_custom_call.1} parent=1 // pred_region
      %s25 = ssub.s32 64, 64
      %26 = vsyncadd [#allocation6], %s25
      %s28 = sshll.u32 [#allocation5], 4
      %s29 = int_to_ptr.vmem [resolvable:$true] %s28
      %31 = dma.hbm_to_vmem [thread:$0]  %s1, 64, %s29, [#allocation6]
    $region9: #{tpu_custom_call.1} parent=1 // pred_fallthru
      _
    // Predicated region
    $region10: #{tpu_custom_call.1} parent=1 // pred_check
      _
    $region11: #{tpu_custom_call.1} parent=1 // pred_check_branch
      %33 = sbr.rel (0) target = $region13
    $region12: #{tpu_custom_call.1} parent=1 // pred_region
      %s35 = ssub.s32 64, 64
      %36 = vsyncadd [#allocation6], %s35
      %s38 = sshll.u32 [#allocation7], 4
      %s39 = int_to_ptr.vmem [resolvable:$true] %s38
      %41 = dma.hbm_to_vmem [thread:$0]  %s2, 64, %s39, [#allocation6]
    $region13: #{tpu_custom_call.1} parent=1 // pred_fallthru
      _
    // Predicated region
    $region14: #{tpu_custom_call.1} parent=1 // pred_check
      _
    $region15: #{tpu_custom_call.1} parent=1 // pred_check_branch
      %43 = sbr.rel (0) target = $region17
    $region16: #{tpu_custom_call.1} parent=1 // pred_region
      _
    $region17: #{tpu_custom_call.1} parent=1 // pred_fallthru
      _
    // Predicated region
    $region18: #{tpu_custom_call.1} parent=1 // pred_check
      _
    $region19: #{tpu_custom_call.1} parent=1 // pred_check_branch
      %45 = sbr.rel (0) target = $region21
    $region20: #{tpu_custom_call.1} parent=1 // pred_region
      %46 = dma.done [#allocation3], 64
    $region21: #{tpu_custom_call.1} parent=1 // pred_fallthru
      _
    // Predicated region
    $region22: #{tpu_custom_call.1} parent=1 // pred_check
      _
    $region23: #{tpu_custom_call.1} parent=1 // pred_check_branch
      %48 = sbr.rel (0) target = $region25
    $region24: #{tpu_custom_call.1} parent=1 // pred_region
      %49 = dma.done [#allocation6], 64
    $region25: #{tpu_custom_call.1} parent=1 // pred_fallthru
      _
    // Predicated region
    $region26: #{tpu_custom_call.1} parent=1 // pred_check
      _
    $region27: #{tpu_custom_call.1} parent=1 // pred_check_branch
      %51 = sbr.rel (0) target = $region29
    $region28: #{tpu_custom_call.1} parent=1 // pred_region
      %52 = dma.done [#allocation6], 64
    $region29: #{tpu_custom_call.1} parent=1 // pred_fallthru
      _
    %v54 = vld [vmem:[#allocation2] sm:$0xf]
    %v55 = vunpack.c.l.bf16 %v54
    %v56 = vld [vmem:[#allocation5] sm:$0xf]
    %v57 = vunpack.c.l.bf16 %v56
    %v58 = vld [vmem:[#allocation7] sm:$0xf]
    %v59 = vunpack.c.l.bf16 %v58
    %61 = vrot.lane.b32.xlu0 %v55, 112
    %v62 = vpop.permute.xlu0 %61
    %64 = vrot.lane.b32.xlu0 %v55, 96
    %v65 = vpop.permute.xlu0 %64
    %67 = vrot.lane.b32.xlu0 %v55, 80
    %v68 = vpop.permute.xlu0 %67
    %70 = vrot.lane.b32.xlu0 %v55, 64
    %v71 = vpop.permute.xlu0 %70
    %73 = vrot.lane.b32.xlu0 %v55, 48
    %v74 = vpop.permute.xlu0 %73
    %76 = vrot.lane.b32.xlu0 %v55, 32
    %v77 = vpop.permute.xlu0 %76
    %79 = vrot.lane.b32.xlu0 %v55, 16
    %v80 = vpop.permute.xlu0 %79
    %v82 = vcombine.low %v55, %v65
    %v83 = vcombine.high %v55, %v65
    %v85 = vunpack.c.l.s4 1983009808
    %v86 = vunpack.c.0.s8 %v85
    %v87 = vlaneseq
    %v88 = vshrl.u32 %v87, 7
    %v89 = vsub.s32 %v86, %v88
    %v90 = vrot.slane %v82, %v89
    %v92 = vunpack.c.l.s4 1983009808
    %v93 = vunpack.c.0.s8 %v92
    %v94 = vlaneseq
    %v95 = vshrl.u32 %v94, 7
    %v96 = vsub.s32 %v93, %v95
    %v97 = vrot.slane %v83, %v96
    %v98 = vcombine.low %v62, %v68
    %v99 = vcombine.high %v62, %v68
    %v101 = vunpack.c.l.s4 1983009808
    %v102 = vunpack.c.0.s8 %v101
    %v103 = vlaneseq
    %v104 = vshrl.u32 %v103, 7
    %v105 = vsub.s32 %v102, %v104
    %v106 = vrot.slane %v98, %v105
    %v108 = vunpack.c.l.s4 1983009808
    %v109 = vunpack.c.0.s8 %v108
    %v110 = vlaneseq
    %v111 = vshrl.u32 %v110, 7
    %v112 = vsub.s32 %v109, %v111
    %v113 = vrot.slane %v99, %v112
    %v114 = vcombine.low %v71, %v77
    %v115 = vcombine.high %v71, %v77
    %v117 = vunpack.c.l.s4 1983009808
    %v118 = vunpack.c.0.s8 %v117
    %v119 = vlaneseq
    %v120 = vshrl.u32 %v119, 7
    %v121 = vsub.s32 %v118, %v120
    %v122 = vrot.slane %v114, %v121
    %v124 = vunpack.c.l.s4 1983009808
    %v125 = vunpack.c.0.s8 %v124
    %v126 = vlaneseq
    %v127 = vshrl.u32 %v126, 7
    %v128 = vsub.s32 %v125, %v127
    %v129 = vrot.slane %v115, %v128
    %v130 = vcombine.low %v74, %v80
    %v131 = vcombine.high %v74, %v80
    %v133 = vunpack.c.l.s4 1983009808
    %v134 = vunpack.c.0.s8 %v133
    %v135 = vlaneseq
    %v136 = vshrl.u32 %v135, 7
    %v137 = vsub.s32 %v134, %v136
    %v138 = vrot.slane %v130, %v137
    %v140 = vunpack.c.l.s4 1983009808
    %v141 = vunpack.c.0.s8 %v140
    %v142 = vlaneseq
    %v143 = vshrl.u32 %v142, 7
    %v144 = vsub.s32 %v141, %v143
    %v145 = vrot.slane %v131, %v144
    %v146 = vcombine.low %v90, %v106
    %v147 = vcombine.high %v90, %v106
    %v149 = vunpack.c.l.s4 1934713408
    %v150 = vunpack.c.0.s8 %v149
    %v151 = vlaneseq
    %v152 = vshrl.u32 %v151, 7
    %v153 = vsub.s32 %v150, %v152
    %v154 = vrot.slane %v146, %v153
    %v156 = vunpack.c.l.s4 1934713408
    %v157 = vunpack.c.0.s8 %v156
    %v158 = vlaneseq
    %v159 = vshrl.u32 %v158, 7
    %v160 = vsub.s32 %v157, %v159
    %v161 = vrot.slane %v147, %v160
    %v162 = vcombine.low %v97, %v113
    %v163 = vcombine.high %v97, %v113
    %v165 = vunpack.c.l.s4 1934713408
    %v166 = vunpack.c.0.s8 %v165
    %v167 = vlaneseq
    %v168 = vshrl.u32 %v167, 7
    %v169 = vsub.s32 %v166, %v168
    %v170 = vrot.slane %v162, %v169
    %v172 = vunpack.c.l.s4 1934713408
    %v173 = vunpack.c.0.s8 %v172
    %v174 = vlaneseq
    %v175 = vshrl.u32 %v174, 7
    %v176 = vsub.s32 %v173, %v175
    %v177 = vrot.slane %v163, %v176
    %v178 = vcombine.low %v122, %v138
    %v179 = vcombine.high %v122, %v138
    %v181 = vunpack.c.l.s4 1934713408
    %v182 = vunpack.c.0.s8 %v181
    %v183 = vlaneseq
    %v184 = vshrl.u32 %v183, 7
    %v185 = vsub.s32 %v182, %v184
    %v186 = vrot.slane %v178, %v185
    %v188 = vunpack.c.l.s4 1934713408
    %v189 = vunpack.c.0.s8 %v188
    %v190 = vlaneseq
    %v191 = vshrl.u32 %v190, 7
    %v192 = vsub.s32 %v189, %v191
    %v193 = vrot.slane %v179, %v192
    %v194 = vcombine.low %v129, %v145
    %v195 = vcombine.high %v129, %v145
    %v197 = vunpack.c.l.s4 1934713408
    %v198 = vunpack.c.0.s8 %v197
    %v199 = vlaneseq
    %v200 = vshrl.u32 %v199, 7
    %v201 = vsub.s32 %v198, %v200
    %v202 = vrot.slane %v194, %v201
    %v204 = vunpack.c.l.s4 1934713408
    %v205 = vunpack.c.0.s8 %v204
    %v206 = vlaneseq
    %v207 = vshrl.u32 %v206, 7
    %v208 = vsub.s32 %v205, %v207
    %v209 = vrot.slane %v195, %v208
    %v210 = vcombine.low %v154, %v186
    %v211 = vcombine.high %v154, %v186
    %v212 = vcombine.low %v161, %v193
    %v213 = vcombine.high %v161, %v193
    %v214 = vcombine.low %v170, %v202
    %v215 = vcombine.high %v170, %v202
    %v216 = vcombine.low %v177, %v209
    %v217 = vcombine.high %v177, %v209
    %219 = vrot.lane.b32.xlu0 %v57, 112
    %v220 = vpop.permute.xlu0 %219
    %222 = vrot.lane.b32.xlu0 %v57, 96
    %v223 = vpop.permute.xlu0 %222
    %225 = vrot.lane.b32.xlu0 %v57, 80
    %v226 = vpop.permute.xlu0 %225
    %228 = vrot.lane.b32.xlu0 %v57, 64
    %v229 = vpop.permute.xlu0 %228
    %231 = vrot.lane.b32.xlu0 %v57, 48
    %v232 = vpop.permute.xlu0 %231
    %234 = vrot.lane.b32.xlu0 %v57, 32
    %v235 = vpop.permute.xlu0 %234
    %237 = vrot.lane.b32.xlu0 %v57, 16
    %v238 = vpop.permute.xlu0 %237
    %v240 = vcombine.low %v57, %v223
    %v241 = vcombine.high %v57, %v223
    %v243 = vunpack.c.l.s4 1983009808
    %v244 = vunpack.c.0.s8 %v243
    %v245 = vlaneseq
    %v246 = vshrl.u32 %v245, 7
    %v247 = vsub.s32 %v244, %v246
    %v248 = vrot.slane %v240, %v247
    %v250 = vunpack.c.l.s4 1983009808
    %v251 = vunpack.c.0.s8 %v250
    %v252 = vlaneseq
    %v253 = vshrl.u32 %v252, 7
    %v254 = vsub.s32 %v251, %v253
    %v255 = vrot.slane %v241, %v254
    %v256 = vcombine.low %v220, %v226
    %v257 = vcombine.high %v220, %v226
    %v259 = vunpack.c.l.s4 1983009808
    %v260 = vunpack.c.0.s8 %v259
    %v261 = vlaneseq
    %v262 = vshrl.u32 %v261, 7
    %v263 = vsub.s32 %v260, %v262
    %v264 = vrot.slane %v256, %v263
    %v266 = vunpack.c.l.s4 1983009808
    %v267 = vunpack.c.0.s8 %v266
    %v268 = vlaneseq
    %v269 = vshrl.u32 %v268, 7
    %v270 = vsub.s32 %v267, %v269
    %v271 = vrot.slane %v257, %v270
    %v272 = vcombine.low %v229, %v235
    %v273 = vcombine.high %v229, %v235
    %v275 = vunpack.c.l.s4 1983009808
    %v276 = vunpack.c.0.s8 %v275
    %v277 = vlaneseq
    %v278 = vshrl.u32 %v277, 7
    %v279 = vsub.s32 %v276, %v278
    %v280 = vrot.slane %v272, %v279
    %v282 = vunpack.c.l.s4 1983009808
    %v283 = vunpack.c.0.s8 %v282
    %v284 = vlaneseq
    %v285 = vshrl.u32 %v284, 7
    %v286 = vsub.s32 %v283, %v285
    %v287 = vrot.slane %v273, %v286
    %v288 = vcombine.low %v232, %v238
    %v289 = vcombine.high %v232, %v238
    %v291 = vunpack.c.l.s4 1983009808
    %v292 = vunpack.c.0.s8 %v291
    %v293 = vlaneseq
    %v294 = vshrl.u32 %v293, 7
    %v295 = vsub.s32 %v292, %v294
    %v296 = vrot.slane %v288, %v295
    %v298 = vunpack.c.l.s4 1983009808
    %v299 = vunpack.c.0.s8 %v298
    %v300 = vlaneseq
    %v301 = vshrl.u32 %v300, 7
    %v302 = vsub.s32 %v299, %v301
    %v303 = vrot.slane %v289, %v302
    %v304 = vcombine.low %v248, %v264
    %v305 = vcombine.high %v248, %v264
    %v307 = vunpack.c.l.s4 1934713408
    %v308 = vunpack.c.0.s8 %v307
    %v309 = vlaneseq
    %v310 = vshrl.u32 %v309, 7
    %v311 = vsub.s32 %v308, %v310
    %v312 = vrot.slane %v304, %v311
    %v314 = vunpack.c.l.s4 1934713408
    %v315 = vunpack.c.0.s8 %v314
    %v316 = vlaneseq
    %v317 = vshrl.u32 %v316, 7
    %v318 = vsub.s32 %v315, %v317
    %v319 = vrot.slane %v305, %v318
    %v320 = vcombine.low %v255, %v271
    %v321 = vcombine.high %v255, %v271
    %v323 = vunpack.c.l.s4 1934713408
    %v324 = vunpack.c.0.s8 %v323
    %v325 = vlaneseq
    %v326 = vshrl.u32 %v325, 7
    %v327 = vsub.s32 %v324, %v326
    %v328 = vrot.slane %v320, %v327
    %v330 = vunpack.c.l.s4 1934713408
    %v331 = vunpack.c.0.s8 %v330
    %v332 = vlaneseq
    %v333 = vshrl.u32 %v332, 7
    %v334 = vsub.s32 %v331, %v333
    %v335 = vrot.slane %v321, %v334
    %v336 = vcombine.low %v280, %v296
    %v337 = vcombine.high %v280, %v296
    %v339 = vunpack.c.l.s4 1934713408
    %v340 = vunpack.c.0.s8 %v339
    %v341 = vlaneseq
    %v342 = vshrl.u32 %v341, 7
    %v343 = vsub.s32 %v340, %v342
    %v344 = vrot.slane %v336, %v343
    %v346 = vunpack.c.l.s4 1934713408
    %v347 = vunpack.c.0.s8 %v346
    %v348 = vlaneseq
    %v349 = vshrl.u32 %v348, 7
    %v350 = vsub.s32 %v347, %v349
    %v351 = vrot.slane %v337, %v350
    %v352 = vcombine.low %v287, %v303
    %v353 = vcombine.high %v287, %v303
    %v355 = vunpack.c.l.s4 1934713408
    %v356 = vunpack.c.0.s8 %v355
    %v357 = vlaneseq
    %v358 = vshrl.u32 %v357, 7
    %v359 = vsub.s32 %v356, %v358
    %v360 = vrot.slane %v352, %v359
    %v362 = vunpack.c.l.s4 1934713408
    %v363 = vunpack.c.0.s8 %v362
    %v364 = vlaneseq
    %v365 = vshrl.u32 %v364, 7
    %v366 = vsub.s32 %v363, %v365
    %v367 = vrot.slane %v353, %v366
    %v368 = vcombine.low %v312, %v344
    %v369 = vcombine.high %v312, %v344
    %v370 = vcombine.low %v319, %v351
    %v371 = vcombine.high %v319, %v351
    %v372 = vcombine.low %v328, %v360
    %v373 = vcombine.high %v328, %v360
    %v374 = vcombine.low %v335, %v367
    %v375 = vcombine.high %v335, %v367
    %377 = vrot.lane.b32.xlu0 %v59, 112
    %v378 = vpop.permute.xlu0 %377
    %380 = vrot.lane.b32.xlu0 %v59, 96
    %v381 = vpop.permute.xlu0 %380
    %383 = vrot.lane.b32.xlu0 %v59, 80
    %v384 = vpop.permute.xlu0 %383
    %386 = vrot.lane.b32.xlu0 %v59, 64
    %v387 = vpop.permute.xlu0 %386
    %389 = vrot.lane.b32.xlu0 %v59, 48
    %v390 = vpop.permute.xlu0 %389
    %392 = vrot.lane.b32.xlu0 %v59, 32
    %v393 = vpop.permute.xlu0 %392
    %395 = vrot.lane.b32.xlu0 %v59, 16
    %v396 = vpop.permute.xlu0 %395
    %v398 = vcombine.low %v59, %v381
    %v399 = vcombine.high %v59, %v381
    %v401 = vunpack.c.l.s4 1983009808
    %v402 = vunpack.c.0.s8 %v401
    %v403 = vlaneseq
    %v404 = vshrl.u32 %v403, 7
    %v405 = vsub.s32 %v402, %v404
    %v406 = vrot.slane %v398, %v405
    %v408 = vunpack.c.l.s4 1983009808
    %v409 = vunpack.c.0.s8 %v408
    %v410 = vlaneseq
    %v411 = vshrl.u32 %v410, 7
    %v412 = vsub.s32 %v409, %v411
    %v413 = vrot.slane %v399, %v412
    %v414 = vcombine.low %v378, %v384
    %v415 = vcombine.high %v378, %v384
    %v417 = vunpack.c.l.s4 1983009808
    %v418 = vunpack.c.0.s8 %v417
    %v419 = vlaneseq
    %v420 = vshrl.u32 %v419, 7
    %v421 = vsub.s32 %v418, %v420
    %v422 = vrot.slane %v414, %v421
    %v424 = vunpack.c.l.s4 1983009808
    %v425 = vunpack.c.0.s8 %v424
    %v426 = vlaneseq
    %v427 = vshrl.u32 %v426, 7
    %v428 = vsub.s32 %v425, %v427
    %v429 = vrot.slane %v415, %v428
    %v430 = vcombine.low %v387, %v393
    %v431 = vcombine.high %v387, %v393
    %v433 = vunpack.c.l.s4 1983009808
    %v434 = vunpack.c.0.s8 %v433
    %v435 = vlaneseq
    %v436 = vshrl.u32 %v435, 7
    %v437 = vsub.s32 %v434, %v436
    %v438 = vrot.slane %v430, %v437
    %v440 = vunpack.c.l.s4 1983009808
    %v441 = vunpack.c.0.s8 %v440
    %v442 = vlaneseq
    %v443 = vshrl.u32 %v442, 7
    %v444 = vsub.s32 %v441, %v443
    %v445 = vrot.slane %v431, %v444
    %v446 = vcombine.low %v390, %v396
    %v447 = vcombine.high %v390, %v396
    %v449 = vunpack.c.l.s4 1983009808
    %v450 = vunpack.c.0.s8 %v449
    %v451 = vlaneseq
    %v452 = vshrl.u32 %v451, 7
    %v453 = vsub.s32 %v450, %v452
    %v454 = vrot.slane %v446, %v453
    %v456 = vunpack.c.l.s4 1983009808
    %v457 = vunpack.c.0.s8 %v456
    %v458 = vlaneseq
    %v459 = vshrl.u32 %v458, 7
    %v460 = vsub.s32 %v457, %v459
    %v461 = vrot.slane %v447, %v460
    %v462 = vcombine.low %v406, %v422
    %v463 = vcombine.high %v406, %v422
    %v465 = vunpack.c.l.s4 1934713408
    %v466 = vunpack.c.0.s8 %v465
    %v467 = vlaneseq
    %v468 = vshrl.u32 %v467, 7
    %v469 = vsub.s32 %v466, %v468
    %v470 = vrot.slane %v462, %v469
    %v472 = vunpack.c.l.s4 1934713408
    %v473 = vunpack.c.0.s8 %v472
    %v474 = vlaneseq
    %v475 = vshrl.u32 %v474, 7
    %v476 = vsub.s32 %v473, %v475
    %v477 = vrot.slane %v463, %v476
    %v478 = vcombine.low %v413, %v429
    %v479 = vcombine.high %v413, %v429
    %v481 = vunpack.c.l.s4 1934713408
    %v482 = vunpack.c.0.s8 %v481
    %v483 = vlaneseq
    %v484 = vshrl.u32 %v483, 7
    %v485 = vsub.s32 %v482, %v484
    %v486 = vrot.slane %v478, %v485
    %v488 = vunpack.c.l.s4 1934713408
    %v489 = vunpack.c.0.s8 %v488
    %v490 = vlaneseq
    %v491 = vshrl.u32 %v490, 7
    %v492 = vsub.s32 %v489, %v491
    %v493 = vrot.slane %v479, %v492
    %v494 = vcombine.low %v438, %v454
    %v495 = vcombine.high %v438, %v454
    %v497 = vunpack.c.l.s4 1934713408
    %v498 = vunpack.c.0.s8 %v497
    %v499 = vlaneseq
    %v500 = vshrl.u32 %v499, 7
    %v501 = vsub.s32 %v498, %v500
    %v502 = vrot.slane %v494, %v501
    %v504 = vunpack.c.l.s4 1934713408
    %v505 = vunpack.c.0.s8 %v504
    %v506 = vlaneseq
    %v507 = vshrl.u32 %v506, 7
    %v508 = vsub.s32 %v505, %v507
    %v509 = vrot.slane %v495, %v508
    %v510 = vcombine.low %v445, %v461
    %v511 = vcombine.high %v445, %v461
    %v513 = vunpack.c.l.s4 1934713408
    %v514 = vunpack.c.0.s8 %v513
    %v515 = vlaneseq
    %v516 = vshrl.u32 %v515, 7
    %v517 = vsub.s32 %v514, %v516
    %v518 = vrot.slane %v510, %v517
    %v520 = vunpack.c.l.s4 1934713408
    %v521 = vunpack.c.0.s8 %v520
    %v522 = vlaneseq
    %v523 = vshrl.u32 %v522, 7
    %v524 = vsub.s32 %v521, %v523
    %v525 = vrot.slane %v511, %v524
    %v526 = vcombine.low %v470, %v502
    %v527 = vcombine.high %v470, %v502
    %v528 = vcombine.low %v477, %v509
    %v529 = vcombine.high %v477, %v509
    %v530 = vcombine.low %v486, %v518
    %v531 = vcombine.high %v486, %v518
    %v532 = vcombine.low %v493, %v525
    %v533 = vcombine.high %v493, %v525
    %v534 = vpack.c.bf16 %v210, %v210
    %v535 = vpack.c.bf16 %v211, %v211
    %v536 = vpack.c.bf16 %v212, %v212
    %v537 = vpack.c.bf16 %v213, %v213
    %v538 = vpack.c.bf16 %v214, %v214
    %v539 = vpack.c.bf16 %v215, %v215
    %v540 = vpack.c.bf16 %v216, %v216
    %v541 = vpack.c.bf16 %v217, %v217
    %v542 = vpack.c.bf16 %v368, %v368
    %v543 = vpack.c.bf16 %v369, %v369
    %v544 = vpack.c.bf16 %v370, %v370
    %v545 = vpack.c.bf16 %v371, %v371
    %v546 = vpack.c.bf16 %v372, %v372
    %v547 = vpack.c.bf16 %v373, %v373
    %v548 = vpack.c.bf16 %v374, %v374
    %v549 = vpack.c.bf16 %v375, %v375
    %v550 = vld [vmem:[%s3] sm:$0xff]
    %vm551 = vcmask 130048
    %v553 = vsel %vm551, %v534, 0
    %v556 = vsel %vm551, %v542, 0
    %558 = vmatprep.subr.bf16.mxu0 0
    %559 = vmatpush1.bf16.xpose.msra.mxu0 %v556
    %560 = vmatprep.subr.bf16.mxu0 0
    %561 = vmatpush1.bf16.xpose.msra.mxu0 0
    %562 = vmatprep.subr.bf16.mxu0 0
    %563 = vmatpush1.bf16.xpose.msra.mxu0 0
    %564 = vmatprep.subr.bf16.mxu0 0
    %565 = vmatpush1.bf16.xpose.msra.mxu0 0
    %566 = vmatprep.subr.bf16.mxu0 0
    %567 = vmatpush1.bf16.xpose.msra.mxu0 0
    %568 = vmatprep.subr.bf16.mxu0 0
    %569 = vmatpush1.bf16.xpose.msra.mxu0 0
    %570 = vmatprep.subr.bf16.mxu0 0
    %571 = vmatpush1.bf16.xpose.msra.mxu0 0
    %572 = vmatprep.subr.bf16.mxu0 0
    %573 = vmatpush1.bf16.xpose.msra.mxu0 0
    %574 = vmatprep.subr.bf16.mxu0 0
    %575 = vmatpush1.bf16.xpose.msra.mxu0 0
    %576 = vmatprep.subr.bf16.mxu0 0
    %577 = vmatpush1.bf16.xpose.msra.mxu0 0
    %578 = vmatprep.subr.bf16.mxu0 0
    %579 = vmatpush1.bf16.xpose.msra.mxu0 0
    %580 = vmatprep.subr.bf16.mxu0 0
    %581 = vmatpush1.bf16.xpose.msra.mxu0 0
    %582 = vmatprep.subr.bf16.mxu0 0
    %583 = vmatpush1.bf16.xpose.msra.mxu0 0
    %584 = vmatprep.subr.bf16.mxu0 0
    %585 = vmatpush1.bf16.xpose.msra.mxu0 0
    %586 = vmatprep.subr.bf16.mxu0 0
    %587 = vmatpush1.bf16.xpose.msra.mxu0 0
    %588 = vmatprep.subr.bf16.mxu0 0
    %589 = vmatpush1.bf16.xpose.msra.mxu0 0
    %590 = vmatprep.mubr.bf16.mxu0 0
    %591 = vmatmul.mubr.bf16.gmra.mrb[0].mxu0 %v553
    %v592 = vpop.f32.mrb[0].mxu0
    %v593 = vadd.f32 %v550, %v592
    %v594 = vpop.f32.mrb[0].mxu0
    %v595 = vpop.f32.mrb[0].mxu0
    %v596 = vpop.f32.mrb[0].mxu0
    %597 = vdwg.mxu0
    %v599 = vsel %vm551, %v535, 0
    %v602 = vsel %vm551, %v543, 0
    %604 = vmatprep.subr.bf16.mxu0 0
    %605 = vmatpush1.bf16.xpose.msra.mxu0 %v602
    %606 = vmatprep.subr.bf16.mxu0 0
    %607 = vmatpush1.bf16.xpose.msra.mxu0 0
    %608 = vmatprep.subr.bf16.mxu0 0
    %609 = vmatpush1.bf16.xpose.msra.mxu0 0
    %610 = vmatprep.subr.bf16.mxu0 0
    %611 = vmatpush1.bf16.xpose.msra.mxu0 0
    %612 = vmatprep.subr.bf16.mxu0 0
    %613 = vmatpush1.bf16.xpose.msra.mxu0 0
    %614 = vmatprep.subr.bf16.mxu0 0
    %615 = vmatpush1.bf16.xpose.msra.mxu0 0
    %616 = vmatprep.subr.bf16.mxu0 0
    %617 = vmatpush1.bf16.xpose.msra.mxu0 0
    %618 = vmatprep.subr.bf16.mxu0 0
    %619 = vmatpush1.bf16.xpose.msra.mxu0 0
    %620 = vmatprep.subr.bf16.mxu0 0
    %621 = vmatpush1.bf16.xpose.msra.mxu0 0
    %622 = vmatprep.subr.bf16.mxu0 0
    %623 = vmatpush1.bf16.xpose.msra.mxu0 0
    %624 = vmatprep.subr.bf16.mxu0 0
    %625 = vmatpush1.bf16.xpose.msra.mxu0 0
    %626 = vmatprep.subr.bf16.mxu0 0
    %627 = vmatpush1.bf16.xpose.msra.mxu0 0
    %628 = vmatprep.subr.bf16.mxu0 0
    %629 = vmatpush1.bf16.xpose.msra.mxu0 0
    %630 = vmatprep.subr.bf16.mxu0 0
    %631 = vmatpush1.bf16.xpose.msra.mxu0 0
    %632 = vmatprep.subr.bf16.mxu0 0
    %633 = vmatpush1.bf16.xpose.msra.mxu0 0
    %634 = vmatprep.subr.bf16.mxu0 0
    %635 = vmatpush1.bf16.xpose.msra.mxu0 0
    %636 = vmatprep.mubr.bf16.mxu0 0
    %637 = vmatmul.mubr.bf16.gmra.mrb[0].mxu0 %v599
    %v638 = vpop.f32.mrb[0].mxu0
    %v639 = vadd.f32 %v550, %v638
    %v640 = vpop.f32.mrb[0].mxu0
    %v641 = vpop.f32.mrb[0].mxu0
    %v642 = vpop.f32.mrb[0].mxu0
    %643 = vdwg.mxu0
    %v645 = vsel %vm551, %v536, 0
    %v648 = vsel %vm551, %v544, 0
    %650 = vmatprep.subr.bf16.mxu0 0
    %651 = vmatpush1.bf16.xpose.msra.mxu0 %v648
    %652 = vmatprep.subr.bf16.mxu0 0
    %653 = vmatpush1.bf16.xpose.msra.mxu0 0
    %654 = vmatprep.subr.bf16.mxu0 0
    %655 = vmatpush1.bf16.xpose.msra.mxu0 0
    %656 = vmatprep.subr.bf16.mxu0 0
    %657 = vmatpush1.bf16.xpose.msra.mxu0 0
    %658 = vmatprep.subr.bf16.mxu0 0
    %659 = vmatpush1.bf16.xpose.msra.mxu0 0
    %660 = vmatprep.subr.bf16.mxu0 0
    %661 = vmatpush1.bf16.xpose.msra.mxu0 0
    %662 = vmatprep.subr.bf16.mxu0 0
    %663 = vmatpush1.bf16.xpose.msra.mxu0 0
    %664 = vmatprep.subr.bf16.mxu0 0
    %665 = vmatpush1.bf16.xpose.msra.mxu0 0
    %666 = vmatprep.subr.bf16.mxu0 0
    %667 = vmatpush1.bf16.xpose.msra.mxu0 0
    %668 = vmatprep.subr.bf16.mxu0 0
    %669 = vmatpush1.bf16.xpose.msra.mxu0 0
    %670 = vmatprep.subr.bf16.mxu0 0
    %671 = vmatpush1.bf16.xpose.msra.mxu0 0
    %672 = vmatprep.subr.bf16.mxu0 0
    %673 = vmatpush1.bf16.xpose.msra.mxu0 0
    %674 = vmatprep.subr.bf16.mxu0 0
    %675 = vmatpush1.bf16.xpose.msra.mxu0 0
    %676 = vmatprep.subr.bf16.mxu0 0
    %677 = vmatpush1.bf16.xpose.msra.mxu0 0
    %678 = vmatprep.subr.bf16.mxu0 0
    %679 = vmatpush1.bf16.xpose.msra.mxu0 0
    %680 = vmatprep.subr.bf16.mxu0 0
    %681 = vmatpush1.bf16.xpose.msra.mxu0 0
    %682 = vmatprep.mubr.bf16.mxu0 0
    %683 = vmatmul.mubr.bf16.gmra.mrb[0].mxu0 %v645
    %v684 = vpop.f32.mrb[0].mxu0
    %v685 = vadd.f32 %v550, %v684
    %v686 = vpop.f32.mrb[0].mxu0
    %v687 = vpop.f32.mrb[0].mxu0
    %v688 = vpop.f32.mrb[0].mxu0
    %689 = vdwg.mxu0
    %v691 = vsel %vm551, %v537, 0
    %v694 = vsel %vm551, %v545, 0
    %696 = vmatprep.subr.bf16.mxu0 0
    %697 = vmatpush1.bf16.xpose.msra.mxu0 %v694
    %698 = vmatprep.subr.bf16.mxu0 0
    %699 = vmatpush1.bf16.xpose.msra.mxu0 0
    %700 = vmatprep.subr.bf16.mxu0 0
    %701 = vmatpush1.bf16.xpose.msra.mxu0 0
    %702 = vmatprep.subr.bf16.mxu0 0
    %703 = vmatpush1.bf16.xpose.msra.mxu0 0
    %704 = vmatprep.subr.bf16.mxu0 0
    %705 = vmatpush1.bf16.xpose.msra.mxu0 0
    %706 = vmatprep.subr.bf16.mxu0 0
    %707 = vmatpush1.bf16.xpose.msra.mxu0 0
    %708 = vmatprep.subr.bf16.mxu0 0
    %709 = vmatpush1.bf16.xpose.msra.mxu0 0
    %710 = vmatprep.subr.bf16.mxu0 0
    %711 = vmatpush1.bf16.xpose.msra.mxu0 0
    %712 = vmatprep.subr.bf16.mxu0 0
    %713 = vmatpush1.bf16.xpose.msra.mxu0 0
    %714 = vmatprep.subr.bf16.mxu0 0
    %715 = vmatpush1.bf16.xpose.msra.mxu0 0
    %716 = vmatprep.subr.bf16.mxu0 0
    %717 = vmatpush1.bf16.xpose.msra.mxu0 0
    %718 = vmatprep.subr.bf16.mxu0 0
    %719 = vmatpush1.bf16.xpose.msra.mxu0 0
    %720 = vmatprep.subr.bf16.mxu0 0
    %721 = vmatpush1.bf16.xpose.msra.mxu0 0
    %722 = vmatprep.subr.bf16.mxu0 0
    %723 = vmatpush1.bf16.xpose.msra.mxu0 0
    %724 = vmatprep.subr.bf16.mxu0 0
    %725 = vmatpush1.bf16.xpose.msra.mxu0 0
    %726 = vmatprep.subr.bf16.mxu0 0
    %727 = vmatpush1.bf16.xpose.msra.mxu0 0
    %728 = vmatprep.mubr.bf16.mxu0 0
    %729 = vmatmul.mubr.bf16.gmra.mrb[0].mxu0 %v691
    %v730 = vpop.f32.mrb[0].mxu0
    %v731 = vadd.f32 %v550, %v730
    %v732 = vpop.f32.mrb[0].mxu0
    %v733 = vpop.f32.mrb[0].mxu0
    %v734 = vpop.f32.mrb[0].mxu0
    %735 = vdwg.mxu0
    %v737 = vsel %vm551, %v538, 0
    %v740 = vsel %vm551, %v546, 0
    %742 = vmatprep.subr.bf16.mxu0 0
    %743 = vmatpush1.bf16.xpose.msra.mxu0 %v740
    %744 = vmatprep.subr.bf16.mxu0 0
    %745 = vmatpush1.bf16.xpose.msra.mxu0 0
    %746 = vmatprep.subr.bf16.mxu0 0
    %747 = vmatpush1.bf16.xpose.msra.mxu0 0
    %748 = vmatprep.subr.bf16.mxu0 0
    %749 = vmatpush1.bf16.xpose.msra.mxu0 0
    %750 = vmatprep.subr.bf16.mxu0 0
    %751 = vmatpush1.bf16.xpose.msra.mxu0 0
    %752 = vmatprep.subr.bf16.mxu0 0
    %753 = vmatpush1.bf16.xpose.msra.mxu0 0
    %754 = vmatprep.subr.bf16.mxu0 0
    %755 = vmatpush1.bf16.xpose.msra.mxu0 0
    %756 = vmatprep.subr.bf16.mxu0 0
    %757 = vmatpush1.bf16.xpose.msra.mxu0 0
    %758 = vmatprep.subr.bf16.mxu0 0
    %759 = vmatpush1.bf16.xpose.msra.mxu0 0
    %760 = vmatprep.subr.bf16.mxu0 0
    %761 = vmatpush1.bf16.xpose.msra.mxu0 0
    %762 = vmatprep.subr.bf16.mxu0 0
    %763 = vmatpush1.bf16.xpose.msra.mxu0 0
    %764 = vmatprep.subr.bf16.mxu0 0
    %765 = vmatpush1.bf16.xpose.msra.mxu0 0
    %766 = vmatprep.subr.bf16.mxu0 0
    %767 = vmatpush1.bf16.xpose.msra.mxu0 0
    %768 = vmatprep.subr.bf16.mxu0 0
    %769 = vmatpush1.bf16.xpose.msra.mxu0 0
    %770 = vmatprep.subr.bf16.mxu0 0
    %771 = vmatpush1.bf16.xpose.msra.mxu0 0
    %772 = vmatprep.subr.bf16.mxu0 0
    %773 = vmatpush1.bf16.xpose.msra.mxu0 0
    %774 = vmatprep.mubr.bf16.mxu0 0
    %775 = vmatmul.mubr.bf16.gmra.mrb[0].mxu0 %v737
    %v776 = vpop.f32.mrb[0].mxu0
    %v777 = vadd.f32 %v550, %v776
    %v778 = vpop.f32.mrb[0].mxu0
    %v779 = vpop.f32.mrb[0].mxu0
    %v780 = vpop.f32.mrb[0].mxu0
    %781 = vdwg.mxu0
    %v783 = vsel %vm551, %v539, 0
    %v786 = vsel %vm551, %v547, 0
    %788 = vmatprep.subr.bf16.mxu0 0
    %789 = vmatpush1.bf16.xpose.msra.mxu0 %v786
    %790 = vmatprep.subr.bf16.mxu0 0
    %791 = vmatpush1.bf16.xpose.msra.mxu0 0
    %792 = vmatprep.subr.bf16.mxu0 0
    %793 = vmatpush1.bf16.xpose.msra.mxu0 0
    %794 = vmatprep.subr.bf16.mxu0 0
    %795 = vmatpush1.bf16.xpose.msra.mxu0 0
    %796 = vmatprep.subr.bf16.mxu0 0
    %797 = vmatpush1.bf16.xpose.msra.mxu0 0
    %798 = vmatprep.subr.bf16.mxu0 0
    %799 = vmatpush1.bf16.xpose.msra.mxu0 0
    %800 = vmatprep.subr.bf16.mxu0 0
    %801 = vmatpush1.bf16.xpose.msra.mxu0 0
    %802 = vmatprep.subr.bf16.mxu0 0
    %803 = vmatpush1.bf16.xpose.msra.mxu0 0
    %804 = vmatprep.subr.bf16.mxu0 0
    %805 = vmatpush1.bf16.xpose.msra.mxu0 0
    %806 = vmatprep.subr.bf16.mxu0 0
    %807 = vmatpush1.bf16.xpose.msra.mxu0 0
    %808 = vmatprep.subr.bf16.mxu0 0
    %809 = vmatpush1.bf16.xpose.msra.mxu0 0
    %810 = vmatprep.subr.bf16.mxu0 0
    %811 = vmatpush1.bf16.xpose.msra.mxu0 0
    %812 = vmatprep.subr.bf16.mxu0 0
    %813 = vmatpush1.bf16.xpose.msra.mxu0 0
    %814 = vmatprep.subr.bf16.mxu0 0
    %815 = vmatpush1.bf16.xpose.msra.mxu0 0
    %816 = vmatprep.subr.bf16.mxu0 0
    %817 = vmatpush1.bf16.xpose.msra.mxu0 0
    %818 = vmatprep.subr.bf16.mxu0 0
    %819 = vmatpush1.bf16.xpose.msra.mxu0 0
    %820 = vmatprep.mubr.bf16.mxu0 0
    %821 = vmatmul.mubr.bf16.gmra.mrb[0].mxu0 %v783
    %v822 = vpop.f32.mrb[0].mxu0
    %v823 = vadd.f32 %v550, %v822
    %v824 = vpop.f32.mrb[0].mxu0
    %v825 = vpop.f32.mrb[0].mxu0
    %v826 = vpop.f32.mrb[0].mxu0
    %827 = vdwg.mxu0
    %v829 = vsel %vm551, %v540, 0
    %v832 = vsel %vm551, %v548, 0
    %834 = vmatprep.subr.bf16.mxu0 0
    %835 = vmatpush1.bf16.xpose.msra.mxu0 %v832
    %836 = vmatprep.subr.bf16.mxu0 0
    %837 = vmatpush1.bf16.xpose.msra.mxu0 0
    %838 = vmatprep.subr.bf16.mxu0 0
    %839 = vmatpush1.bf16.xpose.msra.mxu0 0
    %840 = vmatprep.subr.bf16.mxu0 0
    %841 = vmatpush1.bf16.xpose.msra.mxu0 0
    %842 = vmatprep.subr.bf16.mxu0 0
    %843 = vmatpush1.bf16.xpose.msra.mxu0 0
    %844 = vmatprep.subr.bf16.mxu0 0
    %845 = vmatpush1.bf16.xpose.msra.mxu0 0
    %846 = vmatprep.subr.bf16.mxu0 0
    %847 = vmatpush1.bf16.xpose.msra.mxu0 0
    %848 = vmatprep.subr.bf16.mxu0 0
    %849 = vmatpush1.bf16.xpose.msra.mxu0 0
    %850 = vmatprep.subr.bf16.mxu0 0
    %851 = vmatpush1.bf16.xpose.msra.mxu0 0
    %852 = vmatprep.subr.bf16.mxu0 0
    %853 = vmatpush1.bf16.xpose.msra.mxu0 0
    %854 = vmatprep.subr.bf16.mxu0 0
    %855 = vmatpush1.bf16.xpose.msra.mxu0 0
    %856 = vmatprep.subr.bf16.mxu0 0
    %857 = vmatpush1.bf16.xpose.msra.mxu0 0
    %858 = vmatprep.subr.bf16.mxu0 0
    %859 = vmatpush1.bf16.xpose.msra.mxu0 0
    %860 = vmatprep.subr.bf16.mxu0 0
    %861 = vmatpush1.bf16.xpose.msra.mxu0 0
    %862 = vmatprep.subr.bf16.mxu0 0
    %863 = vmatpush1.bf16.xpose.msra.mxu0 0
    %864 = vmatprep.subr.bf16.mxu0 0
    %865 = vmatpush1.bf16.xpose.msra.mxu0 0
    %866 = vmatprep.mubr.bf16.mxu0 0
    %867 = vmatmul.mubr.bf16.gmra.mrb[0].mxu0 %v829
    %v868 = vpop.f32.mrb[0].mxu0
    %v869 = vadd.f32 %v550, %v868
    %v870 = vpop.f32.mrb[0].mxu0
    %v871 = vpop.f32.mrb[0].mxu0
    %v872 = vpop.f32.mrb[0].mxu0
    %873 = vdwg.mxu0
    %v875 = vsel %vm551, %v541, 0
    %v878 = vsel %vm551, %v549, 0
    %880 = vmatprep.subr.bf16.mxu0 0
    %881 = vmatpush1.bf16.xpose.msra.mxu0 %v878
    %882 = vmatprep.subr.bf16.mxu0 0
    %883 = vmatpush1.bf16.xpose.msra.mxu0 0
    %884 = vmatprep.subr.bf16.mxu0 0
    %885 = vmatpush1.bf16.xpose.msra.mxu0 0
    %886 = vmatprep.subr.bf16.mxu0 0
    %887 = vmatpush1.bf16.xpose.msra.mxu0 0
    %888 = vmatprep.subr.bf16.mxu0 0
    %889 = vmatpush1.bf16.xpose.msra.mxu0 0
    %890 = vmatprep.subr.bf16.mxu0 0
    %891 = vmatpush1.bf16.xpose.msra.mxu0 0
    %892 = vmatprep.subr.bf16.mxu0 0
    %893 = vmatpush1.bf16.xpose.msra.mxu0 0
    %894 = vmatprep.subr.bf16.mxu0 0
    %895 = vmatpush1.bf16.xpose.msra.mxu0 0
    %896 = vmatprep.subr.bf16.mxu0 0
    %897 = vmatpush1.bf16.xpose.msra.mxu0 0
    %898 = vmatprep.subr.bf16.mxu0 0
    %899 = vmatpush1.bf16.xpose.msra.mxu0 0
    %900 = vmatprep.subr.bf16.mxu0 0
    %901 = vmatpush1.bf16.xpose.msra.mxu0 0
    %902 = vmatprep.subr.bf16.mxu0 0
    %903 = vmatpush1.bf16.xpose.msra.mxu0 0
    %904 = vmatprep.subr.bf16.mxu0 0
    %905 = vmatpush1.bf16.xpose.msra.mxu0 0
    %906 = vmatprep.subr.bf16.mxu0 0
    %907 = vmatpush1.bf16.xpose.msra.mxu0 0
    %908 = vmatprep.subr.bf16.mxu0 0
    %909 = vmatpush1.bf16.xpose.msra.mxu0 0
    %910 = vmatprep.subr.bf16.mxu0 0
    %911 = vmatpush1.bf16.xpose.msra.mxu0 0
    %912 = vmatprep.mubr.bf16.mxu0 0
    %913 = vmatmul.mubr.bf16.gmra.mrb[0].mxu0 %v875
    %v914 = vpop.f32.mrb[0].mxu0
    %v915 = vadd.f32 %v550, %v914
    %v916 = vpop.f32.mrb[0].mxu0
    %v917 = vpop.f32.mrb[0].mxu0
    %v918 = vpop.f32.mrb[0].mxu0
    %919 = vdwg.mxu0
    %vm920 = vcmask 64512
    %v921 = vsel %vm920, %v593, -inf
    %922 = vmax.xlane.f32.xlu0 %v921
    %v923 = vpop.xlane.xlu0 %922
    %v924 = vsel %vm920, %v639, -inf
    %925 = vmax.xlane.f32.xlu0 %v924
    %v926 = vpop.xlane.xlu0 %925
    %v927 = vsel %vm920, %v685, -inf
    %928 = vmax.xlane.f32.xlu0 %v927
    %v929 = vpop.xlane.xlu0 %928
    %v930 = vsel %vm920, %v731, -inf
    %931 = vmax.xlane.f32.xlu0 %v930
    %v932 = vpop.xlane.xlu0 %931
    %v933 = vsel %vm920, %v777, -inf
    %934 = vmax.xlane.f32.xlu0 %v933
    %v935 = vpop.xlane.xlu0 %934
    %v936 = vsel %vm920, %v823, -inf
    %937 = vmax.xlane.f32.xlu0 %v936
    %v938 = vpop.xlane.xlu0 %937
    %v939 = vsel %vm920, %v869, -inf
    %940 = vmax.xlane.f32.xlu0 %v939
    %v941 = vpop.xlane.xlu0 %940
    %v942 = vsel %vm920, %v915, -inf
    %943 = vmax.xlane.f32.xlu0 %v942
    %v944 = vpop.xlane.xlu0 %943
    %v945 = vsub.f32 %v593, %v923
    %v946 = vsub.f32 %v639, %v926
    %v947 = vsub.f32 %v685, %v929
    %v948 = vsub.f32 %v731, %v932
    %v949 = vsub.f32 %v777, %v935
    %v950 = vsub.f32 %v823, %v938
    %v951 = vsub.f32 %v869, %v941
    %v952 = vsub.f32 %v915, %v944
    %v953 = vmul.f32 %v945, 1.442695
    %v954 = vpow.pop %v953
    %v955 = vmul.f32 %v946, 1.442695
    %v956 = vpow.pop %v955
    %v957 = vmul.f32 %v947, 1.442695
    %v958 = vpow.pop %v957
    %v959 = vmul.f32 %v948, 1.442695
    %v960 = vpow.pop %v959
    %v961 = vmul.f32 %v949, 1.442695
    %v962 = vpow.pop %v961
    %v963 = vmul.f32 %v950, 1.442695
    %v964 = vpow.pop %v963
    %v965 = vmul.f32 %v951, 1.442695
    %v966 = vpow.pop %v965
    %v967 = vmul.f32 %v952, 1.442695
    %v968 = vpow.pop %v967
    %v969 = vsel %vm920, %v954, 0.0
    %970 = vadd.xlane.f32.xlu0 %v969
    %v971 = vpop.xlane.xlu0 %970
    %v972 = vsel %vm920, %v956, 0.0
    %973 = vadd.xlane.f32.xlu0 %v972
    %v974 = vpop.xlane.xlu0 %973
    %v975 = vsel %vm920, %v958, 0.0
    %976 = vadd.xlane.f32.xlu0 %v975
    %v977 = vpop.xlane.xlu0 %976
    %v978 = vsel %vm920, %v960, 0.0
    %979 = vadd.xlane.f32.xlu0 %v978
    %v980 = vpop.xlane.xlu0 %979
    %v981 = vsel %vm920, %v962, 0.0
    %982 = vadd.xlane.f32.xlu0 %v981
    %v983 = vpop.xlane.xlu0 %982
    %v984 = vsel %vm920, %v964, 0.0
    %985 = vadd.xlane.f32.xlu0 %v984
    %v986 = vpop.xlane.xlu0 %985
    %v987 = vsel %vm920, %v966, 0.0
    %988 = vadd.xlane.f32.xlu0 %v987
    %v989 = vpop.xlane.xlu0 %988
    %v990 = vsel %vm920, %v968, 0.0
    %991 = vadd.xlane.f32.xlu0 %v990
    %v992 = vpop.xlane.xlu0 %991
    %v993 = vrcp.pop %v971
    %v994 = vmul.f32 %v954, %v993
    %v995 = vrcp.pop %v974
    %v996 = vmul.f32 %v956, %v995
    %v997 = vrcp.pop %v977
    %v998 = vmul.f32 %v958, %v997
    %v999 = vrcp.pop %v980
    %v1000 = vmul.f32 %v960, %v999
    %v1001 = vrcp.pop %v983
    %v1002 = vmul.f32 %v962, %v1001
    %v1003 = vrcp.pop %v986
    %v1004 = vmul.f32 %v964, %v1003
    %v1005 = vrcp.pop %v989
    %v1006 = vmul.f32 %v966, %v1005
    %v1007 = vrcp.pop %v992
    %v1008 = vmul.f32 %v968, %v1007
    %v1009 = vpack.c.bf16 %v994, %v994
    %v1010 = vpack.c.bf16 %v996, %v996
    %v1011 = vpack.c.bf16 %v998, %v998
    %v1012 = vpack.c.bf16 %v1000, %v1000
    %v1013 = vpack.c.bf16 %v1002, %v1002
    %v1014 = vpack.c.bf16 %v1004, %v1004
    %v1015 = vpack.c.bf16 %v1006, %v1006
    %v1016 = vpack.c.bf16 %v1008, %v1008
    %v1017 = vpack.c.bf16 %v526, %v526
    %v1018 = vpack.c.bf16 %v527, %v527
    %v1019 = vpack.c.bf16 %v528, %v528
    %v1020 = vpack.c.bf16 %v529, %v529
    %v1021 = vpack.c.bf16 %v530, %v530
    %v1022 = vpack.c.bf16 %v531, %v531
    %v1023 = vpack.c.bf16 %v532, %v532
    %v1024 = vpack.c.bf16 %v533, %v533
    %v1026 = vsel %vm920, %v1009, 0
    %vm1028 = vcmask 1043456
    %v1030 = vsel %vm1028, %v1017, 0
    %1032 = vmatprep.subr.bf16.mxu0 0
    %1033 = vmatpush1.bf16.msra.mxu0 %v1030
    %1034 = vmatprep.subr.bf16.mxu0 0
    %1035 = vmatpush1.bf16.msra.mxu0 0
    %1036 = vmatprep.subr.bf16.mxu0 0
    %1037 = vmatpush1.bf16.msra.mxu0 0
    %1038 = vmatprep.subr.bf16.mxu0 0
    %1039 = vmatpush1.bf16.msra.mxu0 0
    %1040 = vmatprep.subr.bf16.mxu0 0
    %1041 = vmatpush1.bf16.msra.mxu0 0
    %1042 = vmatprep.subr.bf16.mxu0 0
    %1043 = vmatpush1.bf16.msra.mxu0 0
    %1044 = vmatprep.subr.bf16.mxu0 0
    %1045 = vmatpush1.bf16.msra.mxu0 0
    %1046 = vmatprep.subr.bf16.mxu0 0
    %1047 = vmatpush1.bf16.msra.mxu0 0
    %1048 = vmatprep.subr.bf16.mxu0 0
    %1049 = vmatpush1.bf16.msra.mxu0 0
    %1050 = vmatprep.subr.bf16.mxu0 0
    %1051 = vmatpush1.bf16.msra.mxu0 0
    %1052 = vmatprep.subr.bf16.mxu0 0
    %1053 = vmatpush1.bf16.msra.mxu0 0
    %1054 = vmatprep.subr.bf16.mxu0 0
    %1055 = vmatpush1.bf16.msra.mxu0 0
    %1056 = vmatprep.subr.bf16.mxu0 0
    %1057 = vmatpush1.bf16.msra.mxu0 0
    %1058 = vmatprep.subr.bf16.mxu0 0
    %1059 = vmatpush1.bf16.msra.mxu0 0
    %1060 = vmatprep.subr.bf16.mxu0 0
    %1061 = vmatpush1.bf16.msra.mxu0 0
    %1062 = vmatprep.subr.bf16.mxu0 0
    %1063 = vmatpush1.bf16.msra.mxu0 0
    %1064 = vmatprep.mubr.bf16.mxu0 0
    %1065 = vmatmul.mubr.bf16.gmra.mrb[0].mxu0 %v1026
    %v1066 = vpop.f32.mrb[0].mxu0
    %v1067 = vadd.f32 0.0, %v1066
    %v1068 = vpop.f32.mrb[0].mxu0
    %v1069 = vpop.f32.mrb[0].mxu0
    %v1070 = vpop.f32.mrb[0].mxu0
    %1071 = vdwg.mxu0
    %v1073 = vsel %vm920, %v1010, 0
    %v1076 = vsel %vm1028, %v1018, 0
    %1078 = vmatprep.subr.bf16.mxu0 0
    %1079 = vmatpush1.bf16.msra.mxu0 %v1076
    %1080 = vmatprep.subr.bf16.mxu0 0
    %1081 = vmatpush1.bf16.msra.mxu0 0
    %1082 = vmatprep.subr.bf16.mxu0 0
    %1083 = vmatpush1.bf16.msra.mxu0 0
    %1084 = vmatprep.subr.bf16.mxu0 0
    %1085 = vmatpush1.bf16.msra.mxu0 0
    %1086 = vmatprep.subr.bf16.mxu0 0
    %1087 = vmatpush1.bf16.msra.mxu0 0
    %1088 = vmatprep.subr.bf16.mxu0 0
    %1089 = vmatpush1.bf16.msra.mxu0 0
    %1090 = vmatprep.subr.bf16.mxu0 0
    %1091 = vmatpush1.bf16.msra.mxu0 0
    %1092 = vmatprep.subr.bf16.mxu0 0
    %1093 = vmatpush1.bf16.msra.mxu0 0
    %1094 = vmatprep.subr.bf16.mxu0 0
    %1095 = vmatpush1.bf16.msra.mxu0 0
    %1096 = vmatprep.subr.bf16.mxu0 0
    %1097 = vmatpush1.bf16.msra.mxu0 0
    %1098 = vmatprep.subr.bf16.mxu0 0
    %1099 = vmatpush1.bf16.msra.mxu0 0
    %1100 = vmatprep.subr.bf16.mxu0 0
    %1101 = vmatpush1.bf16.msra.mxu0 0
    %1102 = vmatprep.subr.bf16.mxu0 0
    %1103 = vmatpush1.bf16.msra.mxu0 0
    %1104 = vmatprep.subr.bf16.mxu0 0
    %1105 = vmatpush1.bf16.msra.mxu0 0
    %1106 = vmatprep.subr.bf16.mxu0 0
    %1107 = vmatpush1.bf16.msra.mxu0 0
    %1108 = vmatprep.subr.bf16.mxu0 0
    %1109 = vmatpush1.bf16.msra.mxu0 0
    %1110 = vmatprep.mubr.bf16.mxu0 0
    %1111 = vmatmul.mubr.bf16.gmra.mrb[0].mxu0 %v1073
    %v1112 = vpop.f32.mrb[0].mxu0
    %v1113 = vadd.f32 0.0, %v1112
    %v1114 = vpop.f32.mrb[0].mxu0
    %v1115 = vpop.f32.mrb[0].mxu0
    %v1116 = vpop.f32.mrb[0].mxu0
    %1117 = vdwg.mxu0
    %v1119 = vsel %vm920, %v1011, 0
    %v1122 = vsel %vm1028, %v1019, 0
    %1124 = vmatprep.subr.bf16.mxu0 0
    %1125 = vmatpush1.bf16.msra.mxu0 %v1122
    %1126 = vmatprep.subr.bf16.mxu0 0
    %1127 = vmatpush1.bf16.msra.mxu0 0
    %1128 = vmatprep.subr.bf16.mxu0 0
    %1129 = vmatpush1.bf16.msra.mxu0 0
    %1130 = vmatprep.subr.bf16.mxu0 0
    %1131 = vmatpush1.bf16.msra.mxu0 0
    %1132 = vmatprep.subr.bf16.mxu0 0
    %1133 = vmatpush1.bf16.msra.mxu0 0
    %1134 = vmatprep.subr.bf16.mxu0 0
    %1135 = vmatpush1.bf16.msra.mxu0 0
    %1136 = vmatprep.subr.bf16.mxu0 0
    %1137 = vmatpush1.bf16.msra.mxu0 0
    %1138 = vmatprep.subr.bf16.mxu0 0
    %1139 = vmatpush1.bf16.msra.mxu0 0
    %1140 = vmatprep.subr.bf16.mxu0 0
    %1141 = vmatpush1.bf16.msra.mxu0 0
    %1142 = vmatprep.subr.bf16.mxu0 0
    %1143 = vmatpush1.bf16.msra.mxu0 0
    %1144 = vmatprep.subr.bf16.mxu0 0
    %1145 = vmatpush1.bf16.msra.mxu0 0
    %1146 = vmatprep.subr.bf16.mxu0 0
    %1147 = vmatpush1.bf16.msra.mxu0 0
    %1148 = vmatprep.subr.bf16.mxu0 0
    %1149 = vmatpush1.bf16.msra.mxu0 0
    %1150 = vmatprep.subr.bf16.mxu0 0
    %1151 = vmatpush1.bf16.msra.mxu0 0
    %1152 = vmatprep.subr.bf16.mxu0 0
    %1153 = vmatpush1.bf16.msra.mxu0 0
    %1154 = vmatprep.subr.bf16.mxu0 0
    %1155 = vmatpush1.bf16.msra.mxu0 0
    %1156 = vmatprep.mubr.bf16.mxu0 0
    %1157 = vmatmul.mubr.bf16.gmra.mrb[0].mxu0 %v1119
    %v1158 = vpop.f32.mrb[0].mxu0
    %v1159 = vadd.f32 0.0, %v1158
    %v1160 = vpop.f32.mrb[0].mxu0
    %v1161 = vpop.f32.mrb[0].mxu0
    %v1162 = vpop.f32.mrb[0].mxu0
    %1163 = vdwg.mxu0
    %v1165 = vsel %vm920, %v1012, 0
    %v1168 = vsel %vm1028, %v1020, 0
    %1170 = vmatprep.subr.bf16.mxu0 0
    %1171 = vmatpush1.bf16.msra.mxu0 %v1168
    %1172 = vmatprep.subr.bf16.mxu0 0
    %1173 = vmatpush1.bf16.msra.mxu0 0
    %1174 = vmatprep.subr.bf16.mxu0 0
    %1175 = vmatpush1.bf16.msra.mxu0 0
    %1176 = vmatprep.subr.bf16.mxu0 0
    %1177 = vmatpush1.bf16.msra.mxu0 0
    %1178 = vmatprep.subr.bf16.mxu0 0
    %1179 = vmatpush1.bf16.msra.mxu0 0
    %1180 = vmatprep.subr.bf16.mxu0 0
    %1181 = vmatpush1.bf16.msra.mxu0 0
    %1182 = vmatprep.subr.bf16.mxu0 0
    %1183 = vmatpush1.bf16.msra.mxu0 0
    %1184 = vmatprep.subr.bf16.mxu0 0
    %1185 = vmatpush1.bf16.msra.mxu0 0
    %1186 = vmatprep.subr.bf16.mxu0 0
    %1187 = vmatpush1.bf16.msra.mxu0 0
    %1188 = vmatprep.subr.bf16.mxu0 0
    %1189 = vmatpush1.bf16.msra.mxu0 0
    %1190 = vmatprep.subr.bf16.mxu0 0
    %1191 = vmatpush1.bf16.msra.mxu0 0
    %1192 = vmatprep.subr.bf16.mxu0 0
    %1193 = vmatpush1.bf16.msra.mxu0 0
    %1194 = vmatprep.subr.bf16.mxu0 0
    %1195 = vmatpush1.bf16.msra.mxu0 0
    %1196 = vmatprep.subr.bf16.mxu0 0
    %1197 = vmatpush1.bf16.msra.mxu0 0
    %1198 = vmatprep.subr.bf16.mxu0 0
    %1199 = vmatpush1.bf16.msra.mxu0 0
    %1200 = vmatprep.subr.bf16.mxu0 0
    %1201 = vmatpush1.bf16.msra.mxu0 0
    %1202 = vmatprep.mubr.bf16.mxu0 0
    %1203 = vmatmul.mubr.bf16.gmra.mrb[0].mxu0 %v1165
    %v1204 = vpop.f32.mrb[0].mxu0
    %v1205 = vadd.f32 0.0, %v1204
    %v1206 = vpop.f32.mrb[0].mxu0
    %v1207 = vpop.f32.mrb[0].mxu0
    %v1208 = vpop.f32.mrb[0].mxu0
    %1209 = vdwg.mxu0
    %v1211 = vsel %vm920, %v1013, 0
    %v1214 = vsel %vm1028, %v1021, 0
    %1216 = vmatprep.subr.bf16.mxu0 0
    %1217 = vmatpush1.bf16.msra.mxu0 %v1214
    %1218 = vmatprep.subr.bf16.mxu0 0
    %1219 = vmatpush1.bf16.msra.mxu0 0
    %1220 = vmatprep.subr.bf16.mxu0 0
    %1221 = vmatpush1.bf16.msra.mxu0 0
    %1222 = vmatprep.subr.bf16.mxu0 0
    %1223 = vmatpush1.bf16.msra.mxu0 0
    %1224 = vmatprep.subr.bf16.mxu0 0
    %1225 = vmatpush1.bf16.msra.mxu0 0
    %1226 = vmatprep.subr.bf16.mxu0 0
    %1227 = vmatpush1.bf16.msra.mxu0 0
    %1228 = vmatprep.subr.bf16.mxu0 0
    %1229 = vmatpush1.bf16.msra.mxu0 0
    %1230 = vmatprep.subr.bf16.mxu0 0
    %1231 = vmatpush1.bf16.msra.mxu0 0
    %1232 = vmatprep.subr.bf16.mxu0 0
    %1233 = vmatpush1.bf16.msra.mxu0 0
    %1234 = vmatprep.subr.bf16.mxu0 0
    %1235 = vmatpush1.bf16.msra.mxu0 0
    %1236 = vmatprep.subr.bf16.mxu0 0
    %1237 = vmatpush1.bf16.msra.mxu0 0
    %1238 = vmatprep.subr.bf16.mxu0 0
    %1239 = vmatpush1.bf16.msra.mxu0 0
    %1240 = vmatprep.subr.bf16.mxu0 0
    %1241 = vmatpush1.bf16.msra.mxu0 0
    %1242 = vmatprep.subr.bf16.mxu0 0
    %1243 = vmatpush1.bf16.msra.mxu0 0
    %1244 = vmatprep.subr.bf16.mxu0 0
    %1245 = vmatpush1.bf16.msra.mxu0 0
    %1246 = vmatprep.subr.bf16.mxu0 0
    %1247 = vmatpush1.bf16.msra.mxu0 0
    %1248 = vmatprep.mubr.bf16.mxu0 0
    %1249 = vmatmul.mubr.bf16.gmra.mrb[0].mxu0 %v1211
    %v1250 = vpop.f32.mrb[0].mxu0
    %v1251 = vadd.f32 0.0, %v1250
    %v1252 = vpop.f32.mrb[0].mxu0
    %v1253 = vpop.f32.mrb[0].mxu0
    %v1254 = vpop.f32.mrb[0].mxu0
    %1255 = vdwg.mxu0
    %v1257 = vsel %vm920, %v1014, 0
    %v1260 = vsel %vm1028, %v1022, 0
    %1262 = vmatprep.subr.bf16.mxu0 0
    %1263 = vmatpush1.bf16.msra.mxu0 %v1260
    %1264 = vmatprep.subr.bf16.mxu0 0
    %1265 = vmatpush1.bf16.msra.mxu0 0
    %1266 = vmatprep.subr.bf16.mxu0 0
    %1267 = vmatpush1.bf16.msra.mxu0 0
    %1268 = vmatprep.subr.bf16.mxu0 0
    %1269 = vmatpush1.bf16.msra.mxu0 0
    %1270 = vmatprep.subr.bf16.mxu0 0
    %1271 = vmatpush1.bf16.msra.mxu0 0
    %1272 = vmatprep.subr.bf16.mxu0 0
    %1273 = vmatpush1.bf16.msra.mxu0 0
    %1274 = vmatprep.subr.bf16.mxu0 0
    %1275 = vmatpush1.bf16.msra.mxu0 0
    %1276 = vmatprep.subr.bf16.mxu0 0
    %1277 = vmatpush1.bf16.msra.mxu0 0
    %1278 = vmatprep.subr.bf16.mxu0 0
    %1279 = vmatpush1.bf16.msra.mxu0 0
    %1280 = vmatprep.subr.bf16.mxu0 0
    %1281 = vmatpush1.bf16.msra.mxu0 0
    %1282 = vmatprep.subr.bf16.mxu0 0
    %1283 = vmatpush1.bf16.msra.mxu0 0
    %1284 = vmatprep.subr.bf16.mxu0 0
    %1285 = vmatpush1.bf16.msra.mxu0 0
    %1286 = vmatprep.subr.bf16.mxu0 0
    %1287 = vmatpush1.bf16.msra.mxu0 0
    %1288 = vmatprep.subr.bf16.mxu0 0
    %1289 = vmatpush1.bf16.msra.mxu0 0
    %1290 = vmatprep.subr.bf16.mxu0 0
    %1291 = vmatpush1.bf16.msra.mxu0 0
    %1292 = vmatprep.subr.bf16.mxu0 0
    %1293 = vmatpush1.bf16.msra.mxu0 0
    %1294 = vmatprep.mubr.bf16.mxu0 0
    %1295 = vmatmul.mubr.bf16.gmra.mrb[0].mxu0 %v1257
    %v1296 = vpop.f32.mrb[0].mxu0
    %v1297 = vadd.f32 0.0, %v1296
    %v1298 = vpop.f32.mrb[0].mxu0
    %v1299 = vpop.f32.mrb[0].mxu0
    %v1300 = vpop.f32.mrb[0].mxu0
    %1301 = vdwg.mxu0
    %v1303 = vsel %vm920, %v1015, 0
    %v1306 = vsel %vm1028, %v1023, 0
    %1308 = vmatprep.subr.bf16.mxu0 0
    %1309 = vmatpush1.bf16.msra.mxu0 %v1306
    %1310 = vmatprep.subr.bf16.mxu0 0
    %1311 = vmatpush1.bf16.msra.mxu0 0
    %1312 = vmatprep.subr.bf16.mxu0 0
    %1313 = vmatpush1.bf16.msra.mxu0 0
    %1314 = vmatprep.subr.bf16.mxu0 0
    %1315 = vmatpush1.bf16.msra.mxu0 0
    %1316 = vmatprep.subr.bf16.mxu0 0
    %1317 = vmatpush1.bf16.msra.mxu0 0
    %1318 = vmatprep.subr.bf16.mxu0 0
    %1319 = vmatpush1.bf16.msra.mxu0 0
    %1320 = vmatprep.subr.bf16.mxu0 0
    %1321 = vmatpush1.bf16.msra.mxu0 0
    %1322 = vmatprep.subr.bf16.mxu0 0
    %1323 = vmatpush1.bf16.msra.mxu0 0
    %1324 = vmatprep.subr.bf16.mxu0 0
    %1325 = vmatpush1.bf16.msra.mxu0 0
    %1326 = vmatprep.subr.bf16.mxu0 0
    %1327 = vmatpush1.bf16.msra.mxu0 0
    %1328 = vmatprep.subr.bf16.mxu0 0
    %1329 = vmatpush1.bf16.msra.mxu0 0
    %1330 = vmatprep.subr.bf16.mxu0 0
    %1331 = vmatpush1.bf16.msra.mxu0 0
    %1332 = vmatprep.subr.bf16.mxu0 0
    %1333 = vmatpush1.bf16.msra.mxu0 0
    %1334 = vmatprep.subr.bf16.mxu0 0
    %1335 = vmatpush1.bf16.msra.mxu0 0
    %1336 = vmatprep.subr.bf16.mxu0 0
    %1337 = vmatpush1.bf16.msra.mxu0 0
    %1338 = vmatprep.subr.bf16.mxu0 0
    %1339 = vmatpush1.bf16.msra.mxu0 0
    %1340 = vmatprep.mubr.bf16.mxu0 0
    %1341 = vmatmul.mubr.bf16.gmra.mrb[0].mxu0 %v1303
    %v1342 = vpop.f32.mrb[0].mxu0
    %v1343 = vadd.f32 0.0, %v1342
    %v1344 = vpop.f32.mrb[0].mxu0
    %v1345 = vpop.f32.mrb[0].mxu0
    %v1346 = vpop.f32.mrb[0].mxu0
    %1347 = vdwg.mxu0
    %v1349 = vsel %vm920, %v1016, 0
    %v1352 = vsel %vm1028, %v1024, 0
    %1354 = vmatprep.subr.bf16.mxu0 0
    %1355 = vmatpush1.bf16.msra.mxu0 %v1352
    %1356 = vmatprep.subr.bf16.mxu0 0
    %1357 = vmatpush1.bf16.msra.mxu0 0
    %1358 = vmatprep.subr.bf16.mxu0 0
    %1359 = vmatpush1.bf16.msra.mxu0 0
    %1360 = vmatprep.subr.bf16.mxu0 0
    %1361 = vmatpush1.bf16.msra.mxu0 0
    %1362 = vmatprep.subr.bf16.mxu0 0
    %1363 = vmatpush1.bf16.msra.mxu0 0
    %1364 = vmatprep.subr.bf16.mxu0 0
    %1365 = vmatpush1.bf16.msra.mxu0 0
    %1366 = vmatprep.subr.bf16.mxu0 0
    %1367 = vmatpush1.bf16.msra.mxu0 0
    %1368 = vmatprep.subr.bf16.mxu0 0
    %1369 = vmatpush1.bf16.msra.mxu0 0
    %1370 = vmatprep.subr.bf16.mxu0 0
    %1371 = vmatpush1.bf16.msra.mxu0 0
    %1372 = vmatprep.subr.bf16.mxu0 0
    %1373 = vmatpush1.bf16.msra.mxu0 0
    %1374 = vmatprep.subr.bf16.mxu0 0
    %1375 = vmatpush1.bf16.msra.mxu0 0
    %1376 = vmatprep.subr.bf16.mxu0 0
    %1377 = vmatpush1.bf16.msra.mxu0 0
    %1378 = vmatprep.subr.bf16.mxu0 0
    %1379 = vmatpush1.bf16.msra.mxu0 0
    %1380 = vmatprep.subr.bf16.mxu0 0
    %1381 = vmatpush1.bf16.msra.mxu0 0
    %1382 = vmatprep.subr.bf16.mxu0 0
    %1383 = vmatpush1.bf16.msra.mxu0 0
    %1384 = vmatprep.subr.bf16.mxu0 0
    %1385 = vmatpush1.bf16.msra.mxu0 0
    %1386 = vmatprep.mubr.bf16.mxu0 0
    %1387 = vmatmul.mubr.bf16.gmra.mrb[0].mxu0 %v1349
    %v1388 = vpop.f32.mrb[0].mxu0
    %v1389 = vadd.f32 0.0, %v1388
    %v1390 = vpop.f32.mrb[0].mxu0
    %v1391 = vpop.f32.mrb[0].mxu0
    %v1392 = vpop.f32.mrb[0].mxu0
    %1393 = vdwg.mxu0
    %v1394 = vcombine.low %v1067, %v1159
    %v1395 = vcombine.high %v1067, %v1159
    %v1397 = vunpack.c.l.s4 1983009808
    %v1398 = vunpack.c.0.s8 %v1397
    %v1399 = vlaneseq
    %v1400 = vshrl.u32 %v1399, 7
    %v1401 = vsub.s32 %v1398, %v1400
    %v1402 = vrot.slane %v1394, %v1401
    %v1404 = vunpack.c.l.s4 1983009808
    %v1405 = vunpack.c.0.s8 %v1404
    %v1406 = vlaneseq
    %v1407 = vshrl.u32 %v1406, 7
    %v1408 = vsub.s32 %v1405, %v1407
    %v1409 = vrot.slane %v1395, %v1408
    %v1410 = vcombine.low %v1113, %v1205
    %v1411 = vcombine.high %v1113, %v1205
    %v1413 = vunpack.c.l.s4 1983009808
    %v1414 = vunpack.c.0.s8 %v1413
    %v1415 = vlaneseq
    %v1416 = vshrl.u32 %v1415, 7
    %v1417 = vsub.s32 %v1414, %v1416
    %v1418 = vrot.slane %v1410, %v1417
    %v1420 = vunpack.c.l.s4 1983009808
    %v1421 = vunpack.c.0.s8 %v1420
    %v1422 = vlaneseq
    %v1423 = vshrl.u32 %v1422, 7
    %v1424 = vsub.s32 %v1421, %v1423
    %v1425 = vrot.slane %v1411, %v1424
    %v1426 = vcombine.low %v1251, %v1343
    %v1427 = vcombine.high %v1251, %v1343
    %v1429 = vunpack.c.l.s4 1983009808
    %v1430 = vunpack.c.0.s8 %v1429
    %v1431 = vlaneseq
    %v1432 = vshrl.u32 %v1431, 7
    %v1433 = vsub.s32 %v1430, %v1432
    %v1434 = vrot.slane %v1426, %v1433
    %v1436 = vunpack.c.l.s4 1983009808
    %v1437 = vunpack.c.0.s8 %v1436
    %v1438 = vlaneseq
    %v1439 = vshrl.u32 %v1438, 7
    %v1440 = vsub.s32 %v1437, %v1439
    %v1441 = vrot.slane %v1427, %v1440
    %v1442 = vcombine.low %v1297, %v1389
    %v1443 = vcombine.high %v1297, %v1389
    %v1445 = vunpack.c.l.s4 1983009808
    %v1446 = vunpack.c.0.s8 %v1445
    %v1447 = vlaneseq
    %v1448 = vshrl.u32 %v1447, 7
    %v1449 = vsub.s32 %v1446, %v1448
    %v1450 = vrot.slane %v1442, %v1449
    %v1452 = vunpack.c.l.s4 1983009808
    %v1453 = vunpack.c.0.s8 %v1452
    %v1454 = vlaneseq
    %v1455 = vshrl.u32 %v1454, 7
    %v1456 = vsub.s32 %v1453, %v1455
    %v1457 = vrot.slane %v1443, %v1456
    %v1458 = vcombine.low %v1402, %v1418
    %v1459 = vcombine.high %v1402, %v1418
    %v1461 = vunpack.c.l.s4 1934713408
    %v1462 = vunpack.c.0.s8 %v1461
    %v1463 = vlaneseq
    %v1464 = vshrl.u32 %v1463, 7
    %v1465 = vsub.s32 %v1462, %v1464
    %v1466 = vrot.slane %v1458, %v1465
    %v1468 = vunpack.c.l.s4 1934713408
    %v1469 = vunpack.c.0.s8 %v1468
    %v1470 = vlaneseq
    %v1471 = vshrl.u32 %v1470, 7
    %v1472 = vsub.s32 %v1469, %v1471
    %v1473 = vrot.slane %v1459, %v1472
    %v1474 = vcombine.low %v1409, %v1425
    %v1475 = vcombine.high %v1409, %v1425
    %v1477 = vunpack.c.l.s4 1934713408
    %v1478 = vunpack.c.0.s8 %v1477
    %v1479 = vlaneseq
    %v1480 = vshrl.u32 %v1479, 7
    %v1481 = vsub.s32 %v1478, %v1480
    %v1482 = vrot.slane %v1474, %v1481
    %v1484 = vunpack.c.l.s4 1934713408
    %v1485 = vunpack.c.0.s8 %v1484
    %v1486 = vlaneseq
    %v1487 = vshrl.u32 %v1486, 7
    %v1488 = vsub.s32 %v1485, %v1487
    %v1489 = vrot.slane %v1475, %v1488
    %v1490 = vcombine.low %v1434, %v1450
    %v1491 = vcombine.high %v1434, %v1450
    %v1493 = vunpack.c.l.s4 1934713408
    %v1494 = vunpack.c.0.s8 %v1493
    %v1495 = vlaneseq
    %v1496 = vshrl.u32 %v1495, 7
    %v1497 = vsub.s32 %v1494, %v1496
    %v1498 = vrot.slane %v1490, %v1497
    %v1500 = vunpack.c.l.s4 1934713408
    %v1501 = vunpack.c.0.s8 %v1500
    %v1502 = vlaneseq
    %v1503 = vshrl.u32 %v1502, 7
    %v1504 = vsub.s32 %v1501, %v1503
    %v1505 = vrot.slane %v1491, %v1504
    %v1506 = vcombine.low %v1441, %v1457
    %v1507 = vcombine.high %v1441, %v1457
    %v1509 = vunpack.c.l.s4 1934713408
    %v1510 = vunpack.c.0.s8 %v1509
    %v1511 = vlaneseq
    %v1512 = vshrl.u32 %v1511, 7
    %v1513 = vsub.s32 %v1510, %v1512
    %v1514 = vrot.slane %v1506, %v1513
    %v1516 = vunpack.c.l.s4 1934713408
    %v1517 = vunpack.c.0.s8 %v1516
    %v1518 = vlaneseq
    %v1519 = vshrl.u32 %v1518, 7
    %v1520 = vsub.s32 %v1517, %v1519
    %v1521 = vrot.slane %v1507, %v1520
    %v1522 = vcombine.low %v1466, %v1498
    %v1523 = vcombine.high %v1466, %v1498
    %v1524 = vcombine.low %v1473, %v1505
    %v1525 = vcombine.high %v1473, %v1505
    %v1526 = vcombine.low %v1482, %v1514
    %v1527 = vcombine.high %v1482, %v1514
    %v1528 = vcombine.low %v1489, %v1521
    %v1529 = vcombine.high %v1489, %v1521
    %1531 = vrot.lane.b32.xlu0 %v1523, 16
    %v1532 = vpop.permute.xlu0 %1531
    %1535 = vrot.lane.b32.xlu0 %v1524, 32
    %v1536 = vpop.permute.xlu0 %1535
    %1539 = vrot.lane.b32.xlu0 %v1525, 48
    %v1540 = vpop.permute.xlu0 %1539
    %1543 = vrot.lane.b32.xlu0 %v1526, 64
    %v1544 = vpop.permute.xlu0 %1543
    %1547 = vrot.lane.b32.xlu0 %v1527, 80
    %v1548 = vpop.permute.xlu0 %1547
    %1551 = vrot.lane.b32.xlu0 %v1528, 96
    %v1552 = vpop.permute.xlu0 %1551
    %1555 = vrot.lane.b32.xlu0 %v1529, 112
    %v1556 = vpop.permute.xlu0 %1555
    %v1558 = vsel %vm551, %v1522, %v1532
    %vm1559 = vcmask 261120
    %v1560 = vsel %vm1559, %v1558, %v1536
    %vm1561 = vcmask 392192
    %v1562 = vsel %vm1561, %v1560, %v1540
    %vm1563 = vcmask 523264
    %v1564 = vsel %vm1563, %v1562, %v1544
    %vm1565 = vcmask 654336
    %v1566 = vsel %vm1565, %v1564, %v1548
    %vm1567 = vcmask 785408
    %v1568 = vsel %vm1567, %v1566, %v1552
    %vm1569 = vcmask 916480
    %v1570 = vsel %vm1569, %v1568, %v1556
    %v1571 = vpack.c.bf16 %v1570, %v1570
    %1572 = vst [vmem:[#allocation8] sm:$0xf] %v1571
    // Predicated region
    $region30: #{tpu_custom_call.1} parent=1 // pred_check
      _
    $region31: #{tpu_custom_call.1} parent=1 // pred_check_branch
      %1574 = sbr.rel (0) target = $region33
    $region32: #{tpu_custom_call.1} parent=1 // pred_region
      %s1576 = ssub.s32 64, 64
      %1577 = vsyncadd [#allocation4], %s1576
      %s1579 = sshll.u32 [#allocation8], 4
      %s1580 = int_to_ptr.vmem [resolvable:$true] %s1579
      %1582 = dma.vmem_to_hbm [thread:$0]  %s1580, 64, %s4, [#allocation4]
    $region33: #{tpu_custom_call.1} parent=1 // pred_fallthru
      _
    // Predicated region
    $region34: #{tpu_custom_call.1} parent=1 // pred_check
      _
    $region35: #{tpu_custom_call.1} parent=1 // pred_check_branch
      %1584 = sbr.rel (0) target = $region37
    $region36: #{tpu_custom_call.1} parent=1 // pred_region
      %1585 = dma.done [#allocation4], 64
    $region37: #{tpu_custom_call.1} parent=1 // pred_fallthru
      _
    %1586 = vsyncpa [#allocation3], 1
    %1587 = vsyncpa [#allocation6], 1
    %1588 = vsyncpa [#allocation4], 1

// kernel: block_forward.7
$region0: #{block_forward.7}
  #allocation0 [shape = 'u32[]', space=smem, size = 0x4, offset = 0x4, fixed_abs, tag = 'smem constant byte address 0x4 - core index']
  #allocation1 [shape = 'u32[144,128]{1,0:T(1,128)}', space=vmem, size = 0x12000, scoped, tag = 'internal scratch']
  %s0 = inlined_call_operand.vmem [shape: f32[128,64], index: 0, kind: input, shape index: {}]
  %s1 = inlined_call_operand.vmem [shape: f32[1,64], index: 1, kind: input, shape index: {}]
  %s2 = inlined_call_operand.vmem [shape: f32[1,64], index: 2, kind: input, shape index: {}]
  %s3 = inlined_call_operand.vmem [shape: bf16[64,192], index: 3, kind: input, shape index: {}]
  %s4 = inlined_call_operand.vmem [shape: bf16[128,192], index: 4, kind: output, shape index: {}]
  %s5 = sld [smem:[#allocation0]]
  $region26: #{block_forward.7} parent=0
    _
  %s7 = ssub.s32 1, %s5
  %s8 = scalar_select 0, %s7, %s5
  // Predicated region
  $region2: #{block_forward.7} parent=0 // pred_check
    _
  $region3: #{block_forward.7} parent=0 // pred_check_branch
    %10 = sbr.rel (0) target = $region5
  $region4: #{block_forward.7} parent=0 // pred_region
    _
  $region5: #{block_forward.7} parent=0 // pred_fallthru
    _
  // Predicated region
  $region6: #{block_forward.7} parent=0 // pred_check
    _
  $region7: #{block_forward.7} parent=0 // pred_check_branch
    %12 = sbr.rel (0) target = $region9
  $region8: #{block_forward.7} parent=0 // pred_region
    _
  $region9: #{block_forward.7} parent=0 // pred_fallthru
    _
  // Predicated region
  $region10: #{block_forward.7} parent=0 // pred_check
    _
  $region11: #{block_forward.7} parent=0 // pred_check_branch
    %14 = sbr.rel (0) target = $region13
  $region12: #{block_forward.7} parent=0 // pred_region
    _
  $region13: #{block_forward.7} parent=0 // pred_fallthru
    _
  // Predicated region
  $region14: #{block_forward.7} parent=0 // pred_check
    _
  $region15: #{block_forward.7} parent=0 // pred_check_branch
    %16 = sbr.rel (0) target = $region17
  $region16: #{block_forward.7} parent=0 // pred_region
    _
  $region17: #{block_forward.7} parent=0 // pred_fallthru
    _
  %v18 = vld [vmem:[%s0] sm:$0xff]
  %v19 = vld [vmem:[%s0 + $0x8] sm:$0xff]
  %v20 = vld [vmem:[%s0 + $0x10] sm:$0xff]
  %v21 = vld [vmem:[%s0 + $0x18] sm:$0xff]
  %v22 = vld [vmem:[%s0 + $0x20] sm:$0xff]
  %v23 = vld [vmem:[%s0 + $0x28] sm:$0xff]
  %v24 = vld [vmem:[%s0 + $0x30] sm:$0xff]
  %v25 = vld [vmem:[%s0 + $0x38] sm:$0xff]
  %v26 = vld [vmem:[%s0 + $0x40] sm:$0xff]
  %v27 = vld [vmem:[%s0 + $0x48] sm:$0xff]
  %v28 = vld [vmem:[%s0 + $0x50] sm:$0xff]
  %v29 = vld [vmem:[%s0 + $0x58] sm:$0xff]
  %v30 = vld [vmem:[%s0 + $0x60] sm:$0xff]
  %v31 = vld [vmem:[%s0 + $0x68] sm:$0xff]
  %v32 = vld [vmem:[%s0 + $0x70] sm:$0xff]
  %v33 = vld [vmem:[%s0 + $0x78] sm:$0xff]
  %v34 = vld [vmem:[%s1] sm:$0x1]
  %v35 = vld [vmem:[%s2] sm:$0x1]
  %vm36 = vcmask 523264
  %v37 = vsel %vm36, %v18, 0.0
  %38 = vadd.xlane.f32.xlu0 %v37
  %v39 = vpop.xlane.xlu0 %38
  %v40 = vsel %vm36, %v19, 0.0
  %41 = vadd.xlane.f32.xlu0 %v40
  %v42 = vpop.xlane.xlu0 %41
  %v43 = vsel %vm36, %v20, 0.0
  %44 = vadd.xlane.f32.xlu0 %v43
  %v45 = vpop.xlane.xlu0 %44
  %v46 = vsel %vm36, %v21, 0.0
  %47 = vadd.xlane.f32.xlu0 %v46
  %v48 = vpop.xlane.xlu0 %47
  %v49 = vsel %vm36, %v22, 0.0
  %50 = vadd.xlane.f32.xlu0 %v49
  %v51 = vpop.xlane.xlu0 %50
  %v52 = vsel %vm36, %v23, 0.0
  %53 = vadd.xlane.f32.xlu0 %v52
  %v54 = vpop.xlane.xlu0 %53
  %v55 = vsel %vm36, %v24, 0.0
  %56 = vadd.xlane.f32.xlu0 %v55
  %v57 = vpop.xlane.xlu0 %56
  %v58 = vsel %vm36, %v25, 0.0
  %59 = vadd.xlane.f32.xlu0 %v58
  %v60 = vpop.xlane.xlu0 %59
  %v61 = vsel %vm36, %v26, 0.0
  %62 = vadd.xlane.f32.xlu0 %v61
  %v63 = vpop.xlane.xlu0 %62
  %v64 = vsel %vm36, %v27, 0.0
  %65 = vadd.xlane.f32.xlu0 %v64
  %v66 = vpop.xlane.xlu0 %65
  %v67 = vsel %vm36, %v28, 0.0
  %68 = vadd.xlane.f32.xlu0 %v67
  %v69 = vpop.xlane.xlu0 %68
  %v70 = vsel %vm36, %v29, 0.0
  %71 = vadd.xlane.f32.xlu0 %v70
  %v72 = vpop.xlane.xlu0 %71
  %v73 = vsel %vm36, %v30, 0.0
  %74 = vadd.xlane.f32.xlu0 %v73
  %v75 = vpop.xlane.xlu0 %74
  %v76 = vsel %vm36, %v31, 0.0
  %77 = vadd.xlane.f32.xlu0 %v76
  %v78 = vpop.xlane.xlu0 %77
  %v79 = vsel %vm36, %v32, 0.0
  %80 = vadd.xlane.f32.xlu0 %v79
  %v81 = vpop.xlane.xlu0 %80
  %v82 = vsel %vm36, %v33, 0.0
  %83 = vadd.xlane.f32.xlu0 %v82
  %v84 = vpop.xlane.xlu0 %83
  %v85 = vrcp.pop 64.0
  %v86 = vmul.f32 %v39, %v85
  %v87 = vmul.f32 %v42, %v85
  %v88 = vmul.f32 %v45, %v85
  %v89 = vmul.f32 %v48, %v85
  %v90 = vmul.f32 %v51, %v85
  %v91 = vmul.f32 %v54, %v85
  %v92 = vmul.f32 %v57, %v85
  %v93 = vmul.f32 %v60, %v85
  %v94 = vmul.f32 %v63, %v85
  %v95 = vmul.f32 %v66, %v85
  %v96 = vmul.f32 %v69, %v85
  %v97 = vmul.f32 %v72, %v85
  %v98 = vmul.f32 %v75, %v85
  %v99 = vmul.f32 %v78, %v85
  %v100 = vmul.f32 %v81, %v85
  %v101 = vmul.f32 %v84, %v85
  %v102 = vsub.f32 %v18, %v86
  %v103 = vsub.f32 %v19, %v87
  %v104 = vsub.f32 %v20, %v88
  %v105 = vsub.f32 %v21, %v89
  %v106 = vsub.f32 %v22, %v90
  %v107 = vsub.f32 %v23, %v91
  %v108 = vsub.f32 %v24, %v92
  %v109 = vsub.f32 %v25, %v93
  %v110 = vsub.f32 %v26, %v94
  %v111 = vsub.f32 %v27, %v95
  %v112 = vsub.f32 %v28, %v96
  %v113 = vsub.f32 %v29, %v97
  %v114 = vsub.f32 %v30, %v98
  %v115 = vsub.f32 %v31, %v99
  %v116 = vsub.f32 %v32, %v100
  %v117 = vsub.f32 %v33, %v101
  %v118 = vmul.f32 %v102, %v102
  %v119 = vmul.f32 %v103, %v103
  %v120 = vmul.f32 %v104, %v104
  %v121 = vmul.f32 %v105, %v105
  %v122 = vmul.f32 %v106, %v106
  %v123 = vmul.f32 %v107, %v107
  %v124 = vmul.f32 %v108, %v108
  %v125 = vmul.f32 %v109, %v109
  %v126 = vmul.f32 %v110, %v110
  %v127 = vmul.f32 %v111, %v111
  %v128 = vmul.f32 %v112, %v112
  %v129 = vmul.f32 %v113, %v113
  %v130 = vmul.f32 %v114, %v114
  %v131 = vmul.f32 %v115, %v115
  %v132 = vmul.f32 %v116, %v116
  %v133 = vmul.f32 %v117, %v117
  %v134 = vsel %vm36, %v118, 0.0
  %135 = vadd.xlane.f32.xlu0 %v134
  %v136 = vpop.xlane.xlu0 %135
  %v137 = vsel %vm36, %v119, 0.0
  %138 = vadd.xlane.f32.xlu0 %v137
  %v139 = vpop.xlane.xlu0 %138
  %v140 = vsel %vm36, %v120, 0.0
  %141 = vadd.xlane.f32.xlu0 %v140
  %v142 = vpop.xlane.xlu0 %141
  %v143 = vsel %vm36, %v121, 0.0
  %144 = vadd.xlane.f32.xlu0 %v143
  %v145 = vpop.xlane.xlu0 %144
  %v146 = vsel %vm36, %v122, 0.0
  %147 = vadd.xlane.f32.xlu0 %v146
  %v148 = vpop.xlane.xlu0 %147
  %v149 = vsel %vm36, %v123, 0.0
  %150 = vadd.xlane.f32.xlu0 %v149
  %v151 = vpop.xlane.xlu0 %150
  %v152 = vsel %vm36, %v124, 0.0
  %153 = vadd.xlane.f32.xlu0 %v152
  %v154 = vpop.xlane.xlu0 %153
  %v155 = vsel %vm36, %v125, 0.0
  %156 = vadd.xlane.f32.xlu0 %v155
  %v157 = vpop.xlane.xlu0 %156
  %v158 = vsel %vm36, %v126, 0.0
  %159 = vadd.xlane.f32.xlu0 %v158
  %v160 = vpop.xlane.xlu0 %159
  %v161 = vsel %vm36, %v127, 0.0
  %162 = vadd.xlane.f32.xlu0 %v161
  %v163 = vpop.xlane.xlu0 %162
  %v164 = vsel %vm36, %v128, 0.0
  %165 = vadd.xlane.f32.xlu0 %v164
  %v166 = vpop.xlane.xlu0 %165
  %v167 = vsel %vm36, %v129, 0.0
  %168 = vadd.xlane.f32.xlu0 %v167
  %v169 = vpop.xlane.xlu0 %168
  %v170 = vsel %vm36, %v130, 0.0
  %171 = vadd.xlane.f32.xlu0 %v170
  %v172 = vpop.xlane.xlu0 %171
  %v173 = vsel %vm36, %v131, 0.0
  %174 = vadd.xlane.f32.xlu0 %v173
  %v175 = vpop.xlane.xlu0 %174
  %v176 = vsel %vm36, %v132, 0.0
  %177 = vadd.xlane.f32.xlu0 %v176
  %v178 = vpop.xlane.xlu0 %177
  %v179 = vsel %vm36, %v133, 0.0
  %180 = vadd.xlane.f32.xlu0 %v179
  %v181 = vpop.xlane.xlu0 %180
  %v182 = vmul.f32 %v136, %v85
  %v183 = vmul.f32 %v139, %v85
  %v184 = vmul.f32 %v142, %v85
  %v185 = vmul.f32 %v145, %v85
  %v186 = vmul.f32 %v148, %v85
  %v187 = vmul.f32 %v151, %v85
  %v188 = vmul.f32 %v154, %v85
  %v189 = vmul.f32 %v157, %v85
  %v190 = vmul.f32 %v160, %v85
  %v191 = vmul.f32 %v163, %v85
  %v192 = vmul.f32 %v166, %v85
  %v193 = vmul.f32 %v169, %v85
  %v194 = vmul.f32 %v172, %v85
  %v195 = vmul.f32 %v175, %v85
  %v196 = vmul.f32 %v178, %v85
  %v197 = vmul.f32 %v181, %v85
  %v198 = vadd.f32 %v182, 1e-05
  %v199 = vadd.f32 %v183, 1e-05
  %v200 = vadd.f32 %v184, 1e-05
  %v201 = vadd.f32 %v185, 1e-05
  %v202 = vadd.f32 %v186, 1e-05
  %v203 = vadd.f32 %v187, 1e-05
  %v204 = vadd.f32 %v188, 1e-05
  %v205 = vadd.f32 %v189, 1e-05
  %v206 = vadd.f32 %v190, 1e-05
  %v207 = vadd.f32 %v191, 1e-05
  %v208 = vadd.f32 %v192, 1e-05
  %v209 = vadd.f32 %v193, 1e-05
  %v210 = vadd.f32 %v194, 1e-05
  %v211 = vadd.f32 %v195, 1e-05
  %v212 = vadd.f32 %v196, 1e-05
  %v213 = vadd.f32 %v197, 1e-05
  %v214 = vrsqrt.pop %v198
  %v215 = vrsqrt.pop %v199
  %v216 = vrsqrt.pop %v200
  %v217 = vrsqrt.pop %v201
  %v218 = vrsqrt.pop %v202
  %v219 = vrsqrt.pop %v203
  %v220 = vrsqrt.pop %v204
  %v221 = vrsqrt.pop %v205
  %v222 = vrsqrt.pop %v206
  %v223 = vrsqrt.pop %v207
  %v224 = vrsqrt.pop %v208
  %v225 = vrsqrt.pop %v209
  %v226 = vrsqrt.pop %v210
  %v227 = vrsqrt.pop %v211
  %v228 = vrsqrt.pop %v212
  %v229 = vrsqrt.pop %v213
  %v230 = vmul.f32 %v102, %v214
  %v231 = vmul.f32 %v103, %v215
  %v232 = vmul.f32 %v104, %v216
  %v233 = vmul.f32 %v105, %v217
  %v234 = vmul.f32 %v106, %v218
  %v235 = vmul.f32 %v107, %v219
  %v236 = vmul.f32 %v108, %v220
  %v237 = vmul.f32 %v109, %v221
  %v238 = vmul.f32 %v110, %v222
  %v239 = vmul.f32 %v111, %v223
  %v240 = vmul.f32 %v112, %v224
  %v241 = vmul.f32 %v113, %v225
  %v242 = vmul.f32 %v114, %v226
  %v243 = vmul.f32 %v115, %v227
  %v244 = vmul.f32 %v116, %v228
  %v245 = vmul.f32 %v117, %v229
  %v247 = vlaneseq
  %v248 = vshrl.u32 %v247, 7
  %v249 = vsub.s32 0, %v248
  %v250 = vrot.slane %v34, %v249
  %v252 = vmul.f32 %v230, %v250
  %v253 = vmul.f32 %v231, %v250
  %v254 = vmul.f32 %v232, %v250
  %v255 = vmul.f32 %v233, %v250
  %v256 = vmul.f32 %v234, %v250
  %v257 = vmul.f32 %v235, %v250
  %v258 = vmul.f32 %v236, %v250
  %v259 = vmul.f32 %v237, %v250
  %v260 = vmul.f32 %v238, %v250
  %v261 = vmul.f32 %v239, %v250
  %v262 = vmul.f32 %v240, %v250
  %v263 = vmul.f32 %v241, %v250
  %v264 = vmul.f32 %v242, %v250
  %v265 = vmul.f32 %v243, %v250
  %v266 = vmul.f32 %v244, %v250
  %v267 = vmul.f32 %v245, %v250
  %v269 = vlaneseq
  %v270 = vshrl.u32 %v269, 7
  %v271 = vsub.s32 0, %v270
  %v272 = vrot.slane %v35, %v271
  %v274 = vadd.f32 %v252, %v272
  %v275 = vadd.f32 %v253, %v272
  %v276 = vadd.f32 %v254, %v272
  %v277 = vadd.f32 %v255, %v272
  %v278 = vadd.f32 %v256, %v272
  %v279 = vadd.f32 %v257, %v272
  %v280 = vadd.f32 %v258, %v272
  %v281 = vadd.f32 %v259, %v272
  %v282 = vadd.f32 %v260, %v272
  %v283 = vadd.f32 %v261, %v272
  %v284 = vadd.f32 %v262, %v272
  %v285 = vadd.f32 %v263, %v272
  %v286 = vadd.f32 %v264, %v272
  %v287 = vadd.f32 %v265, %v272
  %v288 = vadd.f32 %v266, %v272
  %v289 = vadd.f32 %v267, %v272
  %v290 = vpack.c.bf16 %v275, %v274
  %v291 = vpack.c.bf16 %v277, %v276
  %v292 = vpack.c.bf16 %v279, %v278
  %v293 = vpack.c.bf16 %v281, %v280
  %v294 = vpack.c.bf16 %v283, %v282
  %v295 = vpack.c.bf16 %v285, %v284
  %v296 = vpack.c.bf16 %v287, %v286
  %v297 = vpack.c.bf16 %v289, %v288
  %v298 = vld [vmem:[%s3] sm:$0xff]
  %v299 = vld [vmem:[%s3 + $0x8] sm:$0xff]
  %v300 = vld [vmem:[%s3 + $0x10] sm:$0xff]
  %v301 = vld [vmem:[%s3 + $0x18] sm:$0xff]
  %v302 = vld [vmem:[%s3 + $0x20] sm:$0xff]
  %v303 = vld [vmem:[%s3 + $0x28] sm:$0xff]
  %v304 = vld [vmem:[%s3 + $0x30] sm:$0xff]
  %v305 = vld [vmem:[%s3 + $0x38] sm:$0xff]
  %v314 = vunpack.c.l.b16 %v298
  %v315 = vunpack.c.h.b16 %v298
  %v316 = vunpack.c.l.b16 %v299
  %v317 = vunpack.c.h.b16 %v299
  %v318 = vunpack.c.l.b16 %v300
  %v319 = vunpack.c.h.b16 %v300
  %v320 = vunpack.c.l.b16 %v301
  %v321 = vunpack.c.h.b16 %v301
  %v322 = vunpack.c.l.b16 %v302
  %v323 = vunpack.c.h.b16 %v302
  %v324 = vunpack.c.l.b16 %v303
  %v325 = vunpack.c.h.b16 %v303
  %v326 = vunpack.c.l.b16 %v304
  %v327 = vunpack.c.h.b16 %v304
  %v328 = vunpack.c.l.b16 %v305
  %v329 = vunpack.c.h.b16 %v305
  %v330 = vpack.c.b16 %v316, %v314
  %v331 = vpack.c.b16 %v317, %v315
  %v332 = vpack.c.b16 %v320, %v318
  %v333 = vpack.c.b16 %v321, %v319
  %v334 = vpack.c.b16 %v324, %v322
  %v335 = vpack.c.b16 %v325, %v323
  %v336 = vpack.c.b16 %v328, %v326
  %v337 = vpack.c.b16 %v329, %v327
  %v347 = vsel %vm36, %v290, 0
  %v350 = vsel %vm36, %v291, 0
  %v353 = vsel %vm36, %v292, 0
  %v356 = vsel %vm36, %v293, 0
  %v359 = vsel %vm36, %v294, 0
  %v362 = vsel %vm36, %v295, 0
  %v365 = vsel %vm36, %v296, 0
  %v368 = vsel %vm36, %v297, 0
  %370 = vmatprep.subr.bf16.mxu0 %v331
  %371 = vmatpush1.bf16.msra.mxu0 %v330
  %372 = vmatprep.subr.bf16.mxu0 %v333
  %373 = vmatpush1.bf16.msra.mxu0 %v332
  %374 = vmatprep.subr.bf16.mxu0 %v335
  %375 = vmatpush1.bf16.msra.mxu0 %v334
  %376 = vmatprep.subr.bf16.mxu0 %v337
  %377 = vmatpush1.bf16.msra.mxu0 %v336
  %378 = vmatprep.subr.bf16.mxu0 0
  %379 = vmatpush1.bf16.msra.mxu0 0
  %380 = vmatprep.subr.bf16.mxu0 0
  %381 = vmatpush1.bf16.msra.mxu0 0
  %382 = vmatprep.subr.bf16.mxu0 0
  %383 = vmatpush1.bf16.msra.mxu0 0
  %384 = vmatprep.subr.bf16.mxu0 0
  %385 = vmatpush1.bf16.msra.mxu0 0
  %386 = vmatprep.subr.bf16.mxu0 0
  %387 = vmatpush1.bf16.msra.mxu0 0
  %388 = vmatprep.subr.bf16.mxu0 0
  %389 = vmatpush1.bf16.msra.mxu0 0
  %390 = vmatprep.subr.bf16.mxu0 0
  %391 = vmatpush1.bf16.msra.mxu0 0
  %392 = vmatprep.subr.bf16.mxu0 0
  %393 = vmatpush1.bf16.msra.mxu0 0
  %394 = vmatprep.subr.bf16.mxu0 0
  %395 = vmatpush1.bf16.msra.mxu0 0
  %396 = vmatprep.subr.bf16.mxu0 0
  %397 = vmatpush1.bf16.msra.mxu0 0
  %398 = vmatprep.subr.bf16.mxu0 0
  %399 = vmatpush1.bf16.msra.mxu0 0
  %400 = vmatprep.subr.bf16.mxu0 0
  %401 = vmatpush1.bf16.msra.mxu0 0
  %402 = vmatprep.mubr.bf16.mxu0 0
  %403 = vmatmul.mubr.bf16.gmra.mrb[0].mxu0 %v347
  %v404 = vpop.f32.mrb[0].mxu0
  %v405 = vadd.f32 0.0, %v404
  %v406 = vpop.f32.mrb[0].mxu0
  %v407 = vadd.f32 0.0, %v406
  %v408 = vpop.f32.mrb[0].mxu0
  %v409 = vadd.f32 0.0, %v408
  %v410 = vpop.f32.mrb[0].mxu0
  %v411 = vadd.f32 0.0, %v410
  %412 = vmatprep.mubr.bf16.mxu0 0
  %413 = vmatmul.mubr.bf16.gmra.mrb[0].mxu0 %v350
  %v414 = vpop.f32.mrb[0].mxu0
  %v415 = vadd.f32 0.0, %v414
  %v416 = vpop.f32.mrb[0].mxu0
  %v417 = vadd.f32 0.0, %v416
  %v418 = vpop.f32.mrb[0].mxu0
  %v419 = vadd.f32 0.0, %v418
  %v420 = vpop.f32.mrb[0].mxu0
  %v421 = vadd.f32 0.0, %v420
  %422 = vmatprep.mubr.bf16.mxu0 0
  %423 = vmatmul.mubr.bf16.gmra.mrb[0].mxu0 %v353
  %v424 = vpop.f32.mrb[0].mxu0
  %v425 = vadd.f32 0.0, %v424
  %v426 = vpop.f32.mrb[0].mxu0
  %v427 = vadd.f32 0.0, %v426
  %v428 = vpop.f32.mrb[0].mxu0
  %v429 = vadd.f32 0.0, %v428
  %v430 = vpop.f32.mrb[0].mxu0
  %v431 = vadd.f32 0.0, %v430
  %432 = vmatprep.mubr.bf16.mxu0 0
  %433 = vmatmul.mubr.bf16.gmra.mrb[0].mxu0 %v356
  %v434 = vpop.f32.mrb[0].mxu0
  %v435 = vadd.f32 0.0, %v434
  %v436 = vpop.f32.mrb[0].mxu0
  %v437 = vadd.f32 0.0, %v436
  %v438 = vpop.f32.mrb[0].mxu0
  %v439 = vadd.f32 0.0, %v438
  %v440 = vpop.f32.mrb[0].mxu0
  %v441 = vadd.f32 0.0, %v440
  %442 = vmatprep.mubr.bf16.mxu0 0
  %443 = vmatmul.mubr.bf16.gmra.mrb[0].mxu0 %v359
  %v444 = vpop.f32.mrb[0].mxu0
  %v445 = vadd.f32 0.0, %v444
  %v446 = vpop.f32.mrb[0].mxu0
  %v447 = vadd.f32 0.0, %v446
  %v448 = vpop.f32.mrb[0].mxu0
  %v449 = vadd.f32 0.0, %v448
  %v450 = vpop.f32.mrb[0].mxu0
  %v451 = vadd.f32 0.0, %v450
  %452 = vmatprep.mubr.bf16.mxu0 0
  %453 = vmatmul.mubr.bf16.gmra.mrb[0].mxu0 %v362
  %v454 = vpop.f32.mrb[0].mxu0
  %v455 = vadd.f32 0.0, %v454
  %v456 = vpop.f32.mrb[0].mxu0
  %v457 = vadd.f32 0.0, %v456
  %v458 = vpop.f32.mrb[0].mxu0
  %v459 = vadd.f32 0.0, %v458
  %v460 = vpop.f32.mrb[0].mxu0
  %v461 = vadd.f32 0.0, %v460
  %462 = vmatprep.mubr.bf16.mxu0 0
  %463 = vmatmul.mubr.bf16.gmra.mrb[0].mxu0 %v365
  %v464 = vpop.f32.mrb[0].mxu0
  %v465 = vadd.f32 0.0, %v464
  %v466 = vpop.f32.mrb[0].mxu0
  %v467 = vadd.f32 0.0, %v466
  %v468 = vpop.f32.mrb[0].mxu0
  %v469 = vadd.f32 0.0, %v468
  %v470 = vpop.f32.mrb[0].mxu0
  %v471 = vadd.f32 0.0, %v470
  %472 = vmatprep.mubr.bf16.mxu0 0
  %473 = vmatmul.mubr.bf16.gmra.mrb[0].mxu0 %v368
  %v474 = vpop.f32.mrb[0].mxu0
  %v475 = vadd.f32 0.0, %v474
  %v476 = vpop.f32.mrb[0].mxu0
  %v477 = vadd.f32 0.0, %v476
  %v478 = vpop.f32.mrb[0].mxu0
  %v479 = vadd.f32 0.0, %v478
  %v480 = vpop.f32.mrb[0].mxu0
  %v481 = vadd.f32 0.0, %v480
  %482 = vdwg.mxu0
  %v483 = vpack.c.bf16 %v409, %v405
  %v484 = vpack.c.bf16 %v411, %v407
  %v485 = vpack.c.bf16 %v419, %v415
  %v486 = vpack.c.bf16 %v421, %v417
  %v487 = vpack.c.bf16 %v429, %v425
  %v488 = vpack.c.bf16 %v431, %v427
  %v489 = vpack.c.bf16 %v439, %v435
  %v490 = vpack.c.bf16 %v441, %v437
  %v491 = vpack.c.bf16 %v449, %v445
  %v492 = vpack.c.bf16 %v451, %v447
  %v493 = vpack.c.bf16 %v459, %v455
  %v494 = vpack.c.bf16 %v461, %v457
  %v495 = vpack.c.bf16 %v469, %v465
  %v496 = vpack.c.bf16 %v471, %v467
  %v497 = vpack.c.bf16 %v479, %v475
  %v498 = vpack.c.bf16 %v481, %v477
  %v515 = vunpack.c.l.b16 %v483
  %v516 = vunpack.c.l.b16 %v484
  %v517 = vunpack.c.h.b16 %v483
  %v518 = vunpack.c.h.b16 %v484
  %v519 = vunpack.c.l.b16 %v485
  %v520 = vunpack.c.l.b16 %v486
  %v521 = vunpack.c.h.b16 %v485
  %v522 = vunpack.c.h.b16 %v486
  %v523 = vunpack.c.l.b16 %v487
  %v524 = vunpack.c.l.b16 %v488
  %v525 = vunpack.c.h.b16 %v487
  %v526 = vunpack.c.h.b16 %v488
  %v527 = vunpack.c.l.b16 %v489
  %v528 = vunpack.c.l.b16 %v490
  %v529 = vunpack.c.h.b16 %v489
  %v530 = vunpack.c.h.b16 %v490
  %v531 = vunpack.c.l.b16 %v491
  %v532 = vunpack.c.l.b16 %v492
  %v533 = vunpack.c.h.b16 %v491
  %v534 = vunpack.c.h.b16 %v492
  %v535 = vunpack.c.l.b16 %v493
  %v536 = vunpack.c.l.b16 %v494
  %v537 = vunpack.c.h.b16 %v493
  %v538 = vunpack.c.h.b16 %v494
  %v539 = vunpack.c.l.b16 %v495
  %v540 = vunpack.c.l.b16 %v496
  %v541 = vunpack.c.h.b16 %v495
  %v542 = vunpack.c.h.b16 %v496
  %v543 = vunpack.c.l.b16 %v497
  %v544 = vunpack.c.l.b16 %v498
  %v545 = vunpack.c.h.b16 %v497
  %v546 = vunpack.c.h.b16 %v498
  %v547 = vpack.c.b16 %v516, %v515
  %v548 = vpack.c.b16 %v518, %v517
  %v549 = vpack.c.b16 %v520, %v519
  %v550 = vpack.c.b16 %v522, %v521
  %v551 = vpack.c.b16 %v524, %v523
  %v552 = vpack.c.b16 %v526, %v525
  %v553 = vpack.c.b16 %v528, %v527
  %v554 = vpack.c.b16 %v530, %v529
  %v555 = vpack.c.b16 %v532, %v531
  %v556 = vpack.c.b16 %v534, %v533
  %v557 = vpack.c.b16 %v536, %v535
  %v558 = vpack.c.b16 %v538, %v537
  %v559 = vpack.c.b16 %v540, %v539
  %v560 = vpack.c.b16 %v542, %v541
  %v561 = vpack.c.b16 %v544, %v543
  %v562 = vpack.c.b16 %v546, %v545
  %vm579 = vcmask 1043456
  %vm580 = vcmask 523268
  %vm581 = vmor %vm580, %vm579
  %582 = vst.msk [vmem:[%s4] sm:$0xff] %vm581, %v547
  %583 = vst.msk [vmem:[%s4 + $0x8] sm:$0xff] %vm581, %v548
  %584 = vst.msk [vmem:[%s4 + $0x10] sm:$0xff] %vm581, %v549
  %585 = vst.msk [vmem:[%s4 + $0x18] sm:$0xff] %vm581, %v550
  %586 = vst.msk [vmem:[%s4 + $0x20] sm:$0xff] %vm581, %v551
  %587 = vst.msk [vmem:[%s4 + $0x28] sm:$0xff] %vm581, %v552
  %588 = vst.msk [vmem:[%s4 + $0x30] sm:$0xff] %vm581, %v553
  %589 = vst.msk [vmem:[%s4 + $0x38] sm:$0xff] %vm581, %v554
  %590 = vst.msk [vmem:[%s4 + $0x40] sm:$0xff] %vm581, %v555
  %591 = vst.msk [vmem:[%s4 + $0x48] sm:$0xff] %vm581, %v556
  %592 = vst.msk [vmem:[%s4 + $0x50] sm:$0xff] %vm581, %v557
  %593 = vst.msk [vmem:[%s4 + $0x58] sm:$0xff] %vm581, %v558
  %594 = vst.msk [vmem:[%s4 + $0x60] sm:$0xff] %vm581, %v559
  %595 = vst.msk [vmem:[%s4 + $0x68] sm:$0xff] %vm581, %v560
  %596 = vst.msk [vmem:[%s4 + $0x70] sm:$0xff] %vm581, %v561
  %597 = vst.msk [vmem:[%s4 + $0x78] sm:$0xff] %vm581, %v562
  // Predicated region
  $region18: #{block_forward.7} parent=0 // pred_check
    _
  $region19: #{block_forward.7} parent=0 // pred_check_branch
    %599 = sbr.rel (0) target = $region21
  $region20: #{block_forward.7} parent=0 // pred_region
    _
  $region21: #{block_forward.7} parent=0 // pred_fallthru
    _
  // Predicated region
  $region22: #{block_forward.7} parent=0 // pred_check
    _
  $region23: #{block_forward.7} parent=0 // pred_check_branch
    %601 = sbr.rel (0) target = $region25
  $region24: #{block_forward.7} parent=0 // pred_region
    _
  $region25: #{block_forward.7} parent=0 // pred_fallthru
    _

// kernel: squeeze.3
$region0: #{squeeze.3}
  %s0 = inlined_call_operand.vmem [shape: bf16[1,4,16,128], index: 0, kind: input, shape index: {}]
  %s1 = inlined_call_operand.vmem [shape: bf16[4,16,8,16], index: 1, kind: output, shape index: {}]
  $region1: #{squeeze.3} parent=0
    #allocation0 [shape = 'u8[262144]{0}', space=vmem, size = 0x40000, scoped, tag = 'scoped mem for output reshape']
    #allocation1 [shape = 'u8[32768]{0}', space=vmem, size = 0x8000, scoped, tag = 'scoped mem for input reshape']
    %s3 = smul.u32 4, 2
    %s4 = sshllo.u32 0, %s3
    %s5 = smul.addr 4, 7
    %s6 = scalar_lea.vmem %s0, %s5
    %s7 = sshrl.u32 %s4, 1
    %s8 = sor.u32 %s4, %s7
    %s9 = sand.u32 %s8, 85
    %s10 = sshrl.u32 %s9, 1
    %s11 = sor.u32 %s9, %s10
    %s12 = sand.u32 51, %s11
    %s13 = sshrl.u32 %s12, 2
    %s14 = sor.u32 %s12, %s13
    %s15 = sand.u32 15, %s14
    %v16 = vld [vmem:[%s6] sm:%s15]
    %v17 = vunpack.c.l.bf16 %v16
    %v18 = vunpack.c.h.bf16 %v16
    %s19 = scalar_lea.vmem [#allocation1], 56
    %20 = vst [vmem:[%s19] sm:%s4] %v17
    %s21 = smul.addr 4, 6
    %s22 = scalar_lea.vmem %s0, %s21
    %s23 = sshrl.u32 %s4, 1
    %s24 = sor.u32 %s4, %s23
    %s25 = sand.u32 %s24, 85
    %s26 = sshrl.u32 %s25, 1
    %s27 = sor.u32 %s25, %s26
    %s28 = sand.u32 51, %s27
    %s29 = sshrl.u32 %s28, 2
    %s30 = sor.u32 %s28, %s29
    %s31 = sand.u32 15, %s30
    %v32 = vld [vmem:[%s22] sm:%s31]
    %v33 = vunpack.c.l.bf16 %v32
    %v34 = vunpack.c.h.bf16 %v32
    %s35 = scalar_lea.vmem [#allocation1], 48
    %36 = vst [vmem:[%s35] sm:%s4] %v33
    %s37 = smul.addr 4, 5
    %s38 = scalar_lea.vmem %s0, %s37
    %s39 = sshrl.u32 %s4, 1
    %s40 = sor.u32 %s4, %s39
    %s41 = sand.u32 %s40, 85
    %s42 = sshrl.u32 %s41, 1
    %s43 = sor.u32 %s41, %s42
    %s44 = sand.u32 51, %s43
    %s45 = sshrl.u32 %s44, 2
    %s46 = sor.u32 %s44, %s45
    %s47 = sand.u32 15, %s46
    %v48 = vld [vmem:[%s38] sm:%s47]
    %v49 = vunpack.c.l.bf16 %v48
    %v50 = vunpack.c.h.bf16 %v48
    %s51 = scalar_lea.vmem [#allocation1], 40
    %52 = vst [vmem:[%s51] sm:%s4] %v49
    %s53 = smul.addr 4, 4
    %s54 = scalar_lea.vmem %s0, %s53
    %s55 = sshrl.u32 %s4, 1
    %s56 = sor.u32 %s4, %s55
    %s57 = sand.u32 %s56, 85
    %s58 = sshrl.u32 %s57, 1
    %s59 = sor.u32 %s57, %s58
    %s60 = sand.u32 51, %s59
    %s61 = sshrl.u32 %s60, 2
    %s62 = sor.u32 %s60, %s61
    %s63 = sand.u32 15, %s62
    %v64 = vld [vmem:[%s54] sm:%s63]
    %v65 = vunpack.c.l.bf16 %v64
    %v66 = vunpack.c.h.bf16 %v64
    %s67 = scalar_lea.vmem [#allocation1], 32
    %68 = vst [vmem:[%s67] sm:%s4] %v65
    %s69 = smul.addr 4, 3
    %s70 = scalar_lea.vmem %s0, %s69
    %s71 = sshrl.u32 %s4, 1
    %s72 = sor.u32 %s4, %s71
    %s73 = sand.u32 %s72, 85
    %s74 = sshrl.u32 %s73, 1
    %s75 = sor.u32 %s73, %s74
    %s76 = sand.u32 51, %s75
    %s77 = sshrl.u32 %s76, 2
    %s78 = sor.u32 %s76, %s77
    %s79 = sand.u32 15, %s78
    %v80 = vld [vmem:[%s70] sm:%s79]
    %v81 = vunpack.c.l.bf16 %v80
    %v82 = vunpack.c.h.bf16 %v80
    %s83 = scalar_lea.vmem [#allocation1], 24
    %84 = vst [vmem:[%s83] sm:%s4] %v81
    %s85 = smul.addr 4, 2
    %s86 = scalar_lea.vmem %s0, %s85
    %s87 = sshrl.u32 %s4, 1
    %s88 = sor.u32 %s4, %s87
    %s89 = sand.u32 %s88, 85
    %s90 = sshrl.u32 %s89, 1
    %s91 = sor.u32 %s89, %s90
    %s92 = sand.u32 51, %s91
    %s93 = sshrl.u32 %s92, 2
    %s94 = sor.u32 %s92, %s93
    %s95 = sand.u32 15, %s94
    %v96 = vld [vmem:[%s86] sm:%s95]
    %v97 = vunpack.c.l.bf16 %v96
    %v98 = vunpack.c.h.bf16 %v96
    %s99 = scalar_lea.vmem [#allocation1], 16
    %100 = vst [vmem:[%s99] sm:%s4] %v97
    %s101 = scalar_lea.vmem %s0, 4
    %s102 = sshrl.u32 %s4, 1
    %s103 = sor.u32 %s4, %s102
    %s104 = sand.u32 %s103, 85
    %s105 = sshrl.u32 %s104, 1
    %s106 = sor.u32 %s104, %s105
    %s107 = sand.u32 51, %s106
    %s108 = sshrl.u32 %s107, 2
    %s109 = sor.u32 %s107, %s108
    %s110 = sand.u32 15, %s109
    %v111 = vld [vmem:[%s101] sm:%s110]
    %v112 = vunpack.c.l.bf16 %v111
    %v113 = vunpack.c.h.bf16 %v111
    %s114 = scalar_lea.vmem [#allocation1], 8
    %115 = vst [vmem:[%s114] sm:%s4] %v112
    %s116 = sshrl.u32 %s4, 1
    %s117 = sor.u32 %s4, %s116
    %s118 = sand.u32 %s117, 85
    %s119 = sshrl.u32 %s118, 1
    %s120 = sor.u32 %s118, %s119
    %s121 = sand.u32 51, %s120
    %s122 = sshrl.u32 %s121, 2
    %s123 = sor.u32 %s121, %s122
    %s124 = sand.u32 15, %s123
    %v125 = vld [vmem:[%s0] sm:%s124]
    %v126 = vunpack.c.l.bf16 %v125
    %v127 = vunpack.c.h.bf16 %v125
    %128 = vst [vmem:[#allocation1] sm:%s4] %v126
    %v129 = vld [vmem:[#allocation1] sm:$0xff]
    %vm130 = vcmask 130048
    %131 = vst.msk [vmem:[#allocation0] ss:$8 sm:$0xf] %vm130, %v129
    %132 = vst.msk [vmem:[#allocation0] ss:$8 sm:$0xf0] %vm130, %v129
    %s133 = scalar_lea.vmem [#allocation1], 8
    %v134 = vld [vmem:[%s133] sm:$0xff]
    %vm135 = vcmask 130048
    %s136 = scalar_lea.vmem [#allocation0], 64
    %137 = vst.msk [vmem:[%s136] ss:$8 sm:$0xf] %vm135, %v134
    %s138 = scalar_lea.vmem [#allocation0], 64
    %139 = vst.msk [vmem:[%s138] ss:$8 sm:$0xf0] %vm135, %v134
    %s140 = scalar_lea.vmem [#allocation1], 16
    %v141 = vld [vmem:[%s140] sm:$0xff]
    %vm142 = vcmask 130048
    %s143 = scalar_lea.vmem [#allocation0], 128
    %144 = vst.msk [vmem:[%s143] ss:$8 sm:$0xf] %vm142, %v141
    %s145 = scalar_lea.vmem [#allocation0], 128
    %146 = vst.msk [vmem:[%s145] ss:$8 sm:$0xf0] %vm142, %v141
    %s147 = scalar_lea.vmem [#allocation1], 24
    %v148 = vld [vmem:[%s147] sm:$0xff]
    %vm149 = vcmask 130048
    %s150 = scalar_lea.vmem [#allocation0], 192
    %151 = vst.msk [vmem:[%s150] ss:$8 sm:$0xf] %vm149, %v148
    %s152 = scalar_lea.vmem [#allocation0], 192
    %153 = vst.msk [vmem:[%s152] ss:$8 sm:$0xf0] %vm149, %v148
    %s154 = scalar_lea.vmem [#allocation1], 32
    %v155 = vld [vmem:[%s154] sm:$0xff]
    %vm156 = vcmask 130048
    %s157 = scalar_lea.vmem [#allocation0], 256
    %158 = vst.msk [vmem:[%s157] ss:$8 sm:$0xf] %vm156, %v155
    %s159 = scalar_lea.vmem [#allocation0], 256
    %160 = vst.msk [vmem:[%s159] ss:$8 sm:$0xf0] %vm156, %v155
    %s161 = scalar_lea.vmem [#allocation1], 40
    %v162 = vld [vmem:[%s161] sm:$0xff]
    %vm163 = vcmask 130048
    %s164 = scalar_lea.vmem [#allocation0], 320
    %165 = vst.msk [vmem:[%s164] ss:$8 sm:$0xf] %vm163, %v162
    %s166 = scalar_lea.vmem [#allocation0], 320
    %167 = vst.msk [vmem:[%s166] ss:$8 sm:$0xf0] %vm163, %v162
    %s168 = scalar_lea.vmem [#allocation1], 48
    %v169 = vld [vmem:[%s168] sm:$0xff]
    %vm170 = vcmask 130048
    %s171 = scalar_lea.vmem [#allocation0], 384
    %172 = vst.msk [vmem:[%s171] ss:$8 sm:$0xf] %vm170, %v169
    %s173 = scalar_lea.vmem [#allocation0], 384
    %174 = vst.msk [vmem:[%s173] ss:$8 sm:$0xf0] %vm170, %v169
    %s175 = scalar_lea.vmem [#allocation1], 56
    %v176 = vld [vmem:[%s175] sm:$0xff]
    %vm177 = vcmask 130048
    %s178 = scalar_lea.vmem [#allocation0], 448
    %179 = vst.msk [vmem:[%s178] ss:$8 sm:$0xf] %vm177, %v176
    %s180 = scalar_lea.vmem [#allocation0], 448
    %181 = vst.msk [vmem:[%s180] ss:$8 sm:$0xf0] %vm177, %v176
    %v182 = vld [vmem:[#allocation1] sm:$0xff]
    %183 = vrot.lane.b32.xlu0 %v182, 112
    %v184 = vpop.permute.xlu0 %183
    %vm185 = vcmask 130048
    %s186 = scalar_lea.vmem [#allocation0], 1
    %187 = vst.msk [vmem:[%s186] ss:$8 sm:$0xf] %vm185, %v184
    %s188 = scalar_lea.vmem [#allocation0], 1
    %189 = vst.msk [vmem:[%s188] ss:$8 sm:$0xf0] %vm185, %v184
    %s190 = scalar_lea.vmem [#allocation1], 8
    %v191 = vld [vmem:[%s190] sm:$0xff]
    %192 = vrot.lane.b32.xlu0 %v191, 112
    %v193 = vpop.permute.xlu0 %192
    %vm194 = vcmask 130048
    %s195 = scalar_lea.vmem [#allocation0], 65
    %196 = vst.msk [vmem:[%s195] ss:$8 sm:$0xf] %vm194, %v193
    %s197 = scalar_lea.vmem [#allocation0], 65
    %198 = vst.msk [vmem:[%s197] ss:$8 sm:$0xf0] %vm194, %v193
    %s199 = scalar_lea.vmem [#allocation1], 16
    %v200 = vld [vmem:[%s199] sm:$0xff]
    %201 = vrot.lane.b32.xlu0 %v200, 112
    %v202 = vpop.permute.xlu0 %201
    %vm203 = vcmask 130048
    %s204 = scalar_lea.vmem [#allocation0], 129
    %205 = vst.msk [vmem:[%s204] ss:$8 sm:$0xf] %vm203, %v202
    %s206 = scalar_lea.vmem [#allocation0], 129
    %207 = vst.msk [vmem:[%s206] ss:$8 sm:$0xf0] %vm203, %v202
    %s208 = scalar_lea.vmem [#allocation1], 24
    %v209 = vld [vmem:[%s208] sm:$0xff]
    %210 = vrot.lane.b32.xlu0 %v209, 112
    %v211 = vpop.permute.xlu0 %210
    %vm212 = vcmask 130048
    %s213 = scalar_lea.vmem [#allocation0], 193
    %214 = vst.msk [vmem:[%s213] ss:$8 sm:$0xf] %vm212, %v211
    %s215 = scalar_lea.vmem [#allocation0], 193
    %216 = vst.msk [vmem:[%s215] ss:$8 sm:$0xf0] %vm212, %v211
    %s217 = scalar_lea.vmem [#allocation1], 32
    %v218 = vld [vmem:[%s217] sm:$0xff]
    %219 = vrot.lane.b32.xlu0 %v218, 112
    %v220 = vpop.permute.xlu0 %219
    %vm221 = vcmask 130048
    %s222 = scalar_lea.vmem [#allocation0], 257
    %223 = vst.msk [vmem:[%s222] ss:$8 sm:$0xf] %vm221, %v220
    %s224 = scalar_lea.vmem [#allocation0], 257
    %225 = vst.msk [vmem:[%s224] ss:$8 sm:$0xf0] %vm221, %v220
    %s226 = scalar_lea.vmem [#allocation1], 40
    %v227 = vld [vmem:[%s226] sm:$0xff]
    %228 = vrot.lane.b32.xlu0 %v227, 112
    %v229 = vpop.permute.xlu0 %228
    %vm230 = vcmask 130048
    %s231 = scalar_lea.vmem [#allocation0], 321
    %232 = vst.msk [vmem:[%s231] ss:$8 sm:$0xf] %vm230, %v229
    %s233 = scalar_lea.vmem [#allocation0], 321
    %234 = vst.msk [vmem:[%s233] ss:$8 sm:$0xf0] %vm230, %v229
    %s235 = scalar_lea.vmem [#allocation1], 48
    %v236 = vld [vmem:[%s235] sm:$0xff]
    %237 = vrot.lane.b32.xlu0 %v236, 112
    %v238 = vpop.permute.xlu0 %237
    %vm239 = vcmask 130048
    %s240 = scalar_lea.vmem [#allocation0], 385
    %241 = vst.msk [vmem:[%s240] ss:$8 sm:$0xf] %vm239, %v238
    %s242 = scalar_lea.vmem [#allocation0], 385
    %243 = vst.msk [vmem:[%s242] ss:$8 sm:$0xf0] %vm239, %v238
    %s244 = scalar_lea.vmem [#allocation1], 56
    %v245 = vld [vmem:[%s244] sm:$0xff]
    %246 = vrot.lane.b32.xlu0 %v245, 112
    %v247 = vpop.permute.xlu0 %246
    %vm248 = vcmask 130048
    %s249 = scalar_lea.vmem [#allocation0], 449
    %250 = vst.msk [vmem:[%s249] ss:$8 sm:$0xf] %vm248, %v247
    %s251 = scalar_lea.vmem [#allocation0], 449
    %252 = vst.msk [vmem:[%s251] ss:$8 sm:$0xf0] %vm248, %v247
    %v253 = vld [vmem:[#allocation1] sm:$0xff]
    %254 = vrot.lane.b32.xlu0 %v253, 96
    %v255 = vpop.permute.xlu0 %254
    %vm256 = vcmask 130048
    %s257 = scalar_lea.vmem [#allocation0], 2
    %258 = vst.msk [vmem:[%s257] ss:$8 sm:$0xf] %vm256, %v255
    %s259 = scalar_lea.vmem [#allocation0], 2
    %260 = vst.msk [vmem:[%s259] ss:$8 sm:$0xf0] %vm256, %v255
    %s261 = scalar_lea.vmem [#allocation1], 8
    %v262 = vld [vmem:[%s261] sm:$0xff]
    %263 = vrot.lane.b32.xlu0 %v262, 96
    %v264 = vpop.permute.xlu0 %263
    %vm265 = vcmask 130048
    %s266 = scalar_lea.vmem [#allocation0], 66
    %267 = vst.msk [vmem:[%s266] ss:$8 sm:$0xf] %vm265, %v264
    %s268 = scalar_lea.vmem [#allocation0], 66
    %269 = vst.msk [vmem:[%s268] ss:$8 sm:$0xf0] %vm265, %v264
    %s270 = scalar_lea.vmem [#allocation1], 16
    %v271 = vld [vmem:[%s270] sm:$0xff]
    %272 = vrot.lane.b32.xlu0 %v271, 96
    %v273 = vpop.permute.xlu0 %272
    %vm274 = vcmask 130048
    %s275 = scalar_lea.vmem [#allocation0], 130
    %276 = vst.msk [vmem:[%s275] ss:$8 sm:$0xf] %vm274, %v273
    %s277 = scalar_lea.vmem [#allocation0], 130
    %278 = vst.msk [vmem:[%s277] ss:$8 sm:$0xf0] %vm274, %v273
    %s279 = scalar_lea.vmem [#allocation1], 24
    %v280 = vld [vmem:[%s279] sm:$0xff]
    %281 = vrot.lane.b32.xlu0 %v280, 96
    %v282 = vpop.permute.xlu0 %281
    %vm283 = vcmask 130048
    %s284 = scalar_lea.vmem [#allocation0], 194
    %285 = vst.msk [vmem:[%s284] ss:$8 sm:$0xf] %vm283, %v282
    %s286 = scalar_lea.vmem [#allocation0], 194
    %287 = vst.msk [vmem:[%s286] ss:$8 sm:$0xf0] %vm283, %v282
    %s288 = scalar_lea.vmem [#allocation1], 32
    %v289 = vld [vmem:[%s288] sm:$0xff]
    %290 = vrot.lane.b32.xlu0 %v289, 96
    %v291 = vpop.permute.xlu0 %290
    %vm292 = vcmask 130048
    %s293 = scalar_lea.vmem [#allocation0], 258
    %294 = vst.msk [vmem:[%s293] ss:$8 sm:$0xf] %vm292, %v291
    %s295 = scalar_lea.vmem [#allocation0], 258
    %296 = vst.msk [vmem:[%s295] ss:$8 sm:$0xf0] %vm292, %v291
    %s297 = scalar_lea.vmem [#allocation1], 40
    %v298 = vld [vmem:[%s297] sm:$0xff]
    %299 = vrot.lane.b32.xlu0 %v298, 96
    %v300 = vpop.permute.xlu0 %299
    %vm301 = vcmask 130048
    %s302 = scalar_lea.vmem [#allocation0], 322
    %303 = vst.msk [vmem:[%s302] ss:$8 sm:$0xf] %vm301, %v300
    %s304 = scalar_lea.vmem [#allocation0], 322
    %305 = vst.msk [vmem:[%s304] ss:$8 sm:$0xf0] %vm301, %v300
    %s306 = scalar_lea.vmem [#allocation1], 48
    %v307 = vld [vmem:[%s306] sm:$0xff]
    %308 = vrot.lane.b32.xlu0 %v307, 96
    %v309 = vpop.permute.xlu0 %308
    %vm310 = vcmask 130048
    %s311 = scalar_lea.vmem [#allocation0], 386
    %312 = vst.msk [vmem:[%s311] ss:$8 sm:$0xf] %vm310, %v309
    %s313 = scalar_lea.vmem [#allocation0], 386
    %314 = vst.msk [vmem:[%s313] ss:$8 sm:$0xf0] %vm310, %v309
    %s315 = scalar_lea.vmem [#allocation1], 56
    %v316 = vld [vmem:[%s315] sm:$0xff]
    %317 = vrot.lane.b32.xlu0 %v316, 96
    %v318 = vpop.permute.xlu0 %317
    %vm319 = vcmask 130048
    %s320 = scalar_lea.vmem [#allocation0], 450
    %321 = vst.msk [vmem:[%s320] ss:$8 sm:$0xf] %vm319, %v318
    %s322 = scalar_lea.vmem [#allocation0], 450
    %323 = vst.msk [vmem:[%s322] ss:$8 sm:$0xf0] %vm319, %v318
    %v324 = vld [vmem:[#allocation1] sm:$0xff]
    %325 = vrot.lane.b32.xlu0 %v324, 80
    %v326 = vpop.permute.xlu0 %325
    %vm327 = vcmask 130048
    %s328 = scalar_lea.vmem [#allocation0], 3
    %329 = vst.msk [vmem:[%s328] ss:$8 sm:$0xf] %vm327, %v326
    %s330 = scalar_lea.vmem [#allocation0], 3
    %331 = vst.msk [vmem:[%s330] ss:$8 sm:$0xf0] %vm327, %v326
    %s332 = scalar_lea.vmem [#allocation1], 8
    %v333 = vld [vmem:[%s332] sm:$0xff]
    %334 = vrot.lane.b32.xlu0 %v333, 80
    %v335 = vpop.permute.xlu0 %334
    %vm336 = vcmask 130048
    %s337 = scalar_lea.vmem [#allocation0], 67
    %338 = vst.msk [vmem:[%s337] ss:$8 sm:$0xf] %vm336, %v335
    %s339 = scalar_lea.vmem [#allocation0], 67
    %340 = vst.msk [vmem:[%s339] ss:$8 sm:$0xf0] %vm336, %v335
    %s341 = scalar_lea.vmem [#allocation1], 16
    %v342 = vld [vmem:[%s341] sm:$0xff]
    %343 = vrot.lane.b32.xlu0 %v342, 80
    %v344 = vpop.permute.xlu0 %343
    %vm345 = vcmask 130048
    %s346 = scalar_lea.vmem [#allocation0], 131
    %347 = vst.msk [vmem:[%s346] ss:$8 sm:$0xf] %vm345, %v344
    %s348 = scalar_lea.vmem [#allocation0], 131
    %349 = vst.msk [vmem:[%s348] ss:$8 sm:$0xf0] %vm345, %v344
    %s350 = scalar_lea.vmem [#allocation1], 24
    %v351 = vld [vmem:[%s350] sm:$0xff]
    %352 = vrot.lane.b32.xlu0 %v351, 80
    %v353 = vpop.permute.xlu0 %352
    %vm354 = vcmask 130048
    %s355 = scalar_lea.vmem [#allocation0], 195
    %356 = vst.msk [vmem:[%s355] ss:$8 sm:$0xf] %vm354, %v353
    %s357 = scalar_lea.vmem [#allocation0], 195
    %358 = vst.msk [vmem:[%s357] ss:$8 sm:$0xf0] %vm354, %v353
    %s359 = scalar_lea.vmem [#allocation1], 32
    %v360 = vld [vmem:[%s359] sm:$0xff]
    %361 = vrot.lane.b32.xlu0 %v360, 80
    %v362 = vpop.permute.xlu0 %361
    %vm363 = vcmask 130048
    %s364 = scalar_lea.vmem [#allocation0], 259
    %365 = vst.msk [vmem:[%s364] ss:$8 sm:$0xf] %vm363, %v362
    %s366 = scalar_lea.vmem [#allocation0], 259
    %367 = vst.msk [vmem:[%s366] ss:$8 sm:$0xf0] %vm363, %v362
    %s368 = scalar_lea.vmem [#allocation1], 40
    %v369 = vld [vmem:[%s368] sm:$0xff]
    %370 = vrot.lane.b32.xlu0 %v369, 80
    %v371 = vpop.permute.xlu0 %370
    %vm372 = vcmask 130048
    %s373 = scalar_lea.vmem [#allocation0], 323
    %374 = vst.msk [vmem:[%s373] ss:$8 sm:$0xf] %vm372, %v371
    %s375 = scalar_lea.vmem [#allocation0], 323
    %376 = vst.msk [vmem:[%s375] ss:$8 sm:$0xf0] %vm372, %v371
    %s377 = scalar_lea.vmem [#allocation1], 48
    %v378 = vld [vmem:[%s377] sm:$0xff]
    %379 = vrot.lane.b32.xlu0 %v378, 80
    %v380 = vpop.permute.xlu0 %379
    %vm381 = vcmask 130048
    %s382 = scalar_lea.vmem [#allocation0], 387
    %383 = vst.msk [vmem:[%s382] ss:$8 sm:$0xf] %vm381, %v380
    %s384 = scalar_lea.vmem [#allocation0], 387
    %385 = vst.msk [vmem:[%s384] ss:$8 sm:$0xf0] %vm381, %v380
    %s386 = scalar_lea.vmem [#allocation1], 56
    %v387 = vld [vmem:[%s386] sm:$0xff]
    %388 = vrot.lane.b32.xlu0 %v387, 80
    %v389 = vpop.permute.xlu0 %388
    %vm390 = vcmask 130048
    %s391 = scalar_lea.vmem [#allocation0], 451
    %392 = vst.msk [vmem:[%s391] ss:$8 sm:$0xf] %vm390, %v389
    %s393 = scalar_lea.vmem [#allocation0], 451
    %394 = vst.msk [vmem:[%s393] ss:$8 sm:$0xf0] %vm390, %v389
    %v395 = vld [vmem:[#allocation1] sm:$0xff]
    %396 = vrot.lane.b32.xlu0 %v395, 64
    %v397 = vpop.permute.xlu0 %396
    %vm398 = vcmask 130048
    %s399 = scalar_lea.vmem [#allocation0], 4
    %400 = vst.msk [vmem:[%s399] ss:$8 sm:$0xf] %vm398, %v397
    %s401 = scalar_lea.vmem [#allocation0], 4
    %402 = vst.msk [vmem:[%s401] ss:$8 sm:$0xf0] %vm398, %v397
    %s403 = scalar_lea.vmem [#allocation1], 8
    %v404 = vld [vmem:[%s403] sm:$0xff]
    %405 = vrot.lane.b32.xlu0 %v404, 64
    %v406 = vpop.permute.xlu0 %405
    %vm407 = vcmask 130048
    %s408 = scalar_lea.vmem [#allocation0], 68
    %409 = vst.msk [vmem:[%s408] ss:$8 sm:$0xf] %vm407, %v406
    %s410 = scalar_lea.vmem [#allocation0], 68
    %411 = vst.msk [vmem:[%s410] ss:$8 sm:$0xf0] %vm407, %v406
    %s412 = scalar_lea.vmem [#allocation1], 16
    %v413 = vld [vmem:[%s412] sm:$0xff]
    %414 = vrot.lane.b32.xlu0 %v413, 64
    %v415 = vpop.permute.xlu0 %414
    %vm416 = vcmask 130048
    %s417 = scalar_lea.vmem [#allocation0], 132
    %418 = vst.msk [vmem:[%s417] ss:$8 sm:$0xf] %vm416, %v415
    %s419 = scalar_lea.vmem [#allocation0], 132
    %420 = vst.msk [vmem:[%s419] ss:$8 sm:$0xf0] %vm416, %v415
    %s421 = scalar_lea.vmem [#allocation1], 24
    %v422 = vld [vmem:[%s421] sm:$0xff]
    %423 = vrot.lane.b32.xlu0 %v422, 64
    %v424 = vpop.permute.xlu0 %423
    %vm425 = vcmask 130048
    %s426 = scalar_lea.vmem [#allocation0], 196
    %427 = vst.msk [vmem:[%s426] ss:$8 sm:$0xf] %vm425, %v424
    %s428 = scalar_lea.vmem [#allocation0], 196
    %429 = vst.msk [vmem:[%s428] ss:$8 sm:$0xf0] %vm425, %v424
    %s430 = scalar_lea.vmem [#allocation1], 32
    %v431 = vld [vmem:[%s430] sm:$0xff]
    %432 = vrot.lane.b32.xlu0 %v431, 64
    %v433 = vpop.permute.xlu0 %432
    %vm434 = vcmask 130048
    %s435 = scalar_lea.vmem [#allocation0], 260
    %436 = vst.msk [vmem:[%s435] ss:$8 sm:$0xf] %vm434, %v433
    %s437 = scalar_lea.vmem [#allocation0], 260
    %438 = vst.msk [vmem:[%s437] ss:$8 sm:$0xf0] %vm434, %v433
    %s439 = scalar_lea.vmem [#allocation1], 40
    %v440 = vld [vmem:[%s439] sm:$0xff]
    %441 = vrot.lane.b32.xlu0 %v440, 64
    %v442 = vpop.permute.xlu0 %441
    %vm443 = vcmask 130048
    %s444 = scalar_lea.vmem [#allocation0], 324
    %445 = vst.msk [vmem:[%s444] ss:$8 sm:$0xf] %vm443, %v442
    %s446 = scalar_lea.vmem [#allocation0], 324
    %447 = vst.msk [vmem:[%s446] ss:$8 sm:$0xf0] %vm443, %v442
    %s448 = scalar_lea.vmem [#allocation1], 48
    %v449 = vld [vmem:[%s448] sm:$0xff]
    %450 = vrot.lane.b32.xlu0 %v449, 64
    %v451 = vpop.permute.xlu0 %450
    %vm452 = vcmask 130048
    %s453 = scalar_lea.vmem [#allocation0], 388
    %454 = vst.msk [vmem:[%s453] ss:$8 sm:$0xf] %vm452, %v451
    %s455 = scalar_lea.vmem [#allocation0], 388
    %456 = vst.msk [vmem:[%s455] ss:$8 sm:$0xf0] %vm452, %v451
    %s457 = scalar_lea.vmem [#allocation1], 56
    %v458 = vld [vmem:[%s457] sm:$0xff]
    %459 = vrot.lane.b32.xlu0 %v458, 64
    %v460 = vpop.permute.xlu0 %459
    %vm461 = vcmask 130048
    %s462 = scalar_lea.vmem [#allocation0], 452
    %463 = vst.msk [vmem:[%s462] ss:$8 sm:$0xf] %vm461, %v460
    %s464 = scalar_lea.vmem [#allocation0], 452
    %465 = vst.msk [vmem:[%s464] ss:$8 sm:$0xf0] %vm461, %v460
    %v466 = vld [vmem:[#allocation1] sm:$0xff]
    %467 = vrot.lane.b32.xlu0 %v466, 48
    %v468 = vpop.permute.xlu0 %467
    %vm469 = vcmask 130048
    %s470 = scalar_lea.vmem [#allocation0], 5
    %471 = vst.msk [vmem:[%s470] ss:$8 sm:$0xf] %vm469, %v468
    %s472 = scalar_lea.vmem [#allocation0], 5
    %473 = vst.msk [vmem:[%s472] ss:$8 sm:$0xf0] %vm469, %v468
    %s474 = scalar_lea.vmem [#allocation1], 8
    %v475 = vld [vmem:[%s474] sm:$0xff]
    %476 = vrot.lane.b32.xlu0 %v475, 48
    %v477 = vpop.permute.xlu0 %476
    %vm478 = vcmask 130048
    %s479 = scalar_lea.vmem [#allocation0], 69
    %480 = vst.msk [vmem:[%s479] ss:$8 sm:$0xf] %vm478, %v477
    %s481 = scalar_lea.vmem [#allocation0], 69
    %482 = vst.msk [vmem:[%s481] ss:$8 sm:$0xf0] %vm478, %v477
    %s483 = scalar_lea.vmem [#allocation1], 16
    %v484 = vld [vmem:[%s483] sm:$0xff]
    %485 = vrot.lane.b32.xlu0 %v484, 48
    %v486 = vpop.permute.xlu0 %485
    %vm487 = vcmask 130048
    %s488 = scalar_lea.vmem [#allocation0], 133
    %489 = vst.msk [vmem:[%s488] ss:$8 sm:$0xf] %vm487, %v486
    %s490 = scalar_lea.vmem [#allocation0], 133
    %491 = vst.msk [vmem:[%s490] ss:$8 sm:$0xf0] %vm487, %v486
    %s492 = scalar_lea.vmem [#allocation1], 24
    %v493 = vld [vmem:[%s492] sm:$0xff]
    %494 = vrot.lane.b32.xlu0 %v493, 48
    %v495 = vpop.permute.xlu0 %494
    %vm496 = vcmask 130048
    %s497 = scalar_lea.vmem [#allocation0], 197
    %498 = vst.msk [vmem:[%s497] ss:$8 sm:$0xf] %vm496, %v495
    %s499 = scalar_lea.vmem [#allocation0], 197
    %500 = vst.msk [vmem:[%s499] ss:$8 sm:$0xf0] %vm496, %v495
    %s501 = scalar_lea.vmem [#allocation1], 32
    %v502 = vld [vmem:[%s501] sm:$0xff]
    %503 = vrot.lane.b32.xlu0 %v502, 48
    %v504 = vpop.permute.xlu0 %503
    %vm505 = vcmask 130048
    %s506 = scalar_lea.vmem [#allocation0], 261
    %507 = vst.msk [vmem:[%s506] ss:$8 sm:$0xf] %vm505, %v504
    %s508 = scalar_lea.vmem [#allocation0], 261
    %509 = vst.msk [vmem:[%s508] ss:$8 sm:$0xf0] %vm505, %v504
    %s510 = scalar_lea.vmem [#allocation1], 40
    %v511 = vld [vmem:[%s510] sm:$0xff]
    %512 = vrot.lane.b32.xlu0 %v511, 48
    %v513 = vpop.permute.xlu0 %512
    %vm514 = vcmask 130048
    %s515 = scalar_lea.vmem [#allocation0], 325
    %516 = vst.msk [vmem:[%s515] ss:$8 sm:$0xf] %vm514, %v513
    %s517 = scalar_lea.vmem [#allocation0], 325
    %518 = vst.msk [vmem:[%s517] ss:$8 sm:$0xf0] %vm514, %v513
    %s519 = scalar_lea.vmem [#allocation1], 48
    %v520 = vld [vmem:[%s519] sm:$0xff]
    %521 = vrot.lane.b32.xlu0 %v520, 48
    %v522 = vpop.permute.xlu0 %521
    %vm523 = vcmask 130048
    %s524 = scalar_lea.vmem [#allocation0], 389
    %525 = vst.msk [vmem:[%s524] ss:$8 sm:$0xf] %vm523, %v522
    %s526 = scalar_lea.vmem [#allocation0], 389
    %527 = vst.msk [vmem:[%s526] ss:$8 sm:$0xf0] %vm523, %v522
    %s528 = scalar_lea.vmem [#allocation1], 56
    %v529 = vld [vmem:[%s528] sm:$0xff]
    %530 = vrot.lane.b32.xlu0 %v529, 48
    %v531 = vpop.permute.xlu0 %530
    %vm532 = vcmask 130048
    %s533 = scalar_lea.vmem [#allocation0], 453
    %534 = vst.msk [vmem:[%s533] ss:$8 sm:$0xf] %vm532, %v531
    %s535 = scalar_lea.vmem [#allocation0], 453
    %536 = vst.msk [vmem:[%s535] ss:$8 sm:$0xf0] %vm532, %v531
    %v537 = vld [vmem:[#allocation1] sm:$0xff]
    %538 = vrot.lane.b32.xlu0 %v537, 32
    %v539 = vpop.permute.xlu0 %538
    %vm540 = vcmask 130048
    %s541 = scalar_lea.vmem [#allocation0], 6
    %542 = vst.msk [vmem:[%s541] ss:$8 sm:$0xf] %vm540, %v539
    %s543 = scalar_lea.vmem [#allocation0], 6
    %544 = vst.msk [vmem:[%s543] ss:$8 sm:$0xf0] %vm540, %v539
    %s545 = scalar_lea.vmem [#allocation1], 8
    %v546 = vld [vmem:[%s545] sm:$0xff]
    %547 = vrot.lane.b32.xlu0 %v546, 32
    %v548 = vpop.permute.xlu0 %547
    %vm549 = vcmask 130048
    %s550 = scalar_lea.vmem [#allocation0], 70
    %551 = vst.msk [vmem:[%s550] ss:$8 sm:$0xf] %vm549, %v548
    %s552 = scalar_lea.vmem [#allocation0], 70
    %553 = vst.msk [vmem:[%s552] ss:$8 sm:$0xf0] %vm549, %v548
    %s554 = scalar_lea.vmem [#allocation1], 16
    %v555 = vld [vmem:[%s554] sm:$0xff]
    %556 = vrot.lane.b32.xlu0 %v555, 32
    %v557 = vpop.permute.xlu0 %556
    %vm558 = vcmask 130048
    %s559 = scalar_lea.vmem [#allocation0], 134
    %560 = vst.msk [vmem:[%s559] ss:$8 sm:$0xf] %vm558, %v557
    %s561 = scalar_lea.vmem [#allocation0], 134
    %562 = vst.msk [vmem:[%s561] ss:$8 sm:$0xf0] %vm558, %v557
    %s563 = scalar_lea.vmem [#allocation1], 24
    %v564 = vld [vmem:[%s563] sm:$0xff]
    %565 = vrot.lane.b32.xlu0 %v564, 32
    %v566 = vpop.permute.xlu0 %565
    %vm567 = vcmask 130048
    %s568 = scalar_lea.vmem [#allocation0], 198
    %569 = vst.msk [vmem:[%s568] ss:$8 sm:$0xf] %vm567, %v566
    %s570 = scalar_lea.vmem [#allocation0], 198
    %571 = vst.msk [vmem:[%s570] ss:$8 sm:$0xf0] %vm567, %v566
    %s572 = scalar_lea.vmem [#allocation1], 32
    %v573 = vld [vmem:[%s572] sm:$0xff]
    %574 = vrot.lane.b32.xlu0 %v573, 32
    %v575 = vpop.permute.xlu0 %574
    %vm576 = vcmask 130048
    %s577 = scalar_lea.vmem [#allocation0], 262
    %578 = vst.msk [vmem:[%s577] ss:$8 sm:$0xf] %vm576, %v575
    %s579 = scalar_lea.vmem [#allocation0], 262
    %580 = vst.msk [vmem:[%s579] ss:$8 sm:$0xf0] %vm576, %v575
    %s581 = scalar_lea.vmem [#allocation1], 40
    %v582 = vld [vmem:[%s581] sm:$0xff]
    %583 = vrot.lane.b32.xlu0 %v582, 32
    %v584 = vpop.permute.xlu0 %583
    %vm585 = vcmask 130048
    %s586 = scalar_lea.vmem [#allocation0], 326
    %587 = vst.msk [vmem:[%s586] ss:$8 sm:$0xf] %vm585, %v584
    %s588 = scalar_lea.vmem [#allocation0], 326
    %589 = vst.msk [vmem:[%s588] ss:$8 sm:$0xf0] %vm585, %v584
    %s590 = scalar_lea.vmem [#allocation1], 48
    %v591 = vld [vmem:[%s590] sm:$0xff]
    %592 = vrot.lane.b32.xlu0 %v591, 32
    %v593 = vpop.permute.xlu0 %592
    %vm594 = vcmask 130048
    %s595 = scalar_lea.vmem [#allocation0], 390
    %596 = vst.msk [vmem:[%s595] ss:$8 sm:$0xf] %vm594, %v593
    %s597 = scalar_lea.vmem [#allocation0], 390
    %598 = vst.msk [vmem:[%s597] ss:$8 sm:$0xf0] %vm594, %v593
    %s599 = scalar_lea.vmem [#allocation1], 56
    %v600 = vld [vmem:[%s599] sm:$0xff]
    %601 = vrot.lane.b32.xlu0 %v600, 32
    %v602 = vpop.permute.xlu0 %601
    %vm603 = vcmask 130048
    %s604 = scalar_lea.vmem [#allocation0], 454
    %605 = vst.msk [vmem:[%s604] ss:$8 sm:$0xf] %vm603, %v602
    %s606 = scalar_lea.vmem [#allocation0], 454
    %607 = vst.msk [vmem:[%s606] ss:$8 sm:$0xf0] %vm603, %v602
    %v608 = vld [vmem:[#allocation1] sm:$0xff]
    %609 = vrot.lane.b32.xlu0 %v608, 16
    %v610 = vpop.permute.xlu0 %609
    %vm611 = vcmask 130048
    %s612 = scalar_lea.vmem [#allocation0], 7
    %613 = vst.msk [vmem:[%s612] ss:$8 sm:$0xf] %vm611, %v610
    %s614 = scalar_lea.vmem [#allocation0], 7
    %615 = vst.msk [vmem:[%s614] ss:$8 sm:$0xf0] %vm611, %v610
    %s616 = scalar_lea.vmem [#allocation1], 8
    %v617 = vld [vmem:[%s616] sm:$0xff]
    %618 = vrot.lane.b32.xlu0 %v617, 16
    %v619 = vpop.permute.xlu0 %618
    %vm620 = vcmask 130048
    %s621 = scalar_lea.vmem [#allocation0], 71
    %622 = vst.msk [vmem:[%s621] ss:$8 sm:$0xf] %vm620, %v619
    %s623 = scalar_lea.vmem [#allocation0], 71
    %624 = vst.msk [vmem:[%s623] ss:$8 sm:$0xf0] %vm620, %v619
    %s625 = scalar_lea.vmem [#allocation1], 16
    %v626 = vld [vmem:[%s625] sm:$0xff]
    %627 = vrot.lane.b32.xlu0 %v626, 16
    %v628 = vpop.permute.xlu0 %627
    %vm629 = vcmask 130048
    %s630 = scalar_lea.vmem [#allocation0], 135
    %631 = vst.msk [vmem:[%s630] ss:$8 sm:$0xf] %vm629, %v628
    %s632 = scalar_lea.vmem [#allocation0], 135
    %633 = vst.msk [vmem:[%s632] ss:$8 sm:$0xf0] %vm629, %v628
    %s634 = scalar_lea.vmem [#allocation1], 24
    %v635 = vld [vmem:[%s634] sm:$0xff]
    %636 = vrot.lane.b32.xlu0 %v635, 16
    %v637 = vpop.permute.xlu0 %636
    %vm638 = vcmask 130048
    %s639 = scalar_lea.vmem [#allocation0], 199
    %640 = vst.msk [vmem:[%s639] ss:$8 sm:$0xf] %vm638, %v637
    %s641 = scalar_lea.vmem [#allocation0], 199
    %642 = vst.msk [vmem:[%s641] ss:$8 sm:$0xf0] %vm638, %v637
    %s643 = scalar_lea.vmem [#allocation1], 32
    %v644 = vld [vmem:[%s643] sm:$0xff]
    %645 = vrot.lane.b32.xlu0 %v644, 16
    %v646 = vpop.permute.xlu0 %645
    %vm647 = vcmask 130048
    %s648 = scalar_lea.vmem [#allocation0], 263
    %649 = vst.msk [vmem:[%s648] ss:$8 sm:$0xf] %vm647, %v646
    %s650 = scalar_lea.vmem [#allocation0], 263
    %651 = vst.msk [vmem:[%s650] ss:$8 sm:$0xf0] %vm647, %v646
    %s652 = scalar_lea.vmem [#allocation1], 40
    %v653 = vld [vmem:[%s652] sm:$0xff]
    %654 = vrot.lane.b32.xlu0 %v653, 16
    %v655 = vpop.permute.xlu0 %654
    %vm656 = vcmask 130048
    %s657 = scalar_lea.vmem [#allocation0], 327
    %658 = vst.msk [vmem:[%s657] ss:$8 sm:$0xf] %vm656, %v655
    %s659 = scalar_lea.vmem [#allocation0], 327
    %660 = vst.msk [vmem:[%s659] ss:$8 sm:$0xf0] %vm656, %v655
    %s661 = scalar_lea.vmem [#allocation1], 48
    %v662 = vld [vmem:[%s661] sm:$0xff]
    %663 = vrot.lane.b32.xlu0 %v662, 16
    %v664 = vpop.permute.xlu0 %663
    %vm665 = vcmask 130048
    %s666 = scalar_lea.vmem [#allocation0], 391
    %667 = vst.msk [vmem:[%s666] ss:$8 sm:$0xf] %vm665, %v664
    %s668 = scalar_lea.vmem [#allocation0], 391
    %669 = vst.msk [vmem:[%s668] ss:$8 sm:$0xf0] %vm665, %v664
    %s670 = scalar_lea.vmem [#allocation1], 56
    %v671 = vld [vmem:[%s670] sm:$0xff]
    %672 = vrot.lane.b32.xlu0 %v671, 16
    %v673 = vpop.permute.xlu0 %672
    %vm674 = vcmask 130048
    %s675 = scalar_lea.vmem [#allocation0], 455
    %676 = vst.msk [vmem:[%s675] ss:$8 sm:$0xf] %vm674, %v673
    %s677 = scalar_lea.vmem [#allocation0], 455
    %678 = vst.msk [vmem:[%s677] ss:$8 sm:$0xf0] %vm674, %v673
    %s680 = smul.u32 4, 2
    %s681 = sshllo.u32 0, %s680
    %s682 = sshrl.u32 %s680, 1
    %v683 = vld [vmem:[#allocation0] sm:%s681]
    %v684 = vpack.c.bf16 0.0, %v683
    %s685 = sshllo.u32 0, %s682
    %686 = vst [vmem:[%s1] sm:%s685] %v684
    %s687 = scalar_lea.vmem [#allocation0], 8
    %v688 = vld [vmem:[%s687] sm:%s681]
    %v689 = vpack.c.bf16 0.0, %v688
    %s690 = sshllo.u32 0, %s682
    %s691 = scalar_lea.vmem %s1, 4
    %692 = vst [vmem:[%s691] sm:%s690] %v689
    %s693 = scalar_lea.vmem [#allocation0], 16
    %v694 = vld [vmem:[%s693] sm:%s681]
    %v695 = vpack.c.bf16 0.0, %v694
    %s696 = sshllo.u32 0, %s682
    %s697 = smul.addr 4, 2
    %s698 = scalar_lea.vmem %s1, %s697
    %699 = vst [vmem:[%s698] sm:%s696] %v695
    %s700 = scalar_lea.vmem [#allocation0], 24
    %v701 = vld [vmem:[%s700] sm:%s681]
    %v702 = vpack.c.bf16 0.0, %v701
    %s703 = sshllo.u32 0, %s682
    %s704 = smul.addr 4, 3
    %s705 = scalar_lea.vmem %s1, %s704
    %706 = vst [vmem:[%s705] sm:%s703] %v702
    %s707 = scalar_lea.vmem [#allocation0], 32
    %v708 = vld [vmem:[%s707] sm:%s681]
    %v709 = vpack.c.bf16 0.0, %v708
    %s710 = sshllo.u32 0, %s682
    %s711 = smul.addr 4, 4
    %s712 = scalar_lea.vmem %s1, %s711
    %713 = vst [vmem:[%s712] sm:%s710] %v709
    %s714 = scalar_lea.vmem [#allocation0], 40
    %v715 = vld [vmem:[%s714] sm:%s681]
    %v716 = vpack.c.bf16 0.0, %v715
    %s717 = sshllo.u32 0, %s682
    %s718 = smul.addr 4, 5
    %s719 = scalar_lea.vmem %s1, %s718
    %720 = vst [vmem:[%s719] sm:%s717] %v716
    %s721 = scalar_lea.vmem [#allocation0], 48
    %v722 = vld [vmem:[%s721] sm:%s681]
    %v723 = vpack.c.bf16 0.0, %v722
    %s724 = sshllo.u32 0, %s682
    %s725 = smul.addr 4, 6
    %s726 = scalar_lea.vmem %s1, %s725
    %727 = vst [vmem:[%s726] sm:%s724] %v723
    %s728 = scalar_lea.vmem [#allocation0], 56
    %v729 = vld [vmem:[%s728] sm:%s681]
    %v730 = vpack.c.bf16 0.0, %v729
    %s731 = sshllo.u32 0, %s682
    %s732 = smul.addr 4, 7
    %s733 = scalar_lea.vmem %s1, %s732
    %734 = vst [vmem:[%s733] sm:%s731] %v730
    %s735 = scalar_lea.vmem [#allocation0], 64
    %v736 = vld [vmem:[%s735] sm:%s681]
    %v737 = vpack.c.bf16 0.0, %v736
    %s738 = sshllo.u32 0, %s682
    %s739 = smul.addr 4, 8
    %s740 = scalar_lea.vmem %s1, %s739
    %741 = vst [vmem:[%s740] sm:%s738] %v737
    %s742 = scalar_lea.vmem [#allocation0], 72
    %v743 = vld [vmem:[%s742] sm:%s681]
    %v744 = vpack.c.bf16 0.0, %v743
    %s745 = sshllo.u32 0, %s682
    %s746 = smul.addr 4, 9
    %s747 = scalar_lea.vmem %s1, %s746
    %748 = vst [vmem:[%s747] sm:%s745] %v744
    %s749 = scalar_lea.vmem [#allocation0], 80
    %v750 = vld [vmem:[%s749] sm:%s681]
    %v751 = vpack.c.bf16 0.0, %v750
    %s752 = sshllo.u32 0, %s682
    %s753 = smul.addr 4, 10
    %s754 = scalar_lea.vmem %s1, %s753
    %755 = vst [vmem:[%s754] sm:%s752] %v751
    %s756 = scalar_lea.vmem [#allocation0], 88
    %v757 = vld [vmem:[%s756] sm:%s681]
    %v758 = vpack.c.bf16 0.0, %v757
    %s759 = sshllo.u32 0, %s682
    %s760 = smul.addr 4, 11
    %s761 = scalar_lea.vmem %s1, %s760
    %762 = vst [vmem:[%s761] sm:%s759] %v758
    %s763 = scalar_lea.vmem [#allocation0], 96
    %v764 = vld [vmem:[%s763] sm:%s681]
    %v765 = vpack.c.bf16 0.0, %v764
    %s766 = sshllo.u32 0, %s682
    %s767 = smul.addr 4, 12
    %s768 = scalar_lea.vmem %s1, %s767
    %769 = vst [vmem:[%s768] sm:%s766] %v765
    %s770 = scalar_lea.vmem [#allocation0], 104
    %v771 = vld [vmem:[%s770] sm:%s681]
    %v772 = vpack.c.bf16 0.0, %v771
    %s773 = sshllo.u32 0, %s682
    %s774 = smul.addr 4, 13
    %s775 = scalar_lea.vmem %s1, %s774
    %776 = vst [vmem:[%s775] sm:%s773] %v772
    %s777 = scalar_lea.vmem [#allocation0], 112
    %v778 = vld [vmem:[%s777] sm:%s681]
    %v779 = vpack.c.bf16 0.0, %v778
    %s780 = sshllo.u32 0, %s682
    %s781 = smul.addr 4, 14
    %s782 = scalar_lea.vmem %s1, %s781
    %783 = vst [vmem:[%s782] sm:%s780] %v779
    %s784 = scalar_lea.vmem [#allocation0], 120
    %v785 = vld [vmem:[%s784] sm:%s681]
    %v786 = vpack.c.bf16 0.0, %v785
    %s787 = sshllo.u32 0, %s682
    %s788 = smul.addr 4, 15
    %s789 = scalar_lea.vmem %s1, %s788
    %790 = vst [vmem:[%s789] sm:%s787] %v786
    %s791 = scalar_lea.vmem [#allocation0], 128
    %v792 = vld [vmem:[%s791] sm:%s681]
    %v793 = vpack.c.bf16 0.0, %v792
    %s794 = sshllo.u32 0, %s682
    %s795 = smul.addr 4, 16
    %s796 = scalar_lea.vmem %s1, %s795
    %797 = vst [vmem:[%s796] sm:%s794] %v793
    %s798 = scalar_lea.vmem [#allocation0], 136
    %v799 = vld [vmem:[%s798] sm:%s681]
    %v800 = vpack.c.bf16 0.0, %v799
    %s801 = sshllo.u32 0, %s682
    %s802 = smul.addr 4, 17
    %s803 = scalar_lea.vmem %s1, %s802
    %804 = vst [vmem:[%s803] sm:%s801] %v800
    %s805 = scalar_lea.vmem [#allocation0], 144
    %v806 = vld [vmem:[%s805] sm:%s681]
    %v807 = vpack.c.bf16 0.0, %v806
    %s808 = sshllo.u32 0, %s682
    %s809 = smul.addr 4, 18
    %s810 = scalar_lea.vmem %s1, %s809
    %811 = vst [vmem:[%s810] sm:%s808] %v807
    %s812 = scalar_lea.vmem [#allocation0], 152
    %v813 = vld [vmem:[%s812] sm:%s681]
    %v814 = vpack.c.bf16 0.0, %v813
    %s815 = sshllo.u32 0, %s682
    %s816 = smul.addr 4, 19
    %s817 = scalar_lea.vmem %s1, %s816
    %818 = vst [vmem:[%s817] sm:%s815] %v814
    %s819 = scalar_lea.vmem [#allocation0], 160
    %v820 = vld [vmem:[%s819] sm:%s681]
    %v821 = vpack.c.bf16 0.0, %v820
    %s822 = sshllo.u32 0, %s682
    %s823 = smul.addr 4, 20
    %s824 = scalar_lea.vmem %s1, %s823
    %825 = vst [vmem:[%s824] sm:%s822] %v821
    %s826 = scalar_lea.vmem [#allocation0], 168
    %v827 = vld [vmem:[%s826] sm:%s681]
    %v828 = vpack.c.bf16 0.0, %v827
    %s829 = sshllo.u32 0, %s682
    %s830 = smul.addr 4, 21
    %s831 = scalar_lea.vmem %s1, %s830
    %832 = vst [vmem:[%s831] sm:%s829] %v828
    %s833 = scalar_lea.vmem [#allocation0], 176
    %v834 = vld [vmem:[%s833] sm:%s681]
    %v835 = vpack.c.bf16 0.0, %v834
    %s836 = sshllo.u32 0, %s682
    %s837 = smul.addr 4, 22
    %s838 = scalar_lea.vmem %s1, %s837
    %839 = vst [vmem:[%s838] sm:%s836] %v835
    %s840 = scalar_lea.vmem [#allocation0], 184
    %v841 = vld [vmem:[%s840] sm:%s681]
    %v842 = vpack.c.bf16 0.0, %v841
    %s843 = sshllo.u32 0, %s682
    %s844 = smul.addr 4, 23
    %s845 = scalar_lea.vmem %s1, %s844
    %846 = vst [vmem:[%s845] sm:%s843] %v842
    %s847 = scalar_lea.vmem [#allocation0], 192
    %v848 = vld [vmem:[%s847] sm:%s681]
    %v849 = vpack.c.bf16 0.0, %v848
    %s850 = sshllo.u32 0, %s682
    %s851 = smul.addr 4, 24
    %s852 = scalar_lea.vmem %s1, %s851
    %853 = vst [vmem:[%s852] sm:%s850] %v849
    %s854 = scalar_lea.vmem [#allocation0], 200
    %v855 = vld [vmem:[%s854] sm:%s681]
    %v856 = vpack.c.bf16 0.0, %v855
    %s857 = sshllo.u32 0, %s682
    %s858 = smul.addr 4, 25
    %s859 = scalar_lea.vmem %s1, %s858
    %860 = vst [vmem:[%s859] sm:%s857] %v856
    %s861 = scalar_lea.vmem [#allocation0], 208
    %v862 = vld [vmem:[%s861] sm:%s681]
    %v863 = vpack.c.bf16 0.0, %v862
    %s864 = sshllo.u32 0, %s682
    %s865 = smul.addr 4, 26
    %s866 = scalar_lea.vmem %s1, %s865
    %867 = vst [vmem:[%s866] sm:%s864] %v863
    %s868 = scalar_lea.vmem [#allocation0], 216
    %v869 = vld [vmem:[%s868] sm:%s681]
    %v870 = vpack.c.bf16 0.0, %v869
    %s871 = sshllo.u32 0, %s682
    %s872 = smul.addr 4, 27
    %s873 = scalar_lea.vmem %s1, %s872
    %874 = vst [vmem:[%s873] sm:%s871] %v870
    %s875 = scalar_lea.vmem [#allocation0], 224
    %v876 = vld [vmem:[%s875] sm:%s681]
    %v877 = vpack.c.bf16 0.0, %v876
    %s878 = sshllo.u32 0, %s682
    %s879 = smul.addr 4, 28
    %s880 = scalar_lea.vmem %s1, %s879
    %881 = vst [vmem:[%s880] sm:%s878] %v877
    %s882 = scalar_lea.vmem [#allocation0], 232
    %v883 = vld [vmem:[%s882] sm:%s681]
    %v884 = vpack.c.bf16 0.0, %v883
    %s885 = sshllo.u32 0, %s682
    %s886 = smul.addr 4, 29
    %s887 = scalar_lea.vmem %s1, %s886
    %888 = vst [vmem:[%s887] sm:%s885] %v884
    %s889 = scalar_lea.vmem [#allocation0], 240
    %v890 = vld [vmem:[%s889] sm:%s681]
    %v891 = vpack.c.bf16 0.0, %v890
    %s892 = sshllo.u32 0, %s682
    %s893 = smul.addr 4, 30
    %s894 = scalar_lea.vmem %s1, %s893
    %895 = vst [vmem:[%s894] sm:%s892] %v891
    %s896 = scalar_lea.vmem [#allocation0], 248
    %v897 = vld [vmem:[%s896] sm:%s681]
    %v898 = vpack.c.bf16 0.0, %v897
    %s899 = sshllo.u32 0, %s682
    %s900 = smul.addr 4, 31
    %s901 = scalar_lea.vmem %s1, %s900
    %902 = vst [vmem:[%s901] sm:%s899] %v898
    %s903 = scalar_lea.vmem [#allocation0], 256
    %v904 = vld [vmem:[%s903] sm:%s681]
    %v905 = vpack.c.bf16 0.0, %v904
    %s906 = sshllo.u32 0, %s682
    %s907 = smul.addr 4, 32
    %s908 = scalar_lea.vmem %s1, %s907
    %909 = vst [vmem:[%s908] sm:%s906] %v905
    %s910 = scalar_lea.vmem [#allocation0], 264
    %v911 = vld [vmem:[%s910] sm:%s681]
    %v912 = vpack.c.bf16 0.0, %v911
    %s913 = sshllo.u32 0, %s682
    %s914 = smul.addr 4, 33
    %s915 = scalar_lea.vmem %s1, %s914
    %916 = vst [vmem:[%s915] sm:%s913] %v912
    %s917 = scalar_lea.vmem [#allocation0], 272
    %v918 = vld [vmem:[%s917] sm:%s681]
    %v919 = vpack.c.bf16 0.0, %v918
    %s920 = sshllo.u32 0, %s682
    %s921 = smul.addr 4, 34
    %s922 = scalar_lea.vmem %s1, %s921
    %923 = vst [vmem:[%s922] sm:%s920] %v919
    %s924 = scalar_lea.vmem [#allocation0], 280
    %v925 = vld [vmem:[%s924] sm:%s681]
    %v926 = vpack.c.bf16 0.0, %v925
    %s927 = sshllo.u32 0, %s682
    %s928 = smul.addr 4, 35
    %s929 = scalar_lea.vmem %s1, %s928
    %930 = vst [vmem:[%s929] sm:%s927] %v926
    %s931 = scalar_lea.vmem [#allocation0], 288
    %v932 = vld [vmem:[%s931] sm:%s681]
    %v933 = vpack.c.bf16 0.0, %v932
    %s934 = sshllo.u32 0, %s682
    %s935 = smul.addr 4, 36
    %s936 = scalar_lea.vmem %s1, %s935
    %937 = vst [vmem:[%s936] sm:%s934] %v933
    %s938 = scalar_lea.vmem [#allocation0], 296
    %v939 = vld [vmem:[%s938] sm:%s681]
    %v940 = vpack.c.bf16 0.0, %v939
    %s941 = sshllo.u32 0, %s682
    %s942 = smul.addr 4, 37
    %s943 = scalar_lea.vmem %s1, %s942
    %944 = vst [vmem:[%s943] sm:%s941] %v940
    %s945 = scalar_lea.vmem [#allocation0], 304
    %v946 = vld [vmem:[%s945] sm:%s681]
    %v947 = vpack.c.bf16 0.0, %v946
    %s948 = sshllo.u32 0, %s682
    %s949 = smul.addr 4, 38
    %s950 = scalar_lea.vmem %s1, %s949
    %951 = vst [vmem:[%s950] sm:%s948] %v947
    %s952 = scalar_lea.vmem [#allocation0], 312
    %v953 = vld [vmem:[%s952] sm:%s681]
    %v954 = vpack.c.bf16 0.0, %v953
    %s955 = sshllo.u32 0, %s682
    %s956 = smul.addr 4, 39
    %s957 = scalar_lea.vmem %s1, %s956
    %958 = vst [vmem:[%s957] sm:%s955] %v954
    %s959 = scalar_lea.vmem [#allocation0], 320
    %v960 = vld [vmem:[%s959] sm:%s681]
    %v961 = vpack.c.bf16 0.0, %v960
    %s962 = sshllo.u32 0, %s682
    %s963 = smul.addr 4, 40
    %s964 = scalar_lea.vmem %s1, %s963
    %965 = vst [vmem:[%s964] sm:%s962] %v961
    %s966 = scalar_lea.vmem [#allocation0], 328
    %v967 = vld [vmem:[%s966] sm:%s681]
    %v968 = vpack.c.bf16 0.0, %v967
    %s969 = sshllo.u32 0, %s682
    %s970 = smul.addr 4, 41
    %s971 = scalar_lea.vmem %s1, %s970
    %972 = vst [vmem:[%s971] sm:%s969] %v968
    %s973 = scalar_lea.vmem [#allocation0], 336
    %v974 = vld [vmem:[%s973] sm:%s681]
    %v975 = vpack.c.bf16 0.0, %v974
    %s976 = sshllo.u32 0, %s682
    %s977 = smul.addr 4, 42
    %s978 = scalar_lea.vmem %s1, %s977
    %979 = vst [vmem:[%s978] sm:%s976] %v975
    %s980 = scalar_lea.vmem [#allocation0], 344
    %v981 = vld [vmem:[%s980] sm:%s681]
    %v982 = vpack.c.bf16 0.0, %v981
    %s983 = sshllo.u32 0, %s682
    %s984 = smul.addr 4, 43
    %s985 = scalar_lea.vmem %s1, %s984
    %986 = vst [vmem:[%s985] sm:%s983] %v982
    %s987 = scalar_lea.vmem [#allocation0], 352
    %v988 = vld [vmem:[%s987] sm:%s681]
    %v989 = vpack.c.bf16 0.0, %v988
    %s990 = sshllo.u32 0, %s682
    %s991 = smul.addr 4, 44
    %s992 = scalar_lea.vmem %s1, %s991
    %993 = vst [vmem:[%s992] sm:%s990] %v989
    %s994 = scalar_lea.vmem [#allocation0], 360
    %v995 = vld [vmem:[%s994] sm:%s681]
    %v996 = vpack.c.bf16 0.0, %v995
    %s997 = sshllo.u32 0, %s682
    %s998 = smul.addr 4, 45
    %s999 = scalar_lea.vmem %s1, %s998
    %1000 = vst [vmem:[%s999] sm:%s997] %v996
    %s1001 = scalar_lea.vmem [#allocation0], 368
    %v1002 = vld [vmem:[%s1001] sm:%s681]
    %v1003 = vpack.c.bf16 0.0, %v1002
    %s1004 = sshllo.u32 0, %s682
    %s1005 = smul.addr 4, 46
    %s1006 = scalar_lea.vmem %s1, %s1005
    %1007 = vst [vmem:[%s1006] sm:%s1004] %v1003
    %s1008 = scalar_lea.vmem [#allocation0], 376
    %v1009 = vld [vmem:[%s1008] sm:%s681]
    %v1010 = vpack.c.bf16 0.0, %v1009
    %s1011 = sshllo.u32 0, %s682
    %s1012 = smul.addr 4, 47
    %s1013 = scalar_lea.vmem %s1, %s1012
    %1014 = vst [vmem:[%s1013] sm:%s1011] %v1010
    %s1015 = scalar_lea.vmem [#allocation0], 384
    %v1016 = vld [vmem:[%s1015] sm:%s681]
    %v1017 = vpack.c.bf16 0.0, %v1016
    %s1018 = sshllo.u32 0, %s682
    %s1019 = smul.addr 4, 48
    %s1020 = scalar_lea.vmem %s1, %s1019
    %1021 = vst [vmem:[%s1020] sm:%s1018] %v1017
    %s1022 = scalar_lea.vmem [#allocation0], 392
    %v1023 = vld [vmem:[%s1022] sm:%s681]
    %v1024 = vpack.c.bf16 0.0, %v1023
    %s1025 = sshllo.u32 0, %s682
    %s1026 = smul.addr 4, 49
    %s1027 = scalar_lea.vmem %s1, %s1026
    %1028 = vst [vmem:[%s1027] sm:%s1025] %v1024
    %s1029 = scalar_lea.vmem [#allocation0], 400
    %v1030 = vld [vmem:[%s1029] sm:%s681]
    %v1031 = vpack.c.bf16 0.0, %v1030
    %s1032 = sshllo.u32 0, %s682
    %s1033 = smul.addr 4, 50
    %s1034 = scalar_lea.vmem %s1, %s1033
    %1035 = vst [vmem:[%s1034] sm:%s1032] %v1031
    %s1036 = scalar_lea.vmem [#allocation0], 408
    %v1037 = vld [vmem:[%s1036] sm:%s681]
    %v1038 = vpack.c.bf16 0.0, %v1037
    %s1039 = sshllo.u32 0, %s682
    %s1040 = smul.addr 4, 51
    %s1041 = scalar_lea.vmem %s1, %s1040
    %1042 = vst [vmem:[%s1041] sm:%s1039] %v1038
    %s1043 = scalar_lea.vmem [#allocation0], 416
    %v1044 = vld [vmem:[%s1043] sm:%s681]
    %v1045 = vpack.c.bf16 0.0, %v1044
    %s1046 = sshllo.u32 0, %s682
    %s1047 = smul.addr 4, 52
    %s1048 = scalar_lea.vmem %s1, %s1047
    %1049 = vst [vmem:[%s1048] sm:%s1046] %v1045
    %s1050 = scalar_lea.vmem [#allocation0], 424
    %v1051 = vld [vmem:[%s1050] sm:%s681]
    %v1052 = vpack.c.bf16 0.0, %v1051
    %s1053 = sshllo.u32 0, %s682
    %s1054 = smul.addr 4, 53
    %s1055 = scalar_lea.vmem %s1, %s1054
    %1056 = vst [vmem:[%s1055] sm:%s1053] %v1052
    %s1057 = scalar_lea.vmem [#allocation0], 432
    %v1058 = vld [vmem:[%s1057] sm:%s681]
    %v1059 = vpack.c.bf16 0.0, %v1058
    %s1060 = sshllo.u32 0, %s682
    %s1061 = smul.addr 4, 54
    %s1062 = scalar_lea.vmem %s1, %s1061
    %1063 = vst [vmem:[%s1062] sm:%s1060] %v1059
    %s1064 = scalar_lea.vmem [#allocation0], 440
    %v1065 = vld [vmem:[%s1064] sm:%s681]
    %v1066 = vpack.c.bf16 0.0, %v1065
    %s1067 = sshllo.u32 0, %s682
    %s1068 = smul.addr 4, 55
    %s1069 = scalar_lea.vmem %s1, %s1068
    %1070 = vst [vmem:[%s1069] sm:%s1067] %v1066
    %s1071 = scalar_lea.vmem [#allocation0], 448
    %v1072 = vld [vmem:[%s1071] sm:%s681]
    %v1073 = vpack.c.bf16 0.0, %v1072
    %s1074 = sshllo.u32 0, %s682
    %s1075 = smul.addr 4, 56
    %s1076 = scalar_lea.vmem %s1, %s1075
    %1077 = vst [vmem:[%s1076] sm:%s1074] %v1073
    %s1078 = scalar_lea.vmem [#allocation0], 456
    %v1079 = vld [vmem:[%s1078] sm:%s681]
    %v1080 = vpack.c.bf16 0.0, %v1079
    %s1081 = sshllo.u32 0, %s682
    %s1082 = smul.addr 4, 57
    %s1083 = scalar_lea.vmem %s1, %s1082
    %1084 = vst [vmem:[%s1083] sm:%s1081] %v1080
    %s1085 = scalar_lea.vmem [#allocation0], 464
    %v1086 = vld [vmem:[%s1085] sm:%s681]
    %v1087 = vpack.c.bf16 0.0, %v1086
    %s1088 = sshllo.u32 0, %s682
    %s1089 = smul.addr 4, 58
    %s1090 = scalar_lea.vmem %s1, %s1089
    %1091 = vst [vmem:[%s1090] sm:%s1088] %v1087
    %s1092 = scalar_lea.vmem [#allocation0], 472
    %v1093 = vld [vmem:[%s1092] sm:%s681]
    %v1094 = vpack.c.bf16 0.0, %v1093
    %s1095 = sshllo.u32 0, %s682
    %s1096 = smul.addr 4, 59
    %s1097 = scalar_lea.vmem %s1, %s1096
    %1098 = vst [vmem:[%s1097] sm:%s1095] %v1094
    %s1099 = scalar_lea.vmem [#allocation0], 480
    %v1100 = vld [vmem:[%s1099] sm:%s681]
    %v1101 = vpack.c.bf16 0.0, %v1100
    %s1102 = sshllo.u32 0, %s682
    %s1103 = smul.addr 4, 60
    %s1104 = scalar_lea.vmem %s1, %s1103
    %1105 = vst [vmem:[%s1104] sm:%s1102] %v1101
    %s1106 = scalar_lea.vmem [#allocation0], 488
    %v1107 = vld [vmem:[%s1106] sm:%s681]
    %v1108 = vpack.c.bf16 0.0, %v1107
    %s1109 = sshllo.u32 0, %s682
    %s1110 = smul.addr 4, 61
    %s1111 = scalar_lea.vmem %s1, %s1110
    %1112 = vst [vmem:[%s1111] sm:%s1109] %v1108
    %s1113 = scalar_lea.vmem [#allocation0], 496
    %v1114 = vld [vmem:[%s1113] sm:%s681]
    %v1115 = vpack.c.bf16 0.0, %v1114
    %s1116 = sshllo.u32 0, %s682
    %s1117 = smul.addr 4, 62
    %s1118 = scalar_lea.vmem %s1, %s1117
    %1119 = vst [vmem:[%s1118] sm:%s1116] %v1115
    %s1120 = scalar_lea.vmem [#allocation0], 504
    %v1121 = vld [vmem:[%s1120] sm:%s681]
    %v1122 = vpack.c.bf16 0.0, %v1121
    %s1123 = sshllo.u32 0, %s682
    %s1124 = smul.addr 4, 63
    %s1125 = scalar_lea.vmem %s1, %s1124
    %1126 = vst [vmem:[%s1125] sm:%s1123] %v1122

// kernel: block_forward.8
$region0: #{block_forward.8}
  #allocation0 [shape = 'u32[]', space=smem, size = 0x4, offset = 0x4, fixed_abs, tag = 'smem constant byte address 0x4 - core index']
  #allocation1 [shape = 'u32[144,128]{1,0:T(1,128)}', space=vmem, size = 0x12000, scoped, tag = 'internal scratch']
  %s0 = inlined_call_operand.vmem [shape: bf16[4,16,8,16], index: 0, kind: input, shape index: {}]
  %s1 = inlined_call_operand.vmem [shape: bf16[4,16,8,16], index: 1, kind: input, shape index: {}]
  %s2 = inlined_call_operand.vmem [shape: bf16[4,16,8,16], index: 2, kind: input, shape index: {}]
  %s3 = inlined_call_operand.vmem [shape: f32[4,8,8], index: 3, kind: input, shape index: {}]
  %s4 = inlined_call_operand.vmem [shape: bf16[4,16,8,16], index: 4, kind: output, shape index: {}]
  %s5 = sld [smem:[#allocation0]]
  $region49: #{block_forward.8} parent=0
    _
  %s7 = ssub.s32 1, %s5
  %s8 = scalar_select 0, %s7, %s5
  loop: start=0, step=1, limit=10
  $region2: #{block_forward.8} parent=0 // loop_pre_header
    _
  $region3: #{block_forward.8} parent=0 // loop_header
    %s10 = sphi 0, %s14
    %p11 = scmp.ge.s32.totalorder %s10, 10
    %s17 = sphi 0, %s29
    %s18 = sphi 0, %s25
    %s19 = sphi 0, %s17
    %s20 = sphi 0, %s18
    %s21 = sphi 0, %s19
    %s22 = sphi 0, %s20
    %s34 = sphi 0, %s36
    %s37 = sphi 0, %s34
    %s38 = sphi 0, %s37
    %s54 = sphi 0, %s38
    %s62 = sphi 0, %s64
    %s65 = sphi 0, %s62
    %s66 = sphi 0, %s65
    %s82 = sphi 0, %s66
    %s90 = sphi 0, %s92
    %s93 = sphi 0, %s90
    %s94 = sphi 0, %s93
    %s110 = sphi 0, %s94
    %s116 = sphi 0, %s118
    %s119 = sphi 0, %s116
    %s120 = sphi 0, %s119
    %s136 = sphi 0, %s120
    %s144 = sphi 0, %s146
    %s147 = sphi 0, %s144
    %s148 = sphi 0, %s147
    %s164 = sphi 0, %s148
  $region4: #{block_forward.8} parent=0 // loop_header_branch
    %13 = sbr.rel (%p11) target = $region8
  $region5: #{block_forward.8} parent=0 // loop_body
    %s15 = ssub.s32 %s10, 1
    %s16 = ssub.s32 %s10, 2
    %s23 = sadd.s32 1, %s18
    %p24 = scmp.ge.s32.totalorder %s23, 2
    %s25 = scalar_select %p24, 0, %s23
    %s26 = sadd.s32 1, %s17
    %s27 = scalar_select %p24, %s26, %s17
    %p28 = scmp.ge.s32.totalorder %s27, 4
    %s29 = scalar_select %p28, 0, %s27
    %s30 = ssub.s32 %s17, %s29
    %s31 = ssub.s32 %s18, %s25
    %s32 = sor.u32 %s30, %s31
    %p33 = scmp.eq.s32.totalorder %s32, 0
    %s35 = sadd.s32 %s34, 1
    %s36 = scalar_select %p33, %s34, %s35
    %p39 = pneg %p33
    %p40 = scmp.eq.s32.totalorder %s10, 7
    %p41 = por %p39, %p40
    %p42 = scmp.ne.s32.totalorder %s34, %s37
    %p43 = scmp.eq.s32.totalorder %s10, 0
    %p44 = por %p42, %p43
    %p45 = scmp.ne.s32.totalorder %s34, %s37
    %p46 = scmp.eq.s32.totalorder %s15, 7
    %p47 = por %p45, %p46
    %p48 = scmp.ne.s32.totalorder %s37, %s38
    %p49 = scmp.eq.s32.totalorder %s15, 0
    %p50 = por %p48, %p49
    %p51 = scmp.ne.s32.totalorder %s37, %s38
    %p52 = scmp.eq.s32.totalorder %s16, 7
    %p53 = por %p51, %p52
    %p55 = scmp.ne.s32.totalorder %s38, %s54
    %p56 = scmp.eq.s32.totalorder %s16, 0
    %p57 = por %p55, %p56
    %s58 = ssub.s32 %s17, %s29
    %s59 = ssub.s32 %s18, %s25
    %s60 = sor.u32 %s58, %s59
    %p61 = scmp.eq.s32.totalorder %s60, 0
    %s63 = sadd.s32 %s62, 1
    %s64 = scalar_select %p61, %s62, %s63
    %p67 = pneg %p61
    %p68 = scmp.eq.s32.totalorder %s10, 7
    %p69 = por %p67, %p68
    %p70 = scmp.ne.s32.totalorder %s62, %s65
    %p71 = scmp.eq.s32.totalorder %s10, 0
    %p72 = por %p70, %p71
    %p73 = scmp.ne.s32.totalorder %s62, %s65
    %p74 = scmp.eq.s32.totalorder %s15, 7
    %p75 = por %p73, %p74
    %p76 = scmp.ne.s32.totalorder %s65, %s66
    %p77 = scmp.eq.s32.totalorder %s15, 0
    %p78 = por %p76, %p77
    %p79 = scmp.ne.s32.totalorder %s65, %s66
    %p80 = scmp.eq.s32.totalorder %s16, 7
    %p81 = por %p79, %p80
    %p83 = scmp.ne.s32.totalorder %s66, %s82
    %p84 = scmp.eq.s32.totalorder %s16, 0
    %p85 = por %p83, %p84
    %s86 = ssub.s32 %s17, %s29
    %s87 = ssub.s32 %s18, %s25
    %s88 = sor.u32 %s86, %s87
    %p89 = scmp.eq.s32.totalorder %s88, 0
    %s91 = sadd.s32 %s90, 1
    %s92 = scalar_select %p89, %s90, %s91
    %p95 = pneg %p89
    %p96 = scmp.eq.s32.totalorder %s10, 7
    %p97 = por %p95, %p96
    %p98 = scmp.ne.s32.totalorder %s90, %s93
    %p99 = scmp.eq.s32.totalorder %s10, 0
    %p100 = por %p98, %p99
    %p101 = scmp.ne.s32.totalorder %s90, %s93
    %p102 = scmp.eq.s32.totalorder %s15, 7
    %p103 = por %p101, %p102
    %p104 = scmp.ne.s32.totalorder %s93, %s94
    %p105 = scmp.eq.s32.totalorder %s15, 0
    %p106 = por %p104, %p105
    %p107 = scmp.ne.s32.totalorder %s93, %s94
    %p108 = scmp.eq.s32.totalorder %s16, 7
    %p109 = por %p107, %p108
    %p111 = scmp.ne.s32.totalorder %s94, %s110
    %p112 = scmp.eq.s32.totalorder %s16, 0
    %p113 = por %p111, %p112
    %s114 = ssub.s32 %s17, %s29
    %p115 = scmp.eq.s32.totalorder %s114, 0
    %s117 = sadd.s32 %s116, 1
    %s118 = scalar_select %p115, %s116, %s117
    %p121 = pneg %p115
    %p122 = scmp.eq.s32.totalorder %s10, 7
    %p123 = por %p121, %p122
    %p124 = scmp.ne.s32.totalorder %s116, %s119
    %p125 = scmp.eq.s32.totalorder %s10, 0
    %p126 = por %p124, %p125
    %p127 = scmp.ne.s32.totalorder %s116, %s119
    %p128 = scmp.eq.s32.totalorder %s15, 7
    %p129 = por %p127, %p128
    %p130 = scmp.ne.s32.totalorder %s119, %s120
    %p131 = scmp.eq.s32.totalorder %s15, 0
    %p132 = por %p130, %p131
    %p133 = scmp.ne.s32.totalorder %s119, %s120
    %p134 = scmp.eq.s32.totalorder %s16, 7
    %p135 = por %p133, %p134
    %p137 = scmp.ne.s32.totalorder %s120, %s136
    %p138 = scmp.eq.s32.totalorder %s16, 0
    %p139 = por %p137, %p138
    %s140 = ssub.s32 %s17, %s29
    %s141 = ssub.s32 %s18, %s25
    %s142 = sor.u32 %s140, %s141
    %p143 = scmp.eq.s32.totalorder %s142, 0
    %s145 = sadd.s32 %s144, 1
    %s146 = scalar_select %p143, %s144, %s145
    %p149 = pneg %p143
    %p150 = scmp.eq.s32.totalorder %s10, 7
    %p151 = por %p149, %p150
    %p152 = scmp.ne.s32.totalorder %s144, %s147
    %p153 = scmp.eq.s32.totalorder %s10, 0
    %p154 = por %p152, %p153
    %p155 = scmp.ne.s32.totalorder %s144, %s147
    %p156 = scmp.eq.s32.totalorder %s15, 7
    %p157 = por %p155, %p156
    %p158 = scmp.ne.s32.totalorder %s147, %s148
    %p159 = scmp.eq.s32.totalorder %s15, 0
    %p160 = por %p158, %p159
    %p161 = scmp.ne.s32.totalorder %s147, %s148
    %p162 = scmp.eq.s32.totalorder %s16, 7
    %p163 = por %p161, %p162
    %p165 = scmp.ne.s32.totalorder %s148, %s164
    %p166 = scmp.eq.s32.totalorder %s16, 0
    %p167 = por %p165, %p166
    %p168 = scmp.le.s32.totalorder 1, %s10
    %p169 = scmp.lt.s32.totalorder %s10, 9
    %p170 = pnand %p168, %p169
    %p171 = pneg %p170
    // Predicated region
    $region9: #{block_forward.8} parent=5 // pred_check
      _
    $region10: #{block_forward.8} parent=5 // pred_check_branch
      %173 = sbr.rel (%p170) target = $region12
    $region11: #{block_forward.8} parent=5 // pred_region
      %s174 = ssub.s32 %s10, 1
    $region12: #{block_forward.8} parent=5 // pred_fallthru
      _
    %p175 = scmp.lt.s32.totalorder %s10, 8
    // Predicated region
    $region13: #{block_forward.8} parent=5 // pred_check
      %p176 = pneg %p175
    $region14: #{block_forward.8} parent=5 // pred_check_branch
      %178 = sbr.rel (%p176) target = $region16
    $region15: #{block_forward.8} parent=5 // pred_region
      // Predicated region
      $region17: #{block_forward.8} parent=15 // pred_check
        %p179 = pneg %p44
      $region18: #{block_forward.8} parent=15 // pred_check_branch
        %181 = sbr.rel (%p179) target = $region20
      $region19: #{block_forward.8} parent=15 // pred_region
        %s182 = smul.u32 8, %s18
        %p183 = scmp.lt.s32.totalorder %s17, 3
        %s184 = scalar_select %p183, %s17, 3
        %p185 = scmp.lt.s32.totalorder %s182, 15
        %s186 = scalar_select %p185, %s182, 15
        %s187 = smul.addr %s184, 16
        %s188 = sadd.s32 %s186, %s187
        %s189 = smul.addr %s188, 4
        %s190 = scalar_lea.vmem %s0, %s189
        %s191 = smul.u32 8, %s18
      $region20: #{block_forward.8} parent=15 // pred_fallthru
        _
      // Predicated region
      $region21: #{block_forward.8} parent=15 // pred_check
        %p192 = pneg %p72
      $region22: #{block_forward.8} parent=15 // pred_check_branch
        %194 = sbr.rel (%p192) target = $region24
      $region23: #{block_forward.8} parent=15 // pred_region
        %s195 = smul.u32 8, %s18
        %p196 = scmp.lt.s32.totalorder %s17, 3
        %s197 = scalar_select %p196, %s17, 3
        %p198 = scmp.lt.s32.totalorder %s195, 15
        %s199 = scalar_select %p198, %s195, 15
        %s200 = smul.addr %s197, 16
        %s201 = sadd.s32 %s199, %s200
        %s202 = smul.addr %s201, 4
        %s203 = scalar_lea.vmem %s1, %s202
        %s204 = smul.u32 8, %s18
      $region24: #{block_forward.8} parent=15 // pred_fallthru
        _
      // Predicated region
      $region25: #{block_forward.8} parent=15 // pred_check
        %p205 = pneg %p100
      $region26: #{block_forward.8} parent=15 // pred_check_branch
        %207 = sbr.rel (%p205) target = $region28
      $region27: #{block_forward.8} parent=15 // pred_region
        %s208 = smul.u32 8, %s18
        %p209 = scmp.lt.s32.totalorder %s17, 3
        %s210 = scalar_select %p209, %s17, 3
        %p211 = scmp.lt.s32.totalorder %s208, 15
        %s212 = scalar_select %p211, %s208, 15
        %s213 = smul.addr %s210, 16
        %s214 = sadd.s32 %s212, %s213
        %s215 = smul.addr %s214, 4
        %s216 = scalar_lea.vmem %s2, %s215
        %s217 = smul.u32 8, %s18
      $region28: #{block_forward.8} parent=15 // pred_fallthru
        _
      // Predicated region
      $region29: #{block_forward.8} parent=15 // pred_check
        %p218 = pneg %p126
      $region30: #{block_forward.8} parent=15 // pred_check_branch
        %220 = sbr.rel (%p218) target = $region32
      $region31: #{block_forward.8} parent=15 // pred_region
        %p221 = scmp.lt.s32.totalorder %s17, 3
        %s222 = scalar_select %p221, %s17, 3
        %s223 = smul.addr %s222, 8
        %s224 = scalar_lea.vmem %s3, %s223
      $region32: #{block_forward.8} parent=15 // pred_fallthru
        _
    $region16: #{block_forward.8} parent=5 // pred_fallthru
      _
    %p225 = scmp.le.s32.totalorder 1, %s10
    %p226 = scmp.lt.s32.totalorder %s10, 9
    %p227 = pnand %p225, %p226
    %p228 = pneg %p227
    // Predicated region
    $region33: #{block_forward.8} parent=5 // pred_check
      _
    $region34: #{block_forward.8} parent=5 // pred_check_branch
      %230 = sbr.rel (%p227) target = $region36
    $region35: #{block_forward.8} parent=5 // pred_region
      %s231 = ssub.s32 %s10, 1
      %s232 = smul.u32 8, %s20
      %p233 = scmp.lt.s32.totalorder %s19, 3
      %s234 = scalar_select %p233, %s19, 3
      %p235 = scmp.lt.s32.totalorder %s232, 15
      %s236 = scalar_select %p235, %s232, 15
      %s237 = smul.addr %s234, 16
      %s238 = sadd.s32 %s236, %s237
      %s239 = smul.addr %s238, 4
      %s240 = scalar_lea.vmem %s0, %s239
      %p241 = pneg %p50
      %p242 = pneg %p47
      %s243 = smul.u32 8, %s20
      %p244 = scmp.lt.s32.totalorder %s19, 3
      %s245 = scalar_select %p244, %s19, 3
      %p246 = scmp.lt.s32.totalorder %s243, 15
      %s247 = scalar_select %p246, %s243, 15
      %s248 = smul.addr %s245, 16
      %s249 = sadd.s32 %s247, %s248
      %s250 = smul.addr %s249, 4
      %s251 = scalar_lea.vmem %s1, %s250
      %p252 = pneg %p78
      %p253 = pneg %p75
      %s254 = smul.u32 8, %s20
      %p255 = scmp.lt.s32.totalorder %s19, 3
      %s256 = scalar_select %p255, %s19, 3
      %p257 = scmp.lt.s32.totalorder %s254, 15
      %s258 = scalar_select %p257, %s254, 15
      %s259 = smul.addr %s256, 16
      %s260 = sadd.s32 %s258, %s259
      %s261 = smul.addr %s260, 4
      %s262 = scalar_lea.vmem %s2, %s261
      %p263 = pneg %p106
      %p264 = pneg %p103
      %p265 = scmp.lt.s32.totalorder %s19, 3
      %s266 = scalar_select %p265, %s19, 3
      %s267 = smul.addr %s266, 8
      %s268 = scalar_lea.vmem %s3, %s267
      %p269 = pneg %p132
      %p270 = pneg %p129
      %p271 = pneg %p160
      %p272 = pneg %p157
      %s273 = smul.u32 8, %s20
      %p274 = scmp.lt.s32.totalorder %s19, 3
      %s275 = scalar_select %p274, %s19, 3
      %p276 = scmp.lt.s32.totalorder %s273, 15
      %s277 = scalar_select %p276, %s273, 15
      %s278 = smul.addr %s275, 16
      %s279 = sadd.s32 %s277, %s278
      %s280 = smul.addr %s279, 4
      %s281 = scalar_lea.vmem %s4, %s280
      %s282 = smul.u32 8, %s20
      %p283 = scmp.lt.s32.totalorder %s19, 3
      %s284 = scalar_select %p283, %s19, 3
      %p285 = scmp.lt.s32.totalorder %s282, 15
      %s286 = scalar_select %p285, %s282, 15
      %s287 = smul.addr %s284, 16
      %s288 = sadd.s32 %s286, %s287
      %s289 = smul.addr %s288, 4
      %s290 = scalar_lea.vmem %s0, %s289
      %s291 = smul.u32 8, %s20
      %s292 = smul.u32 8, %s20
      %p293 = scmp.lt.s32.totalorder %s19, 3
      %s294 = scalar_select %p293, %s19, 3
      %p295 = scmp.lt.s32.totalorder %s292, 15
      %s296 = scalar_select %p295, %s292, 15
      %s297 = smul.addr %s294, 16
      %s298 = sadd.s32 %s296, %s297
      %s299 = smul.addr %s298, 4
      %s300 = scalar_lea.vmem %s1, %s299
      %s301 = smul.u32 8, %s20
      %s302 = smul.u32 8, %s20
      %p303 = scmp.lt.s32.totalorder %s19, 3
      %s304 = scalar_select %p303, %s19, 3
      %p305 = scmp.lt.s32.totalorder %s302, 15
      %s306 = scalar_select %p305, %s302, 15
      %s307 = smul.addr %s304, 16
      %s308 = sadd.s32 %s306, %s307
      %s309 = smul.addr %s308, 4
      %s310 = scalar_lea.vmem %s2, %s309
      %s311 = smul.u32 8, %s20
      %p312 = scmp.lt.s32.totalorder %s19, 3
      %s313 = scalar_select %p312, %s19, 3
      %s314 = smul.addr %s313, 8
      %s315 = scalar_lea.vmem %s3, %s314
      %s316 = smul.u32 8, %s20
      %p317 = scmp.lt.s32.totalorder %s19, 3
      %s318 = scalar_select %p317, %s19, 3
      %p319 = scmp.lt.s32.totalorder %s316, 15
      %s320 = scalar_select %p319, %s316, 15
      %s321 = smul.addr %s318, 16
      %s322 = sadd.s32 %s320, %s321
      %s323 = smul.addr %s322, 4
      %s324 = scalar_lea.vmem %s4, %s323
      %s325 = smul.u32 8, %s20
      %v327 = vld [vmem:[%s290] sm:$0xf]
      %v328 = vld [vmem:[%s290 + $0x4] sm:$0xf]
      %v329 = vld [vmem:[%s290 + $0x8] sm:$0xf]
      %v330 = vld [vmem:[%s290 + $0xc] sm:$0xf]
      %v331 = vld [vmem:[%s290 + $0x10] sm:$0xf]
      %v332 = vld [vmem:[%s290 + $0x14] sm:$0xf]
      %v333 = vld [vmem:[%s290 + $0x18] sm:$0xf]
      %v334 = vld [vmem:[%s290 + $0x1c] sm:$0xf]
      %v335 = vld [vmem:[%s300] sm:$0xf]
      %v336 = vld [vmem:[%s300 + $0x4] sm:$0xf]
      %v337 = vld [vmem:[%s300 + $0x8] sm:$0xf]
      %v338 = vld [vmem:[%s300 + $0xc] sm:$0xf]
      %v339 = vld [vmem:[%s300 + $0x10] sm:$0xf]
      %v340 = vld [vmem:[%s300 + $0x14] sm:$0xf]
      %v341 = vld [vmem:[%s300 + $0x18] sm:$0xf]
      %v342 = vld [vmem:[%s300 + $0x1c] sm:$0xf]
      %v343 = vld [vmem:[%s310] sm:$0xf]
      %v344 = vld [vmem:[%s310 + $0x4] sm:$0xf]
      %v345 = vld [vmem:[%s310 + $0x8] sm:$0xf]
      %v346 = vld [vmem:[%s310 + $0xc] sm:$0xf]
      %v347 = vld [vmem:[%s310 + $0x10] sm:$0xf]
      %v348 = vld [vmem:[%s310 + $0x14] sm:$0xf]
      %v349 = vld [vmem:[%s310 + $0x18] sm:$0xf]
      %v350 = vld [vmem:[%s310 + $0x1c] sm:$0xf]
      %vm351 = vcmask 130048
      %v353 = vsel %vm351, %v327, 0
      %v356 = vsel %vm351, %v335, 0
      %358 = vmatprep.subr.bf16.mxu0 0
      %359 = vmatpush1.bf16.xpose.msra.mxu0 %v356
      %360 = vmatprep.subr.bf16.mxu0 0
      %361 = vmatpush1.bf16.xpose.msra.mxu0 0
      %362 = vmatprep.subr.bf16.mxu0 0
      %363 = vmatpush1.bf16.xpose.msra.mxu0 0
      %364 = vmatprep.subr.bf16.mxu0 0
      %365 = vmatpush1.bf16.xpose.msra.mxu0 0
      %366 = vmatprep.subr.bf16.mxu0 0
      %367 = vmatpush1.bf16.xpose.msra.mxu0 0
      %368 = vmatprep.subr.bf16.mxu0 0
      %369 = vmatpush1.bf16.xpose.msra.mxu0 0
      %370 = vmatprep.subr.bf16.mxu0 0
      %371 = vmatpush1.bf16.xpose.msra.mxu0 0
      %372 = vmatprep.subr.bf16.mxu0 0
      %373 = vmatpush1.bf16.xpose.msra.mxu0 0
      %374 = vmatprep.subr.bf16.mxu0 0
      %375 = vmatpush1.bf16.xpose.msra.mxu0 0
      %376 = vmatprep.subr.bf16.mxu0 0
      %377 = vmatpush1.bf16.xpose.msra.mxu0 0
      %378 = vmatprep.subr.bf16.mxu0 0
      %379 = vmatpush1.bf16.xpose.msra.mxu0 0
      %380 = vmatprep.subr.bf16.mxu0 0
      %381 = vmatpush1.bf16.xpose.msra.mxu0 0
      %382 = vmatprep.subr.bf16.mxu0 0
      %383 = vmatpush1.bf16.xpose.msra.mxu0 0
      %384 = vmatprep.subr.bf16.mxu0 0
      %385 = vmatpush1.bf16.xpose.msra.mxu0 0
      %386 = vmatprep.subr.bf16.mxu0 0
      %387 = vmatpush1.bf16.xpose.msra.mxu0 0
      %388 = vmatprep.subr.bf16.mxu0 0
      %389 = vmatpush1.bf16.xpose.msra.mxu0 0
      %390 = vmatprep.mubr.bf16.mxu0 0
      %391 = vmatmul.mubr.bf16.gmra.mrb[0].mxu0 %v353
      %v392 = vpop.f32.mrb[0].mxu0
      %v393 = vadd.f32 0.0, %v392
      %v394 = vpop.f32.mrb[0].mxu0
      %v395 = vpop.f32.mrb[0].mxu0
      %v396 = vpop.f32.mrb[0].mxu0
      %397 = vdwg.mxu0
      %v399 = vsel %vm351, %v328, 0
      %v402 = vsel %vm351, %v336, 0
      %404 = vmatprep.subr.bf16.mxu0 0
      %405 = vmatpush1.bf16.xpose.msra.mxu0 %v402
      %406 = vmatprep.subr.bf16.mxu0 0
      %407 = vmatpush1.bf16.xpose.msra.mxu0 0
      %408 = vmatprep.subr.bf16.mxu0 0
      %409 = vmatpush1.bf16.xpose.msra.mxu0 0
      %410 = vmatprep.subr.bf16.mxu0 0
      %411 = vmatpush1.bf16.xpose.msra.mxu0 0
      %412 = vmatprep.subr.bf16.mxu0 0
      %413 = vmatpush1.bf16.xpose.msra.mxu0 0
      %414 = vmatprep.subr.bf16.mxu0 0
      %415 = vmatpush1.bf16.xpose.msra.mxu0 0
      %416 = vmatprep.subr.bf16.mxu0 0
      %417 = vmatpush1.bf16.xpose.msra.mxu0 0
      %418 = vmatprep.subr.bf16.mxu0 0
      %419 = vmatpush1.bf16.xpose.msra.mxu0 0
      %420 = vmatprep.subr.bf16.mxu0 0
      %421 = vmatpush1.bf16.xpose.msra.mxu0 0
      %422 = vmatprep.subr.bf16.mxu0 0
      %423 = vmatpush1.bf16.xpose.msra.mxu0 0
      %424 = vmatprep.subr.bf16.mxu0 0
      %425 = vmatpush1.bf16.xpose.msra.mxu0 0
      %426 = vmatprep.subr.bf16.mxu0 0
      %427 = vmatpush1.bf16.xpose.msra.mxu0 0
      %428 = vmatprep.subr.bf16.mxu0 0
      %429 = vmatpush1.bf16.xpose.msra.mxu0 0
      %430 = vmatprep.subr.bf16.mxu0 0
      %431 = vmatpush1.bf16.xpose.msra.mxu0 0
      %432 = vmatprep.subr.bf16.mxu0 0
      %433 = vmatpush1.bf16.xpose.msra.mxu0 0
      %434 = vmatprep.subr.bf16.mxu0 0
      %435 = vmatpush1.bf16.xpose.msra.mxu0 0
      %436 = vmatprep.mubr.bf16.mxu0 0
      %437 = vmatmul.mubr.bf16.gmra.mrb[0].mxu0 %v399
      %v438 = vpop.f32.mrb[0].mxu0
      %v439 = vadd.f32 0.0, %v438
      %v440 = vpop.f32.mrb[0].mxu0
      %v441 = vpop.f32.mrb[0].mxu0
      %v442 = vpop.f32.mrb[0].mxu0
      %443 = vdwg.mxu0
      %v445 = vsel %vm351, %v329, 0
      %v448 = vsel %vm351, %v337, 0
      %450 = vmatprep.subr.bf16.mxu0 0
      %451 = vmatpush1.bf16.xpose.msra.mxu0 %v448
      %452 = vmatprep.subr.bf16.mxu0 0
      %453 = vmatpush1.bf16.xpose.msra.mxu0 0
      %454 = vmatprep.subr.bf16.mxu0 0
      %455 = vmatpush1.bf16.xpose.msra.mxu0 0
      %456 = vmatprep.subr.bf16.mxu0 0
      %457 = vmatpush1.bf16.xpose.msra.mxu0 0
      %458 = vmatprep.subr.bf16.mxu0 0
      %459 = vmatpush1.bf16.xpose.msra.mxu0 0
      %460 = vmatprep.subr.bf16.mxu0 0
      %461 = vmatpush1.bf16.xpose.msra.mxu0 0
      %462 = vmatprep.subr.bf16.mxu0 0
      %463 = vmatpush1.bf16.xpose.msra.mxu0 0
      %464 = vmatprep.subr.bf16.mxu0 0
      %465 = vmatpush1.bf16.xpose.msra.mxu0 0
      %466 = vmatprep.subr.bf16.mxu0 0
      %467 = vmatpush1.bf16.xpose.msra.mxu0 0
      %468 = vmatprep.subr.bf16.mxu0 0
      %469 = vmatpush1.bf16.xpose.msra.mxu0 0
      %470 = vmatprep.subr.bf16.mxu0 0
      %471 = vmatpush1.bf16.xpose.msra.mxu0 0
      %472 = vmatprep.subr.bf16.mxu0 0
      %473 = vmatpush1.bf16.xpose.msra.mxu0 0
      %474 = vmatprep.subr.bf16.mxu0 0
      %475 = vmatpush1.bf16.xpose.msra.mxu0 0
      %476 = vmatprep.subr.bf16.mxu0 0
      %477 = vmatpush1.bf16.xpose.msra.mxu0 0
      %478 = vmatprep.subr.bf16.mxu0 0
      %479 = vmatpush1.bf16.xpose.msra.mxu0 0
      %480 = vmatprep.subr.bf16.mxu0 0
      %481 = vmatpush1.bf16.xpose.msra.mxu0 0
      %482 = vmatprep.mubr.bf16.mxu0 0
      %483 = vmatmul.mubr.bf16.gmra.mrb[0].mxu0 %v445
      %v484 = vpop.f32.mrb[0].mxu0
      %v485 = vadd.f32 0.0, %v484
      %v486 = vpop.f32.mrb[0].mxu0
      %v487 = vpop.f32.mrb[0].mxu0
      %v488 = vpop.f32.mrb[0].mxu0
      %489 = vdwg.mxu0
      %v491 = vsel %vm351, %v330, 0
      %v494 = vsel %vm351, %v338, 0
      %496 = vmatprep.subr.bf16.mxu0 0
      %497 = vmatpush1.bf16.xpose.msra.mxu0 %v494
      %498 = vmatprep.subr.bf16.mxu0 0
      %499 = vmatpush1.bf16.xpose.msra.mxu0 0
      %500 = vmatprep.subr.bf16.mxu0 0
      %501 = vmatpush1.bf16.xpose.msra.mxu0 0
      %502 = vmatprep.subr.bf16.mxu0 0
      %503 = vmatpush1.bf16.xpose.msra.mxu0 0
      %504 = vmatprep.subr.bf16.mxu0 0
      %505 = vmatpush1.bf16.xpose.msra.mxu0 0
      %506 = vmatprep.subr.bf16.mxu0 0
      %507 = vmatpush1.bf16.xpose.msra.mxu0 0
      %508 = vmatprep.subr.bf16.mxu0 0
      %509 = vmatpush1.bf16.xpose.msra.mxu0 0
      %510 = vmatprep.subr.bf16.mxu0 0
      %511 = vmatpush1.bf16.xpose.msra.mxu0 0
      %512 = vmatprep.subr.bf16.mxu0 0
      %513 = vmatpush1.bf16.xpose.msra.mxu0 0
      %514 = vmatprep.subr.bf16.mxu0 0
      %515 = vmatpush1.bf16.xpose.msra.mxu0 0
      %516 = vmatprep.subr.bf16.mxu0 0
      %517 = vmatpush1.bf16.xpose.msra.mxu0 0
      %518 = vmatprep.subr.bf16.mxu0 0
      %519 = vmatpush1.bf16.xpose.msra.mxu0 0
      %520 = vmatprep.subr.bf16.mxu0 0
      %521 = vmatpush1.bf16.xpose.msra.mxu0 0
      %522 = vmatprep.subr.bf16.mxu0 0
      %523 = vmatpush1.bf16.xpose.msra.mxu0 0
      %524 = vmatprep.subr.bf16.mxu0 0
      %525 = vmatpush1.bf16.xpose.msra.mxu0 0
      %526 = vmatprep.subr.bf16.mxu0 0
      %527 = vmatpush1.bf16.xpose.msra.mxu0 0
      %528 = vmatprep.mubr.bf16.mxu0 0
      %529 = vmatmul.mubr.bf16.gmra.mrb[0].mxu0 %v491
      %v530 = vpop.f32.mrb[0].mxu0
      %v531 = vadd.f32 0.0, %v530
      %v532 = vpop.f32.mrb[0].mxu0
      %v533 = vpop.f32.mrb[0].mxu0
      %v534 = vpop.f32.mrb[0].mxu0
      %535 = vdwg.mxu0
      %v537 = vsel %vm351, %v331, 0
      %v540 = vsel %vm351, %v339, 0
      %542 = vmatprep.subr.bf16.mxu0 0
      %543 = vmatpush1.bf16.xpose.msra.mxu0 %v540
      %544 = vmatprep.subr.bf16.mxu0 0
      %545 = vmatpush1.bf16.xpose.msra.mxu0 0
      %546 = vmatprep.subr.bf16.mxu0 0
      %547 = vmatpush1.bf16.xpose.msra.mxu0 0
      %548 = vmatprep.subr.bf16.mxu0 0
      %549 = vmatpush1.bf16.xpose.msra.mxu0 0
      %550 = vmatprep.subr.bf16.mxu0 0
      %551 = vmatpush1.bf16.xpose.msra.mxu0 0
      %552 = vmatprep.subr.bf16.mxu0 0
      %553 = vmatpush1.bf16.xpose.msra.mxu0 0
      %554 = vmatprep.subr.bf16.mxu0 0
      %555 = vmatpush1.bf16.xpose.msra.mxu0 0
      %556 = vmatprep.subr.bf16.mxu0 0
      %557 = vmatpush1.bf16.xpose.msra.mxu0 0
      %558 = vmatprep.subr.bf16.mxu0 0
      %559 = vmatpush1.bf16.xpose.msra.mxu0 0
      %560 = vmatprep.subr.bf16.mxu0 0
      %561 = vmatpush1.bf16.xpose.msra.mxu0 0
      %562 = vmatprep.subr.bf16.mxu0 0
      %563 = vmatpush1.bf16.xpose.msra.mxu0 0
      %564 = vmatprep.subr.bf16.mxu0 0
      %565 = vmatpush1.bf16.xpose.msra.mxu0 0
      %566 = vmatprep.subr.bf16.mxu0 0
      %567 = vmatpush1.bf16.xpose.msra.mxu0 0
      %568 = vmatprep.subr.bf16.mxu0 0
      %569 = vmatpush1.bf16.xpose.msra.mxu0 0
      %570 = vmatprep.subr.bf16.mxu0 0
      %571 = vmatpush1.bf16.xpose.msra.mxu0 0
      %572 = vmatprep.subr.bf16.mxu0 0
      %573 = vmatpush1.bf16.xpose.msra.mxu0 0
      %574 = vmatprep.mubr.bf16.mxu0 0
      %575 = vmatmul.mubr.bf16.gmra.mrb[0].mxu0 %v537
      %v576 = vpop.f32.mrb[0].mxu0
      %v577 = vadd.f32 0.0, %v576
      %v578 = vpop.f32.mrb[0].mxu0
      %v579 = vpop.f32.mrb[0].mxu0
      %v580 = vpop.f32.mrb[0].mxu0
      %581 = vdwg.mxu0
      %v583 = vsel %vm351, %v332, 0
      %v586 = vsel %vm351, %v340, 0
      %588 = vmatprep.subr.bf16.mxu0 0
      %589 = vmatpush1.bf16.xpose.msra.mxu0 %v586
      %590 = vmatprep.subr.bf16.mxu0 0
      %591 = vmatpush1.bf16.xpose.msra.mxu0 0
      %592 = vmatprep.subr.bf16.mxu0 0
      %593 = vmatpush1.bf16.xpose.msra.mxu0 0
      %594 = vmatprep.subr.bf16.mxu0 0
      %595 = vmatpush1.bf16.xpose.msra.mxu0 0
      %596 = vmatprep.subr.bf16.mxu0 0
      %597 = vmatpush1.bf16.xpose.msra.mxu0 0
      %598 = vmatprep.subr.bf16.mxu0 0
      %599 = vmatpush1.bf16.xpose.msra.mxu0 0
      %600 = vmatprep.subr.bf16.mxu0 0
      %601 = vmatpush1.bf16.xpose.msra.mxu0 0
      %602 = vmatprep.subr.bf16.mxu0 0
      %603 = vmatpush1.bf16.xpose.msra.mxu0 0
      %604 = vmatprep.subr.bf16.mxu0 0
      %605 = vmatpush1.bf16.xpose.msra.mxu0 0
      %606 = vmatprep.subr.bf16.mxu0 0
      %607 = vmatpush1.bf16.xpose.msra.mxu0 0
      %608 = vmatprep.subr.bf16.mxu0 0
      %609 = vmatpush1.bf16.xpose.msra.mxu0 0
      %610 = vmatprep.subr.bf16.mxu0 0
      %611 = vmatpush1.bf16.xpose.msra.mxu0 0
      %612 = vmatprep.subr.bf16.mxu0 0
      %613 = vmatpush1.bf16.xpose.msra.mxu0 0
      %614 = vmatprep.subr.bf16.mxu0 0
      %615 = vmatpush1.bf16.xpose.msra.mxu0 0
      %616 = vmatprep.subr.bf16.mxu0 0
      %617 = vmatpush1.bf16.xpose.msra.mxu0 0
      %618 = vmatprep.subr.bf16.mxu0 0
      %619 = vmatpush1.bf16.xpose.msra.mxu0 0
      %620 = vmatprep.mubr.bf16.mxu0 0
      %621 = vmatmul.mubr.bf16.gmra.mrb[0].mxu0 %v583
      %v622 = vpop.f32.mrb[0].mxu0
      %v623 = vadd.f32 0.0, %v622
      %v624 = vpop.f32.mrb[0].mxu0
      %v625 = vpop.f32.mrb[0].mxu0
      %v626 = vpop.f32.mrb[0].mxu0
      %627 = vdwg.mxu0
      %v629 = vsel %vm351, %v333, 0
      %v632 = vsel %vm351, %v341, 0
      %634 = vmatprep.subr.bf16.mxu0 0
      %635 = vmatpush1.bf16.xpose.msra.mxu0 %v632
      %636 = vmatprep.subr.bf16.mxu0 0
      %637 = vmatpush1.bf16.xpose.msra.mxu0 0
      %638 = vmatprep.subr.bf16.mxu0 0
      %639 = vmatpush1.bf16.xpose.msra.mxu0 0
      %640 = vmatprep.subr.bf16.mxu0 0
      %641 = vmatpush1.bf16.xpose.msra.mxu0 0
      %642 = vmatprep.subr.bf16.mxu0 0
      %643 = vmatpush1.bf16.xpose.msra.mxu0 0
      %644 = vmatprep.subr.bf16.mxu0 0
      %645 = vmatpush1.bf16.xpose.msra.mxu0 0
      %646 = vmatprep.subr.bf16.mxu0 0
      %647 = vmatpush1.bf16.xpose.msra.mxu0 0
      %648 = vmatprep.subr.bf16.mxu0 0
      %649 = vmatpush1.bf16.xpose.msra.mxu0 0
      %650 = vmatprep.subr.bf16.mxu0 0
      %651 = vmatpush1.bf16.xpose.msra.mxu0 0
      %652 = vmatprep.subr.bf16.mxu0 0
      %653 = vmatpush1.bf16.xpose.msra.mxu0 0
      %654 = vmatprep.subr.bf16.mxu0 0
      %655 = vmatpush1.bf16.xpose.msra.mxu0 0
      %656 = vmatprep.subr.bf16.mxu0 0
      %657 = vmatpush1.bf16.xpose.msra.mxu0 0
      %658 = vmatprep.subr.bf16.mxu0 0
      %659 = vmatpush1.bf16.xpose.msra.mxu0 0
      %660 = vmatprep.subr.bf16.mxu0 0
      %661 = vmatpush1.bf16.xpose.msra.mxu0 0
      %662 = vmatprep.subr.bf16.mxu0 0
      %663 = vmatpush1.bf16.xpose.msra.mxu0 0
      %664 = vmatprep.subr.bf16.mxu0 0
      %665 = vmatpush1.bf16.xpose.msra.mxu0 0
      %666 = vmatprep.mubr.bf16.mxu0 0
      %667 = vmatmul.mubr.bf16.gmra.mrb[0].mxu0 %v629
      %v668 = vpop.f32.mrb[0].mxu0
      %v669 = vadd.f32 0.0, %v668
      %v670 = vpop.f32.mrb[0].mxu0
      %v671 = vpop.f32.mrb[0].mxu0
      %v672 = vpop.f32.mrb[0].mxu0
      %673 = vdwg.mxu0
      %v675 = vsel %vm351, %v334, 0
      %v678 = vsel %vm351, %v342, 0
      %680 = vmatprep.subr.bf16.mxu0 0
      %681 = vmatpush1.bf16.xpose.msra.mxu0 %v678
      %682 = vmatprep.subr.bf16.mxu0 0
      %683 = vmatpush1.bf16.xpose.msra.mxu0 0
      %684 = vmatprep.subr.bf16.mxu0 0
      %685 = vmatpush1.bf16.xpose.msra.mxu0 0
      %686 = vmatprep.subr.bf16.mxu0 0
      %687 = vmatpush1.bf16.xpose.msra.mxu0 0
      %688 = vmatprep.subr.bf16.mxu0 0
      %689 = vmatpush1.bf16.xpose.msra.mxu0 0
      %690 = vmatprep.subr.bf16.mxu0 0
      %691 = vmatpush1.bf16.xpose.msra.mxu0 0
      %692 = vmatprep.subr.bf16.mxu0 0
      %693 = vmatpush1.bf16.xpose.msra.mxu0 0
      %694 = vmatprep.subr.bf16.mxu0 0
      %695 = vmatpush1.bf16.xpose.msra.mxu0 0
      %696 = vmatprep.subr.bf16.mxu0 0
      %697 = vmatpush1.bf16.xpose.msra.mxu0 0
      %698 = vmatprep.subr.bf16.mxu0 0
      %699 = vmatpush1.bf16.xpose.msra.mxu0 0
      %700 = vmatprep.subr.bf16.mxu0 0
      %701 = vmatpush1.bf16.xpose.msra.mxu0 0
      %702 = vmatprep.subr.bf16.mxu0 0
      %703 = vmatpush1.bf16.xpose.msra.mxu0 0
      %704 = vmatprep.subr.bf16.mxu0 0
      %705 = vmatpush1.bf16.xpose.msra.mxu0 0
      %706 = vmatprep.subr.bf16.mxu0 0
      %707 = vmatpush1.bf16.xpose.msra.mxu0 0
      %708 = vmatprep.subr.bf16.mxu0 0
      %709 = vmatpush1.bf16.xpose.msra.mxu0 0
      %710 = vmatprep.subr.bf16.mxu0 0
      %711 = vmatpush1.bf16.xpose.msra.mxu0 0
      %712 = vmatprep.mubr.bf16.mxu0 0
      %713 = vmatmul.mubr.bf16.gmra.mrb[0].mxu0 %v675
      %v714 = vpop.f32.mrb[0].mxu0
      %v715 = vadd.f32 0.0, %v714
      %v716 = vpop.f32.mrb[0].mxu0
      %v717 = vpop.f32.mrb[0].mxu0
      %v718 = vpop.f32.mrb[0].mxu0
      %719 = vdwg.mxu0
      %v720 = vmul.f32 %v393, 0.25
      %v721 = vmul.f32 %v439, 0.25
      %v722 = vmul.f32 %v485, 0.25
      %v723 = vmul.f32 %v531, 0.25
      %v724 = vmul.f32 %v577, 0.25
      %v725 = vmul.f32 %v623, 0.25
      %v726 = vmul.f32 %v669, 0.25
      %v727 = vmul.f32 %v715, 0.25
      %v728 = vld [vmem:[%s315] sm:$0xff]
      %v729 = vadd.f32 %v720, %v728
      %v730 = vadd.f32 %v721, %v728
      %v731 = vadd.f32 %v722, %v728
      %v732 = vadd.f32 %v723, %v728
      %v733 = vadd.f32 %v724, %v728
      %v734 = vadd.f32 %v725, %v728
      %v735 = vadd.f32 %v726, %v728
      %v736 = vadd.f32 %v727, %v728
      %vm737 = vcmask 64512
      %v738 = vsel %vm737, %v729, -inf
      %739 = vmax.xlane.f32.xlu0 %v738
      %v740 = vpop.xlane.xlu0 %739
      %v741 = vsel %vm737, %v730, -inf
      %742 = vmax.xlane.f32.xlu0 %v741
      %v743 = vpop.xlane.xlu0 %742
      %v744 = vsel %vm737, %v731, -inf
      %745 = vmax.xlane.f32.xlu0 %v744
      %v746 = vpop.xlane.xlu0 %745
      %v747 = vsel %vm737, %v732, -inf
      %748 = vmax.xlane.f32.xlu0 %v747
      %v749 = vpop.xlane.xlu0 %748
      %v750 = vsel %vm737, %v733, -inf
      %751 = vmax.xlane.f32.xlu0 %v750
      %v752 = vpop.xlane.xlu0 %751
      %v753 = vsel %vm737, %v734, -inf
      %754 = vmax.xlane.f32.xlu0 %v753
      %v755 = vpop.xlane.xlu0 %754
      %v756 = vsel %vm737, %v735, -inf
      %757 = vmax.xlane.f32.xlu0 %v756
      %v758 = vpop.xlane.xlu0 %757
      %v759 = vsel %vm737, %v736, -inf
      %760 = vmax.xlane.f32.xlu0 %v759
      %v761 = vpop.xlane.xlu0 %760
      %v762 = vsub.f32 %v729, %v740
      %v763 = vsub.f32 %v730, %v743
      %v764 = vsub.f32 %v731, %v746
      %v765 = vsub.f32 %v732, %v749
      %v766 = vsub.f32 %v733, %v752
      %v767 = vsub.f32 %v734, %v755
      %v768 = vsub.f32 %v735, %v758
      %v769 = vsub.f32 %v736, %v761
      %v770 = vmul.f32 %v762, 1.442695
      %v771 = vpow.pop %v770
      %v772 = vmul.f32 %v763, 1.442695
      %v773 = vpow.pop %v772
      %v774 = vmul.f32 %v764, 1.442695
      %v775 = vpow.pop %v774
      %v776 = vmul.f32 %v765, 1.442695
      %v777 = vpow.pop %v776
      %v778 = vmul.f32 %v766, 1.442695
      %v779 = vpow.pop %v778
      %v780 = vmul.f32 %v767, 1.442695
      %v781 = vpow.pop %v780
      %v782 = vmul.f32 %v768, 1.442695
      %v783 = vpow.pop %v782
      %v784 = vmul.f32 %v769, 1.442695
      %v785 = vpow.pop %v784
      %v786 = vsel %vm737, %v771, 0.0
      %787 = vadd.xlane.f32.xlu0 %v786
      %v788 = vpop.xlane.xlu0 %787
      %v789 = vsel %vm737, %v773, 0.0
      %790 = vadd.xlane.f32.xlu0 %v789
      %v791 = vpop.xlane.xlu0 %790
      %v792 = vsel %vm737, %v775, 0.0
      %793 = vadd.xlane.f32.xlu0 %v792
      %v794 = vpop.xlane.xlu0 %793
      %v795 = vsel %vm737, %v777, 0.0
      %796 = vadd.xlane.f32.xlu0 %v795
      %v797 = vpop.xlane.xlu0 %796
      %v798 = vsel %vm737, %v779, 0.0
      %799 = vadd.xlane.f32.xlu0 %v798
      %v800 = vpop.xlane.xlu0 %799
      %v801 = vsel %vm737, %v781, 0.0
      %802 = vadd.xlane.f32.xlu0 %v801
      %v803 = vpop.xlane.xlu0 %802
      %v804 = vsel %vm737, %v783, 0.0
      %805 = vadd.xlane.f32.xlu0 %v804
      %v806 = vpop.xlane.xlu0 %805
      %v807 = vsel %vm737, %v785, 0.0
      %808 = vadd.xlane.f32.xlu0 %v807
      %v809 = vpop.xlane.xlu0 %808
      %v810 = vrcp.pop %v788
      %v811 = vmul.f32 %v771, %v810
      %v812 = vrcp.pop %v791
      %v813 = vmul.f32 %v773, %v812
      %v814 = vrcp.pop %v794
      %v815 = vmul.f32 %v775, %v814
      %v816 = vrcp.pop %v797
      %v817 = vmul.f32 %v777, %v816
      %v818 = vrcp.pop %v800
      %v819 = vmul.f32 %v779, %v818
      %v820 = vrcp.pop %v803
      %v821 = vmul.f32 %v781, %v820
      %v822 = vrcp.pop %v806
      %v823 = vmul.f32 %v783, %v822
      %v824 = vrcp.pop %v809
      %v825 = vmul.f32 %v785, %v824
      %v826 = vpack.c.bf16 %v811, %v811
      %v827 = vpack.c.bf16 %v813, %v813
      %v828 = vpack.c.bf16 %v815, %v815
      %v829 = vpack.c.bf16 %v817, %v817
      %v830 = vpack.c.bf16 %v819, %v819
      %v831 = vpack.c.bf16 %v821, %v821
      %v832 = vpack.c.bf16 %v823, %v823
      %v833 = vpack.c.bf16 %v825, %v825
      %v835 = vsel %vm737, %v826, 0
      %vm837 = vcmask 1043456
      %v839 = vsel %vm837, %v343, 0
      %841 = vmatprep.subr.bf16.mxu0 0
      %842 = vmatpush1.bf16.msra.mxu0 %v839
      %843 = vmatprep.subr.bf16.mxu0 0
      %844 = vmatpush1.bf16.msra.mxu0 0
      %845 = vmatprep.subr.bf16.mxu0 0
      %846 = vmatpush1.bf16.msra.mxu0 0
      %847 = vmatprep.subr.bf16.mxu0 0
      %848 = vmatpush1.bf16.msra.mxu0 0
      %849 = vmatprep.subr.bf16.mxu0 0
      %850 = vmatpush1.bf16.msra.mxu0 0
      %851 = vmatprep.subr.bf16.mxu0 0
      %852 = vmatpush1.bf16.msra.mxu0 0
      %853 = vmatprep.subr.bf16.mxu0 0
      %854 = vmatpush1.bf16.msra.mxu0 0
      %855 = vmatprep.subr.bf16.mxu0 0
      %856 = vmatpush1.bf16.msra.mxu0 0
      %857 = vmatprep.subr.bf16.mxu0 0
      %858 = vmatpush1.bf16.msra.mxu0 0
      %859 = vmatprep.subr.bf16.mxu0 0
      %860 = vmatpush1.bf16.msra.mxu0 0
      %861 = vmatprep.subr.bf16.mxu0 0
      %862 = vmatpush1.bf16.msra.mxu0 0
      %863 = vmatprep.subr.bf16.mxu0 0
      %864 = vmatpush1.bf16.msra.mxu0 0
      %865 = vmatprep.subr.bf16.mxu0 0
      %866 = vmatpush1.bf16.msra.mxu0 0
      %867 = vmatprep.subr.bf16.mxu0 0
      %868 = vmatpush1.bf16.msra.mxu0 0
      %869 = vmatprep.subr.bf16.mxu0 0
      %870 = vmatpush1.bf16.msra.mxu0 0
      %871 = vmatprep.subr.bf16.mxu0 0
      %872 = vmatpush1.bf16.msra.mxu0 0
      %873 = vmatprep.mubr.bf16.mxu0 0
      %874 = vmatmul.mubr.bf16.gmra.mrb[0].mxu0 %v835
      %v875 = vpop.f32.mrb[0].mxu0
      %v876 = vadd.f32 0.0, %v875
      %v877 = vpop.f32.mrb[0].mxu0
      %v878 = vpop.f32.mrb[0].mxu0
      %v879 = vpop.f32.mrb[0].mxu0
      %880 = vdwg.mxu0
      %v882 = vsel %vm737, %v827, 0
      %v885 = vsel %vm837, %v344, 0
      %887 = vmatprep.subr.bf16.mxu0 0
      %888 = vmatpush1.bf16.msra.mxu0 %v885
      %889 = vmatprep.subr.bf16.mxu0 0
      %890 = vmatpush1.bf16.msra.mxu0 0
      %891 = vmatprep.subr.bf16.mxu0 0
      %892 = vmatpush1.bf16.msra.mxu0 0
      %893 = vmatprep.subr.bf16.mxu0 0
      %894 = vmatpush1.bf16.msra.mxu0 0
      %895 = vmatprep.subr.bf16.mxu0 0
      %896 = vmatpush1.bf16.msra.mxu0 0
      %897 = vmatprep.subr.bf16.mxu0 0
      %898 = vmatpush1.bf16.msra.mxu0 0
      %899 = vmatprep.subr.bf16.mxu0 0
      %900 = vmatpush1.bf16.msra.mxu0 0
      %901 = vmatprep.subr.bf16.mxu0 0
      %902 = vmatpush1.bf16.msra.mxu0 0
      %903 = vmatprep.subr.bf16.mxu0 0
      %904 = vmatpush1.bf16.msra.mxu0 0
      %905 = vmatprep.subr.bf16.mxu0 0
      %906 = vmatpush1.bf16.msra.mxu0 0
      %907 = vmatprep.subr.bf16.mxu0 0
      %908 = vmatpush1.bf16.msra.mxu0 0
      %909 = vmatprep.subr.bf16.mxu0 0
      %910 = vmatpush1.bf16.msra.mxu0 0
      %911 = vmatprep.subr.bf16.mxu0 0
      %912 = vmatpush1.bf16.msra.mxu0 0
      %913 = vmatprep.subr.bf16.mxu0 0
      %914 = vmatpush1.bf16.msra.mxu0 0
      %915 = vmatprep.subr.bf16.mxu0 0
      %916 = vmatpush1.bf16.msra.mxu0 0
      %917 = vmatprep.subr.bf16.mxu0 0
      %918 = vmatpush1.bf16.msra.mxu0 0
      %919 = vmatprep.mubr.bf16.mxu0 0
      %920 = vmatmul.mubr.bf16.gmra.mrb[0].mxu0 %v882
      %v921 = vpop.f32.mrb[0].mxu0
      %v922 = vadd.f32 0.0, %v921
      %v923 = vpop.f32.mrb[0].mxu0
      %v924 = vpop.f32.mrb[0].mxu0
      %v925 = vpop.f32.mrb[0].mxu0
      %926 = vdwg.mxu0
      %v928 = vsel %vm737, %v828, 0
      %v931 = vsel %vm837, %v345, 0
      %933 = vmatprep.subr.bf16.mxu0 0
      %934 = vmatpush1.bf16.msra.mxu0 %v931
      %935 = vmatprep.subr.bf16.mxu0 0
      %936 = vmatpush1.bf16.msra.mxu0 0
      %937 = vmatprep.subr.bf16.mxu0 0
      %938 = vmatpush1.bf16.msra.mxu0 0
      %939 = vmatprep.subr.bf16.mxu0 0
      %940 = vmatpush1.bf16.msra.mxu0 0
      %941 = vmatprep.subr.bf16.mxu0 0
      %942 = vmatpush1.bf16.msra.mxu0 0
      %943 = vmatprep.subr.bf16.mxu0 0
      %944 = vmatpush1.bf16.msra.mxu0 0
      %945 = vmatprep.subr.bf16.mxu0 0
      %946 = vmatpush1.bf16.msra.mxu0 0
      %947 = vmatprep.subr.bf16.mxu0 0
      %948 = vmatpush1.bf16.msra.mxu0 0
      %949 = vmatprep.subr.bf16.mxu0 0
      %950 = vmatpush1.bf16.msra.mxu0 0
      %951 = vmatprep.subr.bf16.mxu0 0
      %952 = vmatpush1.bf16.msra.mxu0 0
      %953 = vmatprep.subr.bf16.mxu0 0
      %954 = vmatpush1.bf16.msra.mxu0 0
      %955 = vmatprep.subr.bf16.mxu0 0
      %956 = vmatpush1.bf16.msra.mxu0 0
      %957 = vmatprep.subr.bf16.mxu0 0
      %958 = vmatpush1.bf16.msra.mxu0 0
      %959 = vmatprep.subr.bf16.mxu0 0
      %960 = vmatpush1.bf16.msra.mxu0 0
      %961 = vmatprep.subr.bf16.mxu0 0
      %962 = vmatpush1.bf16.msra.mxu0 0
      %963 = vmatprep.subr.bf16.mxu0 0
      %964 = vmatpush1.bf16.msra.mxu0 0
      %965 = vmatprep.mubr.bf16.mxu0 0
      %966 = vmatmul.mubr.bf16.gmra.mrb[0].mxu0 %v928
      %v967 = vpop.f32.mrb[0].mxu0
      %v968 = vadd.f32 0.0, %v967
      %v969 = vpop.f32.mrb[0].mxu0
      %v970 = vpop.f32.mrb[0].mxu0
      %v971 = vpop.f32.mrb[0].mxu0
      %972 = vdwg.mxu0
      %v974 = vsel %vm737, %v829, 0
      %v977 = vsel %vm837, %v346, 0
      %979 = vmatprep.subr.bf16.mxu0 0
      %980 = vmatpush1.bf16.msra.mxu0 %v977
      %981 = vmatprep.subr.bf16.mxu0 0
      %982 = vmatpush1.bf16.msra.mxu0 0
      %983 = vmatprep.subr.bf16.mxu0 0
      %984 = vmatpush1.bf16.msra.mxu0 0
      %985 = vmatprep.subr.bf16.mxu0 0
      %986 = vmatpush1.bf16.msra.mxu0 0
      %987 = vmatprep.subr.bf16.mxu0 0
      %988 = vmatpush1.bf16.msra.mxu0 0
      %989 = vmatprep.subr.bf16.mxu0 0
      %990 = vmatpush1.bf16.msra.mxu0 0
      %991 = vmatprep.subr.bf16.mxu0 0
      %992 = vmatpush1.bf16.msra.mxu0 0
      %993 = vmatprep.subr.bf16.mxu0 0
      %994 = vmatpush1.bf16.msra.mxu0 0
      %995 = vmatprep.subr.bf16.mxu0 0
      %996 = vmatpush1.bf16.msra.mxu0 0
      %997 = vmatprep.subr.bf16.mxu0 0
      %998 = vmatpush1.bf16.msra.mxu0 0
      %999 = vmatprep.subr.bf16.mxu0 0
      %1000 = vmatpush1.bf16.msra.mxu0 0
      %1001 = vmatprep.subr.bf16.mxu0 0
      %1002 = vmatpush1.bf16.msra.mxu0 0
      %1003 = vmatprep.subr.bf16.mxu0 0
      %1004 = vmatpush1.bf16.msra.mxu0 0
      %1005 = vmatprep.subr.bf16.mxu0 0
      %1006 = vmatpush1.bf16.msra.mxu0 0
      %1007 = vmatprep.subr.bf16.mxu0 0
      %1008 = vmatpush1.bf16.msra.mxu0 0
      %1009 = vmatprep.subr.bf16.mxu0 0
      %1010 = vmatpush1.bf16.msra.mxu0 0
      %1011 = vmatprep.mubr.bf16.mxu0 0
      %1012 = vmatmul.mubr.bf16.gmra.mrb[0].mxu0 %v974
      %v1013 = vpop.f32.mrb[0].mxu0
      %v1014 = vadd.f32 0.0, %v1013
      %v1015 = vpop.f32.mrb[0].mxu0
      %v1016 = vpop.f32.mrb[0].mxu0
      %v1017 = vpop.f32.mrb[0].mxu0
      %1018 = vdwg.mxu0
      %v1020 = vsel %vm737, %v830, 0
      %v1023 = vsel %vm837, %v347, 0
      %1025 = vmatprep.subr.bf16.mxu0 0
      %1026 = vmatpush1.bf16.msra.mxu0 %v1023
      %1027 = vmatprep.subr.bf16.mxu0 0
      %1028 = vmatpush1.bf16.msra.mxu0 0
      %1029 = vmatprep.subr.bf16.mxu0 0
      %1030 = vmatpush1.bf16.msra.mxu0 0
      %1031 = vmatprep.subr.bf16.mxu0 0
      %1032 = vmatpush1.bf16.msra.mxu0 0
      %1033 = vmatprep.subr.bf16.mxu0 0
      %1034 = vmatpush1.bf16.msra.mxu0 0
      %1035 = vmatprep.subr.bf16.mxu0 0
      %1036 = vmatpush1.bf16.msra.mxu0 0
      %1037 = vmatprep.subr.bf16.mxu0 0
      %1038 = vmatpush1.bf16.msra.mxu0 0
      %1039 = vmatprep.subr.bf16.mxu0 0
      %1040 = vmatpush1.bf16.msra.mxu0 0
      %1041 = vmatprep.subr.bf16.mxu0 0
      %1042 = vmatpush1.bf16.msra.mxu0 0
      %1043 = vmatprep.subr.bf16.mxu0 0
      %1044 = vmatpush1.bf16.msra.mxu0 0
      %1045 = vmatprep.subr.bf16.mxu0 0
      %1046 = vmatpush1.bf16.msra.mxu0 0
      %1047 = vmatprep.subr.bf16.mxu0 0
      %1048 = vmatpush1.bf16.msra.mxu0 0
      %1049 = vmatprep.subr.bf16.mxu0 0
      %1050 = vmatpush1.bf16.msra.mxu0 0
      %1051 = vmatprep.subr.bf16.mxu0 0
      %1052 = vmatpush1.bf16.msra.mxu0 0
      %1053 = vmatprep.subr.bf16.mxu0 0
      %1054 = vmatpush1.bf16.msra.mxu0 0
      %1055 = vmatprep.subr.bf16.mxu0 0
      %1056 = vmatpush1.bf16.msra.mxu0 0
      %1057 = vmatprep.mubr.bf16.mxu0 0
      %1058 = vmatmul.mubr.bf16.gmra.mrb[0].mxu0 %v1020
      %v1059 = vpop.f32.mrb[0].mxu0
      %v1060 = vadd.f32 0.0, %v1059
      %v1061 = vpop.f32.mrb[0].mxu0
      %v1062 = vpop.f32.mrb[0].mxu0
      %v1063 = vpop.f32.mrb[0].mxu0
      %1064 = vdwg.mxu0
      %v1066 = vsel %vm737, %v831, 0
      %v1069 = vsel %vm837, %v348, 0
      %1071 = vmatprep.subr.bf16.mxu0 0
      %1072 = vmatpush1.bf16.msra.mxu0 %v1069
      %1073 = vmatprep.subr.bf16.mxu0 0
      %1074 = vmatpush1.bf16.msra.mxu0 0
      %1075 = vmatprep.subr.bf16.mxu0 0
      %1076 = vmatpush1.bf16.msra.mxu0 0
      %1077 = vmatprep.subr.bf16.mxu0 0
      %1078 = vmatpush1.bf16.msra.mxu0 0
      %1079 = vmatprep.subr.bf16.mxu0 0
      %1080 = vmatpush1.bf16.msra.mxu0 0
      %1081 = vmatprep.subr.bf16.mxu0 0
      %1082 = vmatpush1.bf16.msra.mxu0 0
      %1083 = vmatprep.subr.bf16.mxu0 0
      %1084 = vmatpush1.bf16.msra.mxu0 0
      %1085 = vmatprep.subr.bf16.mxu0 0
      %1086 = vmatpush1.bf16.msra.mxu0 0
      %1087 = vmatprep.subr.bf16.mxu0 0
      %1088 = vmatpush1.bf16.msra.mxu0 0
      %1089 = vmatprep.subr.bf16.mxu0 0
      %1090 = vmatpush1.bf16.msra.mxu0 0
      %1091 = vmatprep.subr.bf16.mxu0 0
      %1092 = vmatpush1.bf16.msra.mxu0 0
      %1093 = vmatprep.subr.bf16.mxu0 0
      %1094 = vmatpush1.bf16.msra.mxu0 0
      %1095 = vmatprep.subr.bf16.mxu0 0
      %1096 = vmatpush1.bf16.msra.mxu0 0
      %1097 = vmatprep.subr.bf16.mxu0 0
      %1098 = vmatpush1.bf16.msra.mxu0 0
      %1099 = vmatprep.subr.bf16.mxu0 0
      %1100 = vmatpush1.bf16.msra.mxu0 0
      %1101 = vmatprep.subr.bf16.mxu0 0
      %1102 = vmatpush1.bf16.msra.mxu0 0
      %1103 = vmatprep.mubr.bf16.mxu0 0
      %1104 = vmatmul.mubr.bf16.gmra.mrb[0].mxu0 %v1066
      %v1105 = vpop.f32.mrb[0].mxu0
      %v1106 = vadd.f32 0.0, %v1105
      %v1107 = vpop.f32.mrb[0].mxu0
      %v1108 = vpop.f32.mrb[0].mxu0
      %v1109 = vpop.f32.mrb[0].mxu0
      %1110 = vdwg.mxu0
      %v1112 = vsel %vm737, %v832, 0
      %v1115 = vsel %vm837, %v349, 0
      %1117 = vmatprep.subr.bf16.mxu0 0
      %1118 = vmatpush1.bf16.msra.mxu0 %v1115
      %1119 = vmatprep.subr.bf16.mxu0 0
      %1120 = vmatpush1.bf16.msra.mxu0 0
      %1121 = vmatprep.subr.bf16.mxu0 0
      %1122 = vmatpush1.bf16.msra.mxu0 0
      %1123 = vmatprep.subr.bf16.mxu0 0
      %1124 = vmatpush1.bf16.msra.mxu0 0
      %1125 = vmatprep.subr.bf16.mxu0 0
      %1126 = vmatpush1.bf16.msra.mxu0 0
      %1127 = vmatprep.subr.bf16.mxu0 0
      %1128 = vmatpush1.bf16.msra.mxu0 0
      %1129 = vmatprep.subr.bf16.mxu0 0
      %1130 = vmatpush1.bf16.msra.mxu0 0
      %1131 = vmatprep.subr.bf16.mxu0 0
      %1132 = vmatpush1.bf16.msra.mxu0 0
      %1133 = vmatprep.subr.bf16.mxu0 0
      %1134 = vmatpush1.bf16.msra.mxu0 0
      %1135 = vmatprep.subr.bf16.mxu0 0
      %1136 = vmatpush1.bf16.msra.mxu0 0
      %1137 = vmatprep.subr.bf16.mxu0 0
      %1138 = vmatpush1.bf16.msra.mxu0 0
      %1139 = vmatprep.subr.bf16.mxu0 0
      %1140 = vmatpush1.bf16.msra.mxu0 0
      %1141 = vmatprep.subr.bf16.mxu0 0
      %1142 = vmatpush1.bf16.msra.mxu0 0
      %1143 = vmatprep.subr.bf16.mxu0 0
      %1144 = vmatpush1.bf16.msra.mxu0 0
      %1145 = vmatprep.subr.bf16.mxu0 0
      %1146 = vmatpush1.bf16.msra.mxu0 0
      %1147 = vmatprep.subr.bf16.mxu0 0
      %1148 = vmatpush1.bf16.msra.mxu0 0
      %1149 = vmatprep.mubr.bf16.mxu0 0
      %1150 = vmatmul.mubr.bf16.gmra.mrb[0].mxu0 %v1112
      %v1151 = vpop.f32.mrb[0].mxu0
      %v1152 = vadd.f32 0.0, %v1151
      %v1153 = vpop.f32.mrb[0].mxu0
      %v1154 = vpop.f32.mrb[0].mxu0
      %v1155 = vpop.f32.mrb[0].mxu0
      %1156 = vdwg.mxu0
      %v1158 = vsel %vm737, %v833, 0
      %v1161 = vsel %vm837, %v350, 0
      %1163 = vmatprep.subr.bf16.mxu0 0
      %1164 = vmatpush1.bf16.msra.mxu0 %v1161
      %1165 = vmatprep.subr.bf16.mxu0 0
      %1166 = vmatpush1.bf16.msra.mxu0 0
      %1167 = vmatprep.subr.bf16.mxu0 0
      %1168 = vmatpush1.bf16.msra.mxu0 0
      %1169 = vmatprep.subr.bf16.mxu0 0
      %1170 = vmatpush1.bf16.msra.mxu0 0
      %1171 = vmatprep.subr.bf16.mxu0 0
      %1172 = vmatpush1.bf16.msra.mxu0 0
      %1173 = vmatprep.subr.bf16.mxu0 0
      %1174 = vmatpush1.bf16.msra.mxu0 0
      %1175 = vmatprep.subr.bf16.mxu0 0
      %1176 = vmatpush1.bf16.msra.mxu0 0
      %1177 = vmatprep.subr.bf16.mxu0 0
      %1178 = vmatpush1.bf16.msra.mxu0 0
      %1179 = vmatprep.subr.bf16.mxu0 0
      %1180 = vmatpush1.bf16.msra.mxu0 0
      %1181 = vmatprep.subr.bf16.mxu0 0
      %1182 = vmatpush1.bf16.msra.mxu0 0
      %1183 = vmatprep.subr.bf16.mxu0 0
      %1184 = vmatpush1.bf16.msra.mxu0 0
      %1185 = vmatprep.subr.bf16.mxu0 0
      %1186 = vmatpush1.bf16.msra.mxu0 0
      %1187 = vmatprep.subr.bf16.mxu0 0
      %1188 = vmatpush1.bf16.msra.mxu0 0
      %1189 = vmatprep.subr.bf16.mxu0 0
      %1190 = vmatpush1.bf16.msra.mxu0 0
      %1191 = vmatprep.subr.bf16.mxu0 0
      %1192 = vmatpush1.bf16.msra.mxu0 0
      %1193 = vmatprep.subr.bf16.mxu0 0
      %1194 = vmatpush1.bf16.msra.mxu0 0
      %1195 = vmatprep.mubr.bf16.mxu0 0
      %1196 = vmatmul.mubr.bf16.gmra.mrb[0].mxu0 %v1158
      %v1197 = vpop.f32.mrb[0].mxu0
      %v1198 = vadd.f32 0.0, %v1197
      %v1199 = vpop.f32.mrb[0].mxu0
      %v1200 = vpop.f32.mrb[0].mxu0
      %v1201 = vpop.f32.mrb[0].mxu0
      %1202 = vdwg.mxu0
      %v1203 = vpack.c.bf16 %v876, %v876
      %v1204 = vpack.c.bf16 %v922, %v922
      %v1205 = vpack.c.bf16 %v968, %v968
      %v1206 = vpack.c.bf16 %v1014, %v1014
      %v1207 = vpack.c.bf16 %v1060, %v1060
      %v1208 = vpack.c.bf16 %v1106, %v1106
      %v1209 = vpack.c.bf16 %v1152, %v1152
      %v1210 = vpack.c.bf16 %v1198, %v1198
      %vm1211 = vcmask 125952
      %1212 = vst.msk [vmem:[%s324] sm:$0xf] %vm1211, %v1203
      %1213 = vst.msk [vmem:[%s324 + $0x4] sm:$0xf] %vm1211, %v1204
      %1214 = vst.msk [vmem:[%s324 + $0x8] sm:$0xf] %vm1211, %v1205
      %1215 = vst.msk [vmem:[%s324 + $0xc] sm:$0xf] %vm1211, %v1206
      %1216 = vst.msk [vmem:[%s324 + $0x10] sm:$0xf] %vm1211, %v1207
      %1217 = vst.msk [vmem:[%s324 + $0x14] sm:$0xf] %vm1211, %v1208
      %1218 = vst.msk [vmem:[%s324 + $0x18] sm:$0xf] %vm1211, %v1209
      %1219 = vst.msk [vmem:[%s324 + $0x1c] sm:$0xf] %vm1211, %v1210
      %s1220 = smul.u32 8, %s20
      %p1221 = scmp.lt.s32.totalorder %s19, 3
      %s1222 = scalar_select %p1221, %s19, 3
      %p1223 = scmp.lt.s32.totalorder %s1220, 15
      %s1224 = scalar_select %p1223, %s1220, 15
      %s1225 = smul.addr %s1222, 16
      %s1226 = sadd.s32 %s1224, %s1225
      %s1227 = smul.addr %s1226, 4
      %s1228 = scalar_lea.vmem %s4, %s1227
      // Predicated region
      $region37: #{block_forward.8} parent=35 // pred_check
        %p1229 = pneg %p157
      $region38: #{block_forward.8} parent=35 // pred_check_branch
        %1231 = sbr.rel (%p1229) target = $region40
      $region39: #{block_forward.8} parent=35 // pred_region
        %s1232 = smul.u32 8, %s20
      $region40: #{block_forward.8} parent=35 // pred_fallthru
        _
    $region36: #{block_forward.8} parent=5 // pred_fallthru
      _
    %p1233 = scmp.le.s32.totalorder 2, %s10
    // Predicated region
    $region41: #{block_forward.8} parent=5 // pred_check
      %p1234 = pneg %p1233
    $region42: #{block_forward.8} parent=5 // pred_check_branch
      %1236 = sbr.rel (%p1234) target = $region44
    $region43: #{block_forward.8} parent=5 // pred_region
      %s1237 = ssub.s32 %s10, 2
      // Predicated region
      $region45: #{block_forward.8} parent=43 // pred_check
        %p1238 = pneg %p163
      $region46: #{block_forward.8} parent=43 // pred_check_branch
        %1240 = sbr.rel (%p1238) target = $region48
      $region47: #{block_forward.8} parent=43 // pred_region
        %s1241 = smul.u32 8, %s22
        %p1242 = scmp.lt.s32.totalorder %s21, 3
        %s1243 = scalar_select %p1242, %s21, 3
        %p1244 = scmp.lt.s32.totalorder %s1241, 15
        %s1245 = scalar_select %p1244, %s1241, 15
        %s1246 = smul.addr %s1243, 16
        %s1247 = sadd.s32 %s1245, %s1246
        %s1248 = smul.addr %s1247, 4
        %s1249 = scalar_lea.vmem %s4, %s1248
      $region48: #{block_forward.8} parent=43 // pred_fallthru
        _
    $region44: #{block_forward.8} parent=5 // pred_fallthru
      _
  $region6: #{block_forward.8} parent=0 // loop_footer
    %s14 = sadd.s32 1, %s10
  $region7: #{block_forward.8} parent=0 // loop_footer_branch
    %9 = sbr.rel target = $region3
  $region8: #{block_forward.8} parent=0 // loop_exit
    _

// kernel: block_forward.10
$region0: #{block_forward.10}
  #allocation0 [shape = 'u32[]', space=smem, size = 0x4, offset = 0x4, fixed_abs, tag = 'smem constant byte address 0x4 - core index']
  #allocation1 [shape = 'u32[144,128]{1,0:T(1,128)}', space=vmem, size = 0x12000, scoped, tag = 'internal scratch']
  %s0 = inlined_call_operand.vmem [shape: bf16[128,64], index: 0, kind: input, shape index: {}]
  %s1 = inlined_call_operand.vmem [shape: bf16[128,64], index: 1, kind: input, shape index: {}]
  %s2 = inlined_call_operand.vmem [shape: f32[128,64], index: 2, kind: input, shape index: {}]
  %s3 = inlined_call_operand.vmem [shape: bf16[64,64], index: 3, kind: input, shape index: {}]
  %s4 = inlined_call_operand.vmem [shape: f32[1,64], index: 4, kind: input, shape index: {}]
  %s5 = inlined_call_operand.vmem [shape: f32[128,64], index: 5, kind: output, shape index: {}]
  %s6 = sld [smem:[#allocation0]]
  $region30: #{block_forward.10} parent=0
    _
  %s8 = ssub.s32 1, %s6
  %s9 = scalar_select 0, %s8, %s6
  // Predicated region
  $region2: #{block_forward.10} parent=0 // pred_check
    _
  $region3: #{block_forward.10} parent=0 // pred_check_branch
    %11 = sbr.rel (0) target = $region5
  $region4: #{block_forward.10} parent=0 // pred_region
    _
  $region5: #{block_forward.10} parent=0 // pred_fallthru
    _
  // Predicated region
  $region6: #{block_forward.10} parent=0 // pred_check
    _
  $region7: #{block_forward.10} parent=0 // pred_check_branch
    %13 = sbr.rel (0) target = $region9
  $region8: #{block_forward.10} parent=0 // pred_region
    _
  $region9: #{block_forward.10} parent=0 // pred_fallthru
    _
  // Predicated region
  $region10: #{block_forward.10} parent=0 // pred_check
    _
  $region11: #{block_forward.10} parent=0 // pred_check_branch
    %15 = sbr.rel (0) target = $region13
  $region12: #{block_forward.10} parent=0 // pred_region
    _
  $region13: #{block_forward.10} parent=0 // pred_fallthru
    _
  // Predicated region
  $region14: #{block_forward.10} parent=0 // pred_check
    _
  $region15: #{block_forward.10} parent=0 // pred_check_branch
    %17 = sbr.rel (0) target = $region17
  $region16: #{block_forward.10} parent=0 // pred_region
    _
  $region17: #{block_forward.10} parent=0 // pred_fallthru
    _
  // Predicated region
  $region18: #{block_forward.10} parent=0 // pred_check
    _
  $region19: #{block_forward.10} parent=0 // pred_check_branch
    %19 = sbr.rel (0) target = $region21
  $region20: #{block_forward.10} parent=0 // pred_region
    _
  $region21: #{block_forward.10} parent=0 // pred_fallthru
    _
  %v21 = vld [vmem:[%s0] sm:$0xf]
  %v22 = vld [vmem:[%s0 + $0x4] sm:$0xf]
  %v23 = vld [vmem:[%s0 + $0x8] sm:$0xf]
  %v24 = vld [vmem:[%s0 + $0xc] sm:$0xf]
  %v25 = vld [vmem:[%s0 + $0x10] sm:$0xf]
  %v26 = vld [vmem:[%s0 + $0x14] sm:$0xf]
  %v27 = vld [vmem:[%s0 + $0x18] sm:$0xf]
  %v28 = vld [vmem:[%s0 + $0x1c] sm:$0xf]
  %v29 = vld [vmem:[%s0 + $0x20] sm:$0xf]
  %v30 = vld [vmem:[%s0 + $0x24] sm:$0xf]
  %v31 = vld [vmem:[%s0 + $0x28] sm:$0xf]
  %v32 = vld [vmem:[%s0 + $0x2c] sm:$0xf]
  %v33 = vld [vmem:[%s0 + $0x30] sm:$0xf]
  %v34 = vld [vmem:[%s0 + $0x34] sm:$0xf]
  %v35 = vld [vmem:[%s0 + $0x38] sm:$0xf]
  %v36 = vld [vmem:[%s0 + $0x3c] sm:$0xf]
  %v37 = vunpack.c.l.bf16 %v21
  %v38 = vunpack.c.l.bf16 %v22
  %v39 = vunpack.c.l.bf16 %v23
  %v40 = vunpack.c.l.bf16 %v24
  %v41 = vunpack.c.l.bf16 %v25
  %v42 = vunpack.c.l.bf16 %v26
  %v43 = vunpack.c.l.bf16 %v27
  %v44 = vunpack.c.l.bf16 %v28
  %v45 = vunpack.c.l.bf16 %v29
  %v46 = vunpack.c.l.bf16 %v30
  %v47 = vunpack.c.l.bf16 %v31
  %v48 = vunpack.c.l.bf16 %v32
  %v49 = vunpack.c.l.bf16 %v33
  %v50 = vunpack.c.l.bf16 %v34
  %v51 = vunpack.c.l.bf16 %v35
  %v52 = vunpack.c.l.bf16 %v36
  %v53 = vld [vmem:[%s1] sm:$0xf]
  %v54 = vld [vmem:[%s1 + $0x4] sm:$0xf]
  %v55 = vld [vmem:[%s1 + $0x8] sm:$0xf]
  %v56 = vld [vmem:[%s1 + $0xc] sm:$0xf]
  %v57 = vld [vmem:[%s1 + $0x10] sm:$0xf]
  %v58 = vld [vmem:[%s1 + $0x14] sm:$0xf]
  %v59 = vld [vmem:[%s1 + $0x18] sm:$0xf]
  %v60 = vld [vmem:[%s1 + $0x1c] sm:$0xf]
  %v61 = vld [vmem:[%s1 + $0x20] sm:$0xf]
  %v62 = vld [vmem:[%s1 + $0x24] sm:$0xf]
  %v63 = vld [vmem:[%s1 + $0x28] sm:$0xf]
  %v64 = vld [vmem:[%s1 + $0x2c] sm:$0xf]
  %v65 = vld [vmem:[%s1 + $0x30] sm:$0xf]
  %v66 = vld [vmem:[%s1 + $0x34] sm:$0xf]
  %v67 = vld [vmem:[%s1 + $0x38] sm:$0xf]
  %v68 = vld [vmem:[%s1 + $0x3c] sm:$0xf]
  %v69 = vunpack.c.l.bf16 %v53
  %v70 = vunpack.c.l.bf16 %v54
  %v71 = vunpack.c.l.bf16 %v55
  %v72 = vunpack.c.l.bf16 %v56
  %v73 = vunpack.c.l.bf16 %v57
  %v74 = vunpack.c.l.bf16 %v58
  %v75 = vunpack.c.l.bf16 %v59
  %v76 = vunpack.c.l.bf16 %v60
  %v77 = vunpack.c.l.bf16 %v61
  %v78 = vunpack.c.l.bf16 %v62
  %v79 = vunpack.c.l.bf16 %v63
  %v80 = vunpack.c.l.bf16 %v64
  %v81 = vunpack.c.l.bf16 %v65
  %v82 = vunpack.c.l.bf16 %v66
  %v83 = vunpack.c.l.bf16 %v67
  %v84 = vunpack.c.l.bf16 %v68
  %v85 = vadd.f32 %v37, %v69
  %v86 = vadd.f32 %v38, %v70
  %v87 = vadd.f32 %v39, %v71
  %v88 = vadd.f32 %v40, %v72
  %v89 = vadd.f32 %v41, %v73
  %v90 = vadd.f32 %v42, %v74
  %v91 = vadd.f32 %v43, %v75
  %v92 = vadd.f32 %v44, %v76
  %v93 = vadd.f32 %v45, %v77
  %v94 = vadd.f32 %v46, %v78
  %v95 = vadd.f32 %v47, %v79
  %v96 = vadd.f32 %v48, %v80
  %v97 = vadd.f32 %v49, %v81
  %v98 = vadd.f32 %v50, %v82
  %v99 = vadd.f32 %v51, %v83
  %v100 = vadd.f32 %v52, %v84
  %v101 = vpack.c.bf16 %v86, %v85
  %v102 = vpack.c.bf16 %v88, %v87
  %v103 = vpack.c.bf16 %v90, %v89
  %v104 = vpack.c.bf16 %v92, %v91
  %v105 = vpack.c.bf16 %v94, %v93
  %v106 = vpack.c.bf16 %v96, %v95
  %v107 = vpack.c.bf16 %v98, %v97
  %v108 = vpack.c.bf16 %v100, %v99
  %v109 = vld [vmem:[%s3] sm:$0xf]
  %v110 = vld [vmem:[%s3 + $0x4] sm:$0xf]
  %v111 = vld [vmem:[%s3 + $0x8] sm:$0xf]
  %v112 = vld [vmem:[%s3 + $0xc] sm:$0xf]
  %v113 = vld [vmem:[%s3 + $0x10] sm:$0xf]
  %v114 = vld [vmem:[%s3 + $0x14] sm:$0xf]
  %v115 = vld [vmem:[%s3 + $0x18] sm:$0xf]
  %v116 = vld [vmem:[%s3 + $0x1c] sm:$0xf]
  %v125 = vunpack.c.l.b16 %v109
  %v126 = vunpack.c.l.b16 %v110
  %v127 = vunpack.c.l.b16 %v111
  %v128 = vunpack.c.l.b16 %v112
  %v129 = vunpack.c.l.b16 %v113
  %v130 = vunpack.c.l.b16 %v114
  %v131 = vunpack.c.l.b16 %v115
  %v132 = vunpack.c.l.b16 %v116
  %v133 = vpack.c.b16 %v126, %v125
  %v134 = vpack.c.b16 %v128, %v127
  %v135 = vpack.c.b16 %v130, %v129
  %v136 = vpack.c.b16 %v132, %v131
  %vm141 = vcmask 523264
  %v143 = vsel %vm141, %v101, 0
  %v146 = vsel %vm141, %v102, 0
  %v149 = vsel %vm141, %v103, 0
  %v152 = vsel %vm141, %v104, 0
  %v155 = vsel %vm141, %v105, 0
  %v158 = vsel %vm141, %v106, 0
  %v161 = vsel %vm141, %v107, 0
  %v164 = vsel %vm141, %v108, 0
  %166 = vmatprep.subr.bf16.mxu0 0
  %167 = vmatpush1.bf16.msra.mxu0 %v133
  %168 = vmatprep.subr.bf16.mxu0 0
  %169 = vmatpush1.bf16.msra.mxu0 %v134
  %170 = vmatprep.subr.bf16.mxu0 0
  %171 = vmatpush1.bf16.msra.mxu0 %v135
  %172 = vmatprep.subr.bf16.mxu0 0
  %173 = vmatpush1.bf16.msra.mxu0 %v136
  %174 = vmatprep.subr.bf16.mxu0 0
  %175 = vmatpush1.bf16.msra.mxu0 0
  %176 = vmatprep.subr.bf16.mxu0 0
  %177 = vmatpush1.bf16.msra.mxu0 0
  %178 = vmatprep.subr.bf16.mxu0 0
  %179 = vmatpush1.bf16.msra.mxu0 0
  %180 = vmatprep.subr.bf16.mxu0 0
  %181 = vmatpush1.bf16.msra.mxu0 0
  %182 = vmatprep.subr.bf16.mxu0 0
  %183 = vmatpush1.bf16.msra.mxu0 0
  %184 = vmatprep.subr.bf16.mxu0 0
  %185 = vmatpush1.bf16.msra.mxu0 0
  %186 = vmatprep.subr.bf16.mxu0 0
  %187 = vmatpush1.bf16.msra.mxu0 0
  %188 = vmatprep.subr.bf16.mxu0 0
  %189 = vmatpush1.bf16.msra.mxu0 0
  %190 = vmatprep.subr.bf16.mxu0 0
  %191 = vmatpush1.bf16.msra.mxu0 0
  %192 = vmatprep.subr.bf16.mxu0 0
  %193 = vmatpush1.bf16.msra.mxu0 0
  %194 = vmatprep.subr.bf16.mxu0 0
  %195 = vmatpush1.bf16.msra.mxu0 0
  %196 = vmatprep.subr.bf16.mxu0 0
  %197 = vmatpush1.bf16.msra.mxu0 0
  %198 = vmatprep.mubr.bf16.mxu0 0
  %199 = vmatmul.mubr.bf16.gmra.mrb[0].mxu0 %v143
  %v200 = vpop.f32.mrb[0].mxu0
  %v201 = vadd.f32 0.0, %v200
  %v202 = vpop.f32.mrb[0].mxu0
  %v203 = vpop.f32.mrb[0].mxu0
  %v204 = vadd.f32 0.0, %v203
  %v205 = vpop.f32.mrb[0].mxu0
  %206 = vmatprep.mubr.bf16.mxu0 0
  %207 = vmatmul.mubr.bf16.gmra.mrb[0].mxu0 %v146
  %v208 = vpop.f32.mrb[0].mxu0
  %v209 = vadd.f32 0.0, %v208
  %v210 = vpop.f32.mrb[0].mxu0
  %v211 = vpop.f32.mrb[0].mxu0
  %v212 = vadd.f32 0.0, %v211
  %v213 = vpop.f32.mrb[0].mxu0
  %214 = vmatprep.mubr.bf16.mxu0 0
  %215 = vmatmul.mubr.bf16.gmra.mrb[0].mxu0 %v149
  %v216 = vpop.f32.mrb[0].mxu0
  %v217 = vadd.f32 0.0, %v216
  %v218 = vpop.f32.mrb[0].mxu0
  %v219 = vpop.f32.mrb[0].mxu0
  %v220 = vadd.f32 0.0, %v219
  %v221 = vpop.f32.mrb[0].mxu0
  %222 = vmatprep.mubr.bf16.mxu0 0
  %223 = vmatmul.mubr.bf16.gmra.mrb[0].mxu0 %v152
  %v224 = vpop.f32.mrb[0].mxu0
  %v225 = vadd.f32 0.0, %v224
  %v226 = vpop.f32.mrb[0].mxu0
  %v227 = vpop.f32.mrb[0].mxu0
  %v228 = vadd.f32 0.0, %v227
  %v229 = vpop.f32.mrb[0].mxu0
  %230 = vmatprep.mubr.bf16.mxu0 0
  %231 = vmatmul.mubr.bf16.gmra.mrb[0].mxu0 %v155
  %v232 = vpop.f32.mrb[0].mxu0
  %v233 = vadd.f32 0.0, %v232
  %v234 = vpop.f32.mrb[0].mxu0
  %v235 = vpop.f32.mrb[0].mxu0
  %v236 = vadd.f32 0.0, %v235
  %v237 = vpop.f32.mrb[0].mxu0
  %238 = vmatprep.mubr.bf16.mxu0 0
  %239 = vmatmul.mubr.bf16.gmra.mrb[0].mxu0 %v158
  %v240 = vpop.f32.mrb[0].mxu0
  %v241 = vadd.f32 0.0, %v240
  %v242 = vpop.f32.mrb[0].mxu0
  %v243 = vpop.f32.mrb[0].mxu0
  %v244 = vadd.f32 0.0, %v243
  %v245 = vpop.f32.mrb[0].mxu0
  %246 = vmatprep.mubr.bf16.mxu0 0
  %247 = vmatmul.mubr.bf16.gmra.mrb[0].mxu0 %v161
  %v248 = vpop.f32.mrb[0].mxu0
  %v249 = vadd.f32 0.0, %v248
  %v250 = vpop.f32.mrb[0].mxu0
  %v251 = vpop.f32.mrb[0].mxu0
  %v252 = vadd.f32 0.0, %v251
  %v253 = vpop.f32.mrb[0].mxu0
  %254 = vmatprep.mubr.bf16.mxu0 0
  %255 = vmatmul.mubr.bf16.gmra.mrb[0].mxu0 %v164
  %v256 = vpop.f32.mrb[0].mxu0
  %v257 = vadd.f32 0.0, %v256
  %v258 = vpop.f32.mrb[0].mxu0
  %v259 = vpop.f32.mrb[0].mxu0
  %v260 = vadd.f32 0.0, %v259
  %v261 = vpop.f32.mrb[0].mxu0
  %262 = vdwg.mxu0
  %v263 = vld [vmem:[%s2] sm:$0xff]
  %v264 = vld [vmem:[%s2 + $0x8] sm:$0xff]
  %v265 = vld [vmem:[%s2 + $0x10] sm:$0xff]
  %v266 = vld [vmem:[%s2 + $0x18] sm:$0xff]
  %v267 = vld [vmem:[%s2 + $0x20] sm:$0xff]
  %v268 = vld [vmem:[%s2 + $0x28] sm:$0xff]
  %v269 = vld [vmem:[%s2 + $0x30] sm:$0xff]
  %v270 = vld [vmem:[%s2 + $0x38] sm:$0xff]
  %v271 = vld [vmem:[%s2 + $0x40] sm:$0xff]
  %v272 = vld [vmem:[%s2 + $0x48] sm:$0xff]
  %v273 = vld [vmem:[%s2 + $0x50] sm:$0xff]
  %v274 = vld [vmem:[%s2 + $0x58] sm:$0xff]
  %v275 = vld [vmem:[%s2 + $0x60] sm:$0xff]
  %v276 = vld [vmem:[%s2 + $0x68] sm:$0xff]
  %v277 = vld [vmem:[%s2 + $0x70] sm:$0xff]
  %v278 = vld [vmem:[%s2 + $0x78] sm:$0xff]
  %v279 = vadd.f32 %v263, %v201
  %v280 = vadd.f32 %v264, %v204
  %v281 = vadd.f32 %v265, %v209
  %v282 = vadd.f32 %v266, %v212
  %v283 = vadd.f32 %v267, %v217
  %v284 = vadd.f32 %v268, %v220
  %v285 = vadd.f32 %v269, %v225
  %v286 = vadd.f32 %v270, %v228
  %v287 = vadd.f32 %v271, %v233
  %v288 = vadd.f32 %v272, %v236
  %v289 = vadd.f32 %v273, %v241
  %v290 = vadd.f32 %v274, %v244
  %v291 = vadd.f32 %v275, %v249
  %v292 = vadd.f32 %v276, %v252
  %v293 = vadd.f32 %v277, %v257
  %v294 = vadd.f32 %v278, %v260
  %v295 = vld [vmem:[%s4] sm:$0x1]
  %v297 = vlaneseq
  %v298 = vshrl.u32 %v297, 7
  %v299 = vsub.s32 0, %v298
  %v300 = vrot.slane %v295, %v299
  %v302 = vadd.f32 %v279, %v300
  %v303 = vadd.f32 %v280, %v300
  %v304 = vadd.f32 %v281, %v300
  %v305 = vadd.f32 %v282, %v300
  %v306 = vadd.f32 %v283, %v300
  %v307 = vadd.f32 %v284, %v300
  %v308 = vadd.f32 %v285, %v300
  %v309 = vadd.f32 %v286, %v300
  %v310 = vadd.f32 %v287, %v300
  %v311 = vadd.f32 %v288, %v300
  %v312 = vadd.f32 %v289, %v300
  %v313 = vadd.f32 %v290, %v300
  %v314 = vadd.f32 %v291, %v300
  %v315 = vadd.f32 %v292, %v300
  %v316 = vadd.f32 %v293, %v300
  %v317 = vadd.f32 %v294, %v300
  %318 = vst.msk [vmem:[%s5] sm:$0xff] %vm141, %v302
  %319 = vst.msk [vmem:[%s5 + $0x8] sm:$0xff] %vm141, %v303
  %320 = vst.msk [vmem:[%s5 + $0x10] sm:$0xff] %vm141, %v304
  %321 = vst.msk [vmem:[%s5 + $0x18] sm:$0xff] %vm141, %v305
  %322 = vst.msk [vmem:[%s5 + $0x20] sm:$0xff] %vm141, %v306
  %323 = vst.msk [vmem:[%s5 + $0x28] sm:$0xff] %vm141, %v307
  %324 = vst.msk [vmem:[%s5 + $0x30] sm:$0xff] %vm141, %v308
  %325 = vst.msk [vmem:[%s5 + $0x38] sm:$0xff] %vm141, %v309
  %326 = vst.msk [vmem:[%s5 + $0x40] sm:$0xff] %vm141, %v310
  %327 = vst.msk [vmem:[%s5 + $0x48] sm:$0xff] %vm141, %v311
  %328 = vst.msk [vmem:[%s5 + $0x50] sm:$0xff] %vm141, %v312
  %329 = vst.msk [vmem:[%s5 + $0x58] sm:$0xff] %vm141, %v313
  %330 = vst.msk [vmem:[%s5 + $0x60] sm:$0xff] %vm141, %v314
  %331 = vst.msk [vmem:[%s5 + $0x68] sm:$0xff] %vm141, %v315
  %332 = vst.msk [vmem:[%s5 + $0x70] sm:$0xff] %vm141, %v316
  %333 = vst.msk [vmem:[%s5 + $0x78] sm:$0xff] %vm141, %v317
  // Predicated region
  $region22: #{block_forward.10} parent=0 // pred_check
    _
  $region23: #{block_forward.10} parent=0 // pred_check_branch
    %335 = sbr.rel (0) target = $region25
  $region24: #{block_forward.10} parent=0 // pred_region
    _
  $region25: #{block_forward.10} parent=0 // pred_fallthru
    _
  // Predicated region
  $region26: #{block_forward.10} parent=0 // pred_check
    _
  $region27: #{block_forward.10} parent=0 // pred_check_branch
    %337 = sbr.rel (0) target = $region29
  $region28: #{block_forward.10} parent=0 // pred_region
    _
  $region29: #{block_forward.10} parent=0 // pred_fallthru
    _

// kernel: block_forward.9
$region0: #{block_forward.9}
  #allocation0 [shape = 'u32[]', space=smem, size = 0x4, offset = 0x4, fixed_abs, tag = 'smem constant byte address 0x4 - core index']
  #allocation1 [shape = 'u32[144,128]{1,0:T(1,128)}', space=vmem, size = 0x12000, scoped, tag = 'internal scratch']
  #allocation2 [shape = 'f32[10,10,64]{2,1,0:T(8,128)}', space=vmem, size = 0x14000, scoped, tag = 'scratch operand']
  %s0 = inlined_call_operand.vmem [shape: bf16[2,8,8,64], index: 0, kind: input, shape index: {}]
  %s1 = inlined_call_operand.vmem [shape: f32[3,3,64], index: 1, kind: input, shape index: {}]
  %s2 = inlined_call_operand.vmem [shape: f32[1,64], index: 2, kind: input, shape index: {}]
  %s3 = inlined_call_operand.vmem [shape: bf16[2,8,8,64], index: 3, kind: output, shape index: {}]
  %s4 = sld [smem:[#allocation0]]
  $region49: #{block_forward.9} parent=0
    _
  %s6 = ssub.s32 1, %s4
  %s7 = scalar_select 0, %s6, %s4
  loop: start=0, step=1, limit=4
  $region2: #{block_forward.9} parent=0 // loop_pre_header
    _
  $region3: #{block_forward.9} parent=0 // loop_header
    %s9 = sphi 0, %s13
    %p10 = scmp.ge.s32.totalorder %s9, 4
    %s19 = sphi 0, %s21
    %s22 = sphi 0, %s19
    %s23 = sphi 0, %s22
    %s39 = sphi 0, %s23
    %s43 = sphi 0, %s43
    %s45 = sphi 0, %s43
    %s46 = sphi 0, %s45
    %s60 = sphi 0, %s46
    %s64 = sphi 0, %s64
    %s66 = sphi 0, %s64
    %s67 = sphi 0, %s66
    %s81 = sphi 0, %s67
    %s87 = sphi 0, %s89
    %s90 = sphi 0, %s87
    %s91 = sphi 0, %s90
    %s107 = sphi 0, %s91
  $region4: #{block_forward.9} parent=0 // loop_header_branch
    %12 = sbr.rel (%p10) target = $region8
  $region5: #{block_forward.9} parent=0 // loop_body
    %s14 = ssub.s32 %s9, 1
    %s15 = ssub.s32 %s9, 2
    %s16 = sadd.s32 %s9, 1
    %s17 = ssub.s32 %s9, %s16
    %p18 = scmp.eq.s32.totalorder %s17, 0
    %s20 = sadd.s32 %s19, 1
    %s21 = scalar_select %p18, %s19, %s20
    %p24 = pneg %p18
    %p25 = scmp.eq.s32.totalorder %s9, 1
    %p26 = por %p24, %p25
    %p27 = scmp.ne.s32.totalorder %s19, %s22
    %p28 = scmp.eq.s32.totalorder %s9, 0
    %p29 = por %p27, %p28
    %p30 = scmp.ne.s32.totalorder %s19, %s22
    %p31 = scmp.eq.s32.totalorder %s14, 1
    %p32 = por %p30, %p31
    %p33 = scmp.ne.s32.totalorder %s22, %s23
    %p34 = scmp.eq.s32.totalorder %s14, 0
    %p35 = por %p33, %p34
    %p36 = scmp.ne.s32.totalorder %s22, %s23
    %p37 = scmp.eq.s32.totalorder %s15, 1
    %p38 = por %p36, %p37
    %p40 = scmp.ne.s32.totalorder %s23, %s39
    %p41 = scmp.eq.s32.totalorder %s15, 0
    %p42 = por %p40, %p41
    %s44 = sadd.s32 %s43, 1
    %p47 = scmp.eq.s32.totalorder %s9, 1
    %p48 = scmp.ne.s32.totalorder %s43, %s45
    %p49 = scmp.eq.s32.totalorder %s9, 0
    %p50 = por %p48, %p49
    %p51 = scmp.ne.s32.totalorder %s43, %s45
    %p52 = scmp.eq.s32.totalorder %s14, 1
    %p53 = por %p51, %p52
    %p54 = scmp.ne.s32.totalorder %s45, %s46
    %p55 = scmp.eq.s32.totalorder %s14, 0
    %p56 = por %p54, %p55
    %p57 = scmp.ne.s32.totalorder %s45, %s46
    %p58 = scmp.eq.s32.totalorder %s15, 1
    %p59 = por %p57, %p58
    %p61 = scmp.ne.s32.totalorder %s46, %s60
    %p62 = scmp.eq.s32.totalorder %s15, 0
    %p63 = por %p61, %p62
    %s65 = sadd.s32 %s64, 1
    %p68 = scmp.eq.s32.totalorder %s9, 1
    %p69 = scmp.ne.s32.totalorder %s64, %s66
    %p70 = scmp.eq.s32.totalorder %s9, 0
    %p71 = por %p69, %p70
    %p72 = scmp.ne.s32.totalorder %s64, %s66
    %p73 = scmp.eq.s32.totalorder %s14, 1
    %p74 = por %p72, %p73
    %p75 = scmp.ne.s32.totalorder %s66, %s67
    %p76 = scmp.eq.s32.totalorder %s14, 0
    %p77 = por %p75, %p76
    %p78 = scmp.ne.s32.totalorder %s66, %s67
    %p79 = scmp.eq.s32.totalorder %s15, 1
    %p80 = por %p78, %p79
    %p82 = scmp.ne.s32.totalorder %s67, %s81
    %p83 = scmp.eq.s32.totalorder %s15, 0
    %p84 = por %p82, %p83
    %s85 = ssub.s32 %s9, %s16
    %p86 = scmp.eq.s32.totalorder %s85, 0
    %s88 = sadd.s32 %s87, 1
    %s89 = scalar_select %p86, %s87, %s88
    %p92 = pneg %p86
    %p93 = scmp.eq.s32.totalorder %s9, 1
    %p94 = por %p92, %p93
    %p95 = scmp.ne.s32.totalorder %s87, %s90
    %p96 = scmp.eq.s32.totalorder %s9, 0
    %p97 = por %p95, %p96
    %p98 = scmp.ne.s32.totalorder %s87, %s90
    %p99 = scmp.eq.s32.totalorder %s14, 1
    %p100 = por %p98, %p99
    %p101 = scmp.ne.s32.totalorder %s90, %s91
    %p102 = scmp.eq.s32.totalorder %s14, 0
    %p103 = por %p101, %p102
    %p104 = scmp.ne.s32.totalorder %s90, %s91
    %p105 = scmp.eq.s32.totalorder %s15, 1
    %p106 = por %p104, %p105
    %p108 = scmp.ne.s32.totalorder %s91, %s107
    %p109 = scmp.eq.s32.totalorder %s15, 0
    %p110 = por %p108, %p109
    %p111 = scmp.le.s32.totalorder 1, %s9
    %p112 = scmp.lt.s32.totalorder %s9, 3
    %p113 = pnand %p111, %p112
    %p114 = pneg %p113
    // Predicated region
    $region9: #{block_forward.9} parent=5 // pred_check
      _
    $region10: #{block_forward.9} parent=5 // pred_check_branch
      %116 = sbr.rel (%p113) target = $region12
    $region11: #{block_forward.9} parent=5 // pred_region
      %s117 = ssub.s32 %s9, 1
      // Predicated region
      $region13: #{block_forward.9} parent=11 // pred_check
        %p118 = pneg %p56
      $region14: #{block_forward.9} parent=11 // pred_check_branch
        %120 = sbr.rel (%p118) target = $region16
      $region15: #{block_forward.9} parent=11 // pred_region
        _
      $region16: #{block_forward.9} parent=11 // pred_fallthru
        _
      // Predicated region
      $region17: #{block_forward.9} parent=11 // pred_check
        %p121 = pneg %p77
      $region18: #{block_forward.9} parent=11 // pred_check_branch
        %123 = sbr.rel (%p121) target = $region20
      $region19: #{block_forward.9} parent=11 // pred_region
        _
      $region20: #{block_forward.9} parent=11 // pred_fallthru
        _
    $region12: #{block_forward.9} parent=5 // pred_fallthru
      _
    %p124 = scmp.lt.s32.totalorder %s9, 2
    // Predicated region
    $region21: #{block_forward.9} parent=5 // pred_check
      %p125 = pneg %p124
    $region22: #{block_forward.9} parent=5 // pred_check_branch
      %127 = sbr.rel (%p125) target = $region24
    $region23: #{block_forward.9} parent=5 // pred_region
      // Predicated region
      $region25: #{block_forward.9} parent=23 // pred_check
        %p128 = pneg %p29
      $region26: #{block_forward.9} parent=23 // pred_check_branch
        %130 = sbr.rel (%p128) target = $region28
      $region27: #{block_forward.9} parent=23 // pred_region
        %p131 = scmp.lt.s32.totalorder %s9, 1
        %s132 = scalar_select %p131, %s9, 1
        %s133 = smul.addr %s132, 8
        %s134 = smul.addr %s133, 4
        %s135 = scalar_lea.vmem %s0, %s134
      $region28: #{block_forward.9} parent=23 // pred_fallthru
        _
    $region24: #{block_forward.9} parent=5 // pred_fallthru
      _
    %p136 = scmp.le.s32.totalorder 1, %s9
    %p137 = scmp.lt.s32.totalorder %s9, 3
    %p138 = pnand %p136, %p137
    %p139 = pneg %p138
    // Predicated region
    $region29: #{block_forward.9} parent=5 // pred_check
      _
    $region30: #{block_forward.9} parent=5 // pred_check_branch
      %141 = sbr.rel (%p138) target = $region32
    $region31: #{block_forward.9} parent=5 // pred_region
      %s142 = ssub.s32 %s9, 1
      %p143 = scmp.lt.s32.totalorder %s14, 1
      %s144 = scalar_select %p143, %s14, 1
      %s145 = smul.addr %s144, 8
      %s146 = smul.addr %s145, 4
      %s147 = scalar_lea.vmem %s0, %s146
      %p148 = pneg %p35
      %p149 = pneg %p32
      %p150 = pneg %p56
      %p151 = pneg %p53
      %p152 = pneg %p77
      %p153 = pneg %p74
      %p154 = pneg %p103
      %p155 = pneg %p100
      %p156 = scmp.lt.s32.totalorder %s14, 1
      %s157 = scalar_select %p156, %s14, 1
      %s158 = smul.addr %s157, 8
      %s159 = smul.addr %s158, 4
      %s160 = scalar_lea.vmem %s3, %s159
      %p161 = scmp.lt.s32.totalorder %s14, 1
      %s162 = scalar_select %p161, %s14, 1
      %s163 = smul.addr %s162, 8
      %s164 = smul.addr %s163, 4
      %s165 = scalar_lea.vmem %s0, %s164
      %p166 = scmp.lt.s32.totalorder %s14, 1
      %s167 = scalar_select %p166, %s14, 1
      %s168 = smul.addr %s167, 8
      %s169 = smul.addr %s168, 4
      %s170 = scalar_lea.vmem %s3, %s169
      %v171 = vld [vmem:[%s165] sm:$0xf]
      %v172 = vld [vmem:[%s165 + $0x4] sm:$0xf]
      %v173 = vld [vmem:[%s165 + $0x8] sm:$0xf]
      %v174 = vld [vmem:[%s165 + $0xc] sm:$0xf]
      %v175 = vld [vmem:[%s165 + $0x10] sm:$0xf]
      %v176 = vld [vmem:[%s165 + $0x14] sm:$0xf]
      %v177 = vld [vmem:[%s165 + $0x18] sm:$0xf]
      %v178 = vld [vmem:[%s165 + $0x1c] sm:$0xf]
      %v179 = vunpack.c.l.bf16 %v171
      %v180 = vunpack.c.l.bf16 %v172
      %v181 = vunpack.c.l.bf16 %v173
      %v182 = vunpack.c.l.bf16 %v174
      %v183 = vunpack.c.l.bf16 %v175
      %v184 = vunpack.c.l.bf16 %v176
      %v185 = vunpack.c.l.bf16 %v177
      %v186 = vunpack.c.l.bf16 %v178
      %p187 = scmp.eq.s32.totalorder %s14, 0
      // Predicated region
      $region33: #{block_forward.9} parent=31 // pred_check
        %p188 = pneg %p187
      $region34: #{block_forward.9} parent=31 // pred_check_branch
        %190 = sbr.rel (%p188) target = $region36
      $region35: #{block_forward.9} parent=31 // pred_region
        %vm191 = vcmask 523264
        %192 = vst.msk [vmem:[#allocation2] sm:$0xff] %vm191, 0.0
        %vm193 = vcmask 517120
        %194 = vst.msk [vmem:[#allocation2 + $0x8] sm:$0x3] %vm193, 0.0
        %s195 = scalar_lea.vmem [#allocation2], 144
        %196 = vst.msk [vmem:[%s195] sm:$0xff] %vm191, 0.0
        %197 = vst.msk [vmem:[%s195 + $0x8] sm:$0x3] %vm193, 0.0
        %s198 = scalar_lea.vmem [#allocation2], 16
        %vm199 = vcmask 516096
        %200 = vst.msk [vmem:[%s198] sm:$0x1] %vm199, 0.0
        %201 = vst.msk [vmem:[%s198 + $0x10] sm:$0x1] %vm199, 0.0
        %202 = vst.msk [vmem:[%s198 + $0x20] sm:$0x1] %vm199, 0.0
        %203 = vst.msk [vmem:[%s198 + $0x30] sm:$0x1] %vm199, 0.0
        %204 = vst.msk [vmem:[%s198 + $0x40] sm:$0x1] %vm199, 0.0
        %205 = vst.msk [vmem:[%s198 + $0x50] sm:$0x1] %vm199, 0.0
        %206 = vst.msk [vmem:[%s198 + $0x60] sm:$0x1] %vm199, 0.0
        %207 = vst.msk [vmem:[%s198 + $0x70] sm:$0x1] %vm199, 0.0
        %208 = vst.msk [vmem:[%s198 + $0x9] sm:$0x1] %vm199, 0.0
        %209 = vst.msk [vmem:[%s198 + $0x19] sm:$0x1] %vm199, 0.0
        %210 = vst.msk [vmem:[%s198 + $0x29] sm:$0x1] %vm199, 0.0
        %211 = vst.msk [vmem:[%s198 + $0x39] sm:$0x1] %vm199, 0.0
        %212 = vst.msk [vmem:[%s198 + $0x49] sm:$0x1] %vm199, 0.0
        %213 = vst.msk [vmem:[%s198 + $0x59] sm:$0x1] %vm199, 0.0
        %214 = vst.msk [vmem:[%s198 + $0x69] sm:$0x1] %vm199, 0.0
        %215 = vst.msk [vmem:[%s198 + $0x79] sm:$0x1] %vm199, 0.0
      $region36: #{block_forward.9} parent=31 // pred_fallthru
        _
      %s216 = scalar_lea.vmem [#allocation2], 16
      %vm217 = vcmask 523264
      %218 = vst.msk [vmem:[%s216 + $0x1] sm:$0xff] %vm217, %v179
      %219 = vst.msk [vmem:[%s216 + $0x11] sm:$0xff] %vm217, %v180
      %220 = vst.msk [vmem:[%s216 + $0x21] sm:$0xff] %vm217, %v181
      %221 = vst.msk [vmem:[%s216 + $0x31] sm:$0xff] %vm217, %v182
      %222 = vst.msk [vmem:[%s216 + $0x41] sm:$0xff] %vm217, %v183
      %223 = vst.msk [vmem:[%s216 + $0x51] sm:$0xff] %vm217, %v184
      %224 = vst.msk [vmem:[%s216 + $0x61] sm:$0xff] %vm217, %v185
      %225 = vst.msk [vmem:[%s216 + $0x71] sm:$0xff] %vm217, %v186
      %v226 = vld [vmem:[#allocation2] sm:$0xff]
      %v227 = vld [vmem:[#allocation2 + $0x8] sm:$0x3]
      %v228 = vld [vmem:[#allocation2 + $0x10] sm:$0xff]
      %v229 = vld [vmem:[#allocation2 + $0x18] sm:$0x3]
      %v230 = vld [vmem:[#allocation2 + $0x20] sm:$0xff]
      %v231 = vld [vmem:[#allocation2 + $0x28] sm:$0x3]
      %v232 = vld [vmem:[#allocation2 + $0x30] sm:$0xff]
      %v233 = vld [vmem:[#allocation2 + $0x38] sm:$0x3]
      %v234 = vld [vmem:[#allocation2 + $0x40] sm:$0xff]
      %v235 = vld [vmem:[#allocation2 + $0x48] sm:$0x3]
      %v236 = vld [vmem:[#allocation2 + $0x50] sm:$0xff]
      %v237 = vld [vmem:[#allocation2 + $0x58] sm:$0x3]
      %v238 = vld [vmem:[#allocation2 + $0x60] sm:$0xff]
      %v239 = vld [vmem:[#allocation2 + $0x68] sm:$0x3]
      %v240 = vld [vmem:[#allocation2 + $0x70] sm:$0xff]
      %v241 = vld [vmem:[#allocation2 + $0x78] sm:$0x3]
      %v242 = vld [vmem:[#allocation2 + $0x80] sm:$0xff]
      %v243 = vld [vmem:[#allocation2 + $0x88] sm:$0x3]
      %v244 = vld [vmem:[#allocation2 + $0x90] sm:$0xff]
      %v245 = vld [vmem:[#allocation2 + $0x98] sm:$0x3]
      %v246 = vld [vmem:[%s1] sm:$0x7]
      %v247 = vld [vmem:[%s1 + $0x4] sm:$0x7]
      %v248 = vld [vmem:[%s1 + $0x8] sm:$0x7]
      %v249 = vlaneseq
      %v250 = vshrl.u32 %v249, 7
      %v251 = vsub.s32 0, %v250
      %v252 = vrot.slane %v246, %v251
      %v253 = vmul.f32 %v226, %v252
      %v254 = vmul.f32 %v228, %v252
      %v255 = vmul.f32 %v230, %v252
      %v256 = vmul.f32 %v232, %v252
      %v257 = vmul.f32 %v234, %v252
      %v258 = vmul.f32 %v236, %v252
      %v259 = vmul.f32 %v238, %v252
      %v260 = vmul.f32 %v240, %v252
      %v261 = vadd.f32 %v253, 0.0
      %v262 = vadd.f32 %v254, 0.0
      %v263 = vadd.f32 %v255, 0.0
      %v264 = vadd.f32 %v256, 0.0
      %v265 = vadd.f32 %v257, 0.0
      %v266 = vadd.f32 %v258, 0.0
      %v267 = vadd.f32 %v259, 0.0
      %v268 = vadd.f32 %v260, 0.0
      %v269 = vlaneseq
      %v270 = vshrl.u32 %v269, 7
      %v271 = vsub.s32 1, %v270
      %v272 = vrot.slane %v246, %v271
      %v273 = vmul.f32 %v226, %v272
      %v274 = vmul.f32 %v227, %v272
      %v275 = vmul.f32 %v228, %v272
      %v276 = vmul.f32 %v229, %v272
      %v277 = vmul.f32 %v230, %v272
      %v278 = vmul.f32 %v231, %v272
      %v279 = vmul.f32 %v232, %v272
      %v280 = vmul.f32 %v233, %v272
      %v281 = vmul.f32 %v234, %v272
      %v282 = vmul.f32 %v235, %v272
      %v283 = vmul.f32 %v236, %v272
      %v284 = vmul.f32 %v237, %v272
      %v285 = vmul.f32 %v238, %v272
      %v286 = vmul.f32 %v239, %v272
      %v287 = vmul.f32 %v240, %v272
      %v288 = vmul.f32 %v241, %v272
      %vm305 = vcmask 1046528
      %v306 = vrot.slane %v273, 1
      %v307 = vrot.slane %v274, 1
      %v308 = vsel %vm305, %v306, %v307
      %v309 = vrot.slane %v275, 1
      %v310 = vrot.slane %v276, 1
      %v311 = vsel %vm305, %v309, %v310
      %v312 = vrot.slane %v277, 1
      %v313 = vrot.slane %v278, 1
      %v314 = vsel %vm305, %v312, %v313
      %v315 = vrot.slane %v279, 1
      %v316 = vrot.slane %v280, 1
      %v317 = vsel %vm305, %v315, %v316
      %v318 = vrot.slane %v281, 1
      %v319 = vrot.slane %v282, 1
      %v320 = vsel %vm305, %v318, %v319
      %v321 = vrot.slane %v283, 1
      %v322 = vrot.slane %v284, 1
      %v323 = vsel %vm305, %v321, %v322
      %v324 = vrot.slane %v285, 1
      %v325 = vrot.slane %v286, 1
      %v326 = vsel %vm305, %v324, %v325
      %v327 = vrot.slane %v287, 1
      %v328 = vrot.slane %v288, 1
      %v329 = vsel %vm305, %v327, %v328
      %v338 = vadd.f32 %v261, %v308
      %v339 = vadd.f32 %v262, %v311
      %v340 = vadd.f32 %v263, %v314
      %v341 = vadd.f32 %v264, %v317
      %v342 = vadd.f32 %v265, %v320
      %v343 = vadd.f32 %v266, %v323
      %v344 = vadd.f32 %v267, %v326
      %v345 = vadd.f32 %v268, %v329
      %v346 = vlaneseq
      %v347 = vshrl.u32 %v346, 7
      %v348 = vsub.s32 2, %v347
      %v349 = vrot.slane %v246, %v348
      %v350 = vmul.f32 %v226, %v349
      %v351 = vmul.f32 %v227, %v349
      %v352 = vmul.f32 %v228, %v349
      %v353 = vmul.f32 %v229, %v349
      %v354 = vmul.f32 %v230, %v349
      %v355 = vmul.f32 %v231, %v349
      %v356 = vmul.f32 %v232, %v349
      %v357 = vmul.f32 %v233, %v349
      %v358 = vmul.f32 %v234, %v349
      %v359 = vmul.f32 %v235, %v349
      %v360 = vmul.f32 %v236, %v349
      %v361 = vmul.f32 %v237, %v349
      %v362 = vmul.f32 %v238, %v349
      %v363 = vmul.f32 %v239, %v349
      %v364 = vmul.f32 %v240, %v349
      %v365 = vmul.f32 %v241, %v349
      %vm382 = vcmask 1045504
      %v383 = vrot.slane %v350, 2
      %v384 = vrot.slane %v351, 2
      %v385 = vsel %vm382, %v383, %v384
      %v386 = vrot.slane %v352, 2
      %v387 = vrot.slane %v353, 2
      %v388 = vsel %vm382, %v386, %v387
      %v389 = vrot.slane %v354, 2
      %v390 = vrot.slane %v355, 2
      %v391 = vsel %vm382, %v389, %v390
      %v392 = vrot.slane %v356, 2
      %v393 = vrot.slane %v357, 2
      %v394 = vsel %vm382, %v392, %v393
      %v395 = vrot.slane %v358, 2
      %v396 = vrot.slane %v359, 2
      %v397 = vsel %vm382, %v395, %v396
      %v398 = vrot.slane %v360, 2
      %v399 = vrot.slane %v361, 2
      %v400 = vsel %vm382, %v398, %v399
      %v401 = vrot.slane %v362, 2
      %v402 = vrot.slane %v363, 2
      %v403 = vsel %vm382, %v401, %v402
      %v404 = vrot.slane %v364, 2
      %v405 = vrot.slane %v365, 2
      %v406 = vsel %vm382, %v404, %v405
      %v415 = vadd.f32 %v338, %v385
      %v416 = vadd.f32 %v339, %v388
      %v417 = vadd.f32 %v340, %v391
      %v418 = vadd.f32 %v341, %v394
      %v419 = vadd.f32 %v342, %v397
      %v420 = vadd.f32 %v343, %v400
      %v421 = vadd.f32 %v344, %v403
      %v422 = vadd.f32 %v345, %v406
      %v423 = vlaneseq
      %v424 = vshrl.u32 %v423, 7
      %v425 = vsub.s32 0, %v424
      %v426 = vrot.slane %v247, %v425
      %v427 = vmul.f32 %v228, %v426
      %v428 = vmul.f32 %v230, %v426
      %v429 = vmul.f32 %v232, %v426
      %v430 = vmul.f32 %v234, %v426
      %v431 = vmul.f32 %v236, %v426
      %v432 = vmul.f32 %v238, %v426
      %v433 = vmul.f32 %v240, %v426
      %v434 = vmul.f32 %v242, %v426
      %v435 = vadd.f32 %v415, %v427
      %v436 = vadd.f32 %v416, %v428
      %v437 = vadd.f32 %v417, %v429
      %v438 = vadd.f32 %v418, %v430
      %v439 = vadd.f32 %v419, %v431
      %v440 = vadd.f32 %v420, %v432
      %v441 = vadd.f32 %v421, %v433
      %v442 = vadd.f32 %v422, %v434
      %v443 = vlaneseq
      %v444 = vshrl.u32 %v443, 7
      %v445 = vsub.s32 1, %v444
      %v446 = vrot.slane %v247, %v445
      %v447 = vmul.f32 %v228, %v446
      %v448 = vmul.f32 %v229, %v446
      %v449 = vmul.f32 %v230, %v446
      %v450 = vmul.f32 %v231, %v446
      %v451 = vmul.f32 %v232, %v446
      %v452 = vmul.f32 %v233, %v446
      %v453 = vmul.f32 %v234, %v446
      %v454 = vmul.f32 %v235, %v446
      %v455 = vmul.f32 %v236, %v446
      %v456 = vmul.f32 %v237, %v446
      %v457 = vmul.f32 %v238, %v446
      %v458 = vmul.f32 %v239, %v446
      %v459 = vmul.f32 %v240, %v446
      %v460 = vmul.f32 %v241, %v446
      %v461 = vmul.f32 %v242, %v446
      %v462 = vmul.f32 %v243, %v446
      %v479 = vrot.slane %v447, 1
      %v480 = vrot.slane %v448, 1
      %v481 = vsel %vm305, %v479, %v480
      %v482 = vrot.slane %v449, 1
      %v483 = vrot.slane %v450, 1
      %v484 = vsel %vm305, %v482, %v483
      %v485 = vrot.slane %v451, 1
      %v486 = vrot.slane %v452, 1
      %v487 = vsel %vm305, %v485, %v486
      %v488 = vrot.slane %v453, 1
      %v489 = vrot.slane %v454, 1
      %v490 = vsel %vm305, %v488, %v489
      %v491 = vrot.slane %v455, 1
      %v492 = vrot.slane %v456, 1
      %v493 = vsel %vm305, %v491, %v492
      %v494 = vrot.slane %v457, 1
      %v495 = vrot.slane %v458, 1
      %v496 = vsel %vm305, %v494, %v495
      %v497 = vrot.slane %v459, 1
      %v498 = vrot.slane %v460, 1
      %v499 = vsel %vm305, %v497, %v498
      %v500 = vrot.slane %v461, 1
      %v501 = vrot.slane %v462, 1
      %v502 = vsel %vm305, %v500, %v501
      %v511 = vadd.f32 %v435, %v481
      %v512 = vadd.f32 %v436, %v484
      %v513 = vadd.f32 %v437, %v487
      %v514 = vadd.f32 %v438, %v490
      %v515 = vadd.f32 %v439, %v493
      %v516 = vadd.f32 %v440, %v496
      %v517 = vadd.f32 %v441, %v499
      %v518 = vadd.f32 %v442, %v502
      %v519 = vlaneseq
      %v520 = vshrl.u32 %v519, 7
      %v521 = vsub.s32 2, %v520
      %v522 = vrot.slane %v247, %v521
      %v523 = vmul.f32 %v228, %v522
      %v524 = vmul.f32 %v229, %v522
      %v525 = vmul.f32 %v230, %v522
      %v526 = vmul.f32 %v231, %v522
      %v527 = vmul.f32 %v232, %v522
      %v528 = vmul.f32 %v233, %v522
      %v529 = vmul.f32 %v234, %v522
      %v530 = vmul.f32 %v235, %v522
      %v531 = vmul.f32 %v236, %v522
      %v532 = vmul.f32 %v237, %v522
      %v533 = vmul.f32 %v238, %v522
      %v534 = vmul.f32 %v239, %v522
      %v535 = vmul.f32 %v240, %v522
      %v536 = vmul.f32 %v241, %v522
      %v537 = vmul.f32 %v242, %v522
      %v538 = vmul.f32 %v243, %v522
      %v555 = vrot.slane %v523, 2
      %v556 = vrot.slane %v524, 2
      %v557 = vsel %vm382, %v555, %v556
      %v558 = vrot.slane %v525, 2
      %v559 = vrot.slane %v526, 2
      %v560 = vsel %vm382, %v558, %v559
      %v561 = vrot.slane %v527, 2
      %v562 = vrot.slane %v528, 2
      %v563 = vsel %vm382, %v561, %v562
      %v564 = vrot.slane %v529, 2
      %v565 = vrot.slane %v530, 2
      %v566 = vsel %vm382, %v564, %v565
      %v567 = vrot.slane %v531, 2
      %v568 = vrot.slane %v532, 2
      %v569 = vsel %vm382, %v567, %v568
      %v570 = vrot.slane %v533, 2
      %v571 = vrot.slane %v534, 2
      %v572 = vsel %vm382, %v570, %v571
      %v573 = vrot.slane %v535, 2
      %v574 = vrot.slane %v536, 2
      %v575 = vsel %vm382, %v573, %v574
      %v576 = vrot.slane %v537, 2
      %v577 = vrot.slane %v538, 2
      %v578 = vsel %vm382, %v576, %v577
      %v587 = vadd.f32 %v511, %v557
      %v588 = vadd.f32 %v512, %v560
      %v589 = vadd.f32 %v513, %v563
      %v590 = vadd.f32 %v514, %v566
      %v591 = vadd.f32 %v515, %v569
      %v592 = vadd.f32 %v516, %v572
      %v593 = vadd.f32 %v517, %v575
      %v594 = vadd.f32 %v518, %v578
      %v595 = vlaneseq
      %v596 = vshrl.u32 %v595, 7
      %v597 = vsub.s32 0, %v596
      %v598 = vrot.slane %v248, %v597
      %v599 = vmul.f32 %v230, %v598
      %v600 = vmul.f32 %v232, %v598
      %v601 = vmul.f32 %v234, %v598
      %v602 = vmul.f32 %v236, %v598
      %v603 = vmul.f32 %v238, %v598
      %v604 = vmul.f32 %v240, %v598
      %v605 = vmul.f32 %v242, %v598
      %v606 = vmul.f32 %v244, %v598
      %v607 = vadd.f32 %v587, %v599
      %v608 = vadd.f32 %v588, %v600
      %v609 = vadd.f32 %v589, %v601
      %v610 = vadd.f32 %v590, %v602
      %v611 = vadd.f32 %v591, %v603
      %v612 = vadd.f32 %v592, %v604
      %v613 = vadd.f32 %v593, %v605
      %v614 = vadd.f32 %v594, %v606
      %v615 = vlaneseq
      %v616 = vshrl.u32 %v615, 7
      %v617 = vsub.s32 1, %v616
      %v618 = vrot.slane %v248, %v617
      %v619 = vmul.f32 %v230, %v618
      %v620 = vmul.f32 %v231, %v618
      %v621 = vmul.f32 %v232, %v618
      %v622 = vmul.f32 %v233, %v618
      %v623 = vmul.f32 %v234, %v618
      %v624 = vmul.f32 %v235, %v618
      %v625 = vmul.f32 %v236, %v618
      %v626 = vmul.f32 %v237, %v618
      %v627 = vmul.f32 %v238, %v618
      %v628 = vmul.f32 %v239, %v618
      %v629 = vmul.f32 %v240, %v618
      %v630 = vmul.f32 %v241, %v618
      %v631 = vmul.f32 %v242, %v618
      %v632 = vmul.f32 %v243, %v618
      %v633 = vmul.f32 %v244, %v618
      %v634 = vmul.f32 %v245, %v618
      %v651 = vrot.slane %v619, 1
      %v652 = vrot.slane %v620, 1
      %v653 = vsel %vm305, %v651, %v652
      %v654 = vrot.slane %v621, 1
      %v655 = vrot.slane %v622, 1
      %v656 = vsel %vm305, %v654, %v655
      %v657 = vrot.slane %v623, 1
      %v658 = vrot.slane %v624, 1
      %v659 = vsel %vm305, %v657, %v658
      %v660 = vrot.slane %v625, 1
      %v661 = vrot.slane %v626, 1
      %v662 = vsel %vm305, %v660, %v661
      %v663 = vrot.slane %v627, 1
      %v664 = vrot.slane %v628, 1
      %v665 = vsel %vm305, %v663, %v664
      %v666 = vrot.slane %v629, 1
      %v667 = vrot.slane %v630, 1
      %v668 = vsel %vm305, %v666, %v667
      %v669 = vrot.slane %v631, 1
      %v670 = vrot.slane %v632, 1
      %v671 = vsel %vm305, %v669, %v670
      %v672 = vrot.slane %v633, 1
      %v673 = vrot.slane %v634, 1
      %v674 = vsel %vm305, %v672, %v673
      %v683 = vadd.f32 %v607, %v653
      %v684 = vadd.f32 %v608, %v656
      %v685 = vadd.f32 %v609, %v659
      %v686 = vadd.f32 %v610, %v662
      %v687 = vadd.f32 %v611, %v665
      %v688 = vadd.f32 %v612, %v668
      %v689 = vadd.f32 %v613, %v671
      %v690 = vadd.f32 %v614, %v674
      %v691 = vlaneseq
      %v692 = vshrl.u32 %v691, 7
      %v693 = vsub.s32 2, %v692
      %v694 = vrot.slane %v248, %v693
      %v695 = vmul.f32 %v230, %v694
      %v696 = vmul.f32 %v231, %v694
      %v697 = vmul.f32 %v232, %v694
      %v698 = vmul.f32 %v233, %v694
      %v699 = vmul.f32 %v234, %v694
      %v700 = vmul.f32 %v235, %v694
      %v701 = vmul.f32 %v236, %v694
      %v702 = vmul.f32 %v237, %v694
      %v703 = vmul.f32 %v238, %v694
      %v704 = vmul.f32 %v239, %v694
      %v705 = vmul.f32 %v240, %v694
      %v706 = vmul.f32 %v241, %v694
      %v707 = vmul.f32 %v242, %v694
      %v708 = vmul.f32 %v243, %v694
      %v709 = vmul.f32 %v244, %v694
      %v710 = vmul.f32 %v245, %v694
      %v727 = vrot.slane %v695, 2
      %v728 = vrot.slane %v696, 2
      %v729 = vsel %vm382, %v727, %v728
      %v730 = vrot.slane %v697, 2
      %v731 = vrot.slane %v698, 2
      %v732 = vsel %vm382, %v730, %v731
      %v733 = vrot.slane %v699, 2
      %v734 = vrot.slane %v700, 2
      %v735 = vsel %vm382, %v733, %v734
      %v736 = vrot.slane %v701, 2
      %v737 = vrot.slane %v702, 2
      %v738 = vsel %vm382, %v736, %v737
      %v739 = vrot.slane %v703, 2
      %v740 = vrot.slane %v704, 2
      %v741 = vsel %vm382, %v739, %v740
      %v742 = vrot.slane %v705, 2
      %v743 = vrot.slane %v706, 2
      %v744 = vsel %vm382, %v742, %v743
      %v745 = vrot.slane %v707, 2
      %v746 = vrot.slane %v708, 2
      %v747 = vsel %vm382, %v745, %v746
      %v748 = vrot.slane %v709, 2
      %v749 = vrot.slane %v710, 2
      %v750 = vsel %vm382, %v748, %v749
      %v759 = vadd.f32 %v683, %v729
      %v760 = vadd.f32 %v684, %v732
      %v761 = vadd.f32 %v685, %v735
      %v762 = vadd.f32 %v686, %v738
      %v763 = vadd.f32 %v687, %v741
      %v764 = vadd.f32 %v688, %v744
      %v765 = vadd.f32 %v689, %v747
      %v766 = vadd.f32 %v690, %v750
      %v767 = vld [vmem:[%s2] sm:$0x1]
      %v769 = vlaneseq
      %v770 = vshrl.u32 %v769, 7
      %v771 = vsub.s32 0, %v770
      %v772 = vrot.slane %v767, %v771
      %v774 = vadd.f32 %v759, %v772
      %v775 = vadd.f32 %v760, %v772
      %v776 = vadd.f32 %v761, %v772
      %v777 = vadd.f32 %v762, %v772
      %v778 = vadd.f32 %v763, %v772
      %v779 = vadd.f32 %v764, %v772
      %v780 = vadd.f32 %v765, %v772
      %v781 = vadd.f32 %v766, %v772
      %v782 = vpack.c.bf16 %v774, %v774
      %v783 = vpack.c.bf16 %v775, %v775
      %v784 = vpack.c.bf16 %v776, %v776
      %v785 = vpack.c.bf16 %v777, %v777
      %v786 = vpack.c.bf16 %v778, %v778
      %v787 = vpack.c.bf16 %v779, %v779
      %v788 = vpack.c.bf16 %v780, %v780
      %v789 = vpack.c.bf16 %v781, %v781
      %vm790 = vcmask 519168
      %791 = vst.msk [vmem:[%s170] sm:$0xf] %vm790, %v782
      %792 = vst.msk [vmem:[%s170 + $0x4] sm:$0xf] %vm790, %v783
      %793 = vst.msk [vmem:[%s170 + $0x8] sm:$0xf] %vm790, %v784
      %794 = vst.msk [vmem:[%s170 + $0xc] sm:$0xf] %vm790, %v785
      %795 = vst.msk [vmem:[%s170 + $0x10] sm:$0xf] %vm790, %v786
      %796 = vst.msk [vmem:[%s170 + $0x14] sm:$0xf] %vm790, %v787
      %797 = vst.msk [vmem:[%s170 + $0x18] sm:$0xf] %vm790, %v788
      %798 = vst.msk [vmem:[%s170 + $0x1c] sm:$0xf] %vm790, %v789
      %p799 = scmp.lt.s32.totalorder %s14, 1
      %s800 = scalar_select %p799, %s14, 1
      %s801 = smul.addr %s800, 8
      %s802 = smul.addr %s801, 4
      %s803 = scalar_lea.vmem %s3, %s802
      // Predicated region
      $region37: #{block_forward.9} parent=31 // pred_check
        %p804 = pneg %p100
      $region38: #{block_forward.9} parent=31 // pred_check_branch
        %806 = sbr.rel (%p804) target = $region40
      $region39: #{block_forward.9} parent=31 // pred_region
        _
      $region40: #{block_forward.9} parent=31 // pred_fallthru
        _
    $region32: #{block_forward.9} parent=5 // pred_fallthru
      _
    %p807 = scmp.le.s32.totalorder 2, %s9
    // Predicated region
    $region41: #{block_forward.9} parent=5 // pred_check
      %p808 = pneg %p807
    $region42: #{block_forward.9} parent=5 // pred_check_branch
      %810 = sbr.rel (%p808) target = $region44
    $region43: #{block_forward.9} parent=5 // pred_region
      %s811 = ssub.s32 %s9, 2
      // Predicated region
      $region45: #{block_forward.9} parent=43 // pred_check
        %p812 = pneg %p106
      $region46: #{block_forward.9} parent=43 // pred_check_branch
        %814 = sbr.rel (%p812) target = $region48
      $region47: #{block_forward.9} parent=43 // pred_region
        %p815 = scmp.lt.s32.totalorder %s15, 1
        %s816 = scalar_select %p815, %s15, 1
        %s817 = smul.addr %s816, 8
        %s818 = smul.addr %s817, 4
        %s819 = scalar_lea.vmem %s3, %s818
      $region48: #{block_forward.9} parent=43 // pred_fallthru
        _
    $region44: #{block_forward.9} parent=5 // pred_fallthru
      _
  $region6: #{block_forward.9} parent=0 // loop_footer
    %s13 = sadd.s32 1, %s9
  $region7: #{block_forward.9} parent=0 // loop_footer_branch
    %8 = sbr.rel target = $region3
  $region8: #{block_forward.9} parent=0 // loop_exit
    _

// kernel: block_forward.11
$region0: #{block_forward.11}
  #allocation0 [shape = 'u32[]', space=smem, size = 0x4, offset = 0x4, fixed_abs, tag = 'smem constant byte address 0x4 - core index']
  #allocation1 [shape = 'u32[144,128]{1,0:T(1,128)}', space=vmem, size = 0x12000, scoped, tag = 'internal scratch']
  %s0 = inlined_call_operand.vmem [shape: f32[128,64], index: 0, kind: input, shape index: {}]
  %s1 = inlined_call_operand.vmem [shape: f32[1,64], index: 1, kind: input, shape index: {}]
  %s2 = inlined_call_operand.vmem [shape: f32[1,64], index: 2, kind: input, shape index: {}]
  %s3 = inlined_call_operand.vmem [shape: bf16[64,256], index: 3, kind: input, shape index: {}]
  %s4 = inlined_call_operand.vmem [shape: f32[1,256], index: 4, kind: input, shape index: {}]
  %s5 = inlined_call_operand.vmem [shape: f32[128,256], index: 5, kind: output, shape index: {}]
  %s6 = sld [smem:[#allocation0]]
  $region30: #{block_forward.11} parent=0
    _
  %s8 = ssub.s32 1, %s6
  %s9 = scalar_select 0, %s8, %s6
  // Predicated region
  $region2: #{block_forward.11} parent=0 // pred_check
    _
  $region3: #{block_forward.11} parent=0 // pred_check_branch
    %11 = sbr.rel (0) target = $region5
  $region4: #{block_forward.11} parent=0 // pred_region
    _
  $region5: #{block_forward.11} parent=0 // pred_fallthru
    _
  // Predicated region
  $region6: #{block_forward.11} parent=0 // pred_check
    _
  $region7: #{block_forward.11} parent=0 // pred_check_branch
    %13 = sbr.rel (0) target = $region9
  $region8: #{block_forward.11} parent=0 // pred_region
    _
  $region9: #{block_forward.11} parent=0 // pred_fallthru
    _
  // Predicated region
  $region10: #{block_forward.11} parent=0 // pred_check
    _
  $region11: #{block_forward.11} parent=0 // pred_check_branch
    %15 = sbr.rel (0) target = $region13
  $region12: #{block_forward.11} parent=0 // pred_region
    _
  $region13: #{block_forward.11} parent=0 // pred_fallthru
    _
  // Predicated region
  $region14: #{block_forward.11} parent=0 // pred_check
    _
  $region15: #{block_forward.11} parent=0 // pred_check_branch
    %17 = sbr.rel (0) target = $region17
  $region16: #{block_forward.11} parent=0 // pred_region
    _
  $region17: #{block_forward.11} parent=0 // pred_fallthru
    _
  // Predicated region
  $region18: #{block_forward.11} parent=0 // pred_check
    _
  $region19: #{block_forward.11} parent=0 // pred_check_branch
    %19 = sbr.rel (0) target = $region21
  $region20: #{block_forward.11} parent=0 // pred_region
    _
  $region21: #{block_forward.11} parent=0 // pred_fallthru
    _
  %v21 = vld [vmem:[%s0] sm:$0xff]
  %v22 = vld [vmem:[%s0 + $0x8] sm:$0xff]
  %v23 = vld [vmem:[%s0 + $0x10] sm:$0xff]
  %v24 = vld [vmem:[%s0 + $0x18] sm:$0xff]
  %v25 = vld [vmem:[%s0 + $0x20] sm:$0xff]
  %v26 = vld [vmem:[%s0 + $0x28] sm:$0xff]
  %v27 = vld [vmem:[%s0 + $0x30] sm:$0xff]
  %v28 = vld [vmem:[%s0 + $0x38] sm:$0xff]
  %v29 = vld [vmem:[%s0 + $0x40] sm:$0xff]
  %v30 = vld [vmem:[%s0 + $0x48] sm:$0xff]
  %v31 = vld [vmem:[%s0 + $0x50] sm:$0xff]
  %v32 = vld [vmem:[%s0 + $0x58] sm:$0xff]
  %v33 = vld [vmem:[%s0 + $0x60] sm:$0xff]
  %v34 = vld [vmem:[%s0 + $0x68] sm:$0xff]
  %v35 = vld [vmem:[%s0 + $0x70] sm:$0xff]
  %v36 = vld [vmem:[%s0 + $0x78] sm:$0xff]
  %v37 = vld [vmem:[%s1] sm:$0x1]
  %v38 = vld [vmem:[%s2] sm:$0x1]
  %vm39 = vcmask 523264
  %v40 = vsel %vm39, %v21, 0.0
  %41 = vadd.xlane.f32.xlu0 %v40
  %v42 = vpop.xlane.xlu0 %41
  %v43 = vsel %vm39, %v22, 0.0
  %44 = vadd.xlane.f32.xlu0 %v43
  %v45 = vpop.xlane.xlu0 %44
  %v46 = vsel %vm39, %v23, 0.0
  %47 = vadd.xlane.f32.xlu0 %v46
  %v48 = vpop.xlane.xlu0 %47
  %v49 = vsel %vm39, %v24, 0.0
  %50 = vadd.xlane.f32.xlu0 %v49
  %v51 = vpop.xlane.xlu0 %50
  %v52 = vsel %vm39, %v25, 0.0
  %53 = vadd.xlane.f32.xlu0 %v52
  %v54 = vpop.xlane.xlu0 %53
  %v55 = vsel %vm39, %v26, 0.0
  %56 = vadd.xlane.f32.xlu0 %v55
  %v57 = vpop.xlane.xlu0 %56
  %v58 = vsel %vm39, %v27, 0.0
  %59 = vadd.xlane.f32.xlu0 %v58
  %v60 = vpop.xlane.xlu0 %59
  %v61 = vsel %vm39, %v28, 0.0
  %62 = vadd.xlane.f32.xlu0 %v61
  %v63 = vpop.xlane.xlu0 %62
  %v64 = vsel %vm39, %v29, 0.0
  %65 = vadd.xlane.f32.xlu0 %v64
  %v66 = vpop.xlane.xlu0 %65
  %v67 = vsel %vm39, %v30, 0.0
  %68 = vadd.xlane.f32.xlu0 %v67
  %v69 = vpop.xlane.xlu0 %68
  %v70 = vsel %vm39, %v31, 0.0
  %71 = vadd.xlane.f32.xlu0 %v70
  %v72 = vpop.xlane.xlu0 %71
  %v73 = vsel %vm39, %v32, 0.0
  %74 = vadd.xlane.f32.xlu0 %v73
  %v75 = vpop.xlane.xlu0 %74
  %v76 = vsel %vm39, %v33, 0.0
  %77 = vadd.xlane.f32.xlu0 %v76
  %v78 = vpop.xlane.xlu0 %77
  %v79 = vsel %vm39, %v34, 0.0
  %80 = vadd.xlane.f32.xlu0 %v79
  %v81 = vpop.xlane.xlu0 %80
  %v82 = vsel %vm39, %v35, 0.0
  %83 = vadd.xlane.f32.xlu0 %v82
  %v84 = vpop.xlane.xlu0 %83
  %v85 = vsel %vm39, %v36, 0.0
  %86 = vadd.xlane.f32.xlu0 %v85
  %v87 = vpop.xlane.xlu0 %86
  %v88 = vrcp.pop 64.0
  %v89 = vmul.f32 %v42, %v88
  %v90 = vmul.f32 %v45, %v88
  %v91 = vmul.f32 %v48, %v88
  %v92 = vmul.f32 %v51, %v88
  %v93 = vmul.f32 %v54, %v88
  %v94 = vmul.f32 %v57, %v88
  %v95 = vmul.f32 %v60, %v88
  %v96 = vmul.f32 %v63, %v88
  %v97 = vmul.f32 %v66, %v88
  %v98 = vmul.f32 %v69, %v88
  %v99 = vmul.f32 %v72, %v88
  %v100 = vmul.f32 %v75, %v88
  %v101 = vmul.f32 %v78, %v88
  %v102 = vmul.f32 %v81, %v88
  %v103 = vmul.f32 %v84, %v88
  %v104 = vmul.f32 %v87, %v88
  %v105 = vsub.f32 %v21, %v89
  %v106 = vsub.f32 %v22, %v90
  %v107 = vsub.f32 %v23, %v91
  %v108 = vsub.f32 %v24, %v92
  %v109 = vsub.f32 %v25, %v93
  %v110 = vsub.f32 %v26, %v94
  %v111 = vsub.f32 %v27, %v95
  %v112 = vsub.f32 %v28, %v96
  %v113 = vsub.f32 %v29, %v97
  %v114 = vsub.f32 %v30, %v98
  %v115 = vsub.f32 %v31, %v99
  %v116 = vsub.f32 %v32, %v100
  %v117 = vsub.f32 %v33, %v101
  %v118 = vsub.f32 %v34, %v102
  %v119 = vsub.f32 %v35, %v103
  %v120 = vsub.f32 %v36, %v104
  %v121 = vmul.f32 %v105, %v105
  %v122 = vmul.f32 %v106, %v106
  %v123 = vmul.f32 %v107, %v107
  %v124 = vmul.f32 %v108, %v108
  %v125 = vmul.f32 %v109, %v109
  %v126 = vmul.f32 %v110, %v110
  %v127 = vmul.f32 %v111, %v111
  %v128 = vmul.f32 %v112, %v112
  %v129 = vmul.f32 %v113, %v113
  %v130 = vmul.f32 %v114, %v114
  %v131 = vmul.f32 %v115, %v115
  %v132 = vmul.f32 %v116, %v116
  %v133 = vmul.f32 %v117, %v117
  %v134 = vmul.f32 %v118, %v118
  %v135 = vmul.f32 %v119, %v119
  %v136 = vmul.f32 %v120, %v120
  %v137 = vsel %vm39, %v121, 0.0
  %138 = vadd.xlane.f32.xlu0 %v137
  %v139 = vpop.xlane.xlu0 %138
  %v140 = vsel %vm39, %v122, 0.0
  %141 = vadd.xlane.f32.xlu0 %v140
  %v142 = vpop.xlane.xlu0 %141
  %v143 = vsel %vm39, %v123, 0.0
  %144 = vadd.xlane.f32.xlu0 %v143
  %v145 = vpop.xlane.xlu0 %144
  %v146 = vsel %vm39, %v124, 0.0
  %147 = vadd.xlane.f32.xlu0 %v146
  %v148 = vpop.xlane.xlu0 %147
  %v149 = vsel %vm39, %v125, 0.0
  %150 = vadd.xlane.f32.xlu0 %v149
  %v151 = vpop.xlane.xlu0 %150
  %v152 = vsel %vm39, %v126, 0.0
  %153 = vadd.xlane.f32.xlu0 %v152
  %v154 = vpop.xlane.xlu0 %153
  %v155 = vsel %vm39, %v127, 0.0
  %156 = vadd.xlane.f32.xlu0 %v155
  %v157 = vpop.xlane.xlu0 %156
  %v158 = vsel %vm39, %v128, 0.0
  %159 = vadd.xlane.f32.xlu0 %v158
  %v160 = vpop.xlane.xlu0 %159
  %v161 = vsel %vm39, %v129, 0.0
  %162 = vadd.xlane.f32.xlu0 %v161
  %v163 = vpop.xlane.xlu0 %162
  %v164 = vsel %vm39, %v130, 0.0
  %165 = vadd.xlane.f32.xlu0 %v164
  %v166 = vpop.xlane.xlu0 %165
  %v167 = vsel %vm39, %v131, 0.0
  %168 = vadd.xlane.f32.xlu0 %v167
  %v169 = vpop.xlane.xlu0 %168
  %v170 = vsel %vm39, %v132, 0.0
  %171 = vadd.xlane.f32.xlu0 %v170
  %v172 = vpop.xlane.xlu0 %171
  %v173 = vsel %vm39, %v133, 0.0
  %174 = vadd.xlane.f32.xlu0 %v173
  %v175 = vpop.xlane.xlu0 %174
  %v176 = vsel %vm39, %v134, 0.0
  %177 = vadd.xlane.f32.xlu0 %v176
  %v178 = vpop.xlane.xlu0 %177
  %v179 = vsel %vm39, %v135, 0.0
  %180 = vadd.xlane.f32.xlu0 %v179
  %v181 = vpop.xlane.xlu0 %180
  %v182 = vsel %vm39, %v136, 0.0
  %183 = vadd.xlane.f32.xlu0 %v182
  %v184 = vpop.xlane.xlu0 %183
  %v185 = vmul.f32 %v139, %v88
  %v186 = vmul.f32 %v142, %v88
  %v187 = vmul.f32 %v145, %v88
  %v188 = vmul.f32 %v148, %v88
  %v189 = vmul.f32 %v151, %v88
  %v190 = vmul.f32 %v154, %v88
  %v191 = vmul.f32 %v157, %v88
  %v192 = vmul.f32 %v160, %v88
  %v193 = vmul.f32 %v163, %v88
  %v194 = vmul.f32 %v166, %v88
  %v195 = vmul.f32 %v169, %v88
  %v196 = vmul.f32 %v172, %v88
  %v197 = vmul.f32 %v175, %v88
  %v198 = vmul.f32 %v178, %v88
  %v199 = vmul.f32 %v181, %v88
  %v200 = vmul.f32 %v184, %v88
  %v201 = vadd.f32 %v185, 1e-05
  %v202 = vadd.f32 %v186, 1e-05
  %v203 = vadd.f32 %v187, 1e-05
  %v204 = vadd.f32 %v188, 1e-05
  %v205 = vadd.f32 %v189, 1e-05
  %v206 = vadd.f32 %v190, 1e-05
  %v207 = vadd.f32 %v191, 1e-05
  %v208 = vadd.f32 %v192, 1e-05
  %v209 = vadd.f32 %v193, 1e-05
  %v210 = vadd.f32 %v194, 1e-05
  %v211 = vadd.f32 %v195, 1e-05
  %v212 = vadd.f32 %v196, 1e-05
  %v213 = vadd.f32 %v197, 1e-05
  %v214 = vadd.f32 %v198, 1e-05
  %v215 = vadd.f32 %v199, 1e-05
  %v216 = vadd.f32 %v200, 1e-05
  %v217 = vrsqrt.pop %v201
  %v218 = vrsqrt.pop %v202
  %v219 = vrsqrt.pop %v203
  %v220 = vrsqrt.pop %v204
  %v221 = vrsqrt.pop %v205
  %v222 = vrsqrt.pop %v206
  %v223 = vrsqrt.pop %v207
  %v224 = vrsqrt.pop %v208
  %v225 = vrsqrt.pop %v209
  %v226 = vrsqrt.pop %v210
  %v227 = vrsqrt.pop %v211
  %v228 = vrsqrt.pop %v212
  %v229 = vrsqrt.pop %v213
  %v230 = vrsqrt.pop %v214
  %v231 = vrsqrt.pop %v215
  %v232 = vrsqrt.pop %v216
  %v233 = vmul.f32 %v105, %v217
  %v234 = vmul.f32 %v106, %v218
  %v235 = vmul.f32 %v107, %v219
  %v236 = vmul.f32 %v108, %v220
  %v237 = vmul.f32 %v109, %v221
  %v238 = vmul.f32 %v110, %v222
  %v239 = vmul.f32 %v111, %v223
  %v240 = vmul.f32 %v112, %v224
  %v241 = vmul.f32 %v113, %v225
  %v242 = vmul.f32 %v114, %v226
  %v243 = vmul.f32 %v115, %v227
  %v244 = vmul.f32 %v116, %v228
  %v245 = vmul.f32 %v117, %v229
  %v246 = vmul.f32 %v118, %v230
  %v247 = vmul.f32 %v119, %v231
  %v248 = vmul.f32 %v120, %v232
  %v250 = vlaneseq
  %v251 = vshrl.u32 %v250, 7
  %v252 = vsub.s32 0, %v251
  %v253 = vrot.slane %v37, %v252
  %v255 = vmul.f32 %v233, %v253
  %v256 = vmul.f32 %v234, %v253
  %v257 = vmul.f32 %v235, %v253
  %v258 = vmul.f32 %v236, %v253
  %v259 = vmul.f32 %v237, %v253
  %v260 = vmul.f32 %v238, %v253
  %v261 = vmul.f32 %v239, %v253
  %v262 = vmul.f32 %v240, %v253
  %v263 = vmul.f32 %v241, %v253
  %v264 = vmul.f32 %v242, %v253
  %v265 = vmul.f32 %v243, %v253
  %v266 = vmul.f32 %v244, %v253
  %v267 = vmul.f32 %v245, %v253
  %v268 = vmul.f32 %v246, %v253
  %v269 = vmul.f32 %v247, %v253
  %v270 = vmul.f32 %v248, %v253
  %v272 = vlaneseq
  %v273 = vshrl.u32 %v272, 7
  %v274 = vsub.s32 0, %v273
  %v275 = vrot.slane %v38, %v274
  %v277 = vadd.f32 %v255, %v275
  %v278 = vadd.f32 %v256, %v275
  %v279 = vadd.f32 %v257, %v275
  %v280 = vadd.f32 %v258, %v275
  %v281 = vadd.f32 %v259, %v275
  %v282 = vadd.f32 %v260, %v275
  %v283 = vadd.f32 %v261, %v275
  %v284 = vadd.f32 %v262, %v275
  %v285 = vadd.f32 %v263, %v275
  %v286 = vadd.f32 %v264, %v275
  %v287 = vadd.f32 %v265, %v275
  %v288 = vadd.f32 %v266, %v275
  %v289 = vadd.f32 %v267, %v275
  %v290 = vadd.f32 %v268, %v275
  %v291 = vadd.f32 %v269, %v275
  %v292 = vadd.f32 %v270, %v275
  %v293 = vpack.c.bf16 %v278, %v277
  %v294 = vpack.c.bf16 %v280, %v279
  %v295 = vpack.c.bf16 %v282, %v281
  %v296 = vpack.c.bf16 %v284, %v283
  %v297 = vpack.c.bf16 %v286, %v285
  %v298 = vpack.c.bf16 %v288, %v287
  %v299 = vpack.c.bf16 %v290, %v289
  %v300 = vpack.c.bf16 %v292, %v291
  %v301 = vld [vmem:[%s3] sm:$0xff]
  %v302 = vld [vmem:[%s3 + $0x8] sm:$0xff]
  %v303 = vld [vmem:[%s3 + $0x10] sm:$0xff]
  %v304 = vld [vmem:[%s3 + $0x18] sm:$0xff]
  %v305 = vld [vmem:[%s3 + $0x20] sm:$0xff]
  %v306 = vld [vmem:[%s3 + $0x28] sm:$0xff]
  %v307 = vld [vmem:[%s3 + $0x30] sm:$0xff]
  %v308 = vld [vmem:[%s3 + $0x38] sm:$0xff]
  %v309 = vld [vmem:[%s4] sm:$0x3]
  %v311 = vlaneseq
  %v312 = vshrl.u32 %v311, 7
  %v313 = vsub.s32 0, %v312
  %v314 = vrot.slane %v309, %v313
  %v315 = vlaneseq
  %v316 = vshrl.u32 %v315, 7
  %v317 = vsub.s32 1, %v316
  %v318 = vrot.slane %v309, %v317
  %v329 = vunpack.c.l.b16 %v301
  %v330 = vunpack.c.h.b16 %v301
  %v331 = vunpack.c.l.b16 %v302
  %v332 = vunpack.c.h.b16 %v302
  %v333 = vunpack.c.l.b16 %v303
  %v334 = vunpack.c.h.b16 %v303
  %v335 = vunpack.c.l.b16 %v304
  %v336 = vunpack.c.h.b16 %v304
  %v337 = vunpack.c.l.b16 %v305
  %v338 = vunpack.c.h.b16 %v305
  %v339 = vunpack.c.l.b16 %v306
  %v340 = vunpack.c.h.b16 %v306
  %v341 = vunpack.c.l.b16 %v307
  %v342 = vunpack.c.h.b16 %v307
  %v343 = vunpack.c.l.b16 %v308
  %v344 = vunpack.c.h.b16 %v308
  %v345 = vpack.c.b16 %v331, %v329
  %v346 = vpack.c.b16 %v332, %v330
  %v347 = vpack.c.b16 %v335, %v333
  %v348 = vpack.c.b16 %v336, %v334
  %v349 = vpack.c.b16 %v339, %v337
  %v350 = vpack.c.b16 %v340, %v338
  %v351 = vpack.c.b16 %v343, %v341
  %v352 = vpack.c.b16 %v344, %v342
  %v362 = vsel %vm39, %v293, 0
  %v365 = vsel %vm39, %v294, 0
  %v368 = vsel %vm39, %v295, 0
  %v371 = vsel %vm39, %v296, 0
  %v374 = vsel %vm39, %v297, 0
  %v377 = vsel %vm39, %v298, 0
  %v380 = vsel %vm39, %v299, 0
  %v383 = vsel %vm39, %v300, 0
  %385 = vmatprep.subr.bf16.mxu0 %v346
  %386 = vmatpush1.bf16.msra.mxu0 %v345
  %387 = vmatprep.subr.bf16.mxu0 %v348
  %388 = vmatpush1.bf16.msra.mxu0 %v347
  %389 = vmatprep.subr.bf16.mxu0 %v350
  %390 = vmatpush1.bf16.msra.mxu0 %v349
  %391 = vmatprep.subr.bf16.mxu0 %v352
  %392 = vmatpush1.bf16.msra.mxu0 %v351
  %393 = vmatprep.subr.bf16.mxu0 0
  %394 = vmatpush1.bf16.msra.mxu0 0
  %395 = vmatprep.subr.bf16.mxu0 0
  %396 = vmatpush1.bf16.msra.mxu0 0
  %397 = vmatprep.subr.bf16.mxu0 0
  %398 = vmatpush1.bf16.msra.mxu0 0
  %399 = vmatprep.subr.bf16.mxu0 0
  %400 = vmatpush1.bf16.msra.mxu0 0
  %401 = vmatprep.subr.bf16.mxu0 0
  %402 = vmatpush1.bf16.msra.mxu0 0
  %403 = vmatprep.subr.bf16.mxu0 0
  %404 = vmatpush1.bf16.msra.mxu0 0
  %405 = vmatprep.subr.bf16.mxu0 0
  %406 = vmatpush1.bf16.msra.mxu0 0
  %407 = vmatprep.subr.bf16.mxu0 0
  %408 = vmatpush1.bf16.msra.mxu0 0
  %409 = vmatprep.subr.bf16.mxu0 0
  %410 = vmatpush1.bf16.msra.mxu0 0
  %411 = vmatprep.subr.bf16.mxu0 0
  %412 = vmatpush1.bf16.msra.mxu0 0
  %413 = vmatprep.subr.bf16.mxu0 0
  %414 = vmatpush1.bf16.msra.mxu0 0
  %415 = vmatprep.subr.bf16.mxu0 0
  %416 = vmatpush1.bf16.msra.mxu0 0
  %417 = vmatprep.mubr.bf16.mxu0 0
  %418 = vmatmul.mubr.bf16.gmra.mrb[0].mxu0 %v362
  %v419 = vpop.f32.mrb[0].mxu0
  %v420 = vadd.f32 %v314, %v419
  %v421 = vpop.f32.mrb[0].mxu0
  %v422 = vadd.f32 %v318, %v421
  %v423 = vpop.f32.mrb[0].mxu0
  %v424 = vadd.f32 %v314, %v423
  %v425 = vpop.f32.mrb[0].mxu0
  %v426 = vadd.f32 %v318, %v425
  %427 = vmatprep.mubr.bf16.mxu0 0
  %428 = vmatmul.mubr.bf16.gmra.mrb[0].mxu0 %v365
  %v429 = vpop.f32.mrb[0].mxu0
  %v430 = vadd.f32 %v314, %v429
  %v431 = vpop.f32.mrb[0].mxu0
  %v432 = vadd.f32 %v318, %v431
  %v433 = vpop.f32.mrb[0].mxu0
  %v434 = vadd.f32 %v314, %v433
  %v435 = vpop.f32.mrb[0].mxu0
  %v436 = vadd.f32 %v318, %v435
  %437 = vmatprep.mubr.bf16.mxu0 0
  %438 = vmatmul.mubr.bf16.gmra.mrb[0].mxu0 %v368
  %v439 = vpop.f32.mrb[0].mxu0
  %v440 = vadd.f32 %v314, %v439
  %v441 = vpop.f32.mrb[0].mxu0
  %v442 = vadd.f32 %v318, %v441
  %v443 = vpop.f32.mrb[0].mxu0
  %v444 = vadd.f32 %v314, %v443
  %v445 = vpop.f32.mrb[0].mxu0
  %v446 = vadd.f32 %v318, %v445
  %447 = vmatprep.mubr.bf16.mxu0 0
  %448 = vmatmul.mubr.bf16.gmra.mrb[0].mxu0 %v371
  %v449 = vpop.f32.mrb[0].mxu0
  %v450 = vadd.f32 %v314, %v449
  %v451 = vpop.f32.mrb[0].mxu0
  %v452 = vadd.f32 %v318, %v451
  %v453 = vpop.f32.mrb[0].mxu0
  %v454 = vadd.f32 %v314, %v453
  %v455 = vpop.f32.mrb[0].mxu0
  %v456 = vadd.f32 %v318, %v455
  %457 = vmatprep.mubr.bf16.mxu0 0
  %458 = vmatmul.mubr.bf16.gmra.mrb[0].mxu0 %v374
  %v459 = vpop.f32.mrb[0].mxu0
  %v460 = vadd.f32 %v314, %v459
  %v461 = vpop.f32.mrb[0].mxu0
  %v462 = vadd.f32 %v318, %v461
  %v463 = vpop.f32.mrb[0].mxu0
  %v464 = vadd.f32 %v314, %v463
  %v465 = vpop.f32.mrb[0].mxu0
  %v466 = vadd.f32 %v318, %v465
  %467 = vmatprep.mubr.bf16.mxu0 0
  %468 = vmatmul.mubr.bf16.gmra.mrb[0].mxu0 %v377
  %v469 = vpop.f32.mrb[0].mxu0
  %v470 = vadd.f32 %v314, %v469
  %v471 = vpop.f32.mrb[0].mxu0
  %v472 = vadd.f32 %v318, %v471
  %v473 = vpop.f32.mrb[0].mxu0
  %v474 = vadd.f32 %v314, %v473
  %v475 = vpop.f32.mrb[0].mxu0
  %v476 = vadd.f32 %v318, %v475
  %477 = vmatprep.mubr.bf16.mxu0 0
  %478 = vmatmul.mubr.bf16.gmra.mrb[0].mxu0 %v380
  %v479 = vpop.f32.mrb[0].mxu0
  %v480 = vadd.f32 %v314, %v479
  %v481 = vpop.f32.mrb[0].mxu0
  %v482 = vadd.f32 %v318, %v481
  %v483 = vpop.f32.mrb[0].mxu0
  %v484 = vadd.f32 %v314, %v483
  %v485 = vpop.f32.mrb[0].mxu0
  %v486 = vadd.f32 %v318, %v485
  %487 = vmatprep.mubr.bf16.mxu0 0
  %488 = vmatmul.mubr.bf16.gmra.mrb[0].mxu0 %v383
  %v489 = vpop.f32.mrb[0].mxu0
  %v490 = vadd.f32 %v314, %v489
  %v491 = vpop.f32.mrb[0].mxu0
  %v492 = vadd.f32 %v318, %v491
  %v493 = vpop.f32.mrb[0].mxu0
  %v494 = vadd.f32 %v314, %v493
  %v495 = vpop.f32.mrb[0].mxu0
  %v496 = vadd.f32 %v318, %v495
  %497 = vdwg.mxu0
  %498 = vst [vmem:[%s5] sm:$0xff] %v420
  %499 = vst [vmem:[%s5 + $0x8] sm:$0xff] %v422
  %500 = vst [vmem:[%s5 + $0x10] sm:$0xff] %v424
  %501 = vst [vmem:[%s5 + $0x18] sm:$0xff] %v426
  %502 = vst [vmem:[%s5 + $0x20] sm:$0xff] %v430
  %503 = vst [vmem:[%s5 + $0x28] sm:$0xff] %v432
  %504 = vst [vmem:[%s5 + $0x30] sm:$0xff] %v434
  %505 = vst [vmem:[%s5 + $0x38] sm:$0xff] %v436
  %506 = vst [vmem:[%s5 + $0x40] sm:$0xff] %v440
  %507 = vst [vmem:[%s5 + $0x48] sm:$0xff] %v442
  %508 = vst [vmem:[%s5 + $0x50] sm:$0xff] %v444
  %509 = vst [vmem:[%s5 + $0x58] sm:$0xff] %v446
  %510 = vst [vmem:[%s5 + $0x60] sm:$0xff] %v450
  %511 = vst [vmem:[%s5 + $0x68] sm:$0xff] %v452
  %512 = vst [vmem:[%s5 + $0x70] sm:$0xff] %v454
  %513 = vst [vmem:[%s5 + $0x78] sm:$0xff] %v456
  %514 = vst [vmem:[%s5 + $0x80] sm:$0xff] %v460
  %515 = vst [vmem:[%s5 + $0x88] sm:$0xff] %v462
  %516 = vst [vmem:[%s5 + $0x90] sm:$0xff] %v464
  %517 = vst [vmem:[%s5 + $0x98] sm:$0xff] %v466
  %518 = vst [vmem:[%s5 + $0xa0] sm:$0xff] %v470
  %519 = vst [vmem:[%s5 + $0xa8] sm:$0xff] %v472
  %520 = vst [vmem:[%s5 + $0xb0] sm:$0xff] %v474
  %521 = vst [vmem:[%s5 + $0xb8] sm:$0xff] %v476
  %522 = vst [vmem:[%s5 + $0xc0] sm:$0xff] %v480
  %523 = vst [vmem:[%s5 + $0xc8] sm:$0xff] %v482
  %524 = vst [vmem:[%s5 + $0xd0] sm:$0xff] %v484
  %525 = vst [vmem:[%s5 + $0xd8] sm:$0xff] %v486
  %526 = vst [vmem:[%s5 + $0xe0] sm:$0xff] %v490
  %527 = vst [vmem:[%s5 + $0xe8] sm:$0xff] %v492
  %528 = vst [vmem:[%s5 + $0xf0] sm:$0xff] %v494
  %529 = vst [vmem:[%s5 + $0xf8] sm:$0xff] %v496
  // Predicated region
  $region22: #{block_forward.11} parent=0 // pred_check
    _
  $region23: #{block_forward.11} parent=0 // pred_check_branch
    %531 = sbr.rel (0) target = $region25
  $region24: #{block_forward.11} parent=0 // pred_region
    _
  $region25: #{block_forward.11} parent=0 // pred_fallthru
    _
  // Predicated region
  $region26: #{block_forward.11} parent=0 // pred_check
    _
  $region27: #{block_forward.11} parent=0 // pred_check_branch
    %533 = sbr.rel (0) target = $region29
  $region28: #{block_forward.11} parent=0 // pred_region
    _
  $region29: #{block_forward.11} parent=0 // pred_fallthru
    _

// kernel: block_forward.13
$region0: #{block_forward.13}
  #allocation0 [shape = 'u32[]', space=smem, size = 0x4, offset = 0x4, fixed_abs, tag = 'smem constant byte address 0x4 - core index']
  #allocation1 [shape = 'u32[144,128]{1,0:T(1,128)}', space=vmem, size = 0x12000, scoped, tag = 'internal scratch']
  %s0 = inlined_call_operand.vmem [shape: bf16[128,128], index: 0, kind: input, shape index: {}]
  %s1 = inlined_call_operand.vmem [shape: bf16[128,128], index: 1, kind: input, shape index: {}]
  %s2 = inlined_call_operand.vmem [shape: f32[128,64], index: 2, kind: input, shape index: {}]
  %s3 = inlined_call_operand.vmem [shape: f32[128,64], index: 3, kind: input, shape index: {}]
  %s4 = inlined_call_operand.vmem [shape: f32[1,64], index: 4, kind: input, shape index: {}]
  %s5 = inlined_call_operand.vmem [shape: bf16[128,64], index: 5, kind: input, shape index: {}]
  %s6 = inlined_call_operand.vmem [shape: f32[1,64], index: 6, kind: input, shape index: {}]
  %s7 = inlined_call_operand.hbm [shape: f32[128,64], index: 7, kind: output, shape index: {}]
  %s8 = sld [smem:[#allocation0]]
  $region38: #{block_forward.13} parent=0
    _
  %s10 = ssub.s32 1, %s8
  %s11 = scalar_select 0, %s10, %s8
  $region1: #{block_forward.13} parent=0
    #allocation2 [shape = 'u8[65536]{0}', space=vmem, size = 0x10000, scoped, tag = 'output window, operand 0, single buffered']
    #allocation3 [shape = 's32[1]{0}', space=sflag, size = 0x4, scoped, tag = 'scoped memory for block_forward.13']
    %12 = vsyncpa [#allocation3], 0
    // Predicated region
    $region2: #{block_forward.13} parent=1 // pred_check
      _
    $region3: #{block_forward.13} parent=1 // pred_check_branch
      %14 = sbr.rel (0) target = $region5
    $region4: #{block_forward.13} parent=1 // pred_region
      _
    $region5: #{block_forward.13} parent=1 // pred_fallthru
      _
    // Predicated region
    $region6: #{block_forward.13} parent=1 // pred_check
      _
    $region7: #{block_forward.13} parent=1 // pred_check_branch
      %16 = sbr.rel (0) target = $region9
    $region8: #{block_forward.13} parent=1 // pred_region
      _
    $region9: #{block_forward.13} parent=1 // pred_fallthru
      _
    // Predicated region
    $region10: #{block_forward.13} parent=1 // pred_check
      _
    $region11: #{block_forward.13} parent=1 // pred_check_branch
      %18 = sbr.rel (0) target = $region13
    $region12: #{block_forward.13} parent=1 // pred_region
      _
    $region13: #{block_forward.13} parent=1 // pred_fallthru
      _
    // Predicated region
    $region14: #{block_forward.13} parent=1 // pred_check
      _
    $region15: #{block_forward.13} parent=1 // pred_check_branch
      %20 = sbr.rel (0) target = $region17
    $region16: #{block_forward.13} parent=1 // pred_region
      _
    $region17: #{block_forward.13} parent=1 // pred_fallthru
      _
    // Predicated region
    $region18: #{block_forward.13} parent=1 // pred_check
      _
    $region19: #{block_forward.13} parent=1 // pred_check_branch
      %22 = sbr.rel (0) target = $region21
    $region20: #{block_forward.13} parent=1 // pred_region
      _
    $region21: #{block_forward.13} parent=1 // pred_fallthru
      _
    // Predicated region
    $region22: #{block_forward.13} parent=1 // pred_check
      _
    $region23: #{block_forward.13} parent=1 // pred_check_branch
      %24 = sbr.rel (0) target = $region25
    $region24: #{block_forward.13} parent=1 // pred_region
      _
    $region25: #{block_forward.13} parent=1 // pred_fallthru
      _
    // Predicated region
    $region26: #{block_forward.13} parent=1 // pred_check
      _
    $region27: #{block_forward.13} parent=1 // pred_check_branch
      %26 = sbr.rel (0) target = $region29
    $region28: #{block_forward.13} parent=1 // pred_region
      _
    $region29: #{block_forward.13} parent=1 // pred_fallthru
      _
    %v28 = vld [vmem:[%s0] sm:$0xf]
    %v29 = vld [vmem:[%s0 + $0x4] sm:$0xf]
    %v30 = vld [vmem:[%s0 + $0x8] sm:$0xf]
    %v31 = vld [vmem:[%s0 + $0xc] sm:$0xf]
    %v32 = vld [vmem:[%s0 + $0x10] sm:$0xf]
    %v33 = vld [vmem:[%s0 + $0x14] sm:$0xf]
    %v34 = vld [vmem:[%s0 + $0x18] sm:$0xf]
    %v35 = vld [vmem:[%s0 + $0x1c] sm:$0xf]
    %v36 = vld [vmem:[%s0 + $0x20] sm:$0xf]
    %v37 = vld [vmem:[%s0 + $0x24] sm:$0xf]
    %v38 = vld [vmem:[%s0 + $0x28] sm:$0xf]
    %v39 = vld [vmem:[%s0 + $0x2c] sm:$0xf]
    %v40 = vld [vmem:[%s0 + $0x30] sm:$0xf]
    %v41 = vld [vmem:[%s0 + $0x34] sm:$0xf]
    %v42 = vld [vmem:[%s0 + $0x38] sm:$0xf]
    %v43 = vld [vmem:[%s0 + $0x3c] sm:$0xf]
    %v44 = vunpack.c.l.bf16 %v28
    %v45 = vunpack.c.l.bf16 %v29
    %v46 = vunpack.c.l.bf16 %v30
    %v47 = vunpack.c.l.bf16 %v31
    %v48 = vunpack.c.l.bf16 %v32
    %v49 = vunpack.c.l.bf16 %v33
    %v50 = vunpack.c.l.bf16 %v34
    %v51 = vunpack.c.l.bf16 %v35
    %v52 = vunpack.c.l.bf16 %v36
    %v53 = vunpack.c.l.bf16 %v37
    %v54 = vunpack.c.l.bf16 %v38
    %v55 = vunpack.c.l.bf16 %v39
    %v56 = vunpack.c.l.bf16 %v40
    %v57 = vunpack.c.l.bf16 %v41
    %v58 = vunpack.c.l.bf16 %v42
    %v59 = vunpack.c.l.bf16 %v43
    %v60 = vld [vmem:[%s1] sm:$0xf]
    %v61 = vld [vmem:[%s1 + $0x4] sm:$0xf]
    %v62 = vld [vmem:[%s1 + $0x8] sm:$0xf]
    %v63 = vld [vmem:[%s1 + $0xc] sm:$0xf]
    %v64 = vld [vmem:[%s1 + $0x10] sm:$0xf]
    %v65 = vld [vmem:[%s1 + $0x14] sm:$0xf]
    %v66 = vld [vmem:[%s1 + $0x18] sm:$0xf]
    %v67 = vld [vmem:[%s1 + $0x1c] sm:$0xf]
    %v68 = vld [vmem:[%s1 + $0x20] sm:$0xf]
    %v69 = vld [vmem:[%s1 + $0x24] sm:$0xf]
    %v70 = vld [vmem:[%s1 + $0x28] sm:$0xf]
    %v71 = vld [vmem:[%s1 + $0x2c] sm:$0xf]
    %v72 = vld [vmem:[%s1 + $0x30] sm:$0xf]
    %v73 = vld [vmem:[%s1 + $0x34] sm:$0xf]
    %v74 = vld [vmem:[%s1 + $0x38] sm:$0xf]
    %v75 = vld [vmem:[%s1 + $0x3c] sm:$0xf]
    %v76 = vunpack.c.l.bf16 %v60
    %v77 = vunpack.c.l.bf16 %v61
    %v78 = vunpack.c.l.bf16 %v62
    %v79 = vunpack.c.l.bf16 %v63
    %v80 = vunpack.c.l.bf16 %v64
    %v81 = vunpack.c.l.bf16 %v65
    %v82 = vunpack.c.l.bf16 %v66
    %v83 = vunpack.c.l.bf16 %v67
    %v84 = vunpack.c.l.bf16 %v68
    %v85 = vunpack.c.l.bf16 %v69
    %v86 = vunpack.c.l.bf16 %v70
    %v87 = vunpack.c.l.bf16 %v71
    %v88 = vunpack.c.l.bf16 %v72
    %v89 = vunpack.c.l.bf16 %v73
    %v90 = vunpack.c.l.bf16 %v74
    %v91 = vunpack.c.l.bf16 %v75
    %v92 = vmul.f32 %v44, %v76
    %v93 = vmul.f32 %v45, %v77
    %v94 = vmul.f32 %v46, %v78
    %v95 = vmul.f32 %v47, %v79
    %v96 = vmul.f32 %v48, %v80
    %v97 = vmul.f32 %v49, %v81
    %v98 = vmul.f32 %v50, %v82
    %v99 = vmul.f32 %v51, %v83
    %v100 = vmul.f32 %v52, %v84
    %v101 = vmul.f32 %v53, %v85
    %v102 = vmul.f32 %v54, %v86
    %v103 = vmul.f32 %v55, %v87
    %v104 = vmul.f32 %v56, %v88
    %v105 = vmul.f32 %v57, %v89
    %v106 = vmul.f32 %v58, %v90
    %v107 = vmul.f32 %v59, %v91
    %v108 = vpack.c.bf16 %v93, %v92
    %v109 = vpack.c.bf16 %v95, %v94
    %v110 = vpack.c.bf16 %v97, %v96
    %v111 = vpack.c.bf16 %v99, %v98
    %v112 = vpack.c.bf16 %v101, %v100
    %v113 = vpack.c.bf16 %v103, %v102
    %v114 = vpack.c.bf16 %v105, %v104
    %v115 = vpack.c.bf16 %v107, %v106
    %v116 = vld [vmem:[%s5] sm:$0xf]
    %v117 = vld [vmem:[%s5 + $0x4] sm:$0xf]
    %v118 = vld [vmem:[%s5 + $0x8] sm:$0xf]
    %v119 = vld [vmem:[%s5 + $0xc] sm:$0xf]
    %v120 = vld [vmem:[%s5 + $0x10] sm:$0xf]
    %v121 = vld [vmem:[%s5 + $0x14] sm:$0xf]
    %v122 = vld [vmem:[%s5 + $0x18] sm:$0xf]
    %v123 = vld [vmem:[%s5 + $0x1c] sm:$0xf]
    %v124 = vld [vmem:[%s5 + $0x20] sm:$0xf]
    %v125 = vld [vmem:[%s5 + $0x24] sm:$0xf]
    %v126 = vld [vmem:[%s5 + $0x28] sm:$0xf]
    %v127 = vld [vmem:[%s5 + $0x2c] sm:$0xf]
    %v128 = vld [vmem:[%s5 + $0x30] sm:$0xf]
    %v129 = vld [vmem:[%s5 + $0x34] sm:$0xf]
    %v130 = vld [vmem:[%s5 + $0x38] sm:$0xf]
    %v131 = vld [vmem:[%s5 + $0x3c] sm:$0xf]
    %v148 = vunpack.c.l.b16 %v116
    %v149 = vunpack.c.l.b16 %v117
    %v150 = vunpack.c.l.b16 %v118
    %v151 = vunpack.c.l.b16 %v119
    %v152 = vunpack.c.l.b16 %v120
    %v153 = vunpack.c.l.b16 %v121
    %v154 = vunpack.c.l.b16 %v122
    %v155 = vunpack.c.l.b16 %v123
    %v156 = vunpack.c.l.b16 %v124
    %v157 = vunpack.c.l.b16 %v125
    %v158 = vunpack.c.l.b16 %v126
    %v159 = vunpack.c.l.b16 %v127
    %v160 = vunpack.c.l.b16 %v128
    %v161 = vunpack.c.l.b16 %v129
    %v162 = vunpack.c.l.b16 %v130
    %v163 = vunpack.c.l.b16 %v131
    %v164 = vpack.c.b16 %v149, %v148
    %v165 = vpack.c.b16 %v151, %v150
    %v166 = vpack.c.b16 %v153, %v152
    %v167 = vpack.c.b16 %v155, %v154
    %v168 = vpack.c.b16 %v157, %v156
    %v169 = vpack.c.b16 %v159, %v158
    %v170 = vpack.c.b16 %v161, %v160
    %v171 = vpack.c.b16 %v163, %v162
    %180 = vmatprep.subr.bf16.mxu0 0
    %181 = vmatpush1.bf16.msra.mxu0 %v164
    %182 = vmatprep.subr.bf16.mxu0 0
    %183 = vmatpush1.bf16.msra.mxu0 %v165
    %184 = vmatprep.subr.bf16.mxu0 0
    %185 = vmatpush1.bf16.msra.mxu0 %v166
    %186 = vmatprep.subr.bf16.mxu0 0
    %187 = vmatpush1.bf16.msra.mxu0 %v167
    %188 = vmatprep.subr.bf16.mxu0 0
    %189 = vmatpush1.bf16.msra.mxu0 %v168
    %190 = vmatprep.subr.bf16.mxu0 0
    %191 = vmatpush1.bf16.msra.mxu0 %v169
    %192 = vmatprep.subr.bf16.mxu0 0
    %193 = vmatpush1.bf16.msra.mxu0 %v170
    %194 = vmatprep.subr.bf16.mxu0 0
    %195 = vmatpush1.bf16.msra.mxu0 %v171
    %196 = vmatprep.subr.bf16.mxu0 0
    %197 = vmatpush1.bf16.msra.mxu0 0
    %198 = vmatprep.subr.bf16.mxu0 0
    %199 = vmatpush1.bf16.msra.mxu0 0
    %200 = vmatprep.subr.bf16.mxu0 0
    %201 = vmatpush1.bf16.msra.mxu0 0
    %202 = vmatprep.subr.bf16.mxu0 0
    %203 = vmatpush1.bf16.msra.mxu0 0
    %204 = vmatprep.subr.bf16.mxu0 0
    %205 = vmatpush1.bf16.msra.mxu0 0
    %206 = vmatprep.subr.bf16.mxu0 0
    %207 = vmatpush1.bf16.msra.mxu0 0
    %208 = vmatprep.subr.bf16.mxu0 0
    %209 = vmatpush1.bf16.msra.mxu0 0
    %210 = vmatprep.subr.bf16.mxu0 0
    %211 = vmatpush1.bf16.msra.mxu0 0
    %212 = vmatprep.mubr.bf16.mxu0 0
    %213 = vmatmul.mubr.bf16.gmra.mrb[0].mxu0 %v108
    %v214 = vpop.f32.mrb[0].mxu0
    %v215 = vadd.f32 0.0, %v214
    %v216 = vpop.f32.mrb[0].mxu0
    %v217 = vpop.f32.mrb[0].mxu0
    %v218 = vadd.f32 0.0, %v217
    %v219 = vpop.f32.mrb[0].mxu0
    %220 = vmatprep.mubr.bf16.mxu0 0
    %221 = vmatmul.mubr.bf16.gmra.mrb[0].mxu0 %v109
    %v222 = vpop.f32.mrb[0].mxu0
    %v223 = vadd.f32 0.0, %v222
    %v224 = vpop.f32.mrb[0].mxu0
    %v225 = vpop.f32.mrb[0].mxu0
    %v226 = vadd.f32 0.0, %v225
    %v227 = vpop.f32.mrb[0].mxu0
    %228 = vmatprep.mubr.bf16.mxu0 0
    %229 = vmatmul.mubr.bf16.gmra.mrb[0].mxu0 %v110
    %v230 = vpop.f32.mrb[0].mxu0
    %v231 = vadd.f32 0.0, %v230
    %v232 = vpop.f32.mrb[0].mxu0
    %v233 = vpop.f32.mrb[0].mxu0
    %v234 = vadd.f32 0.0, %v233
    %v235 = vpop.f32.mrb[0].mxu0
    %236 = vmatprep.mubr.bf16.mxu0 0
    %237 = vmatmul.mubr.bf16.gmra.mrb[0].mxu0 %v111
    %v238 = vpop.f32.mrb[0].mxu0
    %v239 = vadd.f32 0.0, %v238
    %v240 = vpop.f32.mrb[0].mxu0
    %v241 = vpop.f32.mrb[0].mxu0
    %v242 = vadd.f32 0.0, %v241
    %v243 = vpop.f32.mrb[0].mxu0
    %244 = vmatprep.mubr.bf16.mxu0 0
    %245 = vmatmul.mubr.bf16.gmra.mrb[0].mxu0 %v112
    %v246 = vpop.f32.mrb[0].mxu0
    %v247 = vadd.f32 0.0, %v246
    %v248 = vpop.f32.mrb[0].mxu0
    %v249 = vpop.f32.mrb[0].mxu0
    %v250 = vadd.f32 0.0, %v249
    %v251 = vpop.f32.mrb[0].mxu0
    %252 = vmatprep.mubr.bf16.mxu0 0
    %253 = vmatmul.mubr.bf16.gmra.mrb[0].mxu0 %v113
    %v254 = vpop.f32.mrb[0].mxu0
    %v255 = vadd.f32 0.0, %v254
    %v256 = vpop.f32.mrb[0].mxu0
    %v257 = vpop.f32.mrb[0].mxu0
    %v258 = vadd.f32 0.0, %v257
    %v259 = vpop.f32.mrb[0].mxu0
    %260 = vmatprep.mubr.bf16.mxu0 0
    %261 = vmatmul.mubr.bf16.gmra.mrb[0].mxu0 %v114
    %v262 = vpop.f32.mrb[0].mxu0
    %v263 = vadd.f32 0.0, %v262
    %v264 = vpop.f32.mrb[0].mxu0
    %v265 = vpop.f32.mrb[0].mxu0
    %v266 = vadd.f32 0.0, %v265
    %v267 = vpop.f32.mrb[0].mxu0
    %268 = vmatprep.mubr.bf16.mxu0 0
    %269 = vmatmul.mubr.bf16.gmra.mrb[0].mxu0 %v115
    %v270 = vpop.f32.mrb[0].mxu0
    %v271 = vadd.f32 0.0, %v270
    %v272 = vpop.f32.mrb[0].mxu0
    %v273 = vpop.f32.mrb[0].mxu0
    %v274 = vadd.f32 0.0, %v273
    %v275 = vpop.f32.mrb[0].mxu0
    %276 = vdwg.mxu0
    %v277 = vld [vmem:[%s2] sm:$0xff]
    %v278 = vld [vmem:[%s2 + $0x8] sm:$0xff]
    %v279 = vld [vmem:[%s2 + $0x10] sm:$0xff]
    %v280 = vld [vmem:[%s2 + $0x18] sm:$0xff]
    %v281 = vld [vmem:[%s2 + $0x20] sm:$0xff]
    %v282 = vld [vmem:[%s2 + $0x28] sm:$0xff]
    %v283 = vld [vmem:[%s2 + $0x30] sm:$0xff]
    %v284 = vld [vmem:[%s2 + $0x38] sm:$0xff]
    %v285 = vld [vmem:[%s2 + $0x40] sm:$0xff]
    %v286 = vld [vmem:[%s2 + $0x48] sm:$0xff]
    %v287 = vld [vmem:[%s2 + $0x50] sm:$0xff]
    %v288 = vld [vmem:[%s2 + $0x58] sm:$0xff]
    %v289 = vld [vmem:[%s2 + $0x60] sm:$0xff]
    %v290 = vld [vmem:[%s2 + $0x68] sm:$0xff]
    %v291 = vld [vmem:[%s2 + $0x70] sm:$0xff]
    %v292 = vld [vmem:[%s2 + $0x78] sm:$0xff]
    %v293 = vadd.f32 %v277, %v215
    %v294 = vadd.f32 %v278, %v218
    %v295 = vadd.f32 %v279, %v223
    %v296 = vadd.f32 %v280, %v226
    %v297 = vadd.f32 %v281, %v231
    %v298 = vadd.f32 %v282, %v234
    %v299 = vadd.f32 %v283, %v239
    %v300 = vadd.f32 %v284, %v242
    %v301 = vadd.f32 %v285, %v247
    %v302 = vadd.f32 %v286, %v250
    %v303 = vadd.f32 %v287, %v255
    %v304 = vadd.f32 %v288, %v258
    %v305 = vadd.f32 %v289, %v263
    %v306 = vadd.f32 %v290, %v266
    %v307 = vadd.f32 %v291, %v271
    %v308 = vadd.f32 %v292, %v274
    %v309 = vld [vmem:[%s6] sm:$0x1]
    %v311 = vlaneseq
    %v312 = vshrl.u32 %v311, 7
    %v313 = vsub.s32 0, %v312
    %v314 = vrot.slane %v309, %v313
    %v316 = vadd.f32 %v293, %v314
    %v317 = vadd.f32 %v294, %v314
    %v318 = vadd.f32 %v295, %v314
    %v319 = vadd.f32 %v296, %v314
    %v320 = vadd.f32 %v297, %v314
    %v321 = vadd.f32 %v298, %v314
    %v322 = vadd.f32 %v299, %v314
    %v323 = vadd.f32 %v300, %v314
    %v324 = vadd.f32 %v301, %v314
    %v325 = vadd.f32 %v302, %v314
    %v326 = vadd.f32 %v303, %v314
    %v327 = vadd.f32 %v304, %v314
    %v328 = vadd.f32 %v305, %v314
    %v329 = vadd.f32 %v306, %v314
    %v330 = vadd.f32 %v307, %v314
    %v331 = vadd.f32 %v308, %v314
    %v332 = vld [vmem:[%s3] sm:$0xff]
    %v333 = vld [vmem:[%s3 + $0x8] sm:$0xff]
    %v334 = vld [vmem:[%s3 + $0x10] sm:$0xff]
    %v335 = vld [vmem:[%s3 + $0x18] sm:$0xff]
    %v336 = vld [vmem:[%s3 + $0x20] sm:$0xff]
    %v337 = vld [vmem:[%s3 + $0x28] sm:$0xff]
    %v338 = vld [vmem:[%s3 + $0x30] sm:$0xff]
    %v339 = vld [vmem:[%s3 + $0x38] sm:$0xff]
    %v340 = vld [vmem:[%s3 + $0x40] sm:$0xff]
    %v341 = vld [vmem:[%s3 + $0x48] sm:$0xff]
    %v342 = vld [vmem:[%s3 + $0x50] sm:$0xff]
    %v343 = vld [vmem:[%s3 + $0x58] sm:$0xff]
    %v344 = vld [vmem:[%s3 + $0x60] sm:$0xff]
    %v345 = vld [vmem:[%s3 + $0x68] sm:$0xff]
    %v346 = vld [vmem:[%s3 + $0x70] sm:$0xff]
    %v347 = vld [vmem:[%s3 + $0x78] sm:$0xff]
    %v348 = vld [vmem:[%s4] sm:$0x1]
    %v350 = vlaneseq
    %v351 = vshrl.u32 %v350, 7
    %v352 = vsub.s32 0, %v351
    %v353 = vrot.slane %v348, %v352
    %v355 = vmul.f32 %v332, %v353
    %v356 = vmul.f32 %v333, %v353
    %v357 = vmul.f32 %v334, %v353
    %v358 = vmul.f32 %v335, %v353
    %v359 = vmul.f32 %v336, %v353
    %v360 = vmul.f32 %v337, %v353
    %v361 = vmul.f32 %v338, %v353
    %v362 = vmul.f32 %v339, %v353
    %v363 = vmul.f32 %v340, %v353
    %v364 = vmul.f32 %v341, %v353
    %v365 = vmul.f32 %v342, %v353
    %v366 = vmul.f32 %v343, %v353
    %v367 = vmul.f32 %v344, %v353
    %v368 = vmul.f32 %v345, %v353
    %v369 = vmul.f32 %v346, %v353
    %v370 = vmul.f32 %v347, %v353
    %v371 = vadd.f32 %v316, %v355
    %v372 = vadd.f32 %v317, %v356
    %v373 = vadd.f32 %v318, %v357
    %v374 = vadd.f32 %v319, %v358
    %v375 = vadd.f32 %v320, %v359
    %v376 = vadd.f32 %v321, %v360
    %v377 = vadd.f32 %v322, %v361
    %v378 = vadd.f32 %v323, %v362
    %v379 = vadd.f32 %v324, %v363
    %v380 = vadd.f32 %v325, %v364
    %v381 = vadd.f32 %v326, %v365
    %v382 = vadd.f32 %v327, %v366
    %v383 = vadd.f32 %v328, %v367
    %v384 = vadd.f32 %v329, %v368
    %v385 = vadd.f32 %v330, %v369
    %v386 = vadd.f32 %v331, %v370
    %vm387 = vcmask 523264
    %388 = vst.msk [vmem:[#allocation2] sm:$0xff] %vm387, %v371
    %389 = vst.msk [vmem:[#allocation2 + $0x8] sm:$0xff] %vm387, %v372
    %390 = vst.msk [vmem:[#allocation2 + $0x10] sm:$0xff] %vm387, %v373
    %391 = vst.msk [vmem:[#allocation2 + $0x18] sm:$0xff] %vm387, %v374
    %392 = vst.msk [vmem:[#allocation2 + $0x20] sm:$0xff] %vm387, %v375
    %393 = vst.msk [vmem:[#allocation2 + $0x28] sm:$0xff] %vm387, %v376
    %394 = vst.msk [vmem:[#allocation2 + $0x30] sm:$0xff] %vm387, %v377
    %395 = vst.msk [vmem:[#allocation2 + $0x38] sm:$0xff] %vm387, %v378
    %396 = vst.msk [vmem:[#allocation2 + $0x40] sm:$0xff] %vm387, %v379
    %397 = vst.msk [vmem:[#allocation2 + $0x48] sm:$0xff] %vm387, %v380
    %398 = vst.msk [vmem:[#allocation2 + $0x50] sm:$0xff] %vm387, %v381
    %399 = vst.msk [vmem:[#allocation2 + $0x58] sm:$0xff] %vm387, %v382
    %400 = vst.msk [vmem:[#allocation2 + $0x60] sm:$0xff] %vm387, %v383
    %401 = vst.msk [vmem:[#allocation2 + $0x68] sm:$0xff] %vm387, %v384
    %402 = vst.msk [vmem:[#allocation2 + $0x70] sm:$0xff] %vm387, %v385
    %403 = vst.msk [vmem:[#allocation2 + $0x78] sm:$0xff] %vm387, %v386
    // Predicated region
    $region30: #{block_forward.13} parent=1 // pred_check
      _
    $region31: #{block_forward.13} parent=1 // pred_check_branch
      %405 = sbr.rel (0) target = $region33
    $region32: #{block_forward.13} parent=1 // pred_region
      %s407 = ssub.s32 2048, 2048
      %408 = vsyncadd [#allocation3], %s407
      %s409 = sshll.u32 [#allocation2], 4
      %s410 = int_to_ptr.vmem [resolvable:$true] %s409
      %415 = dma.vmem_to_hbm [thread:$0]  %s410, 2048, %s7, [#allocation3], 128, 128, 8
    $region33: #{block_forward.13} parent=1 // pred_fallthru
      _
    // Predicated region
    $region34: #{block_forward.13} parent=1 // pred_check
      _
    $region35: #{block_forward.13} parent=1 // pred_check_branch
      %417 = sbr.rel (0) target = $region37
    $region36: #{block_forward.13} parent=1 // pred_region
      %418 = dma.done [#allocation3], 2048
    $region37: #{block_forward.13} parent=1 // pred_fallthru
      _
    %419 = vsyncpa [#allocation3], 1

// kernel: block_forward.12
$region0: #{block_forward.12}
  #allocation0 [shape = 'u32[]', space=smem, size = 0x4, offset = 0x4, fixed_abs, tag = 'smem constant byte address 0x4 - core index']
  #allocation1 [shape = 'u32[144,128]{1,0:T(1,128)}', space=vmem, size = 0x12000, scoped, tag = 'internal scratch']
  #allocation2 [shape = 'f32[10,10,128]{2,1,0:T(8,128)}', space=vmem, size = 0x14000, scoped, tag = 'scratch operand']
  %s0 = inlined_call_operand.vmem [shape: f32[2,8,8,128], index: 0, kind: input, shape index: {}]
  %s1 = inlined_call_operand.vmem [shape: f32[1,128], index: 1, kind: input, shape index: {}]
  %s2 = inlined_call_operand.vmem [shape: f32[1,128], index: 2, kind: input, shape index: {}, may-alias: {2,4}]
  %s3 = inlined_call_operand.vmem [shape: f32[3,3,128], index: 3, kind: input, shape index: {}]
  %s4 = inlined_call_operand.vmem [shape: f32[1,128], index: 4, kind: input, shape index: {}, may-alias: {2,4}]
  %s5 = inlined_call_operand.vmem [shape: bf16[2,8,8,128], index: 5, kind: output, shape index: {}]
  %s6 = sld [smem:[#allocation0]]
  $region57: #{block_forward.12} parent=0
    _
  %s8 = ssub.s32 1, %s6
  %s9 = scalar_select 0, %s8, %s6
  loop: start=0, step=1, limit=4
  $region2: #{block_forward.12} parent=0 // loop_pre_header
    _
  $region3: #{block_forward.12} parent=0 // loop_header
    %s11 = sphi 0, %s15
    %p12 = scmp.ge.s32.totalorder %s11, 4
    %s21 = sphi 0, %s23
    %s24 = sphi 0, %s21
    %s25 = sphi 0, %s24
    %s41 = sphi 0, %s25
    %s45 = sphi 0, %s45
    %s47 = sphi 0, %s45
    %s48 = sphi 0, %s47
    %s62 = sphi 0, %s48
    %s66 = sphi 0, %s66
    %s68 = sphi 0, %s66
    %s69 = sphi 0, %s68
    %s83 = sphi 0, %s69
    %s87 = sphi 0, %s87
    %s89 = sphi 0, %s87
    %s90 = sphi 0, %s89
    %s104 = sphi 0, %s90
    %s108 = sphi 0, %s108
    %s110 = sphi 0, %s108
    %s111 = sphi 0, %s110
    %s125 = sphi 0, %s111
    %s131 = sphi 0, %s133
    %s134 = sphi 0, %s131
    %s135 = sphi 0, %s134
    %s151 = sphi 0, %s135
  $region4: #{block_forward.12} parent=0 // loop_header_branch
    %14 = sbr.rel (%p12) target = $region8
  $region5: #{block_forward.12} parent=0 // loop_body
    %s16 = ssub.s32 %s11, 1
    %s17 = ssub.s32 %s11, 2
    %s18 = sadd.s32 %s11, 1
    %s19 = ssub.s32 %s11, %s18
    %p20 = scmp.eq.s32.totalorder %s19, 0
    %s22 = sadd.s32 %s21, 1
    %s23 = scalar_select %p20, %s21, %s22
    %p26 = pneg %p20
    %p27 = scmp.eq.s32.totalorder %s11, 1
    %p28 = por %p26, %p27
    %p29 = scmp.ne.s32.totalorder %s21, %s24
    %p30 = scmp.eq.s32.totalorder %s11, 0
    %p31 = por %p29, %p30
    %p32 = scmp.ne.s32.totalorder %s21, %s24
    %p33 = scmp.eq.s32.totalorder %s16, 1
    %p34 = por %p32, %p33
    %p35 = scmp.ne.s32.totalorder %s24, %s25
    %p36 = scmp.eq.s32.totalorder %s16, 0
    %p37 = por %p35, %p36
    %p38 = scmp.ne.s32.totalorder %s24, %s25
    %p39 = scmp.eq.s32.totalorder %s17, 1
    %p40 = por %p38, %p39
    %p42 = scmp.ne.s32.totalorder %s25, %s41
    %p43 = scmp.eq.s32.totalorder %s17, 0
    %p44 = por %p42, %p43
    %s46 = sadd.s32 %s45, 1
    %p49 = scmp.eq.s32.totalorder %s11, 1
    %p50 = scmp.ne.s32.totalorder %s45, %s47
    %p51 = scmp.eq.s32.totalorder %s11, 0
    %p52 = por %p50, %p51
    %p53 = scmp.ne.s32.totalorder %s45, %s47
    %p54 = scmp.eq.s32.totalorder %s16, 1
    %p55 = por %p53, %p54
    %p56 = scmp.ne.s32.totalorder %s47, %s48
    %p57 = scmp.eq.s32.totalorder %s16, 0
    %p58 = por %p56, %p57
    %p59 = scmp.ne.s32.totalorder %s47, %s48
    %p60 = scmp.eq.s32.totalorder %s17, 1
    %p61 = por %p59, %p60
    %p63 = scmp.ne.s32.totalorder %s48, %s62
    %p64 = scmp.eq.s32.totalorder %s17, 0
    %p65 = por %p63, %p64
    %s67 = sadd.s32 %s66, 1
    %p70 = scmp.eq.s32.totalorder %s11, 1
    %p71 = scmp.ne.s32.totalorder %s66, %s68
    %p72 = scmp.eq.s32.totalorder %s11, 0
    %p73 = por %p71, %p72
    %p74 = scmp.ne.s32.totalorder %s66, %s68
    %p75 = scmp.eq.s32.totalorder %s16, 1
    %p76 = por %p74, %p75
    %p77 = scmp.ne.s32.totalorder %s68, %s69
    %p78 = scmp.eq.s32.totalorder %s16, 0
    %p79 = por %p77, %p78
    %p80 = scmp.ne.s32.totalorder %s68, %s69
    %p81 = scmp.eq.s32.totalorder %s17, 1
    %p82 = por %p80, %p81
    %p84 = scmp.ne.s32.totalorder %s69, %s83
    %p85 = scmp.eq.s32.totalorder %s17, 0
    %p86 = por %p84, %p85
    %s88 = sadd.s32 %s87, 1
    %p91 = scmp.eq.s32.totalorder %s11, 1
    %p92 = scmp.ne.s32.totalorder %s87, %s89
    %p93 = scmp.eq.s32.totalorder %s11, 0
    %p94 = por %p92, %p93
    %p95 = scmp.ne.s32.totalorder %s87, %s89
    %p96 = scmp.eq.s32.totalorder %s16, 1
    %p97 = por %p95, %p96
    %p98 = scmp.ne.s32.totalorder %s89, %s90
    %p99 = scmp.eq.s32.totalorder %s16, 0
    %p100 = por %p98, %p99
    %p101 = scmp.ne.s32.totalorder %s89, %s90
    %p102 = scmp.eq.s32.totalorder %s17, 1
    %p103 = por %p101, %p102
    %p105 = scmp.ne.s32.totalorder %s90, %s104
    %p106 = scmp.eq.s32.totalorder %s17, 0
    %p107 = por %p105, %p106
    %s109 = sadd.s32 %s108, 1
    %p112 = scmp.eq.s32.totalorder %s11, 1
    %p113 = scmp.ne.s32.totalorder %s108, %s110
    %p114 = scmp.eq.s32.totalorder %s11, 0
    %p115 = por %p113, %p114
    %p116 = scmp.ne.s32.totalorder %s108, %s110
    %p117 = scmp.eq.s32.totalorder %s16, 1
    %p118 = por %p116, %p117
    %p119 = scmp.ne.s32.totalorder %s110, %s111
    %p120 = scmp.eq.s32.totalorder %s16, 0
    %p121 = por %p119, %p120
    %p122 = scmp.ne.s32.totalorder %s110, %s111
    %p123 = scmp.eq.s32.totalorder %s17, 1
    %p124 = por %p122, %p123
    %p126 = scmp.ne.s32.totalorder %s111, %s125
    %p127 = scmp.eq.s32.totalorder %s17, 0
    %p128 = por %p126, %p127
    %s129 = ssub.s32 %s11, %s18
    %p130 = scmp.eq.s32.totalorder %s129, 0
    %s132 = sadd.s32 %s131, 1
    %s133 = scalar_select %p130, %s131, %s132
    %p136 = pneg %p130
    %p137 = scmp.eq.s32.totalorder %s11, 1
    %p138 = por %p136, %p137
    %p139 = scmp.ne.s32.totalorder %s131, %s134
    %p140 = scmp.eq.s32.totalorder %s11, 0
    %p141 = por %p139, %p140
    %p142 = scmp.ne.s32.totalorder %s131, %s134
    %p143 = scmp.eq.s32.totalorder %s16, 1
    %p144 = por %p142, %p143
    %p145 = scmp.ne.s32.totalorder %s134, %s135
    %p146 = scmp.eq.s32.totalorder %s16, 0
    %p147 = por %p145, %p146
    %p148 = scmp.ne.s32.totalorder %s134, %s135
    %p149 = scmp.eq.s32.totalorder %s17, 1
    %p150 = por %p148, %p149
    %p152 = scmp.ne.s32.totalorder %s135, %s151
    %p153 = scmp.eq.s32.totalorder %s17, 0
    %p154 = por %p152, %p153
    %p155 = scmp.le.s32.totalorder 1, %s11
    %p156 = scmp.lt.s32.totalorder %s11, 3
    %p157 = pnand %p155, %p156
    %p158 = pneg %p157
    // Predicated region
    $region9: #{block_forward.12} parent=5 // pred_check
      _
    $region10: #{block_forward.12} parent=5 // pred_check_branch
      %160 = sbr.rel (%p157) target = $region12
    $region11: #{block_forward.12} parent=5 // pred_region
      %s161 = ssub.s32 %s11, 1
      // Predicated region
      $region13: #{block_forward.12} parent=11 // pred_check
        %p162 = pneg %p58
      $region14: #{block_forward.12} parent=11 // pred_check_branch
        %164 = sbr.rel (%p162) target = $region16
      $region15: #{block_forward.12} parent=11 // pred_region
        _
      $region16: #{block_forward.12} parent=11 // pred_fallthru
        _
      // Predicated region
      $region17: #{block_forward.12} parent=11 // pred_check
        %p165 = pneg %p79
      $region18: #{block_forward.12} parent=11 // pred_check_branch
        %167 = sbr.rel (%p165) target = $region20
      $region19: #{block_forward.12} parent=11 // pred_region
        _
      $region20: #{block_forward.12} parent=11 // pred_fallthru
        _
      // Predicated region
      $region21: #{block_forward.12} parent=11 // pred_check
        %p168 = pneg %p100
      $region22: #{block_forward.12} parent=11 // pred_check_branch
        %170 = sbr.rel (%p168) target = $region24
      $region23: #{block_forward.12} parent=11 // pred_region
        _
      $region24: #{block_forward.12} parent=11 // pred_fallthru
        _
      // Predicated region
      $region25: #{block_forward.12} parent=11 // pred_check
        %p171 = pneg %p121
      $region26: #{block_forward.12} parent=11 // pred_check_branch
        %173 = sbr.rel (%p171) target = $region28
      $region27: #{block_forward.12} parent=11 // pred_region
        _
      $region28: #{block_forward.12} parent=11 // pred_fallthru
        _
    $region12: #{block_forward.12} parent=5 // pred_fallthru
      _
    %p174 = scmp.lt.s32.totalorder %s11, 2
    // Predicated region
    $region29: #{block_forward.12} parent=5 // pred_check
      %p175 = pneg %p174
    $region30: #{block_forward.12} parent=5 // pred_check_branch
      %177 = sbr.rel (%p175) target = $region32
    $region31: #{block_forward.12} parent=5 // pred_region
      // Predicated region
      $region33: #{block_forward.12} parent=31 // pred_check
        %p178 = pneg %p31
      $region34: #{block_forward.12} parent=31 // pred_check_branch
        %180 = sbr.rel (%p178) target = $region36
      $region35: #{block_forward.12} parent=31 // pred_region
        %p181 = scmp.lt.s32.totalorder %s11, 1
        %s182 = scalar_select %p181, %s11, 1
        %s183 = smul.addr %s182, 8
        %s184 = smul.addr %s183, 8
        %s185 = scalar_lea.vmem %s0, %s184
      $region36: #{block_forward.12} parent=31 // pred_fallthru
        _
    $region32: #{block_forward.12} parent=5 // pred_fallthru
      _
    %p186 = scmp.le.s32.totalorder 1, %s11
    %p187 = scmp.lt.s32.totalorder %s11, 3
    %p188 = pnand %p186, %p187
    %p189 = pneg %p188
    // Predicated region
    $region37: #{block_forward.12} parent=5 // pred_check
      _
    $region38: #{block_forward.12} parent=5 // pred_check_branch
      %191 = sbr.rel (%p188) target = $region40
    $region39: #{block_forward.12} parent=5 // pred_region
      %s192 = ssub.s32 %s11, 1
      %p193 = scmp.lt.s32.totalorder %s16, 1
      %s194 = scalar_select %p193, %s16, 1
      %s195 = smul.addr %s194, 8
      %s196 = smul.addr %s195, 8
      %s197 = scalar_lea.vmem %s0, %s196
      %p198 = pneg %p37
      %p199 = pneg %p34
      %p200 = pneg %p58
      %p201 = pneg %p55
      %p202 = pneg %p79
      %p203 = pneg %p76
      %p204 = pneg %p100
      %p205 = pneg %p97
      %p206 = pneg %p121
      %p207 = pneg %p118
      %p208 = pneg %p147
      %p209 = pneg %p144
      %p210 = scmp.lt.s32.totalorder %s16, 1
      %s211 = scalar_select %p210, %s16, 1
      %s212 = smul.addr %s211, 8
      %s213 = smul.addr %s212, 4
      %s214 = scalar_lea.vmem %s5, %s213
      %p215 = scmp.lt.s32.totalorder %s16, 1
      %s216 = scalar_select %p215, %s16, 1
      %s217 = smul.addr %s216, 8
      %s218 = smul.addr %s217, 8
      %s219 = scalar_lea.vmem %s0, %s218
      %p220 = scmp.lt.s32.totalorder %s16, 1
      %s221 = scalar_select %p220, %s16, 1
      %s222 = smul.addr %s221, 8
      %s223 = smul.addr %s222, 4
      %s224 = scalar_lea.vmem %s5, %s223
      %v225 = vld [vmem:[%s219] sm:$0xff]
      %v226 = vld [vmem:[%s219 + $0x8] sm:$0xff]
      %v227 = vld [vmem:[%s219 + $0x10] sm:$0xff]
      %v228 = vld [vmem:[%s219 + $0x18] sm:$0xff]
      %v229 = vld [vmem:[%s219 + $0x20] sm:$0xff]
      %v230 = vld [vmem:[%s219 + $0x28] sm:$0xff]
      %v231 = vld [vmem:[%s219 + $0x30] sm:$0xff]
      %v232 = vld [vmem:[%s219 + $0x38] sm:$0xff]
      %v233 = vld [vmem:[%s1] sm:$0x1]
      %v234 = vld [vmem:[%s2] sm:$0x1]
      %235 = vadd.xlane.f32.xlu0 %v225
      %v236 = vpop.xlane.xlu0 %235
      %237 = vadd.xlane.f32.xlu0 %v226
      %v238 = vpop.xlane.xlu0 %237
      %239 = vadd.xlane.f32.xlu0 %v227
      %v240 = vpop.xlane.xlu0 %239
      %241 = vadd.xlane.f32.xlu0 %v228
      %v242 = vpop.xlane.xlu0 %241
      %243 = vadd.xlane.f32.xlu0 %v229
      %v244 = vpop.xlane.xlu0 %243
      %245 = vadd.xlane.f32.xlu0 %v230
      %v246 = vpop.xlane.xlu0 %245
      %247 = vadd.xlane.f32.xlu0 %v231
      %v248 = vpop.xlane.xlu0 %247
      %249 = vadd.xlane.f32.xlu0 %v232
      %v250 = vpop.xlane.xlu0 %249
      %v251 = vrcp.pop 128.0
      %v252 = vmul.f32 %v236, %v251
      %v253 = vmul.f32 %v238, %v251
      %v254 = vmul.f32 %v240, %v251
      %v255 = vmul.f32 %v242, %v251
      %v256 = vmul.f32 %v244, %v251
      %v257 = vmul.f32 %v246, %v251
      %v258 = vmul.f32 %v248, %v251
      %v259 = vmul.f32 %v250, %v251
      %v260 = vsub.f32 %v225, %v252
      %v261 = vsub.f32 %v226, %v253
      %v262 = vsub.f32 %v227, %v254
      %v263 = vsub.f32 %v228, %v255
      %v264 = vsub.f32 %v229, %v256
      %v265 = vsub.f32 %v230, %v257
      %v266 = vsub.f32 %v231, %v258
      %v267 = vsub.f32 %v232, %v259
      %v268 = vmul.f32 %v260, %v260
      %v269 = vmul.f32 %v261, %v261
      %v270 = vmul.f32 %v262, %v262
      %v271 = vmul.f32 %v263, %v263
      %v272 = vmul.f32 %v264, %v264
      %v273 = vmul.f32 %v265, %v265
      %v274 = vmul.f32 %v266, %v266
      %v275 = vmul.f32 %v267, %v267
      %276 = vadd.xlane.f32.xlu0 %v268
      %v277 = vpop.xlane.xlu0 %276
      %278 = vadd.xlane.f32.xlu0 %v269
      %v279 = vpop.xlane.xlu0 %278
      %280 = vadd.xlane.f32.xlu0 %v270
      %v281 = vpop.xlane.xlu0 %280
      %282 = vadd.xlane.f32.xlu0 %v271
      %v283 = vpop.xlane.xlu0 %282
      %284 = vadd.xlane.f32.xlu0 %v272
      %v285 = vpop.xlane.xlu0 %284
      %286 = vadd.xlane.f32.xlu0 %v273
      %v287 = vpop.xlane.xlu0 %286
      %288 = vadd.xlane.f32.xlu0 %v274
      %v289 = vpop.xlane.xlu0 %288
      %290 = vadd.xlane.f32.xlu0 %v275
      %v291 = vpop.xlane.xlu0 %290
      %v292 = vmul.f32 %v277, %v251
      %v293 = vmul.f32 %v279, %v251
      %v294 = vmul.f32 %v281, %v251
      %v295 = vmul.f32 %v283, %v251
      %v296 = vmul.f32 %v285, %v251
      %v297 = vmul.f32 %v287, %v251
      %v298 = vmul.f32 %v289, %v251
      %v299 = vmul.f32 %v291, %v251
      %v300 = vadd.f32 %v292, 1e-05
      %v301 = vadd.f32 %v293, 1e-05
      %v302 = vadd.f32 %v294, 1e-05
      %v303 = vadd.f32 %v295, 1e-05
      %v304 = vadd.f32 %v296, 1e-05
      %v305 = vadd.f32 %v297, 1e-05
      %v306 = vadd.f32 %v298, 1e-05
      %v307 = vadd.f32 %v299, 1e-05
      %v308 = vrsqrt.pop %v300
      %v309 = vrsqrt.pop %v301
      %v310 = vrsqrt.pop %v302
      %v311 = vrsqrt.pop %v303
      %v312 = vrsqrt.pop %v304
      %v313 = vrsqrt.pop %v305
      %v314 = vrsqrt.pop %v306
      %v315 = vrsqrt.pop %v307
      %v316 = vmul.f32 %v260, %v308
      %v317 = vmul.f32 %v261, %v309
      %v318 = vmul.f32 %v262, %v310
      %v319 = vmul.f32 %v263, %v311
      %v320 = vmul.f32 %v264, %v312
      %v321 = vmul.f32 %v265, %v313
      %v322 = vmul.f32 %v266, %v314
      %v323 = vmul.f32 %v267, %v315
      %v325 = vlaneseq
      %v326 = vshrl.u32 %v325, 7
      %v327 = vsub.s32 0, %v326
      %v328 = vrot.slane %v233, %v327
      %v330 = vmul.f32 %v316, %v328
      %v331 = vmul.f32 %v317, %v328
      %v332 = vmul.f32 %v318, %v328
      %v333 = vmul.f32 %v319, %v328
      %v334 = vmul.f32 %v320, %v328
      %v335 = vmul.f32 %v321, %v328
      %v336 = vmul.f32 %v322, %v328
      %v337 = vmul.f32 %v323, %v328
      %v339 = vlaneseq
      %v340 = vshrl.u32 %v339, 7
      %v341 = vsub.s32 0, %v340
      %v342 = vrot.slane %v234, %v341
      %v344 = vadd.f32 %v330, %v342
      %v345 = vadd.f32 %v331, %v342
      %v346 = vadd.f32 %v332, %v342
      %v347 = vadd.f32 %v333, %v342
      %v348 = vadd.f32 %v334, %v342
      %v349 = vadd.f32 %v335, %v342
      %v350 = vadd.f32 %v336, %v342
      %v351 = vadd.f32 %v337, %v342
      %p352 = scmp.eq.s32.totalorder %s16, 0
      // Predicated region
      $region41: #{block_forward.12} parent=39 // pred_check
        %p353 = pneg %p352
      $region42: #{block_forward.12} parent=39 // pred_check_branch
        %355 = sbr.rel (%p353) target = $region44
      $region43: #{block_forward.12} parent=39 // pred_region
        %356 = vst [vmem:[#allocation2] sm:$0xff] 0.0
        %357 = vst [vmem:[#allocation2 + $0x8] sm:$0x3] 0.0
        %s358 = scalar_lea.vmem [#allocation2], 144
        %359 = vst [vmem:[%s358] sm:$0xff] 0.0
        %360 = vst [vmem:[%s358 + $0x8] sm:$0x3] 0.0
        %s361 = scalar_lea.vmem [#allocation2], 16
        %362 = vst [vmem:[%s361] sm:$0x1] 0.0
        %363 = vst [vmem:[%s361 + $0x10] sm:$0x1] 0.0
        %364 = vst [vmem:[%s361 + $0x20] sm:$0x1] 0.0
        %365 = vst [vmem:[%s361 + $0x30] sm:$0x1] 0.0
        %366 = vst [vmem:[%s361 + $0x40] sm:$0x1] 0.0
        %367 = vst [vmem:[%s361 + $0x50] sm:$0x1] 0.0
        %368 = vst [vmem:[%s361 + $0x60] sm:$0x1] 0.0
        %369 = vst [vmem:[%s361 + $0x70] sm:$0x1] 0.0
        %370 = vst [vmem:[%s361 + $0x9] sm:$0x1] 0.0
        %371 = vst [vmem:[%s361 + $0x19] sm:$0x1] 0.0
        %372 = vst [vmem:[%s361 + $0x29] sm:$0x1] 0.0
        %373 = vst [vmem:[%s361 + $0x39] sm:$0x1] 0.0
        %374 = vst [vmem:[%s361 + $0x49] sm:$0x1] 0.0
        %375 = vst [vmem:[%s361 + $0x59] sm:$0x1] 0.0
        %376 = vst [vmem:[%s361 + $0x69] sm:$0x1] 0.0
        %377 = vst [vmem:[%s361 + $0x79] sm:$0x1] 0.0
      $region44: #{block_forward.12} parent=39 // pred_fallthru
        _
      %s378 = scalar_lea.vmem [#allocation2], 16
      %379 = vst [vmem:[%s378 + $0x1] sm:$0xff] %v344
      %380 = vst [vmem:[%s378 + $0x11] sm:$0xff] %v345
      %381 = vst [vmem:[%s378 + $0x21] sm:$0xff] %v346
      %382 = vst [vmem:[%s378 + $0x31] sm:$0xff] %v347
      %383 = vst [vmem:[%s378 + $0x41] sm:$0xff] %v348
      %384 = vst [vmem:[%s378 + $0x51] sm:$0xff] %v349
      %385 = vst [vmem:[%s378 + $0x61] sm:$0xff] %v350
      %386 = vst [vmem:[%s378 + $0x71] sm:$0xff] %v351
      %v387 = vld [vmem:[#allocation2] sm:$0xff]
      %v388 = vld [vmem:[#allocation2 + $0x8] sm:$0x3]
      %v389 = vld [vmem:[#allocation2 + $0x10] sm:$0xff]
      %v390 = vld [vmem:[#allocation2 + $0x18] sm:$0x3]
      %v391 = vld [vmem:[#allocation2 + $0x20] sm:$0xff]
      %v392 = vld [vmem:[#allocation2 + $0x28] sm:$0x3]
      %v393 = vld [vmem:[#allocation2 + $0x30] sm:$0xff]
      %v394 = vld [vmem:[#allocation2 + $0x38] sm:$0x3]
      %v395 = vld [vmem:[#allocation2 + $0x40] sm:$0xff]
      %v396 = vld [vmem:[#allocation2 + $0x48] sm:$0x3]
      %v397 = vld [vmem:[#allocation2 + $0x50] sm:$0xff]
      %v398 = vld [vmem:[#allocation2 + $0x58] sm:$0x3]
      %v399 = vld [vmem:[#allocation2 + $0x60] sm:$0xff]
      %v400 = vld [vmem:[#allocation2 + $0x68] sm:$0x3]
      %v401 = vld [vmem:[#allocation2 + $0x70] sm:$0xff]
      %v402 = vld [vmem:[#allocation2 + $0x78] sm:$0x3]
      %v403 = vld [vmem:[#allocation2 + $0x80] sm:$0xff]
      %v404 = vld [vmem:[#allocation2 + $0x88] sm:$0x3]
      %v405 = vld [vmem:[#allocation2 + $0x90] sm:$0xff]
      %v406 = vld [vmem:[#allocation2 + $0x98] sm:$0x3]
      %v407 = vld [vmem:[%s3] sm:$0x7]
      %v408 = vld [vmem:[%s3 + $0x4] sm:$0x7]
      %v409 = vld [vmem:[%s3 + $0x8] sm:$0x7]
      %v410 = vlaneseq
      %v411 = vshrl.u32 %v410, 7
      %v412 = vsub.s32 0, %v411
      %v413 = vrot.slane %v407, %v412
      %v414 = vmul.f32 %v387, %v413
      %v415 = vmul.f32 %v389, %v413
      %v416 = vmul.f32 %v391, %v413
      %v417 = vmul.f32 %v393, %v413
      %v418 = vmul.f32 %v395, %v413
      %v419 = vmul.f32 %v397, %v413
      %v420 = vmul.f32 %v399, %v413
      %v421 = vmul.f32 %v401, %v413
      %v422 = vadd.f32 %v414, 0.0
      %v423 = vadd.f32 %v415, 0.0
      %v424 = vadd.f32 %v416, 0.0
      %v425 = vadd.f32 %v417, 0.0
      %v426 = vadd.f32 %v418, 0.0
      %v427 = vadd.f32 %v419, 0.0
      %v428 = vadd.f32 %v420, 0.0
      %v429 = vadd.f32 %v421, 0.0
      %v430 = vlaneseq
      %v431 = vshrl.u32 %v430, 7
      %v432 = vsub.s32 1, %v431
      %v433 = vrot.slane %v407, %v432
      %v434 = vmul.f32 %v387, %v433
      %v435 = vmul.f32 %v388, %v433
      %v436 = vmul.f32 %v389, %v433
      %v437 = vmul.f32 %v390, %v433
      %v438 = vmul.f32 %v391, %v433
      %v439 = vmul.f32 %v392, %v433
      %v440 = vmul.f32 %v393, %v433
      %v441 = vmul.f32 %v394, %v433
      %v442 = vmul.f32 %v395, %v433
      %v443 = vmul.f32 %v396, %v433
      %v444 = vmul.f32 %v397, %v433
      %v445 = vmul.f32 %v398, %v433
      %v446 = vmul.f32 %v399, %v433
      %v447 = vmul.f32 %v400, %v433
      %v448 = vmul.f32 %v401, %v433
      %v449 = vmul.f32 %v402, %v433
      %vm466 = vcmask 1046528
      %v467 = vrot.slane %v434, 1
      %v468 = vrot.slane %v435, 1
      %v469 = vsel %vm466, %v467, %v468
      %v470 = vrot.slane %v436, 1
      %v471 = vrot.slane %v437, 1
      %v472 = vsel %vm466, %v470, %v471
      %v473 = vrot.slane %v438, 1
      %v474 = vrot.slane %v439, 1
      %v475 = vsel %vm466, %v473, %v474
      %v476 = vrot.slane %v440, 1
      %v477 = vrot.slane %v441, 1
      %v478 = vsel %vm466, %v476, %v477
      %v479 = vrot.slane %v442, 1
      %v480 = vrot.slane %v443, 1
      %v481 = vsel %vm466, %v479, %v480
      %v482 = vrot.slane %v444, 1
      %v483 = vrot.slane %v445, 1
      %v484 = vsel %vm466, %v482, %v483
      %v485 = vrot.slane %v446, 1
      %v486 = vrot.slane %v447, 1
      %v487 = vsel %vm466, %v485, %v486
      %v488 = vrot.slane %v448, 1
      %v489 = vrot.slane %v449, 1
      %v490 = vsel %vm466, %v488, %v489
      %v499 = vadd.f32 %v422, %v469
      %v500 = vadd.f32 %v423, %v472
      %v501 = vadd.f32 %v424, %v475
      %v502 = vadd.f32 %v425, %v478
      %v503 = vadd.f32 %v426, %v481
      %v504 = vadd.f32 %v427, %v484
      %v505 = vadd.f32 %v428, %v487
      %v506 = vadd.f32 %v429, %v490
      %v507 = vlaneseq
      %v508 = vshrl.u32 %v507, 7
      %v509 = vsub.s32 2, %v508
      %v510 = vrot.slane %v407, %v509
      %v511 = vmul.f32 %v387, %v510
      %v512 = vmul.f32 %v388, %v510
      %v513 = vmul.f32 %v389, %v510
      %v514 = vmul.f32 %v390, %v510
      %v515 = vmul.f32 %v391, %v510
      %v516 = vmul.f32 %v392, %v510
      %v517 = vmul.f32 %v393, %v510
      %v518 = vmul.f32 %v394, %v510
      %v519 = vmul.f32 %v395, %v510
      %v520 = vmul.f32 %v396, %v510
      %v521 = vmul.f32 %v397, %v510
      %v522 = vmul.f32 %v398, %v510
      %v523 = vmul.f32 %v399, %v510
      %v524 = vmul.f32 %v400, %v510
      %v525 = vmul.f32 %v401, %v510
      %v526 = vmul.f32 %v402, %v510
      %vm543 = vcmask 1045504
      %v544 = vrot.slane %v511, 2
      %v545 = vrot.slane %v512, 2
      %v546 = vsel %vm543, %v544, %v545
      %v547 = vrot.slane %v513, 2
      %v548 = vrot.slane %v514, 2
      %v549 = vsel %vm543, %v547, %v548
      %v550 = vrot.slane %v515, 2
      %v551 = vrot.slane %v516, 2
      %v552 = vsel %vm543, %v550, %v551
      %v553 = vrot.slane %v517, 2
      %v554 = vrot.slane %v518, 2
      %v555 = vsel %vm543, %v553, %v554
      %v556 = vrot.slane %v519, 2
      %v557 = vrot.slane %v520, 2
      %v558 = vsel %vm543, %v556, %v557
      %v559 = vrot.slane %v521, 2
      %v560 = vrot.slane %v522, 2
      %v561 = vsel %vm543, %v559, %v560
      %v562 = vrot.slane %v523, 2
      %v563 = vrot.slane %v524, 2
      %v564 = vsel %vm543, %v562, %v563
      %v565 = vrot.slane %v525, 2
      %v566 = vrot.slane %v526, 2
      %v567 = vsel %vm543, %v565, %v566
      %v576 = vadd.f32 %v499, %v546
      %v577 = vadd.f32 %v500, %v549
      %v578 = vadd.f32 %v501, %v552
      %v579 = vadd.f32 %v502, %v555
      %v580 = vadd.f32 %v503, %v558
      %v581 = vadd.f32 %v504, %v561
      %v582 = vadd.f32 %v505, %v564
      %v583 = vadd.f32 %v506, %v567
      %v584 = vlaneseq
      %v585 = vshrl.u32 %v584, 7
      %v586 = vsub.s32 0, %v585
      %v587 = vrot.slane %v408, %v586
      %v588 = vmul.f32 %v389, %v587
      %v589 = vmul.f32 %v391, %v587
      %v590 = vmul.f32 %v393, %v587
      %v591 = vmul.f32 %v395, %v587
      %v592 = vmul.f32 %v397, %v587
      %v593 = vmul.f32 %v399, %v587
      %v594 = vmul.f32 %v401, %v587
      %v595 = vmul.f32 %v403, %v587
      %v596 = vadd.f32 %v576, %v588
      %v597 = vadd.f32 %v577, %v589
      %v598 = vadd.f32 %v578, %v590
      %v599 = vadd.f32 %v579, %v591
      %v600 = vadd.f32 %v580, %v592
      %v601 = vadd.f32 %v581, %v593
      %v602 = vadd.f32 %v582, %v594
      %v603 = vadd.f32 %v583, %v595
      %v604 = vlaneseq
      %v605 = vshrl.u32 %v604, 7
      %v606 = vsub.s32 1, %v605
      %v607 = vrot.slane %v408, %v606
      %v608 = vmul.f32 %v389, %v607
      %v609 = vmul.f32 %v390, %v607
      %v610 = vmul.f32 %v391, %v607
      %v611 = vmul.f32 %v392, %v607
      %v612 = vmul.f32 %v393, %v607
      %v613 = vmul.f32 %v394, %v607
      %v614 = vmul.f32 %v395, %v607
      %v615 = vmul.f32 %v396, %v607
      %v616 = vmul.f32 %v397, %v607
      %v617 = vmul.f32 %v398, %v607
      %v618 = vmul.f32 %v399, %v607
      %v619 = vmul.f32 %v400, %v607
      %v620 = vmul.f32 %v401, %v607
      %v621 = vmul.f32 %v402, %v607
      %v622 = vmul.f32 %v403, %v607
      %v623 = vmul.f32 %v404, %v607
      %v640 = vrot.slane %v608, 1
      %v641 = vrot.slane %v609, 1
      %v642 = vsel %vm466, %v640, %v641
      %v643 = vrot.slane %v610, 1
      %v644 = vrot.slane %v611, 1
      %v645 = vsel %vm466, %v643, %v644
      %v646 = vrot.slane %v612, 1
      %v647 = vrot.slane %v613, 1
      %v648 = vsel %vm466, %v646, %v647
      %v649 = vrot.slane %v614, 1
      %v650 = vrot.slane %v615, 1
      %v651 = vsel %vm466, %v649, %v650
      %v652 = vrot.slane %v616, 1
      %v653 = vrot.slane %v617, 1
      %v654 = vsel %vm466, %v652, %v653
      %v655 = vrot.slane %v618, 1
      %v656 = vrot.slane %v619, 1
      %v657 = vsel %vm466, %v655, %v656
      %v658 = vrot.slane %v620, 1
      %v659 = vrot.slane %v621, 1
      %v660 = vsel %vm466, %v658, %v659
      %v661 = vrot.slane %v622, 1
      %v662 = vrot.slane %v623, 1
      %v663 = vsel %vm466, %v661, %v662
      %v672 = vadd.f32 %v596, %v642
      %v673 = vadd.f32 %v597, %v645
      %v674 = vadd.f32 %v598, %v648
      %v675 = vadd.f32 %v599, %v651
      %v676 = vadd.f32 %v600, %v654
      %v677 = vadd.f32 %v601, %v657
      %v678 = vadd.f32 %v602, %v660
      %v679 = vadd.f32 %v603, %v663
      %v680 = vlaneseq
      %v681 = vshrl.u32 %v680, 7
      %v682 = vsub.s32 2, %v681
      %v683 = vrot.slane %v408, %v682
      %v684 = vmul.f32 %v389, %v683
      %v685 = vmul.f32 %v390, %v683
      %v686 = vmul.f32 %v391, %v683
      %v687 = vmul.f32 %v392, %v683
      %v688 = vmul.f32 %v393, %v683
      %v689 = vmul.f32 %v394, %v683
      %v690 = vmul.f32 %v395, %v683
      %v691 = vmul.f32 %v396, %v683
      %v692 = vmul.f32 %v397, %v683
      %v693 = vmul.f32 %v398, %v683
      %v694 = vmul.f32 %v399, %v683
      %v695 = vmul.f32 %v400, %v683
      %v696 = vmul.f32 %v401, %v683
      %v697 = vmul.f32 %v402, %v683
      %v698 = vmul.f32 %v403, %v683
      %v699 = vmul.f32 %v404, %v683
      %v716 = vrot.slane %v684, 2
      %v717 = vrot.slane %v685, 2
      %v718 = vsel %vm543, %v716, %v717
      %v719 = vrot.slane %v686, 2
      %v720 = vrot.slane %v687, 2
      %v721 = vsel %vm543, %v719, %v720
      %v722 = vrot.slane %v688, 2
      %v723 = vrot.slane %v689, 2
      %v724 = vsel %vm543, %v722, %v723
      %v725 = vrot.slane %v690, 2
      %v726 = vrot.slane %v691, 2
      %v727 = vsel %vm543, %v725, %v726
      %v728 = vrot.slane %v692, 2
      %v729 = vrot.slane %v693, 2
      %v730 = vsel %vm543, %v728, %v729
      %v731 = vrot.slane %v694, 2
      %v732 = vrot.slane %v695, 2
      %v733 = vsel %vm543, %v731, %v732
      %v734 = vrot.slane %v696, 2
      %v735 = vrot.slane %v697, 2
      %v736 = vsel %vm543, %v734, %v735
      %v737 = vrot.slane %v698, 2
      %v738 = vrot.slane %v699, 2
      %v739 = vsel %vm543, %v737, %v738
      %v748 = vadd.f32 %v672, %v718
      %v749 = vadd.f32 %v673, %v721
      %v750 = vadd.f32 %v674, %v724
      %v751 = vadd.f32 %v675, %v727
      %v752 = vadd.f32 %v676, %v730
      %v753 = vadd.f32 %v677, %v733
      %v754 = vadd.f32 %v678, %v736
      %v755 = vadd.f32 %v679, %v739
      %v756 = vlaneseq
      %v757 = vshrl.u32 %v756, 7
      %v758 = vsub.s32 0, %v757
      %v759 = vrot.slane %v409, %v758
      %v760 = vmul.f32 %v391, %v759
      %v761 = vmul.f32 %v393, %v759
      %v762 = vmul.f32 %v395, %v759
      %v763 = vmul.f32 %v397, %v759
      %v764 = vmul.f32 %v399, %v759
      %v765 = vmul.f32 %v401, %v759
      %v766 = vmul.f32 %v403, %v759
      %v767 = vmul.f32 %v405, %v759
      %v768 = vadd.f32 %v748, %v760
      %v769 = vadd.f32 %v749, %v761
      %v770 = vadd.f32 %v750, %v762
      %v771 = vadd.f32 %v751, %v763
      %v772 = vadd.f32 %v752, %v764
      %v773 = vadd.f32 %v753, %v765
      %v774 = vadd.f32 %v754, %v766
      %v775 = vadd.f32 %v755, %v767
      %v776 = vlaneseq
      %v777 = vshrl.u32 %v776, 7
      %v778 = vsub.s32 1, %v777
      %v779 = vrot.slane %v409, %v778
      %v780 = vmul.f32 %v391, %v779
      %v781 = vmul.f32 %v392, %v779
      %v782 = vmul.f32 %v393, %v779
      %v783 = vmul.f32 %v394, %v779
      %v784 = vmul.f32 %v395, %v779
      %v785 = vmul.f32 %v396, %v779
      %v786 = vmul.f32 %v397, %v779
      %v787 = vmul.f32 %v398, %v779
      %v788 = vmul.f32 %v399, %v779
      %v789 = vmul.f32 %v400, %v779
      %v790 = vmul.f32 %v401, %v779
      %v791 = vmul.f32 %v402, %v779
      %v792 = vmul.f32 %v403, %v779
      %v793 = vmul.f32 %v404, %v779
      %v794 = vmul.f32 %v405, %v779
      %v795 = vmul.f32 %v406, %v779
      %v812 = vrot.slane %v780, 1
      %v813 = vrot.slane %v781, 1
      %v814 = vsel %vm466, %v812, %v813
      %v815 = vrot.slane %v782, 1
      %v816 = vrot.slane %v783, 1
      %v817 = vsel %vm466, %v815, %v816
      %v818 = vrot.slane %v784, 1
      %v819 = vrot.slane %v785, 1
      %v820 = vsel %vm466, %v818, %v819
      %v821 = vrot.slane %v786, 1
      %v822 = vrot.slane %v787, 1
      %v823 = vsel %vm466, %v821, %v822
      %v824 = vrot.slane %v788, 1
      %v825 = vrot.slane %v789, 1
      %v826 = vsel %vm466, %v824, %v825
      %v827 = vrot.slane %v790, 1
      %v828 = vrot.slane %v791, 1
      %v829 = vsel %vm466, %v827, %v828
      %v830 = vrot.slane %v792, 1
      %v831 = vrot.slane %v793, 1
      %v832 = vsel %vm466, %v830, %v831
      %v833 = vrot.slane %v794, 1
      %v834 = vrot.slane %v795, 1
      %v835 = vsel %vm466, %v833, %v834
      %v844 = vadd.f32 %v768, %v814
      %v845 = vadd.f32 %v769, %v817
      %v846 = vadd.f32 %v770, %v820
      %v847 = vadd.f32 %v771, %v823
      %v848 = vadd.f32 %v772, %v826
      %v849 = vadd.f32 %v773, %v829
      %v850 = vadd.f32 %v774, %v832
      %v851 = vadd.f32 %v775, %v835
      %v852 = vlaneseq
      %v853 = vshrl.u32 %v852, 7
      %v854 = vsub.s32 2, %v853
      %v855 = vrot.slane %v409, %v854
      %v856 = vmul.f32 %v391, %v855
      %v857 = vmul.f32 %v392, %v855
      %v858 = vmul.f32 %v393, %v855
      %v859 = vmul.f32 %v394, %v855
      %v860 = vmul.f32 %v395, %v855
      %v861 = vmul.f32 %v396, %v855
      %v862 = vmul.f32 %v397, %v855
      %v863 = vmul.f32 %v398, %v855
      %v864 = vmul.f32 %v399, %v855
      %v865 = vmul.f32 %v400, %v855
      %v866 = vmul.f32 %v401, %v855
      %v867 = vmul.f32 %v402, %v855
      %v868 = vmul.f32 %v403, %v855
      %v869 = vmul.f32 %v404, %v855
      %v870 = vmul.f32 %v405, %v855
      %v871 = vmul.f32 %v406, %v855
      %v888 = vrot.slane %v856, 2
      %v889 = vrot.slane %v857, 2
      %v890 = vsel %vm543, %v888, %v889
      %v891 = vrot.slane %v858, 2
      %v892 = vrot.slane %v859, 2
      %v893 = vsel %vm543, %v891, %v892
      %v894 = vrot.slane %v860, 2
      %v895 = vrot.slane %v861, 2
      %v896 = vsel %vm543, %v894, %v895
      %v897 = vrot.slane %v862, 2
      %v898 = vrot.slane %v863, 2
      %v899 = vsel %vm543, %v897, %v898
      %v900 = vrot.slane %v864, 2
      %v901 = vrot.slane %v865, 2
      %v902 = vsel %vm543, %v900, %v901
      %v903 = vrot.slane %v866, 2
      %v904 = vrot.slane %v867, 2
      %v905 = vsel %vm543, %v903, %v904
      %v906 = vrot.slane %v868, 2
      %v907 = vrot.slane %v869, 2
      %v908 = vsel %vm543, %v906, %v907
      %v909 = vrot.slane %v870, 2
      %v910 = vrot.slane %v871, 2
      %v911 = vsel %vm543, %v909, %v910
      %v920 = vadd.f32 %v844, %v890
      %v921 = vadd.f32 %v845, %v893
      %v922 = vadd.f32 %v846, %v896
      %v923 = vadd.f32 %v847, %v899
      %v924 = vadd.f32 %v848, %v902
      %v925 = vadd.f32 %v849, %v905
      %v926 = vadd.f32 %v850, %v908
      %v927 = vadd.f32 %v851, %v911
      %v928 = vld [vmem:[%s4] sm:$0x1]
      %v930 = vlaneseq
      %v931 = vshrl.u32 %v930, 7
      %v932 = vsub.s32 0, %v931
      %v933 = vrot.slane %v928, %v932
      %v935 = vadd.f32 %v920, %v933
      %v936 = vadd.f32 %v921, %v933
      %v937 = vadd.f32 %v922, %v933
      %v938 = vadd.f32 %v923, %v933
      %v939 = vadd.f32 %v924, %v933
      %v940 = vadd.f32 %v925, %v933
      %v941 = vadd.f32 %v926, %v933
      %v942 = vadd.f32 %v927, %v933
      %v943 = vpack.c.bf16 %v935, %v935
      %v944 = vpack.c.bf16 %v936, %v936
      %v945 = vpack.c.bf16 %v937, %v937
      %v946 = vpack.c.bf16 %v938, %v938
      %v947 = vpack.c.bf16 %v939, %v939
      %v948 = vpack.c.bf16 %v940, %v940
      %v949 = vpack.c.bf16 %v941, %v941
      %v950 = vpack.c.bf16 %v942, %v942
      %951 = vst [vmem:[%s224] sm:$0xf] %v943
      %952 = vst [vmem:[%s224 + $0x4] sm:$0xf] %v944
      %953 = vst [vmem:[%s224 + $0x8] sm:$0xf] %v945
      %954 = vst [vmem:[%s224 + $0xc] sm:$0xf] %v946
      %955 = vst [vmem:[%s224 + $0x10] sm:$0xf] %v947
      %956 = vst [vmem:[%s224 + $0x14] sm:$0xf] %v948
      %957 = vst [vmem:[%s224 + $0x18] sm:$0xf] %v949
      %958 = vst [vmem:[%s224 + $0x1c] sm:$0xf] %v950
      %p959 = scmp.lt.s32.totalorder %s16, 1
      %s960 = scalar_select %p959, %s16, 1
      %s961 = smul.addr %s960, 8
      %s962 = smul.addr %s961, 4
      %s963 = scalar_lea.vmem %s5, %s962
      // Predicated region
      $region45: #{block_forward.12} parent=39 // pred_check
        %p964 = pneg %p144
      $region46: #{block_forward.12} parent=39 // pred_check_branch
        %966 = sbr.rel (%p964) target = $region48
      $region47: #{block_forward.12} parent=39 // pred_region
        _
      $region48: #{block_forward.12} parent=39 // pred_fallthru
        _
    $region40: #{block_forward.12} parent=5 // pred_fallthru
      _
    %p967 = scmp.le.s32.totalorder 2, %s11
    // Predicated region
    $region49: #{block_forward.12} parent=5 // pred_check
      %p968 = pneg %p967
    $region50: #{block_forward.12} parent=5 // pred_check_branch
      %970 = sbr.rel (%p968) target = $region52
    $region51: #{block_forward.12} parent=5 // pred_region
      %s971 = ssub.s32 %s11, 2
      // Predicated region
      $region53: #{block_forward.12} parent=51 // pred_check
        %p972 = pneg %p150
      $region54: #{block_forward.12} parent=51 // pred_check_branch
        %974 = sbr.rel (%p972) target = $region56
      $region55: #{block_forward.12} parent=51 // pred_region
        %p975 = scmp.lt.s32.totalorder %s17, 1
        %s976 = scalar_select %p975, %s17, 1
        %s977 = smul.addr %s976, 8
        %s978 = smul.addr %s977, 4
        %s979 = scalar_lea.vmem %s5, %s978
      $region56: #{block_forward.12} parent=51 // pred_fallthru
        _
    $region52: #{block_forward.12} parent=5 // pred_fallthru
      _
  $region6: #{block_forward.12} parent=0 // loop_footer
    %s15 = sadd.s32 1, %s11
  $region7: #{block_forward.12} parent=0 // loop_footer_branch
    %10 = sbr.rel target = $region3
  $region8: #{block_forward.12} parent=0 // loop_exit
    _

</llo_original>
